<compile_context>
chip_gen: v5e
topology: v5e:2x2
jax: 0.10.0
libtpu: 0.0.40
codegen_flags: <defaults>
</compile_context>

<pallas_src>
import functools

import jax
import jax.numpy as jnp
from jax.experimental import pallas as pl
from jax.experimental.pallas import tpu as pltpu


# ----------------------------------------------------------------------------
# Fused kernel
# ----------------------------------------------------------------------------
def _c3modul_kernel(x_ref, hidx_ref, widx_ref, c1w_ref, wv_ref, wh_ref, wd_ref,
                    s1_ref, b1_ref, a1_ref, s2_ref, b2_ref,
                    wpw_ref, sf_ref, bf_ref, af_ref, o_ref,
                    *, H, W, deltas_v, deltas_h, deltas_d, add):
    """Whole C3modul_0 forward on a channel-major (C, B*H*W) VMEM slab."""
    L = x_ref.shape[1]
    x = x_ref[...]                      # (C, L) f32, original input channels
    h_idx = hidx_ref[...]               # (C, L) int32 spatial row of each lane
    w_idx = widx_ref[...]               # (C, L) int32 spatial col of each lane

    def depthwise(z, w_ref, taps):
        """acc[c, p] = sum_t w[c, t] * z[c, p + dh*W + dw] with zero padding.

        Each tap (dh, dw) is one XLU lane rotation of the whole slab; the mask
        keeps only lanes whose source pixel stays inside the same image, so
        batch boundaries and the conv zero-padding fall out automatically.
        Tap weights are zero where a branch's kernel has no tap at that offset.
        """
        wmat = w_ref[...]               # (C, T) loaded once, sliced per tap
        acc = jnp.zeros_like(z)
        for t, (dh, dw) in enumerate(taps):
            shift = (-(dh * W + dw)) % L
            v = pltpu.roll(z, shift=shift, axis=1) if shift else z
            conds = []
            if dh > 0:
                conds.append(h_idx < H - dh)
            elif dh < 0:
                conds.append(h_idx >= -dh)
            if dw > 0:
                conds.append(w_idx < W - dw)
            elif dw < 0:
                conds.append(w_idx >= -dw)
            if conds:
                m = conds[0]
                for c in conds[1:]:
                    m = m & c
                v = jnp.where(m, v, 0.0)
            acc = acc + v * wmat[:, t:t + 1]
        return acc

    # input 1x1 conv, rows replicated once per branch  -> (C, L)
    y = jnp.dot(c1w_ref[...], x, preferred_element_type=jnp.float32)

    # (K, 1) depthwise conv + BN1 + PReLU
    y = depthwise(y, wv_ref, deltas_v)
    y = y * s1_ref[...] + b1_ref[...]
    y = jnp.where(y >= 0.0, y, a1_ref[...] * y)

    # (1, K) depthwise conv + BN2
    y = depthwise(y, wh_ref, deltas_h)
    y = y * s2_ref[...] + b2_ref[...]

    # dilated 3x3 depthwise conv
    y = depthwise(y, wd_ref, deltas_d)

    # four per-branch 1x1 convs fused as one block-diagonal MXU matmul
    y = jnp.dot(wpw_ref[...], y, preferred_element_type=jnp.float32)

    if add:
        y = y + x

    # final BN + PReLU
    y = y * sf_ref[...] + bf_ref[...]
    y = jnp.where(y >= 0.0, y, af_ref[...] * y)
    o_ref[...] = y.astype(o_ref.dtype)


# ----------------------------------------------------------------------------
# Wrapper: parameter folding / tap-union expansion / pallas_call plumbing
# ----------------------------------------------------------------------------
def _fold_bn(p):
    scale = p['gamma'] / jnp.sqrt(p['var'] + p['eps'])
    return scale, p['beta'] - p['mean'] * scale


def c3modul_forward(x, params, shifts, add=True):
    B, C, H, W = x.shape
    nb = len(shifts)
    n = C // nb
    assert C == n * nb
    L = B * H * W
    dmax = max(shifts)
    f32 = jnp.float32

    # lane-dense channel-major slab (layout plumbing outside the kernel)
    x_cm = jnp.transpose(x, (1, 0, 2, 3)).reshape(C, L).astype(f32)

    # ---- static tap-offset unions shared by all branches --------------------
    deltas_v = tuple((dv, 0) for dv in range(-(dmax - 1), dmax))
    deltas_h = tuple((0, dw) for dw in range(-(dmax - 1), dmax))
    deltas_d = []
    for d in shifts:
        for i in (-1, 0, 1):
            for j in (-1, 0, 1):
                dd = (i * d, j * d)
                # drop taps that can never hit a valid pixel for this H, W
                if abs(dd[0]) < H and abs(dd[1]) < W and dd not in deltas_d:
                    deltas_d.append(dd)
    deltas_d = tuple(deltas_d)

    # ---- expand per-branch depthwise weights onto the union tap grid --------
    wv = jnp.concatenate(
        [jnp.pad(blk['w_v'], ((0, 0), (dmax - d, dmax - d)))
         for blk, d in zip(params['blocks'], shifts)], axis=0)      # (C, 2*dmax-1)
    wh = jnp.concatenate(
        [jnp.pad(blk['w_h'], ((0, 0), (dmax - d, dmax - d)))
         for blk, d in zip(params['blocks'], shifts)], axis=0)      # (C, 2*dmax-1)

    wd_rows = []
    for blk, d in zip(params['blocks'], shifts):
        cols = []
        for (dh, dw) in deltas_d:
            if dh in (-d, 0, d) and dw in (-d, 0, d):
                cols.append(blk['w_d'][:, (dh // d + 1) * 3 + (dw // d + 1)])
            else:
                cols.append(jnp.zeros((n,), f32))
        wd_rows.append(jnp.stack(cols, axis=1))
    wd = jnp.concatenate(wd_rows, axis=0)                           # (C, len(deltas_d))

    # ---- folded BatchNorm / per-channel affine params -----------------------
    s1 = jnp.concatenate([_fold_bn(blk['bn1'])[0] for blk in params['blocks']])
    b1 = jnp.concatenate([_fold_bn(blk['bn1'])[1] for blk in params['blocks']])
    s2 = jnp.concatenate([_fold_bn(blk['bn2'])[0] for blk in params['blocks']])
    b2 = jnp.concatenate([_fold_bn(blk['bn2'])[1] for blk in params['blocks']])
    a1 = jnp.concatenate([blk['prelu'] for blk in params['blocks']])
    sf, bf = _fold_bn(params['bn'])
    af = params['prelu']
    col = lambda v: v.reshape(C, 1).astype(f32)

    # ---- batched / fused 1x1 conv weights -----------------------------------
    c1w_rep = jnp.concatenate([params['c1_w']] * nb, axis=0)        # (C, C)
    wpw_bd = jnp.zeros((C, C), f32)                                 # block diagonal
    for bidx, blk in enumerate(params['blocks']):
        wpw_bd = wpw_bd.at[bidx * n:(bidx + 1) * n,
                           bidx * n:(bidx + 1) * n].set(blk['w_pw'])

    # ---- per-lane spatial coordinates (for the edge masks) ------------------
    pos = jnp.arange(L, dtype=jnp.int32)
    h_idx = jnp.broadcast_to((pos // W) % H, (C, L))
    w_idx = jnp.broadcast_to(pos % W, (C, L))

    kernel = functools.partial(
        _c3modul_kernel, H=H, W=W, deltas_v=deltas_v, deltas_h=deltas_h,
        deltas_d=deltas_d, add=bool(add))

    vmem = pl.BlockSpec(memory_space=pltpu.MemorySpace.VMEM)
    out_cm = pl.pallas_call(
        kernel,
        out_shape=jax.ShapeDtypeStruct((C, L), f32),
        in_specs=[vmem] * 16,
        out_specs=vmem,
    )(x_cm, h_idx, w_idx, c1w_rep, wv, wh, wd,
      col(s1), col(b1), col(a1), col(s2), col(b2),
      wpw_bd, col(sf), col(bf), col(af))

    return jnp.transpose(out_cm.reshape(C, B, H, W), (1, 0, 2, 3)).astype(x.dtype)


# ----------------------------------------------------------------------------
# Pure-JAX reference (eval-mode BN), used only for a correctness assert
# ----------------------------------------------------------------------------
def _ref_forward(x, params, shifts, add=True):
    prec = jax.lax.Precision.HIGHEST
    dn = ('NCHW', 'OIHW', 'NCHW')
    n = x.shape[1] // len(shifts)

    def conv1x1(inp, w):
        return jax.lax.conv_general_dilated(inp, w[:, :, None, None], (1, 1),
                                            'VALID', dimension_numbers=dn,
                                            precision=prec)

    def dwconv(inp, w, pad, dil):
        c = inp.shape[1]
        return jax.lax.conv_general_dilated(inp, w[:, None, :, :], (1, 1), pad,
                                            rhs_dilation=dil,
                                            dimension_numbers=dn,
                                            feature_group_count=c,
                                            precision=prec)

    def bn(inp, p):
        s = p['gamma'] / jnp.sqrt(p['var'] + p['eps'])
        b = p['beta'] - p['mean'] * s
        return inp * s[None, :, None, None] + b[None, :, None, None]

    def prelu(inp, a):
        return jnp.where(inp >= 0, inp, a[None, :, None, None] * inp)

    out1 = conv1x1(x, params['c1_w'])
    branches = []
    for blk, d in zip(params['blocks'], shifts):
        K = 2 * d - 1
        y = dwconv(out1, blk['w_v'].reshape(n, K, 1), ((d - 1, d - 1), (0, 0)), (1, 1))
        y = prelu(bn(y, blk['bn1']), blk['prelu'])
        y = dwconv(y, blk['w_h'].reshape(n, 1, K), ((0, 0), (d - 1, d - 1)), (1, 1))
        y = bn(y, blk['bn2'])
        y = dwconv(y, blk['w_d'].reshape(n, 3, 3), ((d, d), (d, d)), (d, d))
        y = conv1x1(y, blk['w_pw'])
        branches.append(y)
    combine = jnp.concatenate(branches, axis=1)
    if add:
        combine = x + combine
    return prelu(bn(combine, params['bn']), params['prelu'])


# ----------------------------------------------------------------------------
# Deterministic parameter init (synthetic; shapes follow the PyTorch __init__)
# ----------------------------------------------------------------------------
def _bn_init(keys, c):
    return dict(
        gamma=1.0 + 0.1 * jax.random.normal(keys[0], (c,), jnp.float32),
        beta=0.1 * jax.random.normal(keys[1], (c,), jnp.float32),
        mean=0.1 * jax.random.normal(keys[2], (c,), jnp.float32),
        var=0.5 + jax.random.uniform(keys[3], (c,), jnp.float32),
        eps=1e-5,
    )


def init_params(key, channels, shifts):
    n = channels // 4
    keys = jax.random.split(key, 2 + len(shifts))
    params = {'c1_w': 0.1 * jax.random.normal(keys[0], (n, channels), jnp.float32),
              'blocks': []}
    for i, d in enumerate(shifts):
        K = 2 * d - 1
        bk = jax.random.split(keys[1 + i], 12)
        params['blocks'].append({
            'w_v': (1.0 / K) * jax.random.normal(bk[0], (n, K), jnp.float32),
            'w_h': (1.0 / K) * jax.random.normal(bk[1], (n, K), jnp.float32),
            'w_d': (1.0 / 3.0) * jax.random.normal(bk[2], (n, 9), jnp.float32),
            'w_pw': (n ** -0.5) * jax.random.normal(bk[3], (n, n), jnp.float32),
            'bn1': _bn_init(bk[4:8], n),
            'bn2': _bn_init(bk[8:12], n),
            'prelu': 0.25 * jnp.ones((n,), jnp.float32),  # PyTorch default
        })
    fk = jax.random.split(keys[-1], 4)
    params['bn'] = _bn_init(fk, channels)
    params['prelu'] = 0.25 * jnp.ones((channels,), jnp.float32)
    return params


# ----------------------------------------------------------------------------
if __name__ == "__main__":
    channels, B, H, W = 16, 2, 16, 16
    shifts = (2, 4, 8, 16)

    key = jax.random.PRNGKey(0)
    pkey, xkey = jax.random.split(key)
    params = init_params(pkey, channels, shifts)
    x = jax.random.normal(xkey, (B, channels, H, W), jnp.float32)

    fwd = jax.jit(functools.partial(c3modul_forward, shifts=shifts, add=True))
    out = jax.block_until_ready(fwd(x, params))

    assert out.shape == (B, channels, H, W), out.shape
    assert bool(jnp.all(jnp.isfinite(out)))

    ref = _ref_forward(x, params, shifts, add=True)
    assert bool(jnp.allclose(out, ref, rtol=1e-2, atol=1e-2)), \
        float(jnp.max(jnp.abs(out - ref)))
    print("KERNEL_OK")
</pallas_src>

<mosaic_0001>
module attributes {stable_mosaic.version = 11 : i64} {
  func.func @_c3modul_kernel(%arg0: memref<16x512xf32, #tpu.memory_space<vmem>>, %arg1: memref<16x512xi32, #tpu.memory_space<vmem>>, %arg2: memref<16x512xi32, #tpu.memory_space<vmem>>, %arg3: memref<16x16xf32, #tpu.memory_space<vmem>>, %arg4: memref<16x31xf32, #tpu.memory_space<vmem>>, %arg5: memref<16x31xf32, #tpu.memory_space<vmem>>, %arg6: memref<16x25xf32, #tpu.memory_space<vmem>>, %arg7: memref<16x1xf32, #tpu.memory_space<vmem>>, %arg8: memref<16x1xf32, #tpu.memory_space<vmem>>, %arg9: memref<16x1xf32, #tpu.memory_space<vmem>>, %arg10: memref<16x1xf32, #tpu.memory_space<vmem>>, %arg11: memref<16x1xf32, #tpu.memory_space<vmem>>, %arg12: memref<16x16xf32, #tpu.memory_space<vmem>>, %arg13: memref<16x1xf32, #tpu.memory_space<vmem>>, %arg14: memref<16x1xf32, #tpu.memory_space<vmem>>, %arg15: memref<16x1xf32, #tpu.memory_space<vmem>>, %arg16: memref<16x512xf32, #tpu.memory_space<vmem>>) attributes {dimension_semantics = [], scalar_prefetch = 0 : i64, scratch_operands = 0 : i64, tpu.core_type = #tpu.core_type<tc>} {
    %c0 = arith.constant 0 : index
    %c0_0 = arith.constant 0 : index
    %0 = vector.load %arg0[%c0, %c0_0] : memref<16x512xf32, #tpu.memory_space<vmem>>, vector<16x512xf32>
    %c0_1 = arith.constant 0 : index
    %c0_2 = arith.constant 0 : index
    %1 = vector.load %arg1[%c0_1, %c0_2] : memref<16x512xi32, #tpu.memory_space<vmem>>, vector<16x512xi32>
    %c0_3 = arith.constant 0 : index
    %c0_4 = arith.constant 0 : index
    %2 = vector.load %arg2[%c0_3, %c0_4] : memref<16x512xi32, #tpu.memory_space<vmem>>, vector<16x512xi32>
    %c0_5 = arith.constant 0 : index
    %c0_6 = arith.constant 0 : index
    %3 = vector.load %arg3[%c0_5, %c0_6] : memref<16x16xf32, #tpu.memory_space<vmem>>, vector<16x16xf32>
    %cst = arith.constant dense<0.000000e+00> : vector<16x512xf32>
    %4 = tpu.matmul %3, %0, %cst {dimension_numbers = #tpu.dot_dimension_numbers<[1], [0], [0], [1], [0, 0, 1, 1], [], []>} : vector<16x16xf32>, vector<16x512xf32>, vector<16x512xf32> -> vector<16x512xf32>
    %c0_7 = arith.constant 0 : index
    %c0_8 = arith.constant 0 : index
    %5 = vector.load %arg4[%c0_7, %c0_8] : memref<16x31xf32, #tpu.memory_space<vmem>>, vector<16x31xf32>
    %cst_9 = arith.constant 0.000000e+00 : f32
    %6 = vector.broadcast %cst_9 : f32 to vector<16x512xf32>
    %c240_i32 = arith.constant 240 : i32
    %7 = tpu.dynamic_rotate %4 by %c240_i32 dim 1 : vector<16x512xf32>, i32 -> vector<16x512xf32>
    %c15_i32 = arith.constant 15 : i32
    %8 = vector.broadcast %c15_i32 : i32 to vector<16x512xi32>
    %9 = arith.cmpi sge, %1, %8 : vector<16x512xi32>
    %cst_10 = arith.constant 0.000000e+00 : f32
    %10 = vector.broadcast %cst_10 : f32 to vector<16x512xf32>
    %11 = arith.select %9, %7, %10 : vector<16x512xi1>, vector<16x512xf32>
    %12 = vector.extract_strided_slice %5 {offsets = [0, 0], sizes = [16, 1], strides = [1, 1]} : vector<16x31xf32> to vector<16x1xf32>
    %13 = vector.broadcast %12 : vector<16x1xf32> to vector<16x512xf32>
    %14 = arith.mulf %11, %13 : vector<16x512xf32>
    %15 = arith.addf %6, %14 : vector<16x512xf32>
    %c224_i32 = arith.constant 224 : i32
    %16 = tpu.dynamic_rotate %4 by %c224_i32 dim 1 : vector<16x512xf32>, i32 -> vector<16x512xf32>
    %c14_i32 = arith.constant 14 : i32
    %17 = vector.broadcast %c14_i32 : i32 to vector<16x512xi32>
    %18 = arith.cmpi sge, %1, %17 : vector<16x512xi32>
    %cst_11 = arith.constant 0.000000e+00 : f32
    %19 = vector.broadcast %cst_11 : f32 to vector<16x512xf32>
    %20 = arith.select %18, %16, %19 : vector<16x512xi1>, vector<16x512xf32>
    %21 = vector.extract_strided_slice %5 {offsets = [0, 1], sizes = [16, 1], strides = [1, 1]} : vector<16x31xf32> to vector<16x1xf32>
    %22 = vector.broadcast %21 : vector<16x1xf32> to vector<16x512xf32>
    %23 = arith.mulf %20, %22 : vector<16x512xf32>
    %24 = arith.addf %15, %23 : vector<16x512xf32>
    %c208_i32 = arith.constant 208 : i32
    %25 = tpu.dynamic_rotate %4 by %c208_i32 dim 1 : vector<16x512xf32>, i32 -> vector<16x512xf32>
    %c13_i32 = arith.constant 13 : i32
    %26 = vector.broadcast %c13_i32 : i32 to vector<16x512xi32>
    %27 = arith.cmpi sge, %1, %26 : vector<16x512xi32>
    %cst_12 = arith.constant 0.000000e+00 : f32
    %28 = vector.broadcast %cst_12 : f32 to vector<16x512xf32>
    %29 = arith.select %27, %25, %28 : vector<16x512xi1>, vector<16x512xf32>
    %30 = vector.extract_strided_slice %5 {offsets = [0, 2], sizes = [16, 1], strides = [1, 1]} : vector<16x31xf32> to vector<16x1xf32>
    %31 = vector.broadcast %30 : vector<16x1xf32> to vector<16x512xf32>
    %32 = arith.mulf %29, %31 : vector<16x512xf32>
    %33 = arith.addf %24, %32 : vector<16x512xf32>
    %c192_i32 = arith.constant 192 : i32
    %34 = tpu.dynamic_rotate %4 by %c192_i32 dim 1 : vector<16x512xf32>, i32 -> vector<16x512xf32>
    %c12_i32 = arith.constant 12 : i32
    %35 = vector.broadcast %c12_i32 : i32 to vector<16x512xi32>
    %36 = arith.cmpi sge, %1, %35 : vector<16x512xi32>
    %cst_13 = arith.constant 0.000000e+00 : f32
    %37 = vector.broadcast %cst_13 : f32 to vector<16x512xf32>
    %38 = arith.select %36, %34, %37 : vector<16x512xi1>, vector<16x512xf32>
    %39 = vector.extract_strided_slice %5 {offsets = [0, 3], sizes = [16, 1], strides = [1, 1]} : vector<16x31xf32> to vector<16x1xf32>
    %40 = vector.broadcast %39 : vector<16x1xf32> to vector<16x512xf32>
    %41 = arith.mulf %38, %40 : vector<16x512xf32>
    %42 = arith.addf %33, %41 : vector<16x512xf32>
    %c176_i32 = arith.constant 176 : i32
    %43 = tpu.dynamic_rotate %4 by %c176_i32 dim 1 : vector<16x512xf32>, i32 -> vector<16x512xf32>
    %c11_i32 = arith.constant 11 : i32
    %44 = vector.broadcast %c11_i32 : i32 to vector<16x512xi32>
    %45 = arith.cmpi sge, %1, %44 : vector<16x512xi32>
    %cst_14 = arith.constant 0.000000e+00 : f32
    %46 = vector.broadcast %cst_14 : f32 to vector<16x512xf32>
    %47 = arith.select %45, %43, %46 : vector<16x512xi1>, vector<16x512xf32>
    %48 = vector.extract_strided_slice %5 {offsets = [0, 4], sizes = [16, 1], strides = [1, 1]} : vector<16x31xf32> to vector<16x1xf32>
    %49 = vector.broadcast %48 : vector<16x1xf32> to vector<16x512xf32>
    %50 = arith.mulf %47, %49 : vector<16x512xf32>
    %51 = arith.addf %42, %50 : vector<16x512xf32>
    %c160_i32 = arith.constant 160 : i32
    %52 = tpu.dynamic_rotate %4 by %c160_i32 dim 1 : vector<16x512xf32>, i32 -> vector<16x512xf32>
    %c10_i32 = arith.constant 10 : i32
    %53 = vector.broadcast %c10_i32 : i32 to vector<16x512xi32>
    %54 = arith.cmpi sge, %1, %53 : vector<16x512xi32>
    %cst_15 = arith.constant 0.000000e+00 : f32
    %55 = vector.broadcast %cst_15 : f32 to vector<16x512xf32>
    %56 = arith.select %54, %52, %55 : vector<16x512xi1>, vector<16x512xf32>
    %57 = vector.extract_strided_slice %5 {offsets = [0, 5], sizes = [16, 1], strides = [1, 1]} : vector<16x31xf32> to vector<16x1xf32>
    %58 = vector.broadcast %57 : vector<16x1xf32> to vector<16x512xf32>
    %59 = arith.mulf %56, %58 : vector<16x512xf32>
    %60 = arith.addf %51, %59 : vector<16x512xf32>
    %c144_i32 = arith.constant 144 : i32
    %61 = tpu.dynamic_rotate %4 by %c144_i32 dim 1 : vector<16x512xf32>, i32 -> vector<16x512xf32>
    %c9_i32 = arith.constant 9 : i32
    %62 = vector.broadcast %c9_i32 : i32 to vector<16x512xi32>
    %63 = arith.cmpi sge, %1, %62 : vector<16x512xi32>
    %cst_16 = arith.constant 0.000000e+00 : f32
    %64 = vector.broadcast %cst_16 : f32 to vector<16x512xf32>
    %65 = arith.select %63, %61, %64 : vector<16x512xi1>, vector<16x512xf32>
    %66 = vector.extract_strided_slice %5 {offsets = [0, 6], sizes = [16, 1], strides = [1, 1]} : vector<16x31xf32> to vector<16x1xf32>
    %67 = vector.broadcast %66 : vector<16x1xf32> to vector<16x512xf32>
    %68 = arith.mulf %65, %67 : vector<16x512xf32>
    %69 = arith.addf %60, %68 : vector<16x512xf32>
    %c128_i32 = arith.constant 128 : i32
    %70 = tpu.dynamic_rotate %4 by %c128_i32 dim 1 : vector<16x512xf32>, i32 -> vector<16x512xf32>
    %c8_i32 = arith.constant 8 : i32
    %71 = vector.broadcast %c8_i32 : i32 to vector<16x512xi32>
    %72 = arith.cmpi sge, %1, %71 : vector<16x512xi32>
    %cst_17 = arith.constant 0.000000e+00 : f32
    %73 = vector.broadcast %cst_17 : f32 to vector<16x512xf32>
    %74 = arith.select %72, %70, %73 : vector<16x512xi1>, vector<16x512xf32>
    %75 = vector.extract_strided_slice %5 {offsets = [0, 7], sizes = [16, 1], strides = [1, 1]} : vector<16x31xf32> to vector<16x1xf32>
    %76 = vector.broadcast %75 : vector<16x1xf32> to vector<16x512xf32>
    %77 = arith.mulf %74, %76 : vector<16x512xf32>
    %78 = arith.addf %69, %77 : vector<16x512xf32>
    %c112_i32 = arith.constant 112 : i32
    %79 = tpu.dynamic_rotate %4 by %c112_i32 dim 1 : vector<16x512xf32>, i32 -> vector<16x512xf32>
    %c7_i32 = arith.constant 7 : i32
    %80 = vector.broadcast %c7_i32 : i32 to vector<16x512xi32>
    %81 = arith.cmpi sge, %1, %80 : vector<16x512xi32>
    %cst_18 = arith.constant 0.000000e+00 : f32
    %82 = vector.broadcast %cst_18 : f32 to vector<16x512xf32>
    %83 = arith.select %81, %79, %82 : vector<16x512xi1>, vector<16x512xf32>
    %84 = vector.extract_strided_slice %5 {offsets = [0, 8], sizes = [16, 1], strides = [1, 1]} : vector<16x31xf32> to vector<16x1xf32>
    %85 = vector.broadcast %84 : vector<16x1xf32> to vector<16x512xf32>
    %86 = arith.mulf %83, %85 : vector<16x512xf32>
    %87 = arith.addf %78, %86 : vector<16x512xf32>
    %c96_i32 = arith.constant 96 : i32
    %88 = tpu.dynamic_rotate %4 by %c96_i32 dim 1 : vector<16x512xf32>, i32 -> vector<16x512xf32>
    %c6_i32 = arith.constant 6 : i32
    %89 = vector.broadcast %c6_i32 : i32 to vector<16x512xi32>
    %90 = arith.cmpi sge, %1, %89 : vector<16x512xi32>
    %cst_19 = arith.constant 0.000000e+00 : f32
    %91 = vector.broadcast %cst_19 : f32 to vector<16x512xf32>
    %92 = arith.select %90, %88, %91 : vector<16x512xi1>, vector<16x512xf32>
    %93 = vector.extract_strided_slice %5 {offsets = [0, 9], sizes = [16, 1], strides = [1, 1]} : vector<16x31xf32> to vector<16x1xf32>
    %94 = vector.broadcast %93 : vector<16x1xf32> to vector<16x512xf32>
    %95 = arith.mulf %92, %94 : vector<16x512xf32>
    %96 = arith.addf %87, %95 : vector<16x512xf32>
    %c80_i32 = arith.constant 80 : i32
    %97 = tpu.dynamic_rotate %4 by %c80_i32 dim 1 : vector<16x512xf32>, i32 -> vector<16x512xf32>
    %c5_i32 = arith.constant 5 : i32
    %98 = vector.broadcast %c5_i32 : i32 to vector<16x512xi32>
    %99 = arith.cmpi sge, %1, %98 : vector<16x512xi32>
    %cst_20 = arith.constant 0.000000e+00 : f32
    %100 = vector.broadcast %cst_20 : f32 to vector<16x512xf32>
    %101 = arith.select %99, %97, %100 : vector<16x512xi1>, vector<16x512xf32>
    %102 = vector.extract_strided_slice %5 {offsets = [0, 10], sizes = [16, 1], strides = [1, 1]} : vector<16x31xf32> to vector<16x1xf32>
    %103 = vector.broadcast %102 : vector<16x1xf32> to vector<16x512xf32>
    %104 = arith.mulf %101, %103 : vector<16x512xf32>
    %105 = arith.addf %96, %104 : vector<16x512xf32>
    %c64_i32 = arith.constant 64 : i32
    %106 = tpu.dynamic_rotate %4 by %c64_i32 dim 1 : vector<16x512xf32>, i32 -> vector<16x512xf32>
    %c4_i32 = arith.constant 4 : i32
    %107 = vector.broadcast %c4_i32 : i32 to vector<16x512xi32>
    %108 = arith.cmpi sge, %1, %107 : vector<16x512xi32>
    %cst_21 = arith.constant 0.000000e+00 : f32
    %109 = vector.broadcast %cst_21 : f32 to vector<16x512xf32>
    %110 = arith.select %108, %106, %109 : vector<16x512xi1>, vector<16x512xf32>
    %111 = vector.extract_strided_slice %5 {offsets = [0, 11], sizes = [16, 1], strides = [1, 1]} : vector<16x31xf32> to vector<16x1xf32>
    %112 = vector.broadcast %111 : vector<16x1xf32> to vector<16x512xf32>
    %113 = arith.mulf %110, %112 : vector<16x512xf32>
    %114 = arith.addf %105, %113 : vector<16x512xf32>
    %c48_i32 = arith.constant 48 : i32
    %115 = tpu.dynamic_rotate %4 by %c48_i32 dim 1 : vector<16x512xf32>, i32 -> vector<16x512xf32>
    %c3_i32 = arith.constant 3 : i32
    %116 = vector.broadcast %c3_i32 : i32 to vector<16x512xi32>
    %117 = arith.cmpi sge, %1, %116 : vector<16x512xi32>
    %cst_22 = arith.constant 0.000000e+00 : f32
    %118 = vector.broadcast %cst_22 : f32 to vector<16x512xf32>
    %119 = arith.select %117, %115, %118 : vector<16x512xi1>, vector<16x512xf32>
    %120 = vector.extract_strided_slice %5 {offsets = [0, 12], sizes = [16, 1], strides = [1, 1]} : vector<16x31xf32> to vector<16x1xf32>
    %121 = vector.broadcast %120 : vector<16x1xf32> to vector<16x512xf32>
    %122 = arith.mulf %119, %121 : vector<16x512xf32>
    %123 = arith.addf %114, %122 : vector<16x512xf32>
    %c32_i32 = arith.constant 32 : i32
    %124 = tpu.dynamic_rotate %4 by %c32_i32 dim 1 : vector<16x512xf32>, i32 -> vector<16x512xf32>
    %c2_i32 = arith.constant 2 : i32
    %125 = vector.broadcast %c2_i32 : i32 to vector<16x512xi32>
    %126 = arith.cmpi sge, %1, %125 : vector<16x512xi32>
    %cst_23 = arith.constant 0.000000e+00 : f32
    %127 = vector.broadcast %cst_23 : f32 to vector<16x512xf32>
    %128 = arith.select %126, %124, %127 : vector<16x512xi1>, vector<16x512xf32>
    %129 = vector.extract_strided_slice %5 {offsets = [0, 13], sizes = [16, 1], strides = [1, 1]} : vector<16x31xf32> to vector<16x1xf32>
    %130 = vector.broadcast %129 : vector<16x1xf32> to vector<16x512xf32>
    %131 = arith.mulf %128, %130 : vector<16x512xf32>
    %132 = arith.addf %123, %131 : vector<16x512xf32>
    %c16_i32 = arith.constant 16 : i32
    %133 = tpu.dynamic_rotate %4 by %c16_i32 dim 1 : vector<16x512xf32>, i32 -> vector<16x512xf32>
    %c1_i32 = arith.constant 1 : i32
    %134 = vector.broadcast %c1_i32 : i32 to vector<16x512xi32>
    %135 = arith.cmpi sge, %1, %134 : vector<16x512xi32>
    %cst_24 = arith.constant 0.000000e+00 : f32
    %136 = vector.broadcast %cst_24 : f32 to vector<16x512xf32>
    %137 = arith.select %135, %133, %136 : vector<16x512xi1>, vector<16x512xf32>
    %138 = vector.extract_strided_slice %5 {offsets = [0, 14], sizes = [16, 1], strides = [1, 1]} : vector<16x31xf32> to vector<16x1xf32>
    %139 = vector.broadcast %138 : vector<16x1xf32> to vector<16x512xf32>
    %140 = arith.mulf %137, %139 : vector<16x512xf32>
    %141 = arith.addf %132, %140 : vector<16x512xf32>
    %142 = vector.extract_strided_slice %5 {offsets = [0, 15], sizes = [16, 1], strides = [1, 1]} : vector<16x31xf32> to vector<16x1xf32>
    %143 = vector.broadcast %142 : vector<16x1xf32> to vector<16x512xf32>
    %144 = arith.mulf %4, %143 : vector<16x512xf32>
    %145 = arith.addf %141, %144 : vector<16x512xf32>
    %c496_i32 = arith.constant 496 : i32
    %146 = tpu.dynamic_rotate %4 by %c496_i32 dim 1 : vector<16x512xf32>, i32 -> vector<16x512xf32>
    %c15_i32_25 = arith.constant 15 : i32
    %147 = vector.broadcast %c15_i32_25 : i32 to vector<16x512xi32>
    %148 = arith.cmpi slt, %1, %147 : vector<16x512xi32>
    %cst_26 = arith.constant 0.000000e+00 : f32
    %149 = vector.broadcast %cst_26 : f32 to vector<16x512xf32>
    %150 = arith.select %148, %146, %149 : vector<16x512xi1>, vector<16x512xf32>
    %151 = vector.extract_strided_slice %5 {offsets = [0, 16], sizes = [16, 1], strides = [1, 1]} : vector<16x31xf32> to vector<16x1xf32>
    %152 = vector.broadcast %151 : vector<16x1xf32> to vector<16x512xf32>
    %153 = arith.mulf %150, %152 : vector<16x512xf32>
    %154 = arith.addf %145, %153 : vector<16x512xf32>
    %c480_i32 = arith.constant 480 : i32
    %155 = tpu.dynamic_rotate %4 by %c480_i32 dim 1 : vector<16x512xf32>, i32 -> vector<16x512xf32>
    %c14_i32_27 = arith.constant 14 : i32
    %156 = vector.broadcast %c14_i32_27 : i32 to vector<16x512xi32>
    %157 = arith.cmpi slt, %1, %156 : vector<16x512xi32>
    %cst_28 = arith.constant 0.000000e+00 : f32
    %158 = vector.broadcast %cst_28 : f32 to vector<16x512xf32>
    %159 = arith.select %157, %155, %158 : vector<16x512xi1>, vector<16x512xf32>
    %160 = vector.extract_strided_slice %5 {offsets = [0, 17], sizes = [16, 1], strides = [1, 1]} : vector<16x31xf32> to vector<16x1xf32>
    %161 = vector.broadcast %160 : vector<16x1xf32> to vector<16x512xf32>
    %162 = arith.mulf %159, %161 : vector<16x512xf32>
    %163 = arith.addf %154, %162 : vector<16x512xf32>
    %c464_i32 = arith.constant 464 : i32
    %164 = tpu.dynamic_rotate %4 by %c464_i32 dim 1 : vector<16x512xf32>, i32 -> vector<16x512xf32>
    %c13_i32_29 = arith.constant 13 : i32
    %165 = vector.broadcast %c13_i32_29 : i32 to vector<16x512xi32>
    %166 = arith.cmpi slt, %1, %165 : vector<16x512xi32>
    %cst_30 = arith.constant 0.000000e+00 : f32
    %167 = vector.broadcast %cst_30 : f32 to vector<16x512xf32>
    %168 = arith.select %166, %164, %167 : vector<16x512xi1>, vector<16x512xf32>
    %169 = vector.extract_strided_slice %5 {offsets = [0, 18], sizes = [16, 1], strides = [1, 1]} : vector<16x31xf32> to vector<16x1xf32>
    %170 = vector.broadcast %169 : vector<16x1xf32> to vector<16x512xf32>
    %171 = arith.mulf %168, %170 : vector<16x512xf32>
    %172 = arith.addf %163, %171 : vector<16x512xf32>
    %c448_i32 = arith.constant 448 : i32
    %173 = tpu.dynamic_rotate %4 by %c448_i32 dim 1 : vector<16x512xf32>, i32 -> vector<16x512xf32>
    %c12_i32_31 = arith.constant 12 : i32
    %174 = vector.broadcast %c12_i32_31 : i32 to vector<16x512xi32>
    %175 = arith.cmpi slt, %1, %174 : vector<16x512xi32>
    %cst_32 = arith.constant 0.000000e+00 : f32
    %176 = vector.broadcast %cst_32 : f32 to vector<16x512xf32>
    %177 = arith.select %175, %173, %176 : vector<16x512xi1>, vector<16x512xf32>
    %178 = vector.extract_strided_slice %5 {offsets = [0, 19], sizes = [16, 1], strides = [1, 1]} : vector<16x31xf32> to vector<16x1xf32>
    %179 = vector.broadcast %178 : vector<16x1xf32> to vector<16x512xf32>
    %180 = arith.mulf %177, %179 : vector<16x512xf32>
    %181 = arith.addf %172, %180 : vector<16x512xf32>
    %c432_i32 = arith.constant 432 : i32
    %182 = tpu.dynamic_rotate %4 by %c432_i32 dim 1 : vector<16x512xf32>, i32 -> vector<16x512xf32>
    %c11_i32_33 = arith.constant 11 : i32
    %183 = vector.broadcast %c11_i32_33 : i32 to vector<16x512xi32>
    %184 = arith.cmpi slt, %1, %183 : vector<16x512xi32>
    %cst_34 = arith.constant 0.000000e+00 : f32
    %185 = vector.broadcast %cst_34 : f32 to vector<16x512xf32>
    %186 = arith.select %184, %182, %185 : vector<16x512xi1>, vector<16x512xf32>
    %187 = vector.extract_strided_slice %5 {offsets = [0, 20], sizes = [16, 1], strides = [1, 1]} : vector<16x31xf32> to vector<16x1xf32>
    %188 = vector.broadcast %187 : vector<16x1xf32> to vector<16x512xf32>
    %189 = arith.mulf %186, %188 : vector<16x512xf32>
    %190 = arith.addf %181, %189 : vector<16x512xf32>
    %c416_i32 = arith.constant 416 : i32
    %191 = tpu.dynamic_rotate %4 by %c416_i32 dim 1 : vector<16x512xf32>, i32 -> vector<16x512xf32>
    %c10_i32_35 = arith.constant 10 : i32
    %192 = vector.broadcast %c10_i32_35 : i32 to vector<16x512xi32>
    %193 = arith.cmpi slt, %1, %192 : vector<16x512xi32>
    %cst_36 = arith.constant 0.000000e+00 : f32
    %194 = vector.broadcast %cst_36 : f32 to vector<16x512xf32>
    %195 = arith.select %193, %191, %194 : vector<16x512xi1>, vector<16x512xf32>
    %196 = vector.extract_strided_slice %5 {offsets = [0, 21], sizes = [16, 1], strides = [1, 1]} : vector<16x31xf32> to vector<16x1xf32>
    %197 = vector.broadcast %196 : vector<16x1xf32> to vector<16x512xf32>
    %198 = arith.mulf %195, %197 : vector<16x512xf32>
    %199 = arith.addf %190, %198 : vector<16x512xf32>
    %c400_i32 = arith.constant 400 : i32
    %200 = tpu.dynamic_rotate %4 by %c400_i32 dim 1 : vector<16x512xf32>, i32 -> vector<16x512xf32>
    %c9_i32_37 = arith.constant 9 : i32
    %201 = vector.broadcast %c9_i32_37 : i32 to vector<16x512xi32>
    %202 = arith.cmpi slt, %1, %201 : vector<16x512xi32>
    %cst_38 = arith.constant 0.000000e+00 : f32
    %203 = vector.broadcast %cst_38 : f32 to vector<16x512xf32>
    %204 = arith.select %202, %200, %203 : vector<16x512xi1>, vector<16x512xf32>
    %205 = vector.extract_strided_slice %5 {offsets = [0, 22], sizes = [16, 1], strides = [1, 1]} : vector<16x31xf32> to vector<16x1xf32>
    %206 = vector.broadcast %205 : vector<16x1xf32> to vector<16x512xf32>
    %207 = arith.mulf %204, %206 : vector<16x512xf32>
    %208 = arith.addf %199, %207 : vector<16x512xf32>
    %c384_i32 = arith.constant 384 : i32
    %209 = tpu.dynamic_rotate %4 by %c384_i32 dim 1 : vector<16x512xf32>, i32 -> vector<16x512xf32>
    %c8_i32_39 = arith.constant 8 : i32
    %210 = vector.broadcast %c8_i32_39 : i32 to vector<16x512xi32>
    %211 = arith.cmpi slt, %1, %210 : vector<16x512xi32>
    %cst_40 = arith.constant 0.000000e+00 : f32
    %212 = vector.broadcast %cst_40 : f32 to vector<16x512xf32>
    %213 = arith.select %211, %209, %212 : vector<16x512xi1>, vector<16x512xf32>
    %214 = vector.extract_strided_slice %5 {offsets = [0, 23], sizes = [16, 1], strides = [1, 1]} : vector<16x31xf32> to vector<16x1xf32>
    %215 = vector.broadcast %214 : vector<16x1xf32> to vector<16x512xf32>
    %216 = arith.mulf %213, %215 : vector<16x512xf32>
    %217 = arith.addf %208, %216 : vector<16x512xf32>
    %c368_i32 = arith.constant 368 : i32
    %218 = tpu.dynamic_rotate %4 by %c368_i32 dim 1 : vector<16x512xf32>, i32 -> vector<16x512xf32>
    %c7_i32_41 = arith.constant 7 : i32
    %219 = vector.broadcast %c7_i32_41 : i32 to vector<16x512xi32>
    %220 = arith.cmpi slt, %1, %219 : vector<16x512xi32>
    %cst_42 = arith.constant 0.000000e+00 : f32
    %221 = vector.broadcast %cst_42 : f32 to vector<16x512xf32>
    %222 = arith.select %220, %218, %221 : vector<16x512xi1>, vector<16x512xf32>
    %223 = vector.extract_strided_slice %5 {offsets = [0, 24], sizes = [16, 1], strides = [1, 1]} : vector<16x31xf32> to vector<16x1xf32>
    %224 = vector.broadcast %223 : vector<16x1xf32> to vector<16x512xf32>
    %225 = arith.mulf %222, %224 : vector<16x512xf32>
    %226 = arith.addf %217, %225 : vector<16x512xf32>
    %c352_i32 = arith.constant 352 : i32
    %227 = tpu.dynamic_rotate %4 by %c352_i32 dim 1 : vector<16x512xf32>, i32 -> vector<16x512xf32>
    %c6_i32_43 = arith.constant 6 : i32
    %228 = vector.broadcast %c6_i32_43 : i32 to vector<16x512xi32>
    %229 = arith.cmpi slt, %1, %228 : vector<16x512xi32>
    %cst_44 = arith.constant 0.000000e+00 : f32
    %230 = vector.broadcast %cst_44 : f32 to vector<16x512xf32>
    %231 = arith.select %229, %227, %230 : vector<16x512xi1>, vector<16x512xf32>
    %232 = vector.extract_strided_slice %5 {offsets = [0, 25], sizes = [16, 1], strides = [1, 1]} : vector<16x31xf32> to vector<16x1xf32>
    %233 = vector.broadcast %232 : vector<16x1xf32> to vector<16x512xf32>
    %234 = arith.mulf %231, %233 : vector<16x512xf32>
    %235 = arith.addf %226, %234 : vector<16x512xf32>
    %c336_i32 = arith.constant 336 : i32
    %236 = tpu.dynamic_rotate %4 by %c336_i32 dim 1 : vector<16x512xf32>, i32 -> vector<16x512xf32>
    %c5_i32_45 = arith.constant 5 : i32
    %237 = vector.broadcast %c5_i32_45 : i32 to vector<16x512xi32>
    %238 = arith.cmpi slt, %1, %237 : vector<16x512xi32>
    %cst_46 = arith.constant 0.000000e+00 : f32
    %239 = vector.broadcast %cst_46 : f32 to vector<16x512xf32>
    %240 = arith.select %238, %236, %239 : vector<16x512xi1>, vector<16x512xf32>
    %241 = vector.extract_strided_slice %5 {offsets = [0, 26], sizes = [16, 1], strides = [1, 1]} : vector<16x31xf32> to vector<16x1xf32>
    %242 = vector.broadcast %241 : vector<16x1xf32> to vector<16x512xf32>
    %243 = arith.mulf %240, %242 : vector<16x512xf32>
    %244 = arith.addf %235, %243 : vector<16x512xf32>
    %c320_i32 = arith.constant 320 : i32
    %245 = tpu.dynamic_rotate %4 by %c320_i32 dim 1 : vector<16x512xf32>, i32 -> vector<16x512xf32>
    %c4_i32_47 = arith.constant 4 : i32
    %246 = vector.broadcast %c4_i32_47 : i32 to vector<16x512xi32>
    %247 = arith.cmpi slt, %1, %246 : vector<16x512xi32>
    %cst_48 = arith.constant 0.000000e+00 : f32
    %248 = vector.broadcast %cst_48 : f32 to vector<16x512xf32>
    %249 = arith.select %247, %245, %248 : vector<16x512xi1>, vector<16x512xf32>
    %250 = vector.extract_strided_slice %5 {offsets = [0, 27], sizes = [16, 1], strides = [1, 1]} : vector<16x31xf32> to vector<16x1xf32>
    %251 = vector.broadcast %250 : vector<16x1xf32> to vector<16x512xf32>
    %252 = arith.mulf %249, %251 : vector<16x512xf32>
    %253 = arith.addf %244, %252 : vector<16x512xf32>
    %c304_i32 = arith.constant 304 : i32
    %254 = tpu.dynamic_rotate %4 by %c304_i32 dim 1 : vector<16x512xf32>, i32 -> vector<16x512xf32>
    %c3_i32_49 = arith.constant 3 : i32
    %255 = vector.broadcast %c3_i32_49 : i32 to vector<16x512xi32>
    %256 = arith.cmpi slt, %1, %255 : vector<16x512xi32>
    %cst_50 = arith.constant 0.000000e+00 : f32
    %257 = vector.broadcast %cst_50 : f32 to vector<16x512xf32>
    %258 = arith.select %256, %254, %257 : vector<16x512xi1>, vector<16x512xf32>
    %259 = vector.extract_strided_slice %5 {offsets = [0, 28], sizes = [16, 1], strides = [1, 1]} : vector<16x31xf32> to vector<16x1xf32>
    %260 = vector.broadcast %259 : vector<16x1xf32> to vector<16x512xf32>
    %261 = arith.mulf %258, %260 : vector<16x512xf32>
    %262 = arith.addf %253, %261 : vector<16x512xf32>
    %c288_i32 = arith.constant 288 : i32
    %263 = tpu.dynamic_rotate %4 by %c288_i32 dim 1 : vector<16x512xf32>, i32 -> vector<16x512xf32>
    %c2_i32_51 = arith.constant 2 : i32
    %264 = vector.broadcast %c2_i32_51 : i32 to vector<16x512xi32>
    %265 = arith.cmpi slt, %1, %264 : vector<16x512xi32>
    %cst_52 = arith.constant 0.000000e+00 : f32
    %266 = vector.broadcast %cst_52 : f32 to vector<16x512xf32>
    %267 = arith.select %265, %263, %266 : vector<16x512xi1>, vector<16x512xf32>
    %268 = vector.extract_strided_slice %5 {offsets = [0, 29], sizes = [16, 1], strides = [1, 1]} : vector<16x31xf32> to vector<16x1xf32>
    %269 = vector.broadcast %268 : vector<16x1xf32> to vector<16x512xf32>
    %270 = arith.mulf %267, %269 : vector<16x512xf32>
    %271 = arith.addf %262, %270 : vector<16x512xf32>
    %c272_i32 = arith.constant 272 : i32
    %272 = tpu.dynamic_rotate %4 by %c272_i32 dim 1 : vector<16x512xf32>, i32 -> vector<16x512xf32>
    %c1_i32_53 = arith.constant 1 : i32
    %273 = vector.broadcast %c1_i32_53 : i32 to vector<16x512xi32>
    %274 = arith.cmpi slt, %1, %273 : vector<16x512xi32>
    %cst_54 = arith.constant 0.000000e+00 : f32
    %275 = vector.broadcast %cst_54 : f32 to vector<16x512xf32>
    %276 = arith.select %274, %272, %275 : vector<16x512xi1>, vector<16x512xf32>
    %277 = vector.extract_strided_slice %5 {offsets = [0, 30], sizes = [16, 1], strides = [1, 1]} : vector<16x31xf32> to vector<16x1xf32>
    %278 = vector.broadcast %277 : vector<16x1xf32> to vector<16x512xf32>
    %279 = arith.mulf %276, %278 : vector<16x512xf32>
    %280 = arith.addf %271, %279 : vector<16x512xf32>
    %c0_55 = arith.constant 0 : index
    %c0_56 = arith.constant 0 : index
    %281 = vector.load %arg7[%c0_55, %c0_56] : memref<16x1xf32, #tpu.memory_space<vmem>>, vector<16x1xf32>
    %282 = vector.broadcast %281 : vector<16x1xf32> to vector<16x512xf32>
    %283 = arith.mulf %280, %282 : vector<16x512xf32>
    %c0_57 = arith.constant 0 : index
    %c0_58 = arith.constant 0 : index
    %284 = vector.load %arg8[%c0_57, %c0_58] : memref<16x1xf32, #tpu.memory_space<vmem>>, vector<16x1xf32>
    %285 = vector.broadcast %284 : vector<16x1xf32> to vector<16x512xf32>
    %286 = arith.addf %283, %285 : vector<16x512xf32>
    %cst_59 = arith.constant 0.000000e+00 : f32
    %287 = vector.broadcast %cst_59 : f32 to vector<16x512xf32>
    %288 = arith.cmpf oge, %286, %287 : vector<16x512xf32>
    %c0_60 = arith.constant 0 : index
    %c0_61 = arith.constant 0 : index
    %289 = vector.load %arg9[%c0_60, %c0_61] : memref<16x1xf32, #tpu.memory_space<vmem>>, vector<16x1xf32>
    %290 = vector.broadcast %289 : vector<16x1xf32> to vector<16x512xf32>
    %291 = arith.mulf %290, %286 : vector<16x512xf32>
    %292 = arith.select %288, %286, %291 : vector<16x512xi1>, vector<16x512xf32>
    %c0_62 = arith.constant 0 : index
    %c0_63 = arith.constant 0 : index
    %293 = vector.load %arg5[%c0_62, %c0_63] : memref<16x31xf32, #tpu.memory_space<vmem>>, vector<16x31xf32>
    %cst_64 = arith.constant 0.000000e+00 : f32
    %294 = vector.broadcast %cst_64 : f32 to vector<16x512xf32>
    %c15_i32_65 = arith.constant 15 : i32
    %295 = tpu.dynamic_rotate %292 by %c15_i32_65 dim 1 : vector<16x512xf32>, i32 -> vector<16x512xf32>
    %c15_i32_66 = arith.constant 15 : i32
    %296 = vector.broadcast %c15_i32_66 : i32 to vector<16x512xi32>
    %297 = arith.cmpi sge, %2, %296 : vector<16x512xi32>
    %cst_67 = arith.constant 0.000000e+00 : f32
    %298 = vector.broadcast %cst_67 : f32 to vector<16x512xf32>
    %299 = arith.select %297, %295, %298 : vector<16x512xi1>, vector<16x512xf32>
    %300 = vector.extract_strided_slice %293 {offsets = [0, 0], sizes = [16, 1], strides = [1, 1]} : vector<16x31xf32> to vector<16x1xf32>
    %301 = vector.broadcast %300 : vector<16x1xf32> to vector<16x512xf32>
    %302 = arith.mulf %299, %301 : vector<16x512xf32>
    %303 = arith.addf %294, %302 : vector<16x512xf32>
    %c14_i32_68 = arith.constant 14 : i32
    %304 = tpu.dynamic_rotate %292 by %c14_i32_68 dim 1 : vector<16x512xf32>, i32 -> vector<16x512xf32>
    %c14_i32_69 = arith.constant 14 : i32
    %305 = vector.broadcast %c14_i32_69 : i32 to vector<16x512xi32>
    %306 = arith.cmpi sge, %2, %305 : vector<16x512xi32>
    %cst_70 = arith.constant 0.000000e+00 : f32
    %307 = vector.broadcast %cst_70 : f32 to vector<16x512xf32>
    %308 = arith.select %306, %304, %307 : vector<16x512xi1>, vector<16x512xf32>
    %309 = vector.extract_strided_slice %293 {offsets = [0, 1], sizes = [16, 1], strides = [1, 1]} : vector<16x31xf32> to vector<16x1xf32>
    %310 = vector.broadcast %309 : vector<16x1xf32> to vector<16x512xf32>
    %311 = arith.mulf %308, %310 : vector<16x512xf32>
    %312 = arith.addf %303, %311 : vector<16x512xf32>
    %c13_i32_71 = arith.constant 13 : i32
    %313 = tpu.dynamic_rotate %292 by %c13_i32_71 dim 1 : vector<16x512xf32>, i32 -> vector<16x512xf32>
    %c13_i32_72 = arith.constant 13 : i32
    %314 = vector.broadcast %c13_i32_72 : i32 to vector<16x512xi32>
    %315 = arith.cmpi sge, %2, %314 : vector<16x512xi32>
    %cst_73 = arith.constant 0.000000e+00 : f32
    %316 = vector.broadcast %cst_73 : f32 to vector<16x512xf32>
    %317 = arith.select %315, %313, %316 : vector<16x512xi1>, vector<16x512xf32>
    %318 = vector.extract_strided_slice %293 {offsets = [0, 2], sizes = [16, 1], strides = [1, 1]} : vector<16x31xf32> to vector<16x1xf32>
    %319 = vector.broadcast %318 : vector<16x1xf32> to vector<16x512xf32>
    %320 = arith.mulf %317, %319 : vector<16x512xf32>
    %321 = arith.addf %312, %320 : vector<16x512xf32>
    %c12_i32_74 = arith.constant 12 : i32
    %322 = tpu.dynamic_rotate %292 by %c12_i32_74 dim 1 : vector<16x512xf32>, i32 -> vector<16x512xf32>
    %c12_i32_75 = arith.constant 12 : i32
    %323 = vector.broadcast %c12_i32_75 : i32 to vector<16x512xi32>
    %324 = arith.cmpi sge, %2, %323 : vector<16x512xi32>
    %cst_76 = arith.constant 0.000000e+00 : f32
    %325 = vector.broadcast %cst_76 : f32 to vector<16x512xf32>
    %326 = arith.select %324, %322, %325 : vector<16x512xi1>, vector<16x512xf32>
    %327 = vector.extract_strided_slice %293 {offsets = [0, 3], sizes = [16, 1], strides = [1, 1]} : vector<16x31xf32> to vector<16x1xf32>
    %328 = vector.broadcast %327 : vector<16x1xf32> to vector<16x512xf32>
    %329 = arith.mulf %326, %328 : vector<16x512xf32>
    %330 = arith.addf %321, %329 : vector<16x512xf32>
    %c11_i32_77 = arith.constant 11 : i32
    %331 = tpu.dynamic_rotate %292 by %c11_i32_77 dim 1 : vector<16x512xf32>, i32 -> vector<16x512xf32>
    %c11_i32_78 = arith.constant 11 : i32
    %332 = vector.broadcast %c11_i32_78 : i32 to vector<16x512xi32>
    %333 = arith.cmpi sge, %2, %332 : vector<16x512xi32>
    %cst_79 = arith.constant 0.000000e+00 : f32
    %334 = vector.broadcast %cst_79 : f32 to vector<16x512xf32>
    %335 = arith.select %333, %331, %334 : vector<16x512xi1>, vector<16x512xf32>
    %336 = vector.extract_strided_slice %293 {offsets = [0, 4], sizes = [16, 1], strides = [1, 1]} : vector<16x31xf32> to vector<16x1xf32>
    %337 = vector.broadcast %336 : vector<16x1xf32> to vector<16x512xf32>
    %338 = arith.mulf %335, %337 : vector<16x512xf32>
    %339 = arith.addf %330, %338 : vector<16x512xf32>
    %c10_i32_80 = arith.constant 10 : i32
    %340 = tpu.dynamic_rotate %292 by %c10_i32_80 dim 1 : vector<16x512xf32>, i32 -> vector<16x512xf32>
    %c10_i32_81 = arith.constant 10 : i32
    %341 = vector.broadcast %c10_i32_81 : i32 to vector<16x512xi32>
    %342 = arith.cmpi sge, %2, %341 : vector<16x512xi32>
    %cst_82 = arith.constant 0.000000e+00 : f32
    %343 = vector.broadcast %cst_82 : f32 to vector<16x512xf32>
    %344 = arith.select %342, %340, %343 : vector<16x512xi1>, vector<16x512xf32>
    %345 = vector.extract_strided_slice %293 {offsets = [0, 5], sizes = [16, 1], strides = [1, 1]} : vector<16x31xf32> to vector<16x1xf32>
    %346 = vector.broadcast %345 : vector<16x1xf32> to vector<16x512xf32>
    %347 = arith.mulf %344, %346 : vector<16x512xf32>
    %348 = arith.addf %339, %347 : vector<16x512xf32>
    %c9_i32_83 = arith.constant 9 : i32
    %349 = tpu.dynamic_rotate %292 by %c9_i32_83 dim 1 : vector<16x512xf32>, i32 -> vector<16x512xf32>
    %c9_i32_84 = arith.constant 9 : i32
    %350 = vector.broadcast %c9_i32_84 : i32 to vector<16x512xi32>
    %351 = arith.cmpi sge, %2, %350 : vector<16x512xi32>
    %cst_85 = arith.constant 0.000000e+00 : f32
    %352 = vector.broadcast %cst_85 : f32 to vector<16x512xf32>
    %353 = arith.select %351, %349, %352 : vector<16x512xi1>, vector<16x512xf32>
    %354 = vector.extract_strided_slice %293 {offsets = [0, 6], sizes = [16, 1], strides = [1, 1]} : vector<16x31xf32> to vector<16x1xf32>
    %355 = vector.broadcast %354 : vector<16x1xf32> to vector<16x512xf32>
    %356 = arith.mulf %353, %355 : vector<16x512xf32>
    %357 = arith.addf %348, %356 : vector<16x512xf32>
    %c8_i32_86 = arith.constant 8 : i32
    %358 = tpu.dynamic_rotate %292 by %c8_i32_86 dim 1 : vector<16x512xf32>, i32 -> vector<16x512xf32>
    %c8_i32_87 = arith.constant 8 : i32
    %359 = vector.broadcast %c8_i32_87 : i32 to vector<16x512xi32>
    %360 = arith.cmpi sge, %2, %359 : vector<16x512xi32>
    %cst_88 = arith.constant 0.000000e+00 : f32
    %361 = vector.broadcast %cst_88 : f32 to vector<16x512xf32>
    %362 = arith.select %360, %358, %361 : vector<16x512xi1>, vector<16x512xf32>
    %363 = vector.extract_strided_slice %293 {offsets = [0, 7], sizes = [16, 1], strides = [1, 1]} : vector<16x31xf32> to vector<16x1xf32>
    %364 = vector.broadcast %363 : vector<16x1xf32> to vector<16x512xf32>
    %365 = arith.mulf %362, %364 : vector<16x512xf32>
    %366 = arith.addf %357, %365 : vector<16x512xf32>
    %c7_i32_89 = arith.constant 7 : i32
    %367 = tpu.dynamic_rotate %292 by %c7_i32_89 dim 1 : vector<16x512xf32>, i32 -> vector<16x512xf32>
    %c7_i32_90 = arith.constant 7 : i32
    %368 = vector.broadcast %c7_i32_90 : i32 to vector<16x512xi32>
    %369 = arith.cmpi sge, %2, %368 : vector<16x512xi32>
    %cst_91 = arith.constant 0.000000e+00 : f32
    %370 = vector.broadcast %cst_91 : f32 to vector<16x512xf32>
    %371 = arith.select %369, %367, %370 : vector<16x512xi1>, vector<16x512xf32>
    %372 = vector.extract_strided_slice %293 {offsets = [0, 8], sizes = [16, 1], strides = [1, 1]} : vector<16x31xf32> to vector<16x1xf32>
    %373 = vector.broadcast %372 : vector<16x1xf32> to vector<16x512xf32>
    %374 = arith.mulf %371, %373 : vector<16x512xf32>
    %375 = arith.addf %366, %374 : vector<16x512xf32>
    %c6_i32_92 = arith.constant 6 : i32
    %376 = tpu.dynamic_rotate %292 by %c6_i32_92 dim 1 : vector<16x512xf32>, i32 -> vector<16x512xf32>
    %c6_i32_93 = arith.constant 6 : i32
    %377 = vector.broadcast %c6_i32_93 : i32 to vector<16x512xi32>
    %378 = arith.cmpi sge, %2, %377 : vector<16x512xi32>
    %cst_94 = arith.constant 0.000000e+00 : f32
    %379 = vector.broadcast %cst_94 : f32 to vector<16x512xf32>
    %380 = arith.select %378, %376, %379 : vector<16x512xi1>, vector<16x512xf32>
    %381 = vector.extract_strided_slice %293 {offsets = [0, 9], sizes = [16, 1], strides = [1, 1]} : vector<16x31xf32> to vector<16x1xf32>
    %382 = vector.broadcast %381 : vector<16x1xf32> to vector<16x512xf32>
    %383 = arith.mulf %380, %382 : vector<16x512xf32>
    %384 = arith.addf %375, %383 : vector<16x512xf32>
    %c5_i32_95 = arith.constant 5 : i32
    %385 = tpu.dynamic_rotate %292 by %c5_i32_95 dim 1 : vector<16x512xf32>, i32 -> vector<16x512xf32>
    %c5_i32_96 = arith.constant 5 : i32
    %386 = vector.broadcast %c5_i32_96 : i32 to vector<16x512xi32>
    %387 = arith.cmpi sge, %2, %386 : vector<16x512xi32>
    %cst_97 = arith.constant 0.000000e+00 : f32
    %388 = vector.broadcast %cst_97 : f32 to vector<16x512xf32>
    %389 = arith.select %387, %385, %388 : vector<16x512xi1>, vector<16x512xf32>
    %390 = vector.extract_strided_slice %293 {offsets = [0, 10], sizes = [16, 1], strides = [1, 1]} : vector<16x31xf32> to vector<16x1xf32>
    %391 = vector.broadcast %390 : vector<16x1xf32> to vector<16x512xf32>
    %392 = arith.mulf %389, %391 : vector<16x512xf32>
    %393 = arith.addf %384, %392 : vector<16x512xf32>
    %c4_i32_98 = arith.constant 4 : i32
    %394 = tpu.dynamic_rotate %292 by %c4_i32_98 dim 1 : vector<16x512xf32>, i32 -> vector<16x512xf32>
    %c4_i32_99 = arith.constant 4 : i32
    %395 = vector.broadcast %c4_i32_99 : i32 to vector<16x512xi32>
    %396 = arith.cmpi sge, %2, %395 : vector<16x512xi32>
    %cst_100 = arith.constant 0.000000e+00 : f32
    %397 = vector.broadcast %cst_100 : f32 to vector<16x512xf32>
    %398 = arith.select %396, %394, %397 : vector<16x512xi1>, vector<16x512xf32>
    %399 = vector.extract_strided_slice %293 {offsets = [0, 11], sizes = [16, 1], strides = [1, 1]} : vector<16x31xf32> to vector<16x1xf32>
    %400 = vector.broadcast %399 : vector<16x1xf32> to vector<16x512xf32>
    %401 = arith.mulf %398, %400 : vector<16x512xf32>
    %402 = arith.addf %393, %401 : vector<16x512xf32>
    %c3_i32_101 = arith.constant 3 : i32
    %403 = tpu.dynamic_rotate %292 by %c3_i32_101 dim 1 : vector<16x512xf32>, i32 -> vector<16x512xf32>
    %c3_i32_102 = arith.constant 3 : i32
    %404 = vector.broadcast %c3_i32_102 : i32 to vector<16x512xi32>
    %405 = arith.cmpi sge, %2, %404 : vector<16x512xi32>
    %cst_103 = arith.constant 0.000000e+00 : f32
    %406 = vector.broadcast %cst_103 : f32 to vector<16x512xf32>
    %407 = arith.select %405, %403, %406 : vector<16x512xi1>, vector<16x512xf32>
    %408 = vector.extract_strided_slice %293 {offsets = [0, 12], sizes = [16, 1], strides = [1, 1]} : vector<16x31xf32> to vector<16x1xf32>
    %409 = vector.broadcast %408 : vector<16x1xf32> to vector<16x512xf32>
    %410 = arith.mulf %407, %409 : vector<16x512xf32>
    %411 = arith.addf %402, %410 : vector<16x512xf32>
    %c2_i32_104 = arith.constant 2 : i32
    %412 = tpu.dynamic_rotate %292 by %c2_i32_104 dim 1 : vector<16x512xf32>, i32 -> vector<16x512xf32>
    %c2_i32_105 = arith.constant 2 : i32
    %413 = vector.broadcast %c2_i32_105 : i32 to vector<16x512xi32>
    %414 = arith.cmpi sge, %2, %413 : vector<16x512xi32>
    %cst_106 = arith.constant 0.000000e+00 : f32
    %415 = vector.broadcast %cst_106 : f32 to vector<16x512xf32>
    %416 = arith.select %414, %412, %415 : vector<16x512xi1>, vector<16x512xf32>
    %417 = vector.extract_strided_slice %293 {offsets = [0, 13], sizes = [16, 1], strides = [1, 1]} : vector<16x31xf32> to vector<16x1xf32>
    %418 = vector.broadcast %417 : vector<16x1xf32> to vector<16x512xf32>
    %419 = arith.mulf %416, %418 : vector<16x512xf32>
    %420 = arith.addf %411, %419 : vector<16x512xf32>
    %c1_i32_107 = arith.constant 1 : i32
    %421 = tpu.dynamic_rotate %292 by %c1_i32_107 dim 1 : vector<16x512xf32>, i32 -> vector<16x512xf32>
    %c1_i32_108 = arith.constant 1 : i32
    %422 = vector.broadcast %c1_i32_108 : i32 to vector<16x512xi32>
    %423 = arith.cmpi sge, %2, %422 : vector<16x512xi32>
    %cst_109 = arith.constant 0.000000e+00 : f32
    %424 = vector.broadcast %cst_109 : f32 to vector<16x512xf32>
    %425 = arith.select %423, %421, %424 : vector<16x512xi1>, vector<16x512xf32>
    %426 = vector.extract_strided_slice %293 {offsets = [0, 14], sizes = [16, 1], strides = [1, 1]} : vector<16x31xf32> to vector<16x1xf32>
    %427 = vector.broadcast %426 : vector<16x1xf32> to vector<16x512xf32>
    %428 = arith.mulf %425, %427 : vector<16x512xf32>
    %429 = arith.addf %420, %428 : vector<16x512xf32>
    %430 = vector.extract_strided_slice %293 {offsets = [0, 15], sizes = [16, 1], strides = [1, 1]} : vector<16x31xf32> to vector<16x1xf32>
    %431 = vector.broadcast %430 : vector<16x1xf32> to vector<16x512xf32>
    %432 = arith.mulf %292, %431 : vector<16x512xf32>
    %433 = arith.addf %429, %432 : vector<16x512xf32>
    %c511_i32 = arith.constant 511 : i32
    %434 = tpu.dynamic_rotate %292 by %c511_i32 dim 1 : vector<16x512xf32>, i32 -> vector<16x512xf32>
    %c15_i32_110 = arith.constant 15 : i32
    %435 = vector.broadcast %c15_i32_110 : i32 to vector<16x512xi32>
    %436 = arith.cmpi slt, %2, %435 : vector<16x512xi32>
    %cst_111 = arith.constant 0.000000e+00 : f32
    %437 = vector.broadcast %cst_111 : f32 to vector<16x512xf32>
    %438 = arith.select %436, %434, %437 : vector<16x512xi1>, vector<16x512xf32>
    %439 = vector.extract_strided_slice %293 {offsets = [0, 16], sizes = [16, 1], strides = [1, 1]} : vector<16x31xf32> to vector<16x1xf32>
    %440 = vector.broadcast %439 : vector<16x1xf32> to vector<16x512xf32>
    %441 = arith.mulf %438, %440 : vector<16x512xf32>
    %442 = arith.addf %433, %441 : vector<16x512xf32>
    %c510_i32 = arith.constant 510 : i32
    %443 = tpu.dynamic_rotate %292 by %c510_i32 dim 1 : vector<16x512xf32>, i32 -> vector<16x512xf32>
    %c14_i32_112 = arith.constant 14 : i32
    %444 = vector.broadcast %c14_i32_112 : i32 to vector<16x512xi32>
    %445 = arith.cmpi slt, %2, %444 : vector<16x512xi32>
    %cst_113 = arith.constant 0.000000e+00 : f32
    %446 = vector.broadcast %cst_113 : f32 to vector<16x512xf32>
    %447 = arith.select %445, %443, %446 : vector<16x512xi1>, vector<16x512xf32>
    %448 = vector.extract_strided_slice %293 {offsets = [0, 17], sizes = [16, 1], strides = [1, 1]} : vector<16x31xf32> to vector<16x1xf32>
    %449 = vector.broadcast %448 : vector<16x1xf32> to vector<16x512xf32>
    %450 = arith.mulf %447, %449 : vector<16x512xf32>
    %451 = arith.addf %442, %450 : vector<16x512xf32>
    %c509_i32 = arith.constant 509 : i32
    %452 = tpu.dynamic_rotate %292 by %c509_i32 dim 1 : vector<16x512xf32>, i32 -> vector<16x512xf32>
    %c13_i32_114 = arith.constant 13 : i32
    %453 = vector.broadcast %c13_i32_114 : i32 to vector<16x512xi32>
    %454 = arith.cmpi slt, %2, %453 : vector<16x512xi32>
    %cst_115 = arith.constant 0.000000e+00 : f32
    %455 = vector.broadcast %cst_115 : f32 to vector<16x512xf32>
    %456 = arith.select %454, %452, %455 : vector<16x512xi1>, vector<16x512xf32>
    %457 = vector.extract_strided_slice %293 {offsets = [0, 18], sizes = [16, 1], strides = [1, 1]} : vector<16x31xf32> to vector<16x1xf32>
    %458 = vector.broadcast %457 : vector<16x1xf32> to vector<16x512xf32>
    %459 = arith.mulf %456, %458 : vector<16x512xf32>
    %460 = arith.addf %451, %459 : vector<16x512xf32>
    %c508_i32 = arith.constant 508 : i32
    %461 = tpu.dynamic_rotate %292 by %c508_i32 dim 1 : vector<16x512xf32>, i32 -> vector<16x512xf32>
    %c12_i32_116 = arith.constant 12 : i32
    %462 = vector.broadcast %c12_i32_116 : i32 to vector<16x512xi32>
    %463 = arith.cmpi slt, %2, %462 : vector<16x512xi32>
    %cst_117 = arith.constant 0.000000e+00 : f32
    %464 = vector.broadcast %cst_117 : f32 to vector<16x512xf32>
    %465 = arith.select %463, %461, %464 : vector<16x512xi1>, vector<16x512xf32>
    %466 = vector.extract_strided_slice %293 {offsets = [0, 19], sizes = [16, 1], strides = [1, 1]} : vector<16x31xf32> to vector<16x1xf32>
    %467 = vector.broadcast %466 : vector<16x1xf32> to vector<16x512xf32>
    %468 = arith.mulf %465, %467 : vector<16x512xf32>
    %469 = arith.addf %460, %468 : vector<16x512xf32>
    %c507_i32 = arith.constant 507 : i32
    %470 = tpu.dynamic_rotate %292 by %c507_i32 dim 1 : vector<16x512xf32>, i32 -> vector<16x512xf32>
    %c11_i32_118 = arith.constant 11 : i32
    %471 = vector.broadcast %c11_i32_118 : i32 to vector<16x512xi32>
    %472 = arith.cmpi slt, %2, %471 : vector<16x512xi32>
    %cst_119 = arith.constant 0.000000e+00 : f32
    %473 = vector.broadcast %cst_119 : f32 to vector<16x512xf32>
    %474 = arith.select %472, %470, %473 : vector<16x512xi1>, vector<16x512xf32>
    %475 = vector.extract_strided_slice %293 {offsets = [0, 20], sizes = [16, 1], strides = [1, 1]} : vector<16x31xf32> to vector<16x1xf32>
    %476 = vector.broadcast %475 : vector<16x1xf32> to vector<16x512xf32>
    %477 = arith.mulf %474, %476 : vector<16x512xf32>
    %478 = arith.addf %469, %477 : vector<16x512xf32>
    %c506_i32 = arith.constant 506 : i32
    %479 = tpu.dynamic_rotate %292 by %c506_i32 dim 1 : vector<16x512xf32>, i32 -> vector<16x512xf32>
    %c10_i32_120 = arith.constant 10 : i32
    %480 = vector.broadcast %c10_i32_120 : i32 to vector<16x512xi32>
    %481 = arith.cmpi slt, %2, %480 : vector<16x512xi32>
    %cst_121 = arith.constant 0.000000e+00 : f32
    %482 = vector.broadcast %cst_121 : f32 to vector<16x512xf32>
    %483 = arith.select %481, %479, %482 : vector<16x512xi1>, vector<16x512xf32>
    %484 = vector.extract_strided_slice %293 {offsets = [0, 21], sizes = [16, 1], strides = [1, 1]} : vector<16x31xf32> to vector<16x1xf32>
    %485 = vector.broadcast %484 : vector<16x1xf32> to vector<16x512xf32>
    %486 = arith.mulf %483, %485 : vector<16x512xf32>
    %487 = arith.addf %478, %486 : vector<16x512xf32>
    %c505_i32 = arith.constant 505 : i32
    %488 = tpu.dynamic_rotate %292 by %c505_i32 dim 1 : vector<16x512xf32>, i32 -> vector<16x512xf32>
    %c9_i32_122 = arith.constant 9 : i32
    %489 = vector.broadcast %c9_i32_122 : i32 to vector<16x512xi32>
    %490 = arith.cmpi slt, %2, %489 : vector<16x512xi32>
    %cst_123 = arith.constant 0.000000e+00 : f32
    %491 = vector.broadcast %cst_123 : f32 to vector<16x512xf32>
    %492 = arith.select %490, %488, %491 : vector<16x512xi1>, vector<16x512xf32>
    %493 = vector.extract_strided_slice %293 {offsets = [0, 22], sizes = [16, 1], strides = [1, 1]} : vector<16x31xf32> to vector<16x1xf32>
    %494 = vector.broadcast %493 : vector<16x1xf32> to vector<16x512xf32>
    %495 = arith.mulf %492, %494 : vector<16x512xf32>
    %496 = arith.addf %487, %495 : vector<16x512xf32>
    %c504_i32 = arith.constant 504 : i32
    %497 = tpu.dynamic_rotate %292 by %c504_i32 dim 1 : vector<16x512xf32>, i32 -> vector<16x512xf32>
    %c8_i32_124 = arith.constant 8 : i32
    %498 = vector.broadcast %c8_i32_124 : i32 to vector<16x512xi32>
    %499 = arith.cmpi slt, %2, %498 : vector<16x512xi32>
    %cst_125 = arith.constant 0.000000e+00 : f32
    %500 = vector.broadcast %cst_125 : f32 to vector<16x512xf32>
    %501 = arith.select %499, %497, %500 : vector<16x512xi1>, vector<16x512xf32>
    %502 = vector.extract_strided_slice %293 {offsets = [0, 23], sizes = [16, 1], strides = [1, 1]} : vector<16x31xf32> to vector<16x1xf32>
    %503 = vector.broadcast %502 : vector<16x1xf32> to vector<16x512xf32>
    %504 = arith.mulf %501, %503 : vector<16x512xf32>
    %505 = arith.addf %496, %504 : vector<16x512xf32>
    %c503_i32 = arith.constant 503 : i32
    %506 = tpu.dynamic_rotate %292 by %c503_i32 dim 1 : vector<16x512xf32>, i32 -> vector<16x512xf32>
    %c7_i32_126 = arith.constant 7 : i32
    %507 = vector.broadcast %c7_i32_126 : i32 to vector<16x512xi32>
    %508 = arith.cmpi slt, %2, %507 : vector<16x512xi32>
    %cst_127 = arith.constant 0.000000e+00 : f32
    %509 = vector.broadcast %cst_127 : f32 to vector<16x512xf32>
    %510 = arith.select %508, %506, %509 : vector<16x512xi1>, vector<16x512xf32>
    %511 = vector.extract_strided_slice %293 {offsets = [0, 24], sizes = [16, 1], strides = [1, 1]} : vector<16x31xf32> to vector<16x1xf32>
    %512 = vector.broadcast %511 : vector<16x1xf32> to vector<16x512xf32>
    %513 = arith.mulf %510, %512 : vector<16x512xf32>
    %514 = arith.addf %505, %513 : vector<16x512xf32>
    %c502_i32 = arith.constant 502 : i32
    %515 = tpu.dynamic_rotate %292 by %c502_i32 dim 1 : vector<16x512xf32>, i32 -> vector<16x512xf32>
    %c6_i32_128 = arith.constant 6 : i32
    %516 = vector.broadcast %c6_i32_128 : i32 to vector<16x512xi32>
    %517 = arith.cmpi slt, %2, %516 : vector<16x512xi32>
    %cst_129 = arith.constant 0.000000e+00 : f32
    %518 = vector.broadcast %cst_129 : f32 to vector<16x512xf32>
    %519 = arith.select %517, %515, %518 : vector<16x512xi1>, vector<16x512xf32>
    %520 = vector.extract_strided_slice %293 {offsets = [0, 25], sizes = [16, 1], strides = [1, 1]} : vector<16x31xf32> to vector<16x1xf32>
    %521 = vector.broadcast %520 : vector<16x1xf32> to vector<16x512xf32>
    %522 = arith.mulf %519, %521 : vector<16x512xf32>
    %523 = arith.addf %514, %522 : vector<16x512xf32>
    %c501_i32 = arith.constant 501 : i32
    %524 = tpu.dynamic_rotate %292 by %c501_i32 dim 1 : vector<16x512xf32>, i32 -> vector<16x512xf32>
    %c5_i32_130 = arith.constant 5 : i32
    %525 = vector.broadcast %c5_i32_130 : i32 to vector<16x512xi32>
    %526 = arith.cmpi slt, %2, %525 : vector<16x512xi32>
    %cst_131 = arith.constant 0.000000e+00 : f32
    %527 = vector.broadcast %cst_131 : f32 to vector<16x512xf32>
    %528 = arith.select %526, %524, %527 : vector<16x512xi1>, vector<16x512xf32>
    %529 = vector.extract_strided_slice %293 {offsets = [0, 26], sizes = [16, 1], strides = [1, 1]} : vector<16x31xf32> to vector<16x1xf32>
    %530 = vector.broadcast %529 : vector<16x1xf32> to vector<16x512xf32>
    %531 = arith.mulf %528, %530 : vector<16x512xf32>
    %532 = arith.addf %523, %531 : vector<16x512xf32>
    %c500_i32 = arith.constant 500 : i32
    %533 = tpu.dynamic_rotate %292 by %c500_i32 dim 1 : vector<16x512xf32>, i32 -> vector<16x512xf32>
    %c4_i32_132 = arith.constant 4 : i32
    %534 = vector.broadcast %c4_i32_132 : i32 to vector<16x512xi32>
    %535 = arith.cmpi slt, %2, %534 : vector<16x512xi32>
    %cst_133 = arith.constant 0.000000e+00 : f32
    %536 = vector.broadcast %cst_133 : f32 to vector<16x512xf32>
    %537 = arith.select %535, %533, %536 : vector<16x512xi1>, vector<16x512xf32>
    %538 = vector.extract_strided_slice %293 {offsets = [0, 27], sizes = [16, 1], strides = [1, 1]} : vector<16x31xf32> to vector<16x1xf32>
    %539 = vector.broadcast %538 : vector<16x1xf32> to vector<16x512xf32>
    %540 = arith.mulf %537, %539 : vector<16x512xf32>
    %541 = arith.addf %532, %540 : vector<16x512xf32>
    %c499_i32 = arith.constant 499 : i32
    %542 = tpu.dynamic_rotate %292 by %c499_i32 dim 1 : vector<16x512xf32>, i32 -> vector<16x512xf32>
    %c3_i32_134 = arith.constant 3 : i32
    %543 = vector.broadcast %c3_i32_134 : i32 to vector<16x512xi32>
    %544 = arith.cmpi slt, %2, %543 : vector<16x512xi32>
    %cst_135 = arith.constant 0.000000e+00 : f32
    %545 = vector.broadcast %cst_135 : f32 to vector<16x512xf32>
    %546 = arith.select %544, %542, %545 : vector<16x512xi1>, vector<16x512xf32>
    %547 = vector.extract_strided_slice %293 {offsets = [0, 28], sizes = [16, 1], strides = [1, 1]} : vector<16x31xf32> to vector<16x1xf32>
    %548 = vector.broadcast %547 : vector<16x1xf32> to vector<16x512xf32>
    %549 = arith.mulf %546, %548 : vector<16x512xf32>
    %550 = arith.addf %541, %549 : vector<16x512xf32>
    %c498_i32 = arith.constant 498 : i32
    %551 = tpu.dynamic_rotate %292 by %c498_i32 dim 1 : vector<16x512xf32>, i32 -> vector<16x512xf32>
    %c2_i32_136 = arith.constant 2 : i32
    %552 = vector.broadcast %c2_i32_136 : i32 to vector<16x512xi32>
    %553 = arith.cmpi slt, %2, %552 : vector<16x512xi32>
    %cst_137 = arith.constant 0.000000e+00 : f32
    %554 = vector.broadcast %cst_137 : f32 to vector<16x512xf32>
    %555 = arith.select %553, %551, %554 : vector<16x512xi1>, vector<16x512xf32>
    %556 = vector.extract_strided_slice %293 {offsets = [0, 29], sizes = [16, 1], strides = [1, 1]} : vector<16x31xf32> to vector<16x1xf32>
    %557 = vector.broadcast %556 : vector<16x1xf32> to vector<16x512xf32>
    %558 = arith.mulf %555, %557 : vector<16x512xf32>
    %559 = arith.addf %550, %558 : vector<16x512xf32>
    %c497_i32 = arith.constant 497 : i32
    %560 = tpu.dynamic_rotate %292 by %c497_i32 dim 1 : vector<16x512xf32>, i32 -> vector<16x512xf32>
    %c1_i32_138 = arith.constant 1 : i32
    %561 = vector.broadcast %c1_i32_138 : i32 to vector<16x512xi32>
    %562 = arith.cmpi slt, %2, %561 : vector<16x512xi32>
    %cst_139 = arith.constant 0.000000e+00 : f32
    %563 = vector.broadcast %cst_139 : f32 to vector<16x512xf32>
    %564 = arith.select %562, %560, %563 : vector<16x512xi1>, vector<16x512xf32>
    %565 = vector.extract_strided_slice %293 {offsets = [0, 30], sizes = [16, 1], strides = [1, 1]} : vector<16x31xf32> to vector<16x1xf32>
    %566 = vector.broadcast %565 : vector<16x1xf32> to vector<16x512xf32>
    %567 = arith.mulf %564, %566 : vector<16x512xf32>
    %568 = arith.addf %559, %567 : vector<16x512xf32>
    %c0_140 = arith.constant 0 : index
    %c0_141 = arith.constant 0 : index
    %569 = vector.load %arg10[%c0_140, %c0_141] : memref<16x1xf32, #tpu.memory_space<vmem>>, vector<16x1xf32>
    %570 = vector.broadcast %569 : vector<16x1xf32> to vector<16x512xf32>
    %571 = arith.mulf %568, %570 : vector<16x512xf32>
    %c0_142 = arith.constant 0 : index
    %c0_143 = arith.constant 0 : index
    %572 = vector.load %arg11[%c0_142, %c0_143] : memref<16x1xf32, #tpu.memory_space<vmem>>, vector<16x1xf32>
    %573 = vector.broadcast %572 : vector<16x1xf32> to vector<16x512xf32>
    %574 = arith.addf %571, %573 : vector<16x512xf32>
    %c0_144 = arith.constant 0 : index
    %c0_145 = arith.constant 0 : index
    %575 = vector.load %arg6[%c0_144, %c0_145] : memref<16x25xf32, #tpu.memory_space<vmem>>, vector<16x25xf32>
    %cst_146 = arith.constant 0.000000e+00 : f32
    %576 = vector.broadcast %cst_146 : f32 to vector<16x512xf32>
    %c34_i32 = arith.constant 34 : i32
    %577 = tpu.dynamic_rotate %574 by %c34_i32 dim 1 : vector<16x512xf32>, i32 -> vector<16x512xf32>
    %c2_i32_147 = arith.constant 2 : i32
    %578 = vector.broadcast %c2_i32_147 : i32 to vector<16x512xi32>
    %579 = arith.cmpi sge, %1, %578 : vector<16x512xi32>
    %c2_i32_148 = arith.constant 2 : i32
    %580 = vector.broadcast %c2_i32_148 : i32 to vector<16x512xi32>
    %581 = arith.cmpi sge, %2, %580 : vector<16x512xi32>
    %582 = arith.andi %579, %581 : vector<16x512xi1>
    %cst_149 = arith.constant 0.000000e+00 : f32
    %583 = vector.broadcast %cst_149 : f32 to vector<16x512xf32>
    %584 = arith.select %582, %577, %583 : vector<16x512xi1>, vector<16x512xf32>
    %585 = vector.extract_strided_slice %575 {offsets = [0, 0], sizes = [16, 1], strides = [1, 1]} : vector<16x25xf32> to vector<16x1xf32>
    %586 = vector.broadcast %585 : vector<16x1xf32> to vector<16x512xf32>
    %587 = arith.mulf %584, %586 : vector<16x512xf32>
    %588 = arith.addf %576, %587 : vector<16x512xf32>
    %c32_i32_150 = arith.constant 32 : i32
    %589 = tpu.dynamic_rotate %574 by %c32_i32_150 dim 1 : vector<16x512xf32>, i32 -> vector<16x512xf32>
    %c2_i32_151 = arith.constant 2 : i32
    %590 = vector.broadcast %c2_i32_151 : i32 to vector<16x512xi32>
    %591 = arith.cmpi sge, %1, %590 : vector<16x512xi32>
    %cst_152 = arith.constant 0.000000e+00 : f32
    %592 = vector.broadcast %cst_152 : f32 to vector<16x512xf32>
    %593 = arith.select %591, %589, %592 : vector<16x512xi1>, vector<16x512xf32>
    %594 = vector.extract_strided_slice %575 {offsets = [0, 1], sizes = [16, 1], strides = [1, 1]} : vector<16x25xf32> to vector<16x1xf32>
    %595 = vector.broadcast %594 : vector<16x1xf32> to vector<16x512xf32>
    %596 = arith.mulf %593, %595 : vector<16x512xf32>
    %597 = arith.addf %588, %596 : vector<16x512xf32>
    %c30_i32 = arith.constant 30 : i32
    %598 = tpu.dynamic_rotate %574 by %c30_i32 dim 1 : vector<16x512xf32>, i32 -> vector<16x512xf32>
    %c2_i32_153 = arith.constant 2 : i32
    %599 = vector.broadcast %c2_i32_153 : i32 to vector<16x512xi32>
    %600 = arith.cmpi sge, %1, %599 : vector<16x512xi32>
    %c14_i32_154 = arith.constant 14 : i32
    %601 = vector.broadcast %c14_i32_154 : i32 to vector<16x512xi32>
    %602 = arith.cmpi slt, %2, %601 : vector<16x512xi32>
    %603 = arith.andi %600, %602 : vector<16x512xi1>
    %cst_155 = arith.constant 0.000000e+00 : f32
    %604 = vector.broadcast %cst_155 : f32 to vector<16x512xf32>
    %605 = arith.select %603, %598, %604 : vector<16x512xi1>, vector<16x512xf32>
    %606 = vector.extract_strided_slice %575 {offsets = [0, 2], sizes = [16, 1], strides = [1, 1]} : vector<16x25xf32> to vector<16x1xf32>
    %607 = vector.broadcast %606 : vector<16x1xf32> to vector<16x512xf32>
    %608 = arith.mulf %605, %607 : vector<16x512xf32>
    %609 = arith.addf %597, %608 : vector<16x512xf32>
    %c2_i32_156 = arith.constant 2 : i32
    %610 = tpu.dynamic_rotate %574 by %c2_i32_156 dim 1 : vector<16x512xf32>, i32 -> vector<16x512xf32>
    %c2_i32_157 = arith.constant 2 : i32
    %611 = vector.broadcast %c2_i32_157 : i32 to vector<16x512xi32>
    %612 = arith.cmpi sge, %2, %611 : vector<16x512xi32>
    %cst_158 = arith.constant 0.000000e+00 : f32
    %613 = vector.broadcast %cst_158 : f32 to vector<16x512xf32>
    %614 = arith.select %612, %610, %613 : vector<16x512xi1>, vector<16x512xf32>
    %615 = vector.extract_strided_slice %575 {offsets = [0, 3], sizes = [16, 1], strides = [1, 1]} : vector<16x25xf32> to vector<16x1xf32>
    %616 = vector.broadcast %615 : vector<16x1xf32> to vector<16x512xf32>
    %617 = arith.mulf %614, %616 : vector<16x512xf32>
    %618 = arith.addf %609, %617 : vector<16x512xf32>
    %619 = vector.extract_strided_slice %575 {offsets = [0, 4], sizes = [16, 1], strides = [1, 1]} : vector<16x25xf32> to vector<16x1xf32>
    %620 = vector.broadcast %619 : vector<16x1xf32> to vector<16x512xf32>
    %621 = arith.mulf %574, %620 : vector<16x512xf32>
    %622 = arith.addf %618, %621 : vector<16x512xf32>
    %c510_i32_159 = arith.constant 510 : i32
    %623 = tpu.dynamic_rotate %574 by %c510_i32_159 dim 1 : vector<16x512xf32>, i32 -> vector<16x512xf32>
    %c14_i32_160 = arith.constant 14 : i32
    %624 = vector.broadcast %c14_i32_160 : i32 to vector<16x512xi32>
    %625 = arith.cmpi slt, %2, %624 : vector<16x512xi32>
    %cst_161 = arith.constant 0.000000e+00 : f32
    %626 = vector.broadcast %cst_161 : f32 to vector<16x512xf32>
    %627 = arith.select %625, %623, %626 : vector<16x512xi1>, vector<16x512xf32>
    %628 = vector.extract_strided_slice %575 {offsets = [0, 5], sizes = [16, 1], strides = [1, 1]} : vector<16x25xf32> to vector<16x1xf32>
    %629 = vector.broadcast %628 : vector<16x1xf32> to vector<16x512xf32>
    %630 = arith.mulf %627, %629 : vector<16x512xf32>
    %631 = arith.addf %622, %630 : vector<16x512xf32>
    %c482_i32 = arith.constant 482 : i32
    %632 = tpu.dynamic_rotate %574 by %c482_i32 dim 1 : vector<16x512xf32>, i32 -> vector<16x512xf32>
    %c14_i32_162 = arith.constant 14 : i32
    %633 = vector.broadcast %c14_i32_162 : i32 to vector<16x512xi32>
    %634 = arith.cmpi slt, %1, %633 : vector<16x512xi32>
    %c2_i32_163 = arith.constant 2 : i32
    %635 = vector.broadcast %c2_i32_163 : i32 to vector<16x512xi32>
    %636 = arith.cmpi sge, %2, %635 : vector<16x512xi32>
    %637 = arith.andi %634, %636 : vector<16x512xi1>
    %cst_164 = arith.constant 0.000000e+00 : f32
    %638 = vector.broadcast %cst_164 : f32 to vector<16x512xf32>
    %639 = arith.select %637, %632, %638 : vector<16x512xi1>, vector<16x512xf32>
    %640 = vector.extract_strided_slice %575 {offsets = [0, 6], sizes = [16, 1], strides = [1, 1]} : vector<16x25xf32> to vector<16x1xf32>
    %641 = vector.broadcast %640 : vector<16x1xf32> to vector<16x512xf32>
    %642 = arith.mulf %639, %641 : vector<16x512xf32>
    %643 = arith.addf %631, %642 : vector<16x512xf32>
    %c480_i32_165 = arith.constant 480 : i32
    %644 = tpu.dynamic_rotate %574 by %c480_i32_165 dim 1 : vector<16x512xf32>, i32 -> vector<16x512xf32>
    %c14_i32_166 = arith.constant 14 : i32
    %645 = vector.broadcast %c14_i32_166 : i32 to vector<16x512xi32>
    %646 = arith.cmpi slt, %1, %645 : vector<16x512xi32>
    %cst_167 = arith.constant 0.000000e+00 : f32
    %647 = vector.broadcast %cst_167 : f32 to vector<16x512xf32>
    %648 = arith.select %646, %644, %647 : vector<16x512xi1>, vector<16x512xf32>
    %649 = vector.extract_strided_slice %575 {offsets = [0, 7], sizes = [16, 1], strides = [1, 1]} : vector<16x25xf32> to vector<16x1xf32>
    %650 = vector.broadcast %649 : vector<16x1xf32> to vector<16x512xf32>
    %651 = arith.mulf %648, %650 : vector<16x512xf32>
    %652 = arith.addf %643, %651 : vector<16x512xf32>
    %c478_i32 = arith.constant 478 : i32
    %653 = tpu.dynamic_rotate %574 by %c478_i32 dim 1 : vector<16x512xf32>, i32 -> vector<16x512xf32>
    %c14_i32_168 = arith.constant 14 : i32
    %654 = vector.broadcast %c14_i32_168 : i32 to vector<16x512xi32>
    %655 = arith.cmpi slt, %1, %654 : vector<16x512xi32>
    %c14_i32_169 = arith.constant 14 : i32
    %656 = vector.broadcast %c14_i32_169 : i32 to vector<16x512xi32>
    %657 = arith.cmpi slt, %2, %656 : vector<16x512xi32>
    %658 = arith.andi %655, %657 : vector<16x512xi1>
    %cst_170 = arith.constant 0.000000e+00 : f32
    %659 = vector.broadcast %cst_170 : f32 to vector<16x512xf32>
    %660 = arith.select %658, %653, %659 : vector<16x512xi1>, vector<16x512xf32>
    %661 = vector.extract_strided_slice %575 {offsets = [0, 8], sizes = [16, 1], strides = [1, 1]} : vector<16x25xf32> to vector<16x1xf32>
    %662 = vector.broadcast %661 : vector<16x1xf32> to vector<16x512xf32>
    %663 = arith.mulf %660, %662 : vector<16x512xf32>
    %664 = arith.addf %652, %663 : vector<16x512xf32>
    %c68_i32 = arith.constant 68 : i32
    %665 = tpu.dynamic_rotate %574 by %c68_i32 dim 1 : vector<16x512xf32>, i32 -> vector<16x512xf32>
    %c4_i32_171 = arith.constant 4 : i32
    %666 = vector.broadcast %c4_i32_171 : i32 to vector<16x512xi32>
    %667 = arith.cmpi sge, %1, %666 : vector<16x512xi32>
    %c4_i32_172 = arith.constant 4 : i32
    %668 = vector.broadcast %c4_i32_172 : i32 to vector<16x512xi32>
    %669 = arith.cmpi sge, %2, %668 : vector<16x512xi32>
    %670 = arith.andi %667, %669 : vector<16x512xi1>
    %cst_173 = arith.constant 0.000000e+00 : f32
    %671 = vector.broadcast %cst_173 : f32 to vector<16x512xf32>
    %672 = arith.select %670, %665, %671 : vector<16x512xi1>, vector<16x512xf32>
    %673 = vector.extract_strided_slice %575 {offsets = [0, 9], sizes = [16, 1], strides = [1, 1]} : vector<16x25xf32> to vector<16x1xf32>
    %674 = vector.broadcast %673 : vector<16x1xf32> to vector<16x512xf32>
    %675 = arith.mulf %672, %674 : vector<16x512xf32>
    %676 = arith.addf %664, %675 : vector<16x512xf32>
    %c64_i32_174 = arith.constant 64 : i32
    %677 = tpu.dynamic_rotate %574 by %c64_i32_174 dim 1 : vector<16x512xf32>, i32 -> vector<16x512xf32>
    %c4_i32_175 = arith.constant 4 : i32
    %678 = vector.broadcast %c4_i32_175 : i32 to vector<16x512xi32>
    %679 = arith.cmpi sge, %1, %678 : vector<16x512xi32>
    %cst_176 = arith.constant 0.000000e+00 : f32
    %680 = vector.broadcast %cst_176 : f32 to vector<16x512xf32>
    %681 = arith.select %679, %677, %680 : vector<16x512xi1>, vector<16x512xf32>
    %682 = vector.extract_strided_slice %575 {offsets = [0, 10], sizes = [16, 1], strides = [1, 1]} : vector<16x25xf32> to vector<16x1xf32>
    %683 = vector.broadcast %682 : vector<16x1xf32> to vector<16x512xf32>
    %684 = arith.mulf %681, %683 : vector<16x512xf32>
    %685 = arith.addf %676, %684 : vector<16x512xf32>
    %c60_i32 = arith.constant 60 : i32
    %686 = tpu.dynamic_rotate %574 by %c60_i32 dim 1 : vector<16x512xf32>, i32 -> vector<16x512xf32>
    %c4_i32_177 = arith.constant 4 : i32
    %687 = vector.broadcast %c4_i32_177 : i32 to vector<16x512xi32>
    %688 = arith.cmpi sge, %1, %687 : vector<16x512xi32>
    %c12_i32_178 = arith.constant 12 : i32
    %689 = vector.broadcast %c12_i32_178 : i32 to vector<16x512xi32>
    %690 = arith.cmpi slt, %2, %689 : vector<16x512xi32>
    %691 = arith.andi %688, %690 : vector<16x512xi1>
    %cst_179 = arith.constant 0.000000e+00 : f32
    %692 = vector.broadcast %cst_179 : f32 to vector<16x512xf32>
    %693 = arith.select %691, %686, %692 : vector<16x512xi1>, vector<16x512xf32>
    %694 = vector.extract_strided_slice %575 {offsets = [0, 11], sizes = [16, 1], strides = [1, 1]} : vector<16x25xf32> to vector<16x1xf32>
    %695 = vector.broadcast %694 : vector<16x1xf32> to vector<16x512xf32>
    %696 = arith.mulf %693, %695 : vector<16x512xf32>
    %697 = arith.addf %685, %696 : vector<16x512xf32>
    %c4_i32_180 = arith.constant 4 : i32
    %698 = tpu.dynamic_rotate %574 by %c4_i32_180 dim 1 : vector<16x512xf32>, i32 -> vector<16x512xf32>
    %c4_i32_181 = arith.constant 4 : i32
    %699 = vector.broadcast %c4_i32_181 : i32 to vector<16x512xi32>
    %700 = arith.cmpi sge, %2, %699 : vector<16x512xi32>
    %cst_182 = arith.constant 0.000000e+00 : f32
    %701 = vector.broadcast %cst_182 : f32 to vector<16x512xf32>
    %702 = arith.select %700, %698, %701 : vector<16x512xi1>, vector<16x512xf32>
    %703 = vector.extract_strided_slice %575 {offsets = [0, 12], sizes = [16, 1], strides = [1, 1]} : vector<16x25xf32> to vector<16x1xf32>
    %704 = vector.broadcast %703 : vector<16x1xf32> to vector<16x512xf32>
    %705 = arith.mulf %702, %704 : vector<16x512xf32>
    %706 = arith.addf %697, %705 : vector<16x512xf32>
    %c508_i32_183 = arith.constant 508 : i32
    %707 = tpu.dynamic_rotate %574 by %c508_i32_183 dim 1 : vector<16x512xf32>, i32 -> vector<16x512xf32>
    %c12_i32_184 = arith.constant 12 : i32
    %708 = vector.broadcast %c12_i32_184 : i32 to vector<16x512xi32>
    %709 = arith.cmpi slt, %2, %708 : vector<16x512xi32>
    %cst_185 = arith.constant 0.000000e+00 : f32
    %710 = vector.broadcast %cst_185 : f32 to vector<16x512xf32>
    %711 = arith.select %709, %707, %710 : vector<16x512xi1>, vector<16x512xf32>
    %712 = vector.extract_strided_slice %575 {offsets = [0, 13], sizes = [16, 1], strides = [1, 1]} : vector<16x25xf32> to vector<16x1xf32>
    %713 = vector.broadcast %712 : vector<16x1xf32> to vector<16x512xf32>
    %714 = arith.mulf %711, %713 : vector<16x512xf32>
    %715 = arith.addf %706, %714 : vector<16x512xf32>
    %c452_i32 = arith.constant 452 : i32
    %716 = tpu.dynamic_rotate %574 by %c452_i32 dim 1 : vector<16x512xf32>, i32 -> vector<16x512xf32>
    %c12_i32_186 = arith.constant 12 : i32
    %717 = vector.broadcast %c12_i32_186 : i32 to vector<16x512xi32>
    %718 = arith.cmpi slt, %1, %717 : vector<16x512xi32>
    %c4_i32_187 = arith.constant 4 : i32
    %719 = vector.broadcast %c4_i32_187 : i32 to vector<16x512xi32>
    %720 = arith.cmpi sge, %2, %719 : vector<16x512xi32>
    %721 = arith.andi %718, %720 : vector<16x512xi1>
    %cst_188 = arith.constant 0.000000e+00 : f32
    %722 = vector.broadcast %cst_188 : f32 to vector<16x512xf32>
    %723 = arith.select %721, %716, %722 : vector<16x512xi1>, vector<16x512xf32>
    %724 = vector.extract_strided_slice %575 {offsets = [0, 14], sizes = [16, 1], strides = [1, 1]} : vector<16x25xf32> to vector<16x1xf32>
    %725 = vector.broadcast %724 : vector<16x1xf32> to vector<16x512xf32>
    %726 = arith.mulf %723, %725 : vector<16x512xf32>
    %727 = arith.addf %715, %726 : vector<16x512xf32>
    %c448_i32_189 = arith.constant 448 : i32
    %728 = tpu.dynamic_rotate %574 by %c448_i32_189 dim 1 : vector<16x512xf32>, i32 -> vector<16x512xf32>
    %c12_i32_190 = arith.constant 12 : i32
    %729 = vector.broadcast %c12_i32_190 : i32 to vector<16x512xi32>
    %730 = arith.cmpi slt, %1, %729 : vector<16x512xi32>
    %cst_191 = arith.constant 0.000000e+00 : f32
    %731 = vector.broadcast %cst_191 : f32 to vector<16x512xf32>
    %732 = arith.select %730, %728, %731 : vector<16x512xi1>, vector<16x512xf32>
    %733 = vector.extract_strided_slice %575 {offsets = [0, 15], sizes = [16, 1], strides = [1, 1]} : vector<16x25xf32> to vector<16x1xf32>
    %734 = vector.broadcast %733 : vector<16x1xf32> to vector<16x512xf32>
    %735 = arith.mulf %732, %734 : vector<16x512xf32>
    %736 = arith.addf %727, %735 : vector<16x512xf32>
    %c444_i32 = arith.constant 444 : i32
    %737 = tpu.dynamic_rotate %574 by %c444_i32 dim 1 : vector<16x512xf32>, i32 -> vector<16x512xf32>
    %c12_i32_192 = arith.constant 12 : i32
    %738 = vector.broadcast %c12_i32_192 : i32 to vector<16x512xi32>
    %739 = arith.cmpi slt, %1, %738 : vector<16x512xi32>
    %c12_i32_193 = arith.constant 12 : i32
    %740 = vector.broadcast %c12_i32_193 : i32 to vector<16x512xi32>
    %741 = arith.cmpi slt, %2, %740 : vector<16x512xi32>
    %742 = arith.andi %739, %741 : vector<16x512xi1>
    %cst_194 = arith.constant 0.000000e+00 : f32
    %743 = vector.broadcast %cst_194 : f32 to vector<16x512xf32>
    %744 = arith.select %742, %737, %743 : vector<16x512xi1>, vector<16x512xf32>
    %745 = vector.extract_strided_slice %575 {offsets = [0, 16], sizes = [16, 1], strides = [1, 1]} : vector<16x25xf32> to vector<16x1xf32>
    %746 = vector.broadcast %745 : vector<16x1xf32> to vector<16x512xf32>
    %747 = arith.mulf %744, %746 : vector<16x512xf32>
    %748 = arith.addf %736, %747 : vector<16x512xf32>
    %c136_i32 = arith.constant 136 : i32
    %749 = tpu.dynamic_rotate %574 by %c136_i32 dim 1 : vector<16x512xf32>, i32 -> vector<16x512xf32>
    %c8_i32_195 = arith.constant 8 : i32
    %750 = vector.broadcast %c8_i32_195 : i32 to vector<16x512xi32>
    %751 = arith.cmpi sge, %1, %750 : vector<16x512xi32>
    %c8_i32_196 = arith.constant 8 : i32
    %752 = vector.broadcast %c8_i32_196 : i32 to vector<16x512xi32>
    %753 = arith.cmpi sge, %2, %752 : vector<16x512xi32>
    %754 = arith.andi %751, %753 : vector<16x512xi1>
    %cst_197 = arith.constant 0.000000e+00 : f32
    %755 = vector.broadcast %cst_197 : f32 to vector<16x512xf32>
    %756 = arith.select %754, %749, %755 : vector<16x512xi1>, vector<16x512xf32>
    %757 = vector.extract_strided_slice %575 {offsets = [0, 17], sizes = [16, 1], strides = [1, 1]} : vector<16x25xf32> to vector<16x1xf32>
    %758 = vector.broadcast %757 : vector<16x1xf32> to vector<16x512xf32>
    %759 = arith.mulf %756, %758 : vector<16x512xf32>
    %760 = arith.addf %748, %759 : vector<16x512xf32>
    %c128_i32_198 = arith.constant 128 : i32
    %761 = tpu.dynamic_rotate %574 by %c128_i32_198 dim 1 : vector<16x512xf32>, i32 -> vector<16x512xf32>
    %c8_i32_199 = arith.constant 8 : i32
    %762 = vector.broadcast %c8_i32_199 : i32 to vector<16x512xi32>
    %763 = arith.cmpi sge, %1, %762 : vector<16x512xi32>
    %cst_200 = arith.constant 0.000000e+00 : f32
    %764 = vector.broadcast %cst_200 : f32 to vector<16x512xf32>
    %765 = arith.select %763, %761, %764 : vector<16x512xi1>, vector<16x512xf32>
    %766 = vector.extract_strided_slice %575 {offsets = [0, 18], sizes = [16, 1], strides = [1, 1]} : vector<16x25xf32> to vector<16x1xf32>
    %767 = vector.broadcast %766 : vector<16x1xf32> to vector<16x512xf32>
    %768 = arith.mulf %765, %767 : vector<16x512xf32>
    %769 = arith.addf %760, %768 : vector<16x512xf32>
    %c120_i32 = arith.constant 120 : i32
    %770 = tpu.dynamic_rotate %574 by %c120_i32 dim 1 : vector<16x512xf32>, i32 -> vector<16x512xf32>
    %c8_i32_201 = arith.constant 8 : i32
    %771 = vector.broadcast %c8_i32_201 : i32 to vector<16x512xi32>
    %772 = arith.cmpi sge, %1, %771 : vector<16x512xi32>
    %c8_i32_202 = arith.constant 8 : i32
    %773 = vector.broadcast %c8_i32_202 : i32 to vector<16x512xi32>
    %774 = arith.cmpi slt, %2, %773 : vector<16x512xi32>
    %775 = arith.andi %772, %774 : vector<16x512xi1>
    %cst_203 = arith.constant 0.000000e+00 : f32
    %776 = vector.broadcast %cst_203 : f32 to vector<16x512xf32>
    %777 = arith.select %775, %770, %776 : vector<16x512xi1>, vector<16x512xf32>
    %778 = vector.extract_strided_slice %575 {offsets = [0, 19], sizes = [16, 1], strides = [1, 1]} : vector<16x25xf32> to vector<16x1xf32>
    %779 = vector.broadcast %778 : vector<16x1xf32> to vector<16x512xf32>
    %780 = arith.mulf %777, %779 : vector<16x512xf32>
    %781 = arith.addf %769, %780 : vector<16x512xf32>
    %c8_i32_204 = arith.constant 8 : i32
    %782 = tpu.dynamic_rotate %574 by %c8_i32_204 dim 1 : vector<16x512xf32>, i32 -> vector<16x512xf32>
    %c8_i32_205 = arith.constant 8 : i32
    %783 = vector.broadcast %c8_i32_205 : i32 to vector<16x512xi32>
    %784 = arith.cmpi sge, %2, %783 : vector<16x512xi32>
    %cst_206 = arith.constant 0.000000e+00 : f32
    %785 = vector.broadcast %cst_206 : f32 to vector<16x512xf32>
    %786 = arith.select %784, %782, %785 : vector<16x512xi1>, vector<16x512xf32>
    %787 = vector.extract_strided_slice %575 {offsets = [0, 20], sizes = [16, 1], strides = [1, 1]} : vector<16x25xf32> to vector<16x1xf32>
    %788 = vector.broadcast %787 : vector<16x1xf32> to vector<16x512xf32>
    %789 = arith.mulf %786, %788 : vector<16x512xf32>
    %790 = arith.addf %781, %789 : vector<16x512xf32>
    %c504_i32_207 = arith.constant 504 : i32
    %791 = tpu.dynamic_rotate %574 by %c504_i32_207 dim 1 : vector<16x512xf32>, i32 -> vector<16x512xf32>
    %c8_i32_208 = arith.constant 8 : i32
    %792 = vector.broadcast %c8_i32_208 : i32 to vector<16x512xi32>
    %793 = arith.cmpi slt, %2, %792 : vector<16x512xi32>
    %cst_209 = arith.constant 0.000000e+00 : f32
    %794 = vector.broadcast %cst_209 : f32 to vector<16x512xf32>
    %795 = arith.select %793, %791, %794 : vector<16x512xi1>, vector<16x512xf32>
    %796 = vector.extract_strided_slice %575 {offsets = [0, 21], sizes = [16, 1], strides = [1, 1]} : vector<16x25xf32> to vector<16x1xf32>
    %797 = vector.broadcast %796 : vector<16x1xf32> to vector<16x512xf32>
    %798 = arith.mulf %795, %797 : vector<16x512xf32>
    %799 = arith.addf %790, %798 : vector<16x512xf32>
    %c392_i32 = arith.constant 392 : i32
    %800 = tpu.dynamic_rotate %574 by %c392_i32 dim 1 : vector<16x512xf32>, i32 -> vector<16x512xf32>
    %c8_i32_210 = arith.constant 8 : i32
    %801 = vector.broadcast %c8_i32_210 : i32 to vector<16x512xi32>
    %802 = arith.cmpi slt, %1, %801 : vector<16x512xi32>
    %c8_i32_211 = arith.constant 8 : i32
    %803 = vector.broadcast %c8_i32_211 : i32 to vector<16x512xi32>
    %804 = arith.cmpi sge, %2, %803 : vector<16x512xi32>
    %805 = arith.andi %802, %804 : vector<16x512xi1>
    %cst_212 = arith.constant 0.000000e+00 : f32
    %806 = vector.broadcast %cst_212 : f32 to vector<16x512xf32>
    %807 = arith.select %805, %800, %806 : vector<16x512xi1>, vector<16x512xf32>
    %808 = vector.extract_strided_slice %575 {offsets = [0, 22], sizes = [16, 1], strides = [1, 1]} : vector<16x25xf32> to vector<16x1xf32>
    %809 = vector.broadcast %808 : vector<16x1xf32> to vector<16x512xf32>
    %810 = arith.mulf %807, %809 : vector<16x512xf32>
    %811 = arith.addf %799, %810 : vector<16x512xf32>
    %c384_i32_213 = arith.constant 384 : i32
    %812 = tpu.dynamic_rotate %574 by %c384_i32_213 dim 1 : vector<16x512xf32>, i32 -> vector<16x512xf32>
    %c8_i32_214 = arith.constant 8 : i32
    %813 = vector.broadcast %c8_i32_214 : i32 to vector<16x512xi32>
    %814 = arith.cmpi slt, %1, %813 : vector<16x512xi32>
    %cst_215 = arith.constant 0.000000e+00 : f32
    %815 = vector.broadcast %cst_215 : f32 to vector<16x512xf32>
    %816 = arith.select %814, %812, %815 : vector<16x512xi1>, vector<16x512xf32>
    %817 = vector.extract_strided_slice %575 {offsets = [0, 23], sizes = [16, 1], strides = [1, 1]} : vector<16x25xf32> to vector<16x1xf32>
    %818 = vector.broadcast %817 : vector<16x1xf32> to vector<16x512xf32>
    %819 = arith.mulf %816, %818 : vector<16x512xf32>
    %820 = arith.addf %811, %819 : vector<16x512xf32>
    %c376_i32 = arith.constant 376 : i32
    %821 = tpu.dynamic_rotate %574 by %c376_i32 dim 1 : vector<16x512xf32>, i32 -> vector<16x512xf32>
    %c8_i32_216 = arith.constant 8 : i32
    %822 = vector.broadcast %c8_i32_216 : i32 to vector<16x512xi32>
    %823 = arith.cmpi slt, %1, %822 : vector<16x512xi32>
    %c8_i32_217 = arith.constant 8 : i32
    %824 = vector.broadcast %c8_i32_217 : i32 to vector<16x512xi32>
    %825 = arith.cmpi slt, %2, %824 : vector<16x512xi32>
    %826 = arith.andi %823, %825 : vector<16x512xi1>
    %cst_218 = arith.constant 0.000000e+00 : f32
    %827 = vector.broadcast %cst_218 : f32 to vector<16x512xf32>
    %828 = arith.select %826, %821, %827 : vector<16x512xi1>, vector<16x512xf32>
    %829 = vector.extract_strided_slice %575 {offsets = [0, 24], sizes = [16, 1], strides = [1, 1]} : vector<16x25xf32> to vector<16x1xf32>
    %830 = vector.broadcast %829 : vector<16x1xf32> to vector<16x512xf32>
    %831 = arith.mulf %828, %830 : vector<16x512xf32>
    %832 = arith.addf %820, %831 : vector<16x512xf32>
    %c0_219 = arith.constant 0 : index
    %c0_220 = arith.constant 0 : index
    %833 = vector.load %arg12[%c0_219, %c0_220] : memref<16x16xf32, #tpu.memory_space<vmem>>, vector<16x16xf32>
    %cst_221 = arith.constant dense<0.000000e+00> : vector<16x512xf32>
    %834 = tpu.matmul %833, %832, %cst_221 {dimension_numbers = #tpu.dot_dimension_numbers<[1], [0], [0], [1], [0, 0, 1, 1], [], []>} : vector<16x16xf32>, vector<16x512xf32>, vector<16x512xf32> -> vector<16x512xf32>
    %835 = arith.addf %834, %0 : vector<16x512xf32>
    %c0_222 = arith.constant 0 : index
    %c0_223 = arith.constant 0 : index
    %836 = vector.load %arg13[%c0_222, %c0_223] : memref<16x1xf32, #tpu.memory_space<vmem>>, vector<16x1xf32>
    %837 = vector.broadcast %836 : vector<16x1xf32> to vector<16x512xf32>
    %838 = arith.mulf %835, %837 : vector<16x512xf32>
    %c0_224 = arith.constant 0 : index
    %c0_225 = arith.constant 0 : index
    %839 = vector.load %arg14[%c0_224, %c0_225] : memref<16x1xf32, #tpu.memory_space<vmem>>, vector<16x1xf32>
    %840 = vector.broadcast %839 : vector<16x1xf32> to vector<16x512xf32>
    %841 = arith.addf %838, %840 : vector<16x512xf32>
    %cst_226 = arith.constant 0.000000e+00 : f32
    %842 = vector.broadcast %cst_226 : f32 to vector<16x512xf32>
    %843 = arith.cmpf oge, %841, %842 : vector<16x512xf32>
    %c0_227 = arith.constant 0 : index
    %c0_228 = arith.constant 0 : index
    %844 = vector.load %arg15[%c0_227, %c0_228] : memref<16x1xf32, #tpu.memory_space<vmem>>, vector<16x1xf32>
    %845 = vector.broadcast %844 : vector<16x1xf32> to vector<16x512xf32>
    %846 = arith.mulf %845, %841 : vector<16x512xf32>
    %847 = arith.select %843, %841, %846 : vector<16x512xi1>, vector<16x512xf32>
    %c0_229 = arith.constant 0 : index
    %c0_230 = arith.constant 0 : index
    %848 = vector.load %arg16[%c0_229, %c0_230] : memref<16x512xf32, #tpu.memory_space<vmem>>, vector<16x512xf32>
    tpu.vector_store %arg16[%c0_229, %c0_230], %847 {strides = array<i32>} : memref<16x512xf32, #tpu.memory_space<vmem>>, vector<16x512xf32>,
    return
  }
}

</mosaic_0001>

<llo_original>
// kernel: c3modul_forward.1
$region0: #{c3modul_forward.1}
  #allocation0 [shape = 'u32[]', space=smem, size = 0x4, offset = 0x4, fixed_abs, tag = 'smem constant byte address 0x4 - core index']
  #allocation1 [shape = 'u32[72,128]{1,0:T(1,128)}', space=vmem, size = 0x9000, scoped, tag = 'internal scratch']
  %s0 = inlined_call_operand.vmem [shape: f32[16,512], index: 0, kind: input, shape index: {}]
  %s1 = inlined_call_operand.vmem [shape: s32[16,512], index: 1, kind: input, shape index: {}]
  %s2 = inlined_call_operand.vmem [shape: s32[16,512], index: 2, kind: input, shape index: {}]
  %s3 = inlined_call_operand.vmem [shape: f32[16,16], index: 3, kind: input, shape index: {}]
  %s4 = inlined_call_operand.vmem [shape: f32[16,31], index: 4, kind: input, shape index: {}]
  %s5 = inlined_call_operand.vmem [shape: f32[16,31], index: 5, kind: input, shape index: {}]
  %s6 = inlined_call_operand.vmem [shape: f32[16,25], index: 6, kind: input, shape index: {}]
  %s7 = inlined_call_operand.vmem [shape: f32[16,1], index: 7, kind: input, shape index: {}]
  %s8 = inlined_call_operand.vmem [shape: f32[16,1], index: 8, kind: input, shape index: {}]
  %s9 = inlined_call_operand.vmem [shape: f32[16,1], index: 9, kind: input, shape index: {}]
  %s10 = inlined_call_operand.vmem [shape: f32[16,1], index: 10, kind: input, shape index: {}]
  %s11 = inlined_call_operand.vmem [shape: f32[16,1], index: 11, kind: input, shape index: {}]
  %s12 = inlined_call_operand.vmem [shape: f32[16,16], index: 12, kind: input, shape index: {}]
  %s13 = inlined_call_operand.vmem [shape: f32[16,1], index: 13, kind: input, shape index: {}]
  %s14 = inlined_call_operand.vmem [shape: f32[16,1], index: 14, kind: input, shape index: {}]
  %s15 = inlined_call_operand.vmem [shape: f32[16,1], index: 15, kind: input, shape index: {}]
  %s16 = inlined_call_operand.vmem [shape: f32[16,512], index: 16, kind: output, shape index: {}]
  %s17 = sld [smem:[#allocation0]]
  $region74: #{c3modul_forward.1} parent=0
    _
  %s19 = ssub.s32 1, %s17
  %s20 = scalar_select 0, %s19, %s17
  // Predicated region
  $region2: #{c3modul_forward.1} parent=0 // pred_check
    _
  $region3: #{c3modul_forward.1} parent=0 // pred_check_branch
    %22 = sbr.rel (0) target = $region5
  $region4: #{c3modul_forward.1} parent=0 // pred_region
    _
  $region5: #{c3modul_forward.1} parent=0 // pred_fallthru
    _
  // Predicated region
  $region6: #{c3modul_forward.1} parent=0 // pred_check
    _
  $region7: #{c3modul_forward.1} parent=0 // pred_check_branch
    %24 = sbr.rel (0) target = $region9
  $region8: #{c3modul_forward.1} parent=0 // pred_region
    _
  $region9: #{c3modul_forward.1} parent=0 // pred_fallthru
    _
  // Predicated region
  $region10: #{c3modul_forward.1} parent=0 // pred_check
    _
  $region11: #{c3modul_forward.1} parent=0 // pred_check_branch
    %26 = sbr.rel (0) target = $region13
  $region12: #{c3modul_forward.1} parent=0 // pred_region
    _
  $region13: #{c3modul_forward.1} parent=0 // pred_fallthru
    _
  // Predicated region
  $region14: #{c3modul_forward.1} parent=0 // pred_check
    _
  $region15: #{c3modul_forward.1} parent=0 // pred_check_branch
    %28 = sbr.rel (0) target = $region17
  $region16: #{c3modul_forward.1} parent=0 // pred_region
    _
  $region17: #{c3modul_forward.1} parent=0 // pred_fallthru
    _
  // Predicated region
  $region18: #{c3modul_forward.1} parent=0 // pred_check
    _
  $region19: #{c3modul_forward.1} parent=0 // pred_check_branch
    %30 = sbr.rel (0) target = $region21
  $region20: #{c3modul_forward.1} parent=0 // pred_region
    _
  $region21: #{c3modul_forward.1} parent=0 // pred_fallthru
    _
  // Predicated region
  $region22: #{c3modul_forward.1} parent=0 // pred_check
    _
  $region23: #{c3modul_forward.1} parent=0 // pred_check_branch
    %32 = sbr.rel (0) target = $region25
  $region24: #{c3modul_forward.1} parent=0 // pred_region
    _
  $region25: #{c3modul_forward.1} parent=0 // pred_fallthru
    _
  // Predicated region
  $region26: #{c3modul_forward.1} parent=0 // pred_check
    _
  $region27: #{c3modul_forward.1} parent=0 // pred_check_branch
    %34 = sbr.rel (0) target = $region29
  $region28: #{c3modul_forward.1} parent=0 // pred_region
    _
  $region29: #{c3modul_forward.1} parent=0 // pred_fallthru
    _
  // Predicated region
  $region30: #{c3modul_forward.1} parent=0 // pred_check
    _
  $region31: #{c3modul_forward.1} parent=0 // pred_check_branch
    %36 = sbr.rel (0) target = $region33
  $region32: #{c3modul_forward.1} parent=0 // pred_region
    _
  $region33: #{c3modul_forward.1} parent=0 // pred_fallthru
    _
  // Predicated region
  $region34: #{c3modul_forward.1} parent=0 // pred_check
    _
  $region35: #{c3modul_forward.1} parent=0 // pred_check_branch
    %38 = sbr.rel (0) target = $region37
  $region36: #{c3modul_forward.1} parent=0 // pred_region
    _
  $region37: #{c3modul_forward.1} parent=0 // pred_fallthru
    _
  // Predicated region
  $region38: #{c3modul_forward.1} parent=0 // pred_check
    _
  $region39: #{c3modul_forward.1} parent=0 // pred_check_branch
    %40 = sbr.rel (0) target = $region41
  $region40: #{c3modul_forward.1} parent=0 // pred_region
    _
  $region41: #{c3modul_forward.1} parent=0 // pred_fallthru
    _
  // Predicated region
  $region42: #{c3modul_forward.1} parent=0 // pred_check
    _
  $region43: #{c3modul_forward.1} parent=0 // pred_check_branch
    %42 = sbr.rel (0) target = $region45
  $region44: #{c3modul_forward.1} parent=0 // pred_region
    _
  $region45: #{c3modul_forward.1} parent=0 // pred_fallthru
    _
  // Predicated region
  $region46: #{c3modul_forward.1} parent=0 // pred_check
    _
  $region47: #{c3modul_forward.1} parent=0 // pred_check_branch
    %44 = sbr.rel (0) target = $region49
  $region48: #{c3modul_forward.1} parent=0 // pred_region
    _
  $region49: #{c3modul_forward.1} parent=0 // pred_fallthru
    _
  // Predicated region
  $region50: #{c3modul_forward.1} parent=0 // pred_check
    _
  $region51: #{c3modul_forward.1} parent=0 // pred_check_branch
    %46 = sbr.rel (0) target = $region53
  $region52: #{c3modul_forward.1} parent=0 // pred_region
    _
  $region53: #{c3modul_forward.1} parent=0 // pred_fallthru
    _
  // Predicated region
  $region54: #{c3modul_forward.1} parent=0 // pred_check
    _
  $region55: #{c3modul_forward.1} parent=0 // pred_check_branch
    %48 = sbr.rel (0) target = $region57
  $region56: #{c3modul_forward.1} parent=0 // pred_region
    _
  $region57: #{c3modul_forward.1} parent=0 // pred_fallthru
    _
  // Predicated region
  $region58: #{c3modul_forward.1} parent=0 // pred_check
    _
  $region59: #{c3modul_forward.1} parent=0 // pred_check_branch
    %50 = sbr.rel (0) target = $region61
  $region60: #{c3modul_forward.1} parent=0 // pred_region
    _
  $region61: #{c3modul_forward.1} parent=0 // pred_fallthru
    _
  // Predicated region
  $region62: #{c3modul_forward.1} parent=0 // pred_check
    _
  $region63: #{c3modul_forward.1} parent=0 // pred_check_branch
    %52 = sbr.rel (0) target = $region65
  $region64: #{c3modul_forward.1} parent=0 // pred_region
    _
  $region65: #{c3modul_forward.1} parent=0 // pred_fallthru
    _
  %v53 = vld [vmem:[%s0] sm:$0xff]
  %v54 = vld [vmem:[%s0 + $0x8] sm:$0xff]
  %v55 = vld [vmem:[%s0 + $0x10] sm:$0xff]
  %v56 = vld [vmem:[%s0 + $0x18] sm:$0xff]
  %v57 = vld [vmem:[%s0 + $0x20] sm:$0xff]
  %v58 = vld [vmem:[%s0 + $0x28] sm:$0xff]
  %v59 = vld [vmem:[%s0 + $0x30] sm:$0xff]
  %v60 = vld [vmem:[%s0 + $0x38] sm:$0xff]
  %v61 = vld [vmem:[%s1] sm:$0xff]
  %v62 = vld [vmem:[%s1 + $0x8] sm:$0xff]
  %v63 = vld [vmem:[%s1 + $0x10] sm:$0xff]
  %v64 = vld [vmem:[%s1 + $0x18] sm:$0xff]
  %v65 = vld [vmem:[%s1 + $0x20] sm:$0xff]
  %v66 = vld [vmem:[%s1 + $0x28] sm:$0xff]
  %v67 = vld [vmem:[%s1 + $0x30] sm:$0xff]
  %v68 = vld [vmem:[%s1 + $0x38] sm:$0xff]
  %v69 = vld [vmem:[%s2] sm:$0xff]
  %v70 = vld [vmem:[%s2 + $0x8] sm:$0xff]
  %v71 = vld [vmem:[%s2 + $0x10] sm:$0xff]
  %v72 = vld [vmem:[%s2 + $0x18] sm:$0xff]
  %v73 = vld [vmem:[%s2 + $0x20] sm:$0xff]
  %v74 = vld [vmem:[%s2 + $0x28] sm:$0xff]
  %v75 = vld [vmem:[%s2 + $0x30] sm:$0xff]
  %v76 = vld [vmem:[%s2 + $0x38] sm:$0xff]
  %v77 = vld [vmem:[%s3] sm:$0xff]
  %v78 = vld [vmem:[%s3 + $0x8] sm:$0xff]
  %vm79 = vcmask 130048
  %v81 = vsel %vm79, %v77, 0
  %v84 = vsel %vm79, %v78, 0
  %86 = vmatpush.msra.mxu0 0.0
  %87 = vmatpush.msra.mxu0 0.0
  %88 = vmatpush.msra.mxu0 0.0
  %89 = vmatpush.msra.mxu0 0.0
  %90 = vmatpush.msra.mxu0 0.0
  %91 = vmatpush.msra.mxu0 0.0
  %92 = vmatpush.msra.mxu0 0.0
  %93 = vmatpush.msra.mxu0 0.0
  %94 = vmatpush.msra.mxu0 0.0
  %95 = vmatpush.msra.mxu0 0.0
  %96 = vmatpush.msra.mxu0 0.0
  %97 = vmatpush.msra.mxu0 0.0
  %98 = vmatpush.msra.mxu0 0.0
  %99 = vmatpush.msra.mxu0 0.0
  %100 = vmatpush.msra.mxu0 %v57
  %101 = vmatpush.msra.mxu0 %v53
  %102 = vmatmul.f32.gmra.mxu0 %v81
  %v103 = vpop.f32.mrf.mxu0
  %v104 = vadd.f32 0.0, %v103
  %105 = vmatmul.f32.gmra.mxu0 %v84
  %v106 = vpop.f32.mrf.mxu0
  %v107 = vadd.f32 0.0, %v106
  %108 = vdwg.mxu0
  %109 = vmatpush.msra.mxu0 0.0
  %110 = vmatpush.msra.mxu0 0.0
  %111 = vmatpush.msra.mxu0 0.0
  %112 = vmatpush.msra.mxu0 0.0
  %113 = vmatpush.msra.mxu0 0.0
  %114 = vmatpush.msra.mxu0 0.0
  %115 = vmatpush.msra.mxu0 0.0
  %116 = vmatpush.msra.mxu0 0.0
  %117 = vmatpush.msra.mxu0 0.0
  %118 = vmatpush.msra.mxu0 0.0
  %119 = vmatpush.msra.mxu0 0.0
  %120 = vmatpush.msra.mxu0 0.0
  %121 = vmatpush.msra.mxu0 0.0
  %122 = vmatpush.msra.mxu0 0.0
  %123 = vmatpush.msra.mxu0 %v58
  %124 = vmatpush.msra.mxu0 %v54
  %125 = vmatmul.f32.gmra.mxu0 %v81
  %v126 = vpop.f32.mrf.mxu0
  %v127 = vadd.f32 0.0, %v126
  %128 = vmatmul.f32.gmra.mxu0 %v84
  %v129 = vpop.f32.mrf.mxu0
  %v130 = vadd.f32 0.0, %v129
  %131 = vdwg.mxu0
  %132 = vmatpush.msra.mxu0 0.0
  %133 = vmatpush.msra.mxu0 0.0
  %134 = vmatpush.msra.mxu0 0.0
  %135 = vmatpush.msra.mxu0 0.0
  %136 = vmatpush.msra.mxu0 0.0
  %137 = vmatpush.msra.mxu0 0.0
  %138 = vmatpush.msra.mxu0 0.0
  %139 = vmatpush.msra.mxu0 0.0
  %140 = vmatpush.msra.mxu0 0.0
  %141 = vmatpush.msra.mxu0 0.0
  %142 = vmatpush.msra.mxu0 0.0
  %143 = vmatpush.msra.mxu0 0.0
  %144 = vmatpush.msra.mxu0 0.0
  %145 = vmatpush.msra.mxu0 0.0
  %146 = vmatpush.msra.mxu0 %v59
  %147 = vmatpush.msra.mxu0 %v55
  %148 = vmatmul.f32.gmra.mxu0 %v81
  %v149 = vpop.f32.mrf.mxu0
  %v150 = vadd.f32 0.0, %v149
  %151 = vmatmul.f32.gmra.mxu0 %v84
  %v152 = vpop.f32.mrf.mxu0
  %v153 = vadd.f32 0.0, %v152
  %154 = vdwg.mxu0
  %155 = vmatpush.msra.mxu0 0.0
  %156 = vmatpush.msra.mxu0 0.0
  %157 = vmatpush.msra.mxu0 0.0
  %158 = vmatpush.msra.mxu0 0.0
  %159 = vmatpush.msra.mxu0 0.0
  %160 = vmatpush.msra.mxu0 0.0
  %161 = vmatpush.msra.mxu0 0.0
  %162 = vmatpush.msra.mxu0 0.0
  %163 = vmatpush.msra.mxu0 0.0
  %164 = vmatpush.msra.mxu0 0.0
  %165 = vmatpush.msra.mxu0 0.0
  %166 = vmatpush.msra.mxu0 0.0
  %167 = vmatpush.msra.mxu0 0.0
  %168 = vmatpush.msra.mxu0 0.0
  %169 = vmatpush.msra.mxu0 %v60
  %170 = vmatpush.msra.mxu0 %v56
  %171 = vmatmul.f32.gmra.mxu0 %v81
  %v172 = vpop.f32.mrf.mxu0
  %v173 = vadd.f32 0.0, %v172
  %174 = vmatmul.f32.gmra.mxu0 %v84
  %v175 = vpop.f32.mrf.mxu0
  %v176 = vadd.f32 0.0, %v175
  %177 = vdwg.mxu0
  %v178 = vld [vmem:[%s4] sm:$0xff]
  %v179 = vld [vmem:[%s4 + $0x8] sm:$0xff]
  %180 = vrot.lane.b32.xlu0 %v104, 112
  %v181 = vpop.permute.xlu0 %180
  %182 = vrot.lane.b32.xlu0 %v107, 112
  %v183 = vpop.permute.xlu0 %182
  %184 = vrot.lane.b32.xlu0 %v127, 112
  %v185 = vpop.permute.xlu0 %184
  %186 = vrot.lane.b32.xlu0 %v130, 112
  %v187 = vpop.permute.xlu0 %186
  %188 = vrot.lane.b32.xlu0 %v150, 112
  %v189 = vpop.permute.xlu0 %188
  %190 = vrot.lane.b32.xlu0 %v153, 112
  %v191 = vpop.permute.xlu0 %190
  %192 = vrot.lane.b32.xlu0 %v173, 112
  %v193 = vpop.permute.xlu0 %192
  %194 = vrot.lane.b32.xlu0 %v176, 112
  %v195 = vpop.permute.xlu0 %194
  %v196 = vlaneseq
  %v197 = vand.u32 %v196, 127
  %vm198 = vcmp.lt.s32.totalorder %v197, 112
  %v199 = vsel %vm198, %v189, %v193
  %v200 = vsel %vm198, %v191, %v195
  %v201 = vsel %vm198, %v185, %v189
  %v202 = vsel %vm198, %v187, %v191
  %v203 = vsel %vm198, %v181, %v185
  %v204 = vsel %vm198, %v183, %v187
  %v205 = vsel %vm198, %v193, %v181
  %v206 = vsel %vm198, %v195, %v183
  %vm207 = vcmp.ge.s32.totalorder %v61, 15
  %vm208 = vcmp.ge.s32.totalorder %v62, 15
  %vm209 = vcmp.ge.s32.totalorder %v63, 15
  %vm210 = vcmp.ge.s32.totalorder %v64, 15
  %vm211 = vcmp.ge.s32.totalorder %v65, 15
  %vm212 = vcmp.ge.s32.totalorder %v66, 15
  %vm213 = vcmp.ge.s32.totalorder %v67, 15
  %vm214 = vcmp.ge.s32.totalorder %v68, 15
  %v215 = vsel %vm207, %v199, 0.0
  %v216 = vsel %vm208, %v205, 0.0
  %v217 = vsel %vm209, %v203, 0.0
  %v218 = vsel %vm210, %v201, 0.0
  %v219 = vsel %vm211, %v200, 0.0
  %v220 = vsel %vm212, %v206, 0.0
  %v221 = vsel %vm213, %v204, 0.0
  %v222 = vsel %vm214, %v202, 0.0
  %224 = vset.pattern.permute.xlu0 0
  %225 = vperm.xlu0 %224, %v178
  %v226 = vpop.permute.xlu0 %225
  %229 = vset.pattern.permute.xlu0 0
  %230 = vperm.xlu0 %229, %v179
  %v231 = vpop.permute.xlu0 %230
  %v233 = vmul.f32 %v215, %v226
  %v234 = vmul.f32 %v216, %v226
  %v235 = vmul.f32 %v217, %v226
  %v236 = vmul.f32 %v218, %v226
  %v237 = vmul.f32 %v219, %v231
  %v238 = vmul.f32 %v220, %v231
  %v239 = vmul.f32 %v221, %v231
  %v240 = vmul.f32 %v222, %v231
  %v241 = vadd.f32 %v233, 0.0
  %v242 = vadd.f32 %v234, 0.0
  %v243 = vadd.f32 %v235, 0.0
  %v244 = vadd.f32 %v236, 0.0
  %v245 = vadd.f32 %v237, 0.0
  %v246 = vadd.f32 %v238, 0.0
  %v247 = vadd.f32 %v239, 0.0
  %v248 = vadd.f32 %v240, 0.0
  %249 = vrot.lane.b32.xlu0 %v104, 96
  %v250 = vpop.permute.xlu0 %249
  %251 = vrot.lane.b32.xlu0 %v107, 96
  %v252 = vpop.permute.xlu0 %251
  %253 = vrot.lane.b32.xlu0 %v127, 96
  %v254 = vpop.permute.xlu0 %253
  %255 = vrot.lane.b32.xlu0 %v130, 96
  %v256 = vpop.permute.xlu0 %255
  %257 = vrot.lane.b32.xlu0 %v150, 96
  %v258 = vpop.permute.xlu0 %257
  %259 = vrot.lane.b32.xlu0 %v153, 96
  %v260 = vpop.permute.xlu0 %259
  %261 = vrot.lane.b32.xlu0 %v173, 96
  %v262 = vpop.permute.xlu0 %261
  %263 = vrot.lane.b32.xlu0 %v176, 96
  %v264 = vpop.permute.xlu0 %263
  %vm265 = vcmp.lt.s32.totalorder %v197, 96
  %v266 = vsel %vm265, %v258, %v262
  %v267 = vsel %vm265, %v260, %v264
  %v268 = vsel %vm265, %v254, %v258
  %v269 = vsel %vm265, %v256, %v260
  %v270 = vsel %vm265, %v250, %v254
  %v271 = vsel %vm265, %v252, %v256
  %v272 = vsel %vm265, %v262, %v250
  %v273 = vsel %vm265, %v264, %v252
  %vm274 = vcmp.ge.s32.totalorder %v61, 14
  %vm275 = vcmp.ge.s32.totalorder %v62, 14
  %vm276 = vcmp.ge.s32.totalorder %v63, 14
  %vm277 = vcmp.ge.s32.totalorder %v64, 14
  %vm278 = vcmp.ge.s32.totalorder %v65, 14
  %vm279 = vcmp.ge.s32.totalorder %v66, 14
  %vm280 = vcmp.ge.s32.totalorder %v67, 14
  %vm281 = vcmp.ge.s32.totalorder %v68, 14
  %v282 = vsel %vm274, %v266, 0.0
  %v283 = vsel %vm275, %v272, 0.0
  %v284 = vsel %vm276, %v270, 0.0
  %v285 = vsel %vm277, %v268, 0.0
  %v286 = vsel %vm278, %v267, 0.0
  %v287 = vsel %vm279, %v273, 0.0
  %v288 = vsel %vm280, %v271, 0.0
  %v289 = vsel %vm281, %v269, 0.0
  %290 = vset.pattern.permute.xlu0 1
  %291 = vperm.xlu0 %290, %v178
  %v292 = vpop.permute.xlu0 %291
  %294 = vset.pattern.permute.xlu0 1
  %295 = vperm.xlu0 %294, %v179
  %v296 = vpop.permute.xlu0 %295
  %v298 = vmul.f32 %v282, %v292
  %v299 = vmul.f32 %v283, %v292
  %v300 = vmul.f32 %v284, %v292
  %v301 = vmul.f32 %v285, %v292
  %v302 = vmul.f32 %v286, %v296
  %v303 = vmul.f32 %v287, %v296
  %v304 = vmul.f32 %v288, %v296
  %v305 = vmul.f32 %v289, %v296
  %v306 = vadd.f32 %v241, %v298
  %v307 = vadd.f32 %v242, %v299
  %v308 = vadd.f32 %v243, %v300
  %v309 = vadd.f32 %v244, %v301
  %v310 = vadd.f32 %v245, %v302
  %v311 = vadd.f32 %v246, %v303
  %v312 = vadd.f32 %v247, %v304
  %v313 = vadd.f32 %v248, %v305
  %314 = vrot.lane.b32.xlu0 %v104, 80
  %v315 = vpop.permute.xlu0 %314
  %316 = vrot.lane.b32.xlu0 %v107, 80
  %v317 = vpop.permute.xlu0 %316
  %318 = vrot.lane.b32.xlu0 %v127, 80
  %v319 = vpop.permute.xlu0 %318
  %320 = vrot.lane.b32.xlu0 %v130, 80
  %v321 = vpop.permute.xlu0 %320
  %322 = vrot.lane.b32.xlu0 %v150, 80
  %v323 = vpop.permute.xlu0 %322
  %324 = vrot.lane.b32.xlu0 %v153, 80
  %v325 = vpop.permute.xlu0 %324
  %326 = vrot.lane.b32.xlu0 %v173, 80
  %v327 = vpop.permute.xlu0 %326
  %328 = vrot.lane.b32.xlu0 %v176, 80
  %v329 = vpop.permute.xlu0 %328
  %vm330 = vcmp.lt.s32.totalorder %v197, 80
  %v331 = vsel %vm330, %v323, %v327
  %v332 = vsel %vm330, %v325, %v329
  %v333 = vsel %vm330, %v319, %v323
  %v334 = vsel %vm330, %v321, %v325
  %v335 = vsel %vm330, %v315, %v319
  %v336 = vsel %vm330, %v317, %v321
  %v337 = vsel %vm330, %v327, %v315
  %v338 = vsel %vm330, %v329, %v317
  %vm339 = vcmp.ge.s32.totalorder %v61, 13
  %vm340 = vcmp.ge.s32.totalorder %v62, 13
  %vm341 = vcmp.ge.s32.totalorder %v63, 13
  %vm342 = vcmp.ge.s32.totalorder %v64, 13
  %vm343 = vcmp.ge.s32.totalorder %v65, 13
  %vm344 = vcmp.ge.s32.totalorder %v66, 13
  %vm345 = vcmp.ge.s32.totalorder %v67, 13
  %vm346 = vcmp.ge.s32.totalorder %v68, 13
  %v347 = vsel %vm339, %v331, 0.0
  %v348 = vsel %vm340, %v337, 0.0
  %v349 = vsel %vm341, %v335, 0.0
  %v350 = vsel %vm342, %v333, 0.0
  %v351 = vsel %vm343, %v332, 0.0
  %v352 = vsel %vm344, %v338, 0.0
  %v353 = vsel %vm345, %v336, 0.0
  %v354 = vsel %vm346, %v334, 0.0
  %355 = vset.pattern.permute.xlu0 2
  %356 = vperm.xlu0 %355, %v178
  %v357 = vpop.permute.xlu0 %356
  %359 = vset.pattern.permute.xlu0 2
  %360 = vperm.xlu0 %359, %v179
  %v361 = vpop.permute.xlu0 %360
  %v363 = vmul.f32 %v347, %v357
  %v364 = vmul.f32 %v348, %v357
  %v365 = vmul.f32 %v349, %v357
  %v366 = vmul.f32 %v350, %v357
  %v367 = vmul.f32 %v351, %v361
  %v368 = vmul.f32 %v352, %v361
  %v369 = vmul.f32 %v353, %v361
  %v370 = vmul.f32 %v354, %v361
  %v371 = vadd.f32 %v306, %v363
  %v372 = vadd.f32 %v307, %v364
  %v373 = vadd.f32 %v308, %v365
  %v374 = vadd.f32 %v309, %v366
  %v375 = vadd.f32 %v310, %v367
  %v376 = vadd.f32 %v311, %v368
  %v377 = vadd.f32 %v312, %v369
  %v378 = vadd.f32 %v313, %v370
  %379 = vrot.lane.b32.xlu0 %v104, 64
  %v380 = vpop.permute.xlu0 %379
  %381 = vrot.lane.b32.xlu0 %v107, 64
  %v382 = vpop.permute.xlu0 %381
  %383 = vrot.lane.b32.xlu0 %v127, 64
  %v384 = vpop.permute.xlu0 %383
  %385 = vrot.lane.b32.xlu0 %v130, 64
  %v386 = vpop.permute.xlu0 %385
  %387 = vrot.lane.b32.xlu0 %v150, 64
  %v388 = vpop.permute.xlu0 %387
  %389 = vrot.lane.b32.xlu0 %v153, 64
  %v390 = vpop.permute.xlu0 %389
  %391 = vrot.lane.b32.xlu0 %v173, 64
  %v392 = vpop.permute.xlu0 %391
  %393 = vrot.lane.b32.xlu0 %v176, 64
  %v394 = vpop.permute.xlu0 %393
  %vm395 = vcmp.lt.s32.totalorder %v197, 64
  %v396 = vsel %vm395, %v388, %v392
  %v397 = vsel %vm395, %v390, %v394
  %v398 = vsel %vm395, %v384, %v388
  %v399 = vsel %vm395, %v386, %v390
  %v400 = vsel %vm395, %v380, %v384
  %v401 = vsel %vm395, %v382, %v386
  %v402 = vsel %vm395, %v392, %v380
  %v403 = vsel %vm395, %v394, %v382
  %vm404 = vcmp.ge.s32.totalorder %v61, 12
  %vm405 = vcmp.ge.s32.totalorder %v62, 12
  %vm406 = vcmp.ge.s32.totalorder %v63, 12
  %vm407 = vcmp.ge.s32.totalorder %v64, 12
  %vm408 = vcmp.ge.s32.totalorder %v65, 12
  %vm409 = vcmp.ge.s32.totalorder %v66, 12
  %vm410 = vcmp.ge.s32.totalorder %v67, 12
  %vm411 = vcmp.ge.s32.totalorder %v68, 12
  %v412 = vsel %vm404, %v396, 0.0
  %v413 = vsel %vm405, %v402, 0.0
  %v414 = vsel %vm406, %v400, 0.0
  %v415 = vsel %vm407, %v398, 0.0
  %v416 = vsel %vm408, %v397, 0.0
  %v417 = vsel %vm409, %v403, 0.0
  %v418 = vsel %vm410, %v401, 0.0
  %v419 = vsel %vm411, %v399, 0.0
  %420 = vset.pattern.permute.xlu0 3
  %421 = vperm.xlu0 %420, %v178
  %v422 = vpop.permute.xlu0 %421
  %424 = vset.pattern.permute.xlu0 3
  %425 = vperm.xlu0 %424, %v179
  %v426 = vpop.permute.xlu0 %425
  %v428 = vmul.f32 %v412, %v422
  %v429 = vmul.f32 %v413, %v422
  %v430 = vmul.f32 %v414, %v422
  %v431 = vmul.f32 %v415, %v422
  %v432 = vmul.f32 %v416, %v426
  %v433 = vmul.f32 %v417, %v426
  %v434 = vmul.f32 %v418, %v426
  %v435 = vmul.f32 %v419, %v426
  %v436 = vadd.f32 %v371, %v428
  %v437 = vadd.f32 %v372, %v429
  %v438 = vadd.f32 %v373, %v430
  %v439 = vadd.f32 %v374, %v431
  %v440 = vadd.f32 %v375, %v432
  %v441 = vadd.f32 %v376, %v433
  %v442 = vadd.f32 %v377, %v434
  %v443 = vadd.f32 %v378, %v435
  %444 = vrot.lane.b32.xlu0 %v104, 48
  %v445 = vpop.permute.xlu0 %444
  %446 = vrot.lane.b32.xlu0 %v107, 48
  %v447 = vpop.permute.xlu0 %446
  %448 = vrot.lane.b32.xlu0 %v127, 48
  %v449 = vpop.permute.xlu0 %448
  %450 = vrot.lane.b32.xlu0 %v130, 48
  %v451 = vpop.permute.xlu0 %450
  %452 = vrot.lane.b32.xlu0 %v150, 48
  %v453 = vpop.permute.xlu0 %452
  %454 = vrot.lane.b32.xlu0 %v153, 48
  %v455 = vpop.permute.xlu0 %454
  %456 = vrot.lane.b32.xlu0 %v173, 48
  %v457 = vpop.permute.xlu0 %456
  %458 = vrot.lane.b32.xlu0 %v176, 48
  %v459 = vpop.permute.xlu0 %458
  %vm460 = vcmp.lt.s32.totalorder %v197, 48
  %v461 = vsel %vm460, %v453, %v457
  %v462 = vsel %vm460, %v455, %v459
  %v463 = vsel %vm460, %v449, %v453
  %v464 = vsel %vm460, %v451, %v455
  %v465 = vsel %vm460, %v445, %v449
  %v466 = vsel %vm460, %v447, %v451
  %v467 = vsel %vm460, %v457, %v445
  %v468 = vsel %vm460, %v459, %v447
  %vm469 = vcmp.ge.s32.totalorder %v61, 11
  %vm470 = vcmp.ge.s32.totalorder %v62, 11
  %vm471 = vcmp.ge.s32.totalorder %v63, 11
  %vm472 = vcmp.ge.s32.totalorder %v64, 11
  %vm473 = vcmp.ge.s32.totalorder %v65, 11
  %vm474 = vcmp.ge.s32.totalorder %v66, 11
  %vm475 = vcmp.ge.s32.totalorder %v67, 11
  %vm476 = vcmp.ge.s32.totalorder %v68, 11
  %v477 = vsel %vm469, %v461, 0.0
  %v478 = vsel %vm470, %v467, 0.0
  %v479 = vsel %vm471, %v465, 0.0
  %v480 = vsel %vm472, %v463, 0.0
  %v481 = vsel %vm473, %v462, 0.0
  %v482 = vsel %vm474, %v468, 0.0
  %v483 = vsel %vm475, %v466, 0.0
  %v484 = vsel %vm476, %v464, 0.0
  %485 = vset.pattern.permute.xlu0 4
  %486 = vperm.xlu0 %485, %v178
  %v487 = vpop.permute.xlu0 %486
  %489 = vset.pattern.permute.xlu0 4
  %490 = vperm.xlu0 %489, %v179
  %v491 = vpop.permute.xlu0 %490
  %v493 = vmul.f32 %v477, %v487
  %v494 = vmul.f32 %v478, %v487
  %v495 = vmul.f32 %v479, %v487
  %v496 = vmul.f32 %v480, %v487
  %v497 = vmul.f32 %v481, %v491
  %v498 = vmul.f32 %v482, %v491
  %v499 = vmul.f32 %v483, %v491
  %v500 = vmul.f32 %v484, %v491
  %v501 = vadd.f32 %v436, %v493
  %v502 = vadd.f32 %v437, %v494
  %v503 = vadd.f32 %v438, %v495
  %v504 = vadd.f32 %v439, %v496
  %v505 = vadd.f32 %v440, %v497
  %v506 = vadd.f32 %v441, %v498
  %v507 = vadd.f32 %v442, %v499
  %v508 = vadd.f32 %v443, %v500
  %509 = vrot.lane.b32.xlu0 %v104, 32
  %v510 = vpop.permute.xlu0 %509
  %511 = vrot.lane.b32.xlu0 %v107, 32
  %v512 = vpop.permute.xlu0 %511
  %513 = vrot.lane.b32.xlu0 %v127, 32
  %v514 = vpop.permute.xlu0 %513
  %515 = vrot.lane.b32.xlu0 %v130, 32
  %v516 = vpop.permute.xlu0 %515
  %517 = vrot.lane.b32.xlu0 %v150, 32
  %v518 = vpop.permute.xlu0 %517
  %519 = vrot.lane.b32.xlu0 %v153, 32
  %v520 = vpop.permute.xlu0 %519
  %521 = vrot.lane.b32.xlu0 %v173, 32
  %v522 = vpop.permute.xlu0 %521
  %523 = vrot.lane.b32.xlu0 %v176, 32
  %v524 = vpop.permute.xlu0 %523
  %vm525 = vcmp.lt.s32.totalorder %v197, 32
  %v526 = vsel %vm525, %v518, %v522
  %v527 = vsel %vm525, %v520, %v524
  %v528 = vsel %vm525, %v514, %v518
  %v529 = vsel %vm525, %v516, %v520
  %v530 = vsel %vm525, %v510, %v514
  %v531 = vsel %vm525, %v512, %v516
  %v532 = vsel %vm525, %v522, %v510
  %v533 = vsel %vm525, %v524, %v512
  %vm534 = vcmp.ge.s32.totalorder %v61, 10
  %vm535 = vcmp.ge.s32.totalorder %v62, 10
  %vm536 = vcmp.ge.s32.totalorder %v63, 10
  %vm537 = vcmp.ge.s32.totalorder %v64, 10
  %vm538 = vcmp.ge.s32.totalorder %v65, 10
  %vm539 = vcmp.ge.s32.totalorder %v66, 10
  %vm540 = vcmp.ge.s32.totalorder %v67, 10
  %vm541 = vcmp.ge.s32.totalorder %v68, 10
  %v542 = vsel %vm534, %v526, 0.0
  %v543 = vsel %vm535, %v532, 0.0
  %v544 = vsel %vm536, %v530, 0.0
  %v545 = vsel %vm537, %v528, 0.0
  %v546 = vsel %vm538, %v527, 0.0
  %v547 = vsel %vm539, %v533, 0.0
  %v548 = vsel %vm540, %v531, 0.0
  %v549 = vsel %vm541, %v529, 0.0
  %550 = vset.pattern.permute.xlu0 5
  %551 = vperm.xlu0 %550, %v178
  %v552 = vpop.permute.xlu0 %551
  %554 = vset.pattern.permute.xlu0 5
  %555 = vperm.xlu0 %554, %v179
  %v556 = vpop.permute.xlu0 %555
  %v558 = vmul.f32 %v542, %v552
  %v559 = vmul.f32 %v543, %v552
  %v560 = vmul.f32 %v544, %v552
  %v561 = vmul.f32 %v545, %v552
  %v562 = vmul.f32 %v546, %v556
  %v563 = vmul.f32 %v547, %v556
  %v564 = vmul.f32 %v548, %v556
  %v565 = vmul.f32 %v549, %v556
  %v566 = vadd.f32 %v501, %v558
  %v567 = vadd.f32 %v502, %v559
  %v568 = vadd.f32 %v503, %v560
  %v569 = vadd.f32 %v504, %v561
  %v570 = vadd.f32 %v505, %v562
  %v571 = vadd.f32 %v506, %v563
  %v572 = vadd.f32 %v507, %v564
  %v573 = vadd.f32 %v508, %v565
  %574 = vrot.lane.b32.xlu0 %v104, 16
  %v575 = vpop.permute.xlu0 %574
  %576 = vrot.lane.b32.xlu0 %v107, 16
  %v577 = vpop.permute.xlu0 %576
  %578 = vrot.lane.b32.xlu0 %v127, 16
  %v579 = vpop.permute.xlu0 %578
  %580 = vrot.lane.b32.xlu0 %v130, 16
  %v581 = vpop.permute.xlu0 %580
  %582 = vrot.lane.b32.xlu0 %v150, 16
  %v583 = vpop.permute.xlu0 %582
  %584 = vrot.lane.b32.xlu0 %v153, 16
  %v585 = vpop.permute.xlu0 %584
  %586 = vrot.lane.b32.xlu0 %v173, 16
  %v587 = vpop.permute.xlu0 %586
  %588 = vrot.lane.b32.xlu0 %v176, 16
  %v589 = vpop.permute.xlu0 %588
  %vm590 = vcmp.lt.s32.totalorder %v197, 16
  %v591 = vsel %vm590, %v583, %v587
  %v592 = vsel %vm590, %v585, %v589
  %v593 = vsel %vm590, %v579, %v583
  %v594 = vsel %vm590, %v581, %v585
  %v595 = vsel %vm590, %v575, %v579
  %v596 = vsel %vm590, %v577, %v581
  %v597 = vsel %vm590, %v587, %v575
  %v598 = vsel %vm590, %v589, %v577
  %vm599 = vcmp.ge.s32.totalorder %v61, 9
  %vm600 = vcmp.ge.s32.totalorder %v62, 9
  %vm601 = vcmp.ge.s32.totalorder %v63, 9
  %vm602 = vcmp.ge.s32.totalorder %v64, 9
  %vm603 = vcmp.ge.s32.totalorder %v65, 9
  %vm604 = vcmp.ge.s32.totalorder %v66, 9
  %vm605 = vcmp.ge.s32.totalorder %v67, 9
  %vm606 = vcmp.ge.s32.totalorder %v68, 9
  %v607 = vsel %vm599, %v591, 0.0
  %v608 = vsel %vm600, %v597, 0.0
  %v609 = vsel %vm601, %v595, 0.0
  %v610 = vsel %vm602, %v593, 0.0
  %v611 = vsel %vm603, %v592, 0.0
  %v612 = vsel %vm604, %v598, 0.0
  %v613 = vsel %vm605, %v596, 0.0
  %v614 = vsel %vm606, %v594, 0.0
  %615 = vset.pattern.permute.xlu0 6
  %616 = vperm.xlu0 %615, %v178
  %v617 = vpop.permute.xlu0 %616
  %619 = vset.pattern.permute.xlu0 6
  %620 = vperm.xlu0 %619, %v179
  %v621 = vpop.permute.xlu0 %620
  %v623 = vmul.f32 %v607, %v617
  %v624 = vmul.f32 %v608, %v617
  %v625 = vmul.f32 %v609, %v617
  %v626 = vmul.f32 %v610, %v617
  %v627 = vmul.f32 %v611, %v621
  %v628 = vmul.f32 %v612, %v621
  %v629 = vmul.f32 %v613, %v621
  %v630 = vmul.f32 %v614, %v621
  %v631 = vadd.f32 %v566, %v623
  %v632 = vadd.f32 %v567, %v624
  %v633 = vadd.f32 %v568, %v625
  %v634 = vadd.f32 %v569, %v626
  %v635 = vadd.f32 %v570, %v627
  %v636 = vadd.f32 %v571, %v628
  %v637 = vadd.f32 %v572, %v629
  %v638 = vadd.f32 %v573, %v630
  %vm639 = vcmp.ge.s32.totalorder %v61, 8
  %vm640 = vcmp.ge.s32.totalorder %v62, 8
  %vm641 = vcmp.ge.s32.totalorder %v63, 8
  %vm642 = vcmp.ge.s32.totalorder %v64, 8
  %vm643 = vcmp.ge.s32.totalorder %v65, 8
  %vm644 = vcmp.ge.s32.totalorder %v66, 8
  %vm645 = vcmp.ge.s32.totalorder %v67, 8
  %vm646 = vcmp.ge.s32.totalorder %v68, 8
  %v647 = vsel %vm639, %v173, 0.0
  %v648 = vsel %vm640, %v104, 0.0
  %v649 = vsel %vm641, %v127, 0.0
  %v650 = vsel %vm642, %v150, 0.0
  %v651 = vsel %vm643, %v176, 0.0
  %v652 = vsel %vm644, %v107, 0.0
  %v653 = vsel %vm645, %v130, 0.0
  %v654 = vsel %vm646, %v153, 0.0
  %655 = vset.pattern.permute.xlu0 7
  %656 = vperm.xlu0 %655, %v178
  %v657 = vpop.permute.xlu0 %656
  %659 = vset.pattern.permute.xlu0 7
  %660 = vperm.xlu0 %659, %v179
  %v661 = vpop.permute.xlu0 %660
  %v663 = vmul.f32 %v647, %v657
  %v664 = vmul.f32 %v648, %v657
  %v665 = vmul.f32 %v649, %v657
  %v666 = vmul.f32 %v650, %v657
  %v667 = vmul.f32 %v651, %v661
  %v668 = vmul.f32 %v652, %v661
  %v669 = vmul.f32 %v653, %v661
  %v670 = vmul.f32 %v654, %v661
  %v671 = vadd.f32 %v631, %v663
  %v672 = vadd.f32 %v632, %v664
  %v673 = vadd.f32 %v633, %v665
  %v674 = vadd.f32 %v634, %v666
  %v675 = vadd.f32 %v635, %v667
  %v676 = vadd.f32 %v636, %v668
  %v677 = vadd.f32 %v637, %v669
  %v678 = vadd.f32 %v638, %v670
  %vm679 = vcmp.ge.s32.totalorder %v61, 7
  %vm680 = vcmp.ge.s32.totalorder %v62, 7
  %vm681 = vcmp.ge.s32.totalorder %v63, 7
  %vm682 = vcmp.ge.s32.totalorder %v64, 7
  %vm683 = vcmp.ge.s32.totalorder %v65, 7
  %vm684 = vcmp.ge.s32.totalorder %v66, 7
  %vm685 = vcmp.ge.s32.totalorder %v67, 7
  %vm686 = vcmp.ge.s32.totalorder %v68, 7
  %v687 = vsel %vm679, %v205, 0.0
  %v688 = vsel %vm680, %v203, 0.0
  %v689 = vsel %vm681, %v201, 0.0
  %v690 = vsel %vm682, %v199, 0.0
  %v691 = vsel %vm683, %v206, 0.0
  %v692 = vsel %vm684, %v204, 0.0
  %v693 = vsel %vm685, %v202, 0.0
  %v694 = vsel %vm686, %v200, 0.0
  %695 = vset.pattern.permute.xlu0 8
  %696 = vperm.xlu0 %695, %v178
  %v697 = vpop.permute.xlu0 %696
  %699 = vset.pattern.permute.xlu0 8
  %700 = vperm.xlu0 %699, %v179
  %v701 = vpop.permute.xlu0 %700
  %v703 = vmul.f32 %v687, %v697
  %v704 = vmul.f32 %v688, %v697
  %v705 = vmul.f32 %v689, %v697
  %v706 = vmul.f32 %v690, %v697
  %v707 = vmul.f32 %v691, %v701
  %v708 = vmul.f32 %v692, %v701
  %v709 = vmul.f32 %v693, %v701
  %v710 = vmul.f32 %v694, %v701
  %v711 = vadd.f32 %v671, %v703
  %v712 = vadd.f32 %v672, %v704
  %v713 = vadd.f32 %v673, %v705
  %v714 = vadd.f32 %v674, %v706
  %v715 = vadd.f32 %v675, %v707
  %v716 = vadd.f32 %v676, %v708
  %v717 = vadd.f32 %v677, %v709
  %v718 = vadd.f32 %v678, %v710
  %vm719 = vcmp.ge.s32.totalorder %v61, 6
  %vm720 = vcmp.ge.s32.totalorder %v62, 6
  %vm721 = vcmp.ge.s32.totalorder %v63, 6
  %vm722 = vcmp.ge.s32.totalorder %v64, 6
  %vm723 = vcmp.ge.s32.totalorder %v65, 6
  %vm724 = vcmp.ge.s32.totalorder %v66, 6
  %vm725 = vcmp.ge.s32.totalorder %v67, 6
  %vm726 = vcmp.ge.s32.totalorder %v68, 6
  %v727 = vsel %vm719, %v272, 0.0
  %v728 = vsel %vm720, %v270, 0.0
  %v729 = vsel %vm721, %v268, 0.0
  %v730 = vsel %vm722, %v266, 0.0
  %v731 = vsel %vm723, %v273, 0.0
  %v732 = vsel %vm724, %v271, 0.0
  %v733 = vsel %vm725, %v269, 0.0
  %v734 = vsel %vm726, %v267, 0.0
  %735 = vset.pattern.permute.xlu0 9
  %736 = vperm.xlu0 %735, %v178
  %v737 = vpop.permute.xlu0 %736
  %739 = vset.pattern.permute.xlu0 9
  %740 = vperm.xlu0 %739, %v179
  %v741 = vpop.permute.xlu0 %740
  %v743 = vmul.f32 %v727, %v737
  %v744 = vmul.f32 %v728, %v737
  %v745 = vmul.f32 %v729, %v737
  %v746 = vmul.f32 %v730, %v737
  %v747 = vmul.f32 %v731, %v741
  %v748 = vmul.f32 %v732, %v741
  %v749 = vmul.f32 %v733, %v741
  %v750 = vmul.f32 %v734, %v741
  %v751 = vadd.f32 %v711, %v743
  %v752 = vadd.f32 %v712, %v744
  %v753 = vadd.f32 %v713, %v745
  %v754 = vadd.f32 %v714, %v746
  %v755 = vadd.f32 %v715, %v747
  %v756 = vadd.f32 %v716, %v748
  %v757 = vadd.f32 %v717, %v749
  %v758 = vadd.f32 %v718, %v750
  %vm759 = vcmp.ge.s32.totalorder %v61, 5
  %vm760 = vcmp.ge.s32.totalorder %v62, 5
  %vm761 = vcmp.ge.s32.totalorder %v63, 5
  %vm762 = vcmp.ge.s32.totalorder %v64, 5
  %vm763 = vcmp.ge.s32.totalorder %v65, 5
  %vm764 = vcmp.ge.s32.totalorder %v66, 5
  %vm765 = vcmp.ge.s32.totalorder %v67, 5
  %vm766 = vcmp.ge.s32.totalorder %v68, 5
  %v767 = vsel %vm759, %v337, 0.0
  %v768 = vsel %vm760, %v335, 0.0
  %v769 = vsel %vm761, %v333, 0.0
  %v770 = vsel %vm762, %v331, 0.0
  %v771 = vsel %vm763, %v338, 0.0
  %v772 = vsel %vm764, %v336, 0.0
  %v773 = vsel %vm765, %v334, 0.0
  %v774 = vsel %vm766, %v332, 0.0
  %775 = vset.pattern.permute.xlu0 10
  %776 = vperm.xlu0 %775, %v178
  %v777 = vpop.permute.xlu0 %776
  %779 = vset.pattern.permute.xlu0 10
  %780 = vperm.xlu0 %779, %v179
  %v781 = vpop.permute.xlu0 %780
  %v783 = vmul.f32 %v767, %v777
  %v784 = vmul.f32 %v768, %v777
  %v785 = vmul.f32 %v769, %v777
  %v786 = vmul.f32 %v770, %v777
  %v787 = vmul.f32 %v771, %v781
  %v788 = vmul.f32 %v772, %v781
  %v789 = vmul.f32 %v773, %v781
  %v790 = vmul.f32 %v774, %v781
  %v791 = vadd.f32 %v751, %v783
  %v792 = vadd.f32 %v752, %v784
  %v793 = vadd.f32 %v753, %v785
  %v794 = vadd.f32 %v754, %v786
  %v795 = vadd.f32 %v755, %v787
  %v796 = vadd.f32 %v756, %v788
  %v797 = vadd.f32 %v757, %v789
  %v798 = vadd.f32 %v758, %v790
  %vm799 = vcmp.ge.s32.totalorder %v61, 4
  %vm800 = vcmp.ge.s32.totalorder %v62, 4
  %vm801 = vcmp.ge.s32.totalorder %v63, 4
  %vm802 = vcmp.ge.s32.totalorder %v64, 4
  %vm803 = vcmp.ge.s32.totalorder %v65, 4
  %vm804 = vcmp.ge.s32.totalorder %v66, 4
  %vm805 = vcmp.ge.s32.totalorder %v67, 4
  %vm806 = vcmp.ge.s32.totalorder %v68, 4
  %v807 = vsel %vm799, %v402, 0.0
  %v808 = vsel %vm800, %v400, 0.0
  %v809 = vsel %vm801, %v398, 0.0
  %v810 = vsel %vm802, %v396, 0.0
  %v811 = vsel %vm803, %v403, 0.0
  %v812 = vsel %vm804, %v401, 0.0
  %v813 = vsel %vm805, %v399, 0.0
  %v814 = vsel %vm806, %v397, 0.0
  %815 = vset.pattern.permute.xlu0 11
  %816 = vperm.xlu0 %815, %v178
  %v817 = vpop.permute.xlu0 %816
  %819 = vset.pattern.permute.xlu0 11
  %820 = vperm.xlu0 %819, %v179
  %v821 = vpop.permute.xlu0 %820
  %v823 = vmul.f32 %v807, %v817
  %v824 = vmul.f32 %v808, %v817
  %v825 = vmul.f32 %v809, %v817
  %v826 = vmul.f32 %v810, %v817
  %v827 = vmul.f32 %v811, %v821
  %v828 = vmul.f32 %v812, %v821
  %v829 = vmul.f32 %v813, %v821
  %v830 = vmul.f32 %v814, %v821
  %v831 = vadd.f32 %v791, %v823
  %v832 = vadd.f32 %v792, %v824
  %v833 = vadd.f32 %v793, %v825
  %v834 = vadd.f32 %v794, %v826
  %v835 = vadd.f32 %v795, %v827
  %v836 = vadd.f32 %v796, %v828
  %v837 = vadd.f32 %v797, %v829
  %v838 = vadd.f32 %v798, %v830
  %vm839 = vcmp.ge.s32.totalorder %v61, 3
  %vm840 = vcmp.ge.s32.totalorder %v62, 3
  %vm841 = vcmp.ge.s32.totalorder %v63, 3
  %vm842 = vcmp.ge.s32.totalorder %v64, 3
  %vm843 = vcmp.ge.s32.totalorder %v65, 3
  %vm844 = vcmp.ge.s32.totalorder %v66, 3
  %vm845 = vcmp.ge.s32.totalorder %v67, 3
  %vm846 = vcmp.ge.s32.totalorder %v68, 3
  %v847 = vsel %vm839, %v467, 0.0
  %v848 = vsel %vm840, %v465, 0.0
  %v849 = vsel %vm841, %v463, 0.0
  %v850 = vsel %vm842, %v461, 0.0
  %v851 = vsel %vm843, %v468, 0.0
  %v852 = vsel %vm844, %v466, 0.0
  %v853 = vsel %vm845, %v464, 0.0
  %v854 = vsel %vm846, %v462, 0.0
  %855 = vset.pattern.permute.xlu0 12
  %856 = vperm.xlu0 %855, %v178
  %v857 = vpop.permute.xlu0 %856
  %859 = vset.pattern.permute.xlu0 12
  %860 = vperm.xlu0 %859, %v179
  %v861 = vpop.permute.xlu0 %860
  %v863 = vmul.f32 %v847, %v857
  %v864 = vmul.f32 %v848, %v857
  %v865 = vmul.f32 %v849, %v857
  %v866 = vmul.f32 %v850, %v857
  %v867 = vmul.f32 %v851, %v861
  %v868 = vmul.f32 %v852, %v861
  %v869 = vmul.f32 %v853, %v861
  %v870 = vmul.f32 %v854, %v861
  %v871 = vadd.f32 %v831, %v863
  %v872 = vadd.f32 %v832, %v864
  %v873 = vadd.f32 %v833, %v865
  %v874 = vadd.f32 %v834, %v866
  %v875 = vadd.f32 %v835, %v867
  %v876 = vadd.f32 %v836, %v868
  %v877 = vadd.f32 %v837, %v869
  %v878 = vadd.f32 %v838, %v870
  %vm879 = vcmp.ge.s32.totalorder %v61, 2
  %vm880 = vcmp.ge.s32.totalorder %v62, 2
  %vm881 = vcmp.ge.s32.totalorder %v63, 2
  %vm882 = vcmp.ge.s32.totalorder %v64, 2
  %vm883 = vcmp.ge.s32.totalorder %v65, 2
  %vm884 = vcmp.ge.s32.totalorder %v66, 2
  %vm885 = vcmp.ge.s32.totalorder %v67, 2
  %vm886 = vcmp.ge.s32.totalorder %v68, 2
  %v887 = vsel %vm879, %v532, 0.0
  %v888 = vsel %vm880, %v530, 0.0
  %v889 = vsel %vm881, %v528, 0.0
  %v890 = vsel %vm882, %v526, 0.0
  %v891 = vsel %vm883, %v533, 0.0
  %v892 = vsel %vm884, %v531, 0.0
  %v893 = vsel %vm885, %v529, 0.0
  %v894 = vsel %vm886, %v527, 0.0
  %895 = vset.pattern.permute.xlu0 13
  %896 = vperm.xlu0 %895, %v178
  %v897 = vpop.permute.xlu0 %896
  %899 = vset.pattern.permute.xlu0 13
  %900 = vperm.xlu0 %899, %v179
  %v901 = vpop.permute.xlu0 %900
  %v903 = vmul.f32 %v887, %v897
  %v904 = vmul.f32 %v888, %v897
  %v905 = vmul.f32 %v889, %v897
  %v906 = vmul.f32 %v890, %v897
  %v907 = vmul.f32 %v891, %v901
  %v908 = vmul.f32 %v892, %v901
  %v909 = vmul.f32 %v893, %v901
  %v910 = vmul.f32 %v894, %v901
  %v911 = vadd.f32 %v871, %v903
  %v912 = vadd.f32 %v872, %v904
  %v913 = vadd.f32 %v873, %v905
  %v914 = vadd.f32 %v874, %v906
  %v915 = vadd.f32 %v875, %v907
  %v916 = vadd.f32 %v876, %v908
  %v917 = vadd.f32 %v877, %v909
  %v918 = vadd.f32 %v878, %v910
  %vm919 = vcmp.ge.s32.totalorder %v61, 1
  %vm920 = vcmp.ge.s32.totalorder %v62, 1
  %vm921 = vcmp.ge.s32.totalorder %v63, 1
  %vm922 = vcmp.ge.s32.totalorder %v64, 1
  %vm923 = vcmp.ge.s32.totalorder %v65, 1
  %vm924 = vcmp.ge.s32.totalorder %v66, 1
  %vm925 = vcmp.ge.s32.totalorder %v67, 1
  %vm926 = vcmp.ge.s32.totalorder %v68, 1
  %v927 = vsel %vm919, %v597, 0.0
  %v928 = vsel %vm920, %v595, 0.0
  %v929 = vsel %vm921, %v593, 0.0
  %v930 = vsel %vm922, %v591, 0.0
  %v931 = vsel %vm923, %v598, 0.0
  %v932 = vsel %vm924, %v596, 0.0
  %v933 = vsel %vm925, %v594, 0.0
  %v934 = vsel %vm926, %v592, 0.0
  %935 = vset.pattern.permute.xlu0 14
  %936 = vperm.xlu0 %935, %v178
  %v937 = vpop.permute.xlu0 %936
  %939 = vset.pattern.permute.xlu0 14
  %940 = vperm.xlu0 %939, %v179
  %v941 = vpop.permute.xlu0 %940
  %v943 = vmul.f32 %v927, %v937
  %v944 = vmul.f32 %v928, %v937
  %v945 = vmul.f32 %v929, %v937
  %v946 = vmul.f32 %v930, %v937
  %v947 = vmul.f32 %v931, %v941
  %v948 = vmul.f32 %v932, %v941
  %v949 = vmul.f32 %v933, %v941
  %v950 = vmul.f32 %v934, %v941
  %v951 = vadd.f32 %v911, %v943
  %v952 = vadd.f32 %v912, %v944
  %v953 = vadd.f32 %v913, %v945
  %v954 = vadd.f32 %v914, %v946
  %v955 = vadd.f32 %v915, %v947
  %v956 = vadd.f32 %v916, %v948
  %v957 = vadd.f32 %v917, %v949
  %v958 = vadd.f32 %v918, %v950
  %959 = vset.pattern.permute.xlu0 15
  %960 = vperm.xlu0 %959, %v178
  %v961 = vpop.permute.xlu0 %960
  %963 = vset.pattern.permute.xlu0 15
  %964 = vperm.xlu0 %963, %v179
  %v965 = vpop.permute.xlu0 %964
  %v967 = vmul.f32 %v104, %v961
  %v968 = vmul.f32 %v127, %v961
  %v969 = vmul.f32 %v150, %v961
  %v970 = vmul.f32 %v173, %v961
  %v971 = vmul.f32 %v107, %v965
  %v972 = vmul.f32 %v130, %v965
  %v973 = vmul.f32 %v153, %v965
  %v974 = vmul.f32 %v176, %v965
  %v975 = vadd.f32 %v951, %v967
  %v976 = vadd.f32 %v952, %v968
  %v977 = vadd.f32 %v953, %v969
  %v978 = vadd.f32 %v954, %v970
  %v979 = vadd.f32 %v955, %v971
  %v980 = vadd.f32 %v956, %v972
  %v981 = vadd.f32 %v957, %v973
  %v982 = vadd.f32 %v958, %v974
  %vm983 = vcmp.lt.s32.totalorder %v61, 15
  %vm984 = vcmp.lt.s32.totalorder %v62, 15
  %vm985 = vcmp.lt.s32.totalorder %v63, 15
  %vm986 = vcmp.lt.s32.totalorder %v64, 15
  %vm987 = vcmp.lt.s32.totalorder %v65, 15
  %vm988 = vcmp.lt.s32.totalorder %v66, 15
  %vm989 = vcmp.lt.s32.totalorder %v67, 15
  %vm990 = vcmp.lt.s32.totalorder %v68, 15
  %v991 = vsel %vm983, %v203, 0.0
  %v992 = vsel %vm984, %v201, 0.0
  %v993 = vsel %vm985, %v199, 0.0
  %v994 = vsel %vm986, %v205, 0.0
  %v995 = vsel %vm987, %v204, 0.0
  %v996 = vsel %vm988, %v202, 0.0
  %v997 = vsel %vm989, %v200, 0.0
  %v998 = vsel %vm990, %v206, 0.0
  %999 = vset.pattern.permute.xlu0 16
  %1000 = vperm.xlu0 %999, %v178
  %v1001 = vpop.permute.xlu0 %1000
  %1003 = vset.pattern.permute.xlu0 16
  %1004 = vperm.xlu0 %1003, %v179
  %v1005 = vpop.permute.xlu0 %1004
  %v1007 = vmul.f32 %v991, %v1001
  %v1008 = vmul.f32 %v992, %v1001
  %v1009 = vmul.f32 %v993, %v1001
  %v1010 = vmul.f32 %v994, %v1001
  %v1011 = vmul.f32 %v995, %v1005
  %v1012 = vmul.f32 %v996, %v1005
  %v1013 = vmul.f32 %v997, %v1005
  %v1014 = vmul.f32 %v998, %v1005
  %v1015 = vadd.f32 %v975, %v1007
  %v1016 = vadd.f32 %v976, %v1008
  %v1017 = vadd.f32 %v977, %v1009
  %v1018 = vadd.f32 %v978, %v1010
  %v1019 = vadd.f32 %v979, %v1011
  %v1020 = vadd.f32 %v980, %v1012
  %v1021 = vadd.f32 %v981, %v1013
  %v1022 = vadd.f32 %v982, %v1014
  %vm1023 = vcmp.lt.s32.totalorder %v61, 14
  %vm1024 = vcmp.lt.s32.totalorder %v62, 14
  %vm1025 = vcmp.lt.s32.totalorder %v63, 14
  %vm1026 = vcmp.lt.s32.totalorder %v64, 14
  %vm1027 = vcmp.lt.s32.totalorder %v65, 14
  %vm1028 = vcmp.lt.s32.totalorder %v66, 14
  %vm1029 = vcmp.lt.s32.totalorder %v67, 14
  %vm1030 = vcmp.lt.s32.totalorder %v68, 14
  %v1031 = vsel %vm1023, %v270, 0.0
  %v1032 = vsel %vm1024, %v268, 0.0
  %v1033 = vsel %vm1025, %v266, 0.0
  %v1034 = vsel %vm1026, %v272, 0.0
  %v1035 = vsel %vm1027, %v271, 0.0
  %v1036 = vsel %vm1028, %v269, 0.0
  %v1037 = vsel %vm1029, %v267, 0.0
  %v1038 = vsel %vm1030, %v273, 0.0
  %1039 = vset.pattern.permute.xlu0 17
  %1040 = vperm.xlu0 %1039, %v178
  %v1041 = vpop.permute.xlu0 %1040
  %1043 = vset.pattern.permute.xlu0 17
  %1044 = vperm.xlu0 %1043, %v179
  %v1045 = vpop.permute.xlu0 %1044
  %v1047 = vmul.f32 %v1031, %v1041
  %v1048 = vmul.f32 %v1032, %v1041
  %v1049 = vmul.f32 %v1033, %v1041
  %v1050 = vmul.f32 %v1034, %v1041
  %v1051 = vmul.f32 %v1035, %v1045
  %v1052 = vmul.f32 %v1036, %v1045
  %v1053 = vmul.f32 %v1037, %v1045
  %v1054 = vmul.f32 %v1038, %v1045
  %v1055 = vadd.f32 %v1015, %v1047
  %v1056 = vadd.f32 %v1016, %v1048
  %v1057 = vadd.f32 %v1017, %v1049
  %v1058 = vadd.f32 %v1018, %v1050
  %v1059 = vadd.f32 %v1019, %v1051
  %v1060 = vadd.f32 %v1020, %v1052
  %v1061 = vadd.f32 %v1021, %v1053
  %v1062 = vadd.f32 %v1022, %v1054
  %vm1063 = vcmp.lt.s32.totalorder %v61, 13
  %vm1064 = vcmp.lt.s32.totalorder %v62, 13
  %vm1065 = vcmp.lt.s32.totalorder %v63, 13
  %vm1066 = vcmp.lt.s32.totalorder %v64, 13
  %vm1067 = vcmp.lt.s32.totalorder %v65, 13
  %vm1068 = vcmp.lt.s32.totalorder %v66, 13
  %vm1069 = vcmp.lt.s32.totalorder %v67, 13
  %vm1070 = vcmp.lt.s32.totalorder %v68, 13
  %v1071 = vsel %vm1063, %v335, 0.0
  %v1072 = vsel %vm1064, %v333, 0.0
  %v1073 = vsel %vm1065, %v331, 0.0
  %v1074 = vsel %vm1066, %v337, 0.0
  %v1075 = vsel %vm1067, %v336, 0.0
  %v1076 = vsel %vm1068, %v334, 0.0
  %v1077 = vsel %vm1069, %v332, 0.0
  %v1078 = vsel %vm1070, %v338, 0.0
  %1079 = vset.pattern.permute.xlu0 18
  %1080 = vperm.xlu0 %1079, %v178
  %v1081 = vpop.permute.xlu0 %1080
  %1083 = vset.pattern.permute.xlu0 18
  %1084 = vperm.xlu0 %1083, %v179
  %v1085 = vpop.permute.xlu0 %1084
  %v1087 = vmul.f32 %v1071, %v1081
  %v1088 = vmul.f32 %v1072, %v1081
  %v1089 = vmul.f32 %v1073, %v1081
  %v1090 = vmul.f32 %v1074, %v1081
  %v1091 = vmul.f32 %v1075, %v1085
  %v1092 = vmul.f32 %v1076, %v1085
  %v1093 = vmul.f32 %v1077, %v1085
  %v1094 = vmul.f32 %v1078, %v1085
  %v1095 = vadd.f32 %v1055, %v1087
  %v1096 = vadd.f32 %v1056, %v1088
  %v1097 = vadd.f32 %v1057, %v1089
  %v1098 = vadd.f32 %v1058, %v1090
  %v1099 = vadd.f32 %v1059, %v1091
  %v1100 = vadd.f32 %v1060, %v1092
  %v1101 = vadd.f32 %v1061, %v1093
  %v1102 = vadd.f32 %v1062, %v1094
  %vm1103 = vcmp.lt.s32.totalorder %v61, 12
  %vm1104 = vcmp.lt.s32.totalorder %v62, 12
  %vm1105 = vcmp.lt.s32.totalorder %v63, 12
  %vm1106 = vcmp.lt.s32.totalorder %v64, 12
  %vm1107 = vcmp.lt.s32.totalorder %v65, 12
  %vm1108 = vcmp.lt.s32.totalorder %v66, 12
  %vm1109 = vcmp.lt.s32.totalorder %v67, 12
  %vm1110 = vcmp.lt.s32.totalorder %v68, 12
  %v1111 = vsel %vm1103, %v400, 0.0
  %v1112 = vsel %vm1104, %v398, 0.0
  %v1113 = vsel %vm1105, %v396, 0.0
  %v1114 = vsel %vm1106, %v402, 0.0
  %v1115 = vsel %vm1107, %v401, 0.0
  %v1116 = vsel %vm1108, %v399, 0.0
  %v1117 = vsel %vm1109, %v397, 0.0
  %v1118 = vsel %vm1110, %v403, 0.0
  %1119 = vset.pattern.permute.xlu0 19
  %1120 = vperm.xlu0 %1119, %v178
  %v1121 = vpop.permute.xlu0 %1120
  %1123 = vset.pattern.permute.xlu0 19
  %1124 = vperm.xlu0 %1123, %v179
  %v1125 = vpop.permute.xlu0 %1124
  %v1127 = vmul.f32 %v1111, %v1121
  %v1128 = vmul.f32 %v1112, %v1121
  %v1129 = vmul.f32 %v1113, %v1121
  %v1130 = vmul.f32 %v1114, %v1121
  %v1131 = vmul.f32 %v1115, %v1125
  %v1132 = vmul.f32 %v1116, %v1125
  %v1133 = vmul.f32 %v1117, %v1125
  %v1134 = vmul.f32 %v1118, %v1125
  %v1135 = vadd.f32 %v1095, %v1127
  %v1136 = vadd.f32 %v1096, %v1128
  %v1137 = vadd.f32 %v1097, %v1129
  %v1138 = vadd.f32 %v1098, %v1130
  %v1139 = vadd.f32 %v1099, %v1131
  %v1140 = vadd.f32 %v1100, %v1132
  %v1141 = vadd.f32 %v1101, %v1133
  %v1142 = vadd.f32 %v1102, %v1134
  %vm1143 = vcmp.lt.s32.totalorder %v61, 11
  %vm1144 = vcmp.lt.s32.totalorder %v62, 11
  %vm1145 = vcmp.lt.s32.totalorder %v63, 11
  %vm1146 = vcmp.lt.s32.totalorder %v64, 11
  %vm1147 = vcmp.lt.s32.totalorder %v65, 11
  %vm1148 = vcmp.lt.s32.totalorder %v66, 11
  %vm1149 = vcmp.lt.s32.totalorder %v67, 11
  %vm1150 = vcmp.lt.s32.totalorder %v68, 11
  %v1151 = vsel %vm1143, %v465, 0.0
  %v1152 = vsel %vm1144, %v463, 0.0
  %v1153 = vsel %vm1145, %v461, 0.0
  %v1154 = vsel %vm1146, %v467, 0.0
  %v1155 = vsel %vm1147, %v466, 0.0
  %v1156 = vsel %vm1148, %v464, 0.0
  %v1157 = vsel %vm1149, %v462, 0.0
  %v1158 = vsel %vm1150, %v468, 0.0
  %1159 = vset.pattern.permute.xlu0 20
  %1160 = vperm.xlu0 %1159, %v178
  %v1161 = vpop.permute.xlu0 %1160
  %1163 = vset.pattern.permute.xlu0 20
  %1164 = vperm.xlu0 %1163, %v179
  %v1165 = vpop.permute.xlu0 %1164
  %v1167 = vmul.f32 %v1151, %v1161
  %v1168 = vmul.f32 %v1152, %v1161
  %v1169 = vmul.f32 %v1153, %v1161
  %v1170 = vmul.f32 %v1154, %v1161
  %v1171 = vmul.f32 %v1155, %v1165
  %v1172 = vmul.f32 %v1156, %v1165
  %v1173 = vmul.f32 %v1157, %v1165
  %v1174 = vmul.f32 %v1158, %v1165
  %v1175 = vadd.f32 %v1135, %v1167
  %v1176 = vadd.f32 %v1136, %v1168
  %v1177 = vadd.f32 %v1137, %v1169
  %v1178 = vadd.f32 %v1138, %v1170
  %v1179 = vadd.f32 %v1139, %v1171
  %v1180 = vadd.f32 %v1140, %v1172
  %v1181 = vadd.f32 %v1141, %v1173
  %v1182 = vadd.f32 %v1142, %v1174
  %vm1183 = vcmp.lt.s32.totalorder %v61, 10
  %vm1184 = vcmp.lt.s32.totalorder %v62, 10
  %vm1185 = vcmp.lt.s32.totalorder %v63, 10
  %vm1186 = vcmp.lt.s32.totalorder %v64, 10
  %vm1187 = vcmp.lt.s32.totalorder %v65, 10
  %vm1188 = vcmp.lt.s32.totalorder %v66, 10
  %vm1189 = vcmp.lt.s32.totalorder %v67, 10
  %vm1190 = vcmp.lt.s32.totalorder %v68, 10
  %v1191 = vsel %vm1183, %v530, 0.0
  %v1192 = vsel %vm1184, %v528, 0.0
  %v1193 = vsel %vm1185, %v526, 0.0
  %v1194 = vsel %vm1186, %v532, 0.0
  %v1195 = vsel %vm1187, %v531, 0.0
  %v1196 = vsel %vm1188, %v529, 0.0
  %v1197 = vsel %vm1189, %v527, 0.0
  %v1198 = vsel %vm1190, %v533, 0.0
  %1199 = vset.pattern.permute.xlu0 21
  %1200 = vperm.xlu0 %1199, %v178
  %v1201 = vpop.permute.xlu0 %1200
  %1203 = vset.pattern.permute.xlu0 21
  %1204 = vperm.xlu0 %1203, %v179
  %v1205 = vpop.permute.xlu0 %1204
  %v1207 = vmul.f32 %v1191, %v1201
  %v1208 = vmul.f32 %v1192, %v1201
  %v1209 = vmul.f32 %v1193, %v1201
  %v1210 = vmul.f32 %v1194, %v1201
  %v1211 = vmul.f32 %v1195, %v1205
  %v1212 = vmul.f32 %v1196, %v1205
  %v1213 = vmul.f32 %v1197, %v1205
  %v1214 = vmul.f32 %v1198, %v1205
  %v1215 = vadd.f32 %v1175, %v1207
  %v1216 = vadd.f32 %v1176, %v1208
  %v1217 = vadd.f32 %v1177, %v1209
  %v1218 = vadd.f32 %v1178, %v1210
  %v1219 = vadd.f32 %v1179, %v1211
  %v1220 = vadd.f32 %v1180, %v1212
  %v1221 = vadd.f32 %v1181, %v1213
  %v1222 = vadd.f32 %v1182, %v1214
  %vm1223 = vcmp.lt.s32.totalorder %v61, 9
  %vm1224 = vcmp.lt.s32.totalorder %v62, 9
  %vm1225 = vcmp.lt.s32.totalorder %v63, 9
  %vm1226 = vcmp.lt.s32.totalorder %v64, 9
  %vm1227 = vcmp.lt.s32.totalorder %v65, 9
  %vm1228 = vcmp.lt.s32.totalorder %v66, 9
  %vm1229 = vcmp.lt.s32.totalorder %v67, 9
  %vm1230 = vcmp.lt.s32.totalorder %v68, 9
  %v1231 = vsel %vm1223, %v595, 0.0
  %v1232 = vsel %vm1224, %v593, 0.0
  %v1233 = vsel %vm1225, %v591, 0.0
  %v1234 = vsel %vm1226, %v597, 0.0
  %v1235 = vsel %vm1227, %v596, 0.0
  %v1236 = vsel %vm1228, %v594, 0.0
  %v1237 = vsel %vm1229, %v592, 0.0
  %v1238 = vsel %vm1230, %v598, 0.0
  %1239 = vset.pattern.permute.xlu0 22
  %1240 = vperm.xlu0 %1239, %v178
  %v1241 = vpop.permute.xlu0 %1240
  %1243 = vset.pattern.permute.xlu0 22
  %1244 = vperm.xlu0 %1243, %v179
  %v1245 = vpop.permute.xlu0 %1244
  %v1247 = vmul.f32 %v1231, %v1241
  %v1248 = vmul.f32 %v1232, %v1241
  %v1249 = vmul.f32 %v1233, %v1241
  %v1250 = vmul.f32 %v1234, %v1241
  %v1251 = vmul.f32 %v1235, %v1245
  %v1252 = vmul.f32 %v1236, %v1245
  %v1253 = vmul.f32 %v1237, %v1245
  %v1254 = vmul.f32 %v1238, %v1245
  %v1255 = vadd.f32 %v1215, %v1247
  %v1256 = vadd.f32 %v1216, %v1248
  %v1257 = vadd.f32 %v1217, %v1249
  %v1258 = vadd.f32 %v1218, %v1250
  %v1259 = vadd.f32 %v1219, %v1251
  %v1260 = vadd.f32 %v1220, %v1252
  %v1261 = vadd.f32 %v1221, %v1253
  %v1262 = vadd.f32 %v1222, %v1254
  %vm1263 = vcmp.lt.s32.totalorder %v61, 8
  %vm1264 = vcmp.lt.s32.totalorder %v62, 8
  %vm1265 = vcmp.lt.s32.totalorder %v63, 8
  %vm1266 = vcmp.lt.s32.totalorder %v64, 8
  %vm1267 = vcmp.lt.s32.totalorder %v65, 8
  %vm1268 = vcmp.lt.s32.totalorder %v66, 8
  %vm1269 = vcmp.lt.s32.totalorder %v67, 8
  %vm1270 = vcmp.lt.s32.totalorder %v68, 8
  %v1271 = vsel %vm1263, %v127, 0.0
  %v1272 = vsel %vm1264, %v150, 0.0
  %v1273 = vsel %vm1265, %v173, 0.0
  %v1274 = vsel %vm1266, %v104, 0.0
  %v1275 = vsel %vm1267, %v130, 0.0
  %v1276 = vsel %vm1268, %v153, 0.0
  %v1277 = vsel %vm1269, %v176, 0.0
  %v1278 = vsel %vm1270, %v107, 0.0
  %1279 = vset.pattern.permute.xlu0 23
  %1280 = vperm.xlu0 %1279, %v178
  %v1281 = vpop.permute.xlu0 %1280
  %1283 = vset.pattern.permute.xlu0 23
  %1284 = vperm.xlu0 %1283, %v179
  %v1285 = vpop.permute.xlu0 %1284
  %v1287 = vmul.f32 %v1271, %v1281
  %v1288 = vmul.f32 %v1272, %v1281
  %v1289 = vmul.f32 %v1273, %v1281
  %v1290 = vmul.f32 %v1274, %v1281
  %v1291 = vmul.f32 %v1275, %v1285
  %v1292 = vmul.f32 %v1276, %v1285
  %v1293 = vmul.f32 %v1277, %v1285
  %v1294 = vmul.f32 %v1278, %v1285
  %v1295 = vadd.f32 %v1255, %v1287
  %v1296 = vadd.f32 %v1256, %v1288
  %v1297 = vadd.f32 %v1257, %v1289
  %v1298 = vadd.f32 %v1258, %v1290
  %v1299 = vadd.f32 %v1259, %v1291
  %v1300 = vadd.f32 %v1260, %v1292
  %v1301 = vadd.f32 %v1261, %v1293
  %v1302 = vadd.f32 %v1262, %v1294
  %vm1303 = vcmp.lt.s32.totalorder %v61, 7
  %vm1304 = vcmp.lt.s32.totalorder %v62, 7
  %vm1305 = vcmp.lt.s32.totalorder %v63, 7
  %vm1306 = vcmp.lt.s32.totalorder %v64, 7
  %vm1307 = vcmp.lt.s32.totalorder %v65, 7
  %vm1308 = vcmp.lt.s32.totalorder %v66, 7
  %vm1309 = vcmp.lt.s32.totalorder %v67, 7
  %vm1310 = vcmp.lt.s32.totalorder %v68, 7
  %v1311 = vsel %vm1303, %v201, 0.0
  %v1312 = vsel %vm1304, %v199, 0.0
  %v1313 = vsel %vm1305, %v205, 0.0
  %v1314 = vsel %vm1306, %v203, 0.0
  %v1315 = vsel %vm1307, %v202, 0.0
  %v1316 = vsel %vm1308, %v200, 0.0
  %v1317 = vsel %vm1309, %v206, 0.0
  %v1318 = vsel %vm1310, %v204, 0.0
  %1319 = vset.pattern.permute.xlu0 24
  %1320 = vperm.xlu0 %1319, %v178
  %v1321 = vpop.permute.xlu0 %1320
  %1323 = vset.pattern.permute.xlu0 24
  %1324 = vperm.xlu0 %1323, %v179
  %v1325 = vpop.permute.xlu0 %1324
  %v1327 = vmul.f32 %v1311, %v1321
  %v1328 = vmul.f32 %v1312, %v1321
  %v1329 = vmul.f32 %v1313, %v1321
  %v1330 = vmul.f32 %v1314, %v1321
  %v1331 = vmul.f32 %v1315, %v1325
  %v1332 = vmul.f32 %v1316, %v1325
  %v1333 = vmul.f32 %v1317, %v1325
  %v1334 = vmul.f32 %v1318, %v1325
  %v1335 = vadd.f32 %v1295, %v1327
  %v1336 = vadd.f32 %v1296, %v1328
  %v1337 = vadd.f32 %v1297, %v1329
  %v1338 = vadd.f32 %v1298, %v1330
  %v1339 = vadd.f32 %v1299, %v1331
  %v1340 = vadd.f32 %v1300, %v1332
  %v1341 = vadd.f32 %v1301, %v1333
  %v1342 = vadd.f32 %v1302, %v1334
  %vm1343 = vcmp.lt.s32.totalorder %v61, 6
  %vm1344 = vcmp.lt.s32.totalorder %v62, 6
  %vm1345 = vcmp.lt.s32.totalorder %v63, 6
  %vm1346 = vcmp.lt.s32.totalorder %v64, 6
  %vm1347 = vcmp.lt.s32.totalorder %v65, 6
  %vm1348 = vcmp.lt.s32.totalorder %v66, 6
  %vm1349 = vcmp.lt.s32.totalorder %v67, 6
  %vm1350 = vcmp.lt.s32.totalorder %v68, 6
  %v1351 = vsel %vm1343, %v268, 0.0
  %v1352 = vsel %vm1344, %v266, 0.0
  %v1353 = vsel %vm1345, %v272, 0.0
  %v1354 = vsel %vm1346, %v270, 0.0
  %v1355 = vsel %vm1347, %v269, 0.0
  %v1356 = vsel %vm1348, %v267, 0.0
  %v1357 = vsel %vm1349, %v273, 0.0
  %v1358 = vsel %vm1350, %v271, 0.0
  %1359 = vset.pattern.permute.xlu0 25
  %1360 = vperm.xlu0 %1359, %v178
  %v1361 = vpop.permute.xlu0 %1360
  %1363 = vset.pattern.permute.xlu0 25
  %1364 = vperm.xlu0 %1363, %v179
  %v1365 = vpop.permute.xlu0 %1364
  %v1367 = vmul.f32 %v1351, %v1361
  %v1368 = vmul.f32 %v1352, %v1361
  %v1369 = vmul.f32 %v1353, %v1361
  %v1370 = vmul.f32 %v1354, %v1361
  %v1371 = vmul.f32 %v1355, %v1365
  %v1372 = vmul.f32 %v1356, %v1365
  %v1373 = vmul.f32 %v1357, %v1365
  %v1374 = vmul.f32 %v1358, %v1365
  %v1375 = vadd.f32 %v1335, %v1367
  %v1376 = vadd.f32 %v1336, %v1368
  %v1377 = vadd.f32 %v1337, %v1369
  %v1378 = vadd.f32 %v1338, %v1370
  %v1379 = vadd.f32 %v1339, %v1371
  %v1380 = vadd.f32 %v1340, %v1372
  %v1381 = vadd.f32 %v1341, %v1373
  %v1382 = vadd.f32 %v1342, %v1374
  %vm1383 = vcmp.lt.s32.totalorder %v61, 5
  %vm1384 = vcmp.lt.s32.totalorder %v62, 5
  %vm1385 = vcmp.lt.s32.totalorder %v63, 5
  %vm1386 = vcmp.lt.s32.totalorder %v64, 5
  %vm1387 = vcmp.lt.s32.totalorder %v65, 5
  %vm1388 = vcmp.lt.s32.totalorder %v66, 5
  %vm1389 = vcmp.lt.s32.totalorder %v67, 5
  %vm1390 = vcmp.lt.s32.totalorder %v68, 5
  %v1391 = vsel %vm1383, %v333, 0.0
  %v1392 = vsel %vm1384, %v331, 0.0
  %v1393 = vsel %vm1385, %v337, 0.0
  %v1394 = vsel %vm1386, %v335, 0.0
  %v1395 = vsel %vm1387, %v334, 0.0
  %v1396 = vsel %vm1388, %v332, 0.0
  %v1397 = vsel %vm1389, %v338, 0.0
  %v1398 = vsel %vm1390, %v336, 0.0
  %1399 = vset.pattern.permute.xlu0 26
  %1400 = vperm.xlu0 %1399, %v178
  %v1401 = vpop.permute.xlu0 %1400
  %1403 = vset.pattern.permute.xlu0 26
  %1404 = vperm.xlu0 %1403, %v179
  %v1405 = vpop.permute.xlu0 %1404
  %v1407 = vmul.f32 %v1391, %v1401
  %v1408 = vmul.f32 %v1392, %v1401
  %v1409 = vmul.f32 %v1393, %v1401
  %v1410 = vmul.f32 %v1394, %v1401
  %v1411 = vmul.f32 %v1395, %v1405
  %v1412 = vmul.f32 %v1396, %v1405
  %v1413 = vmul.f32 %v1397, %v1405
  %v1414 = vmul.f32 %v1398, %v1405
  %v1415 = vadd.f32 %v1375, %v1407
  %v1416 = vadd.f32 %v1376, %v1408
  %v1417 = vadd.f32 %v1377, %v1409
  %v1418 = vadd.f32 %v1378, %v1410
  %v1419 = vadd.f32 %v1379, %v1411
  %v1420 = vadd.f32 %v1380, %v1412
  %v1421 = vadd.f32 %v1381, %v1413
  %v1422 = vadd.f32 %v1382, %v1414
  %vm1423 = vcmp.lt.s32.totalorder %v61, 4
  %vm1424 = vcmp.lt.s32.totalorder %v62, 4
  %vm1425 = vcmp.lt.s32.totalorder %v63, 4
  %vm1426 = vcmp.lt.s32.totalorder %v64, 4
  %vm1427 = vcmp.lt.s32.totalorder %v65, 4
  %vm1428 = vcmp.lt.s32.totalorder %v66, 4
  %vm1429 = vcmp.lt.s32.totalorder %v67, 4
  %vm1430 = vcmp.lt.s32.totalorder %v68, 4
  %v1431 = vsel %vm1423, %v398, 0.0
  %v1432 = vsel %vm1424, %v396, 0.0
  %v1433 = vsel %vm1425, %v402, 0.0
  %v1434 = vsel %vm1426, %v400, 0.0
  %v1435 = vsel %vm1427, %v399, 0.0
  %v1436 = vsel %vm1428, %v397, 0.0
  %v1437 = vsel %vm1429, %v403, 0.0
  %v1438 = vsel %vm1430, %v401, 0.0
  %1439 = vset.pattern.permute.xlu0 27
  %1440 = vperm.xlu0 %1439, %v178
  %v1441 = vpop.permute.xlu0 %1440
  %1443 = vset.pattern.permute.xlu0 27
  %1444 = vperm.xlu0 %1443, %v179
  %v1445 = vpop.permute.xlu0 %1444
  %v1447 = vmul.f32 %v1431, %v1441
  %v1448 = vmul.f32 %v1432, %v1441
  %v1449 = vmul.f32 %v1433, %v1441
  %v1450 = vmul.f32 %v1434, %v1441
  %v1451 = vmul.f32 %v1435, %v1445
  %v1452 = vmul.f32 %v1436, %v1445
  %v1453 = vmul.f32 %v1437, %v1445
  %v1454 = vmul.f32 %v1438, %v1445
  %v1455 = vadd.f32 %v1415, %v1447
  %v1456 = vadd.f32 %v1416, %v1448
  %v1457 = vadd.f32 %v1417, %v1449
  %v1458 = vadd.f32 %v1418, %v1450
  %v1459 = vadd.f32 %v1419, %v1451
  %v1460 = vadd.f32 %v1420, %v1452
  %v1461 = vadd.f32 %v1421, %v1453
  %v1462 = vadd.f32 %v1422, %v1454
  %vm1463 = vcmp.lt.s32.totalorder %v61, 3
  %vm1464 = vcmp.lt.s32.totalorder %v62, 3
  %vm1465 = vcmp.lt.s32.totalorder %v63, 3
  %vm1466 = vcmp.lt.s32.totalorder %v64, 3
  %vm1467 = vcmp.lt.s32.totalorder %v65, 3
  %vm1468 = vcmp.lt.s32.totalorder %v66, 3
  %vm1469 = vcmp.lt.s32.totalorder %v67, 3
  %vm1470 = vcmp.lt.s32.totalorder %v68, 3
  %v1471 = vsel %vm1463, %v463, 0.0
  %v1472 = vsel %vm1464, %v461, 0.0
  %v1473 = vsel %vm1465, %v467, 0.0
  %v1474 = vsel %vm1466, %v465, 0.0
  %v1475 = vsel %vm1467, %v464, 0.0
  %v1476 = vsel %vm1468, %v462, 0.0
  %v1477 = vsel %vm1469, %v468, 0.0
  %v1478 = vsel %vm1470, %v466, 0.0
  %1479 = vset.pattern.permute.xlu0 28
  %1480 = vperm.xlu0 %1479, %v178
  %v1481 = vpop.permute.xlu0 %1480
  %1483 = vset.pattern.permute.xlu0 28
  %1484 = vperm.xlu0 %1483, %v179
  %v1485 = vpop.permute.xlu0 %1484
  %v1487 = vmul.f32 %v1471, %v1481
  %v1488 = vmul.f32 %v1472, %v1481
  %v1489 = vmul.f32 %v1473, %v1481
  %v1490 = vmul.f32 %v1474, %v1481
  %v1491 = vmul.f32 %v1475, %v1485
  %v1492 = vmul.f32 %v1476, %v1485
  %v1493 = vmul.f32 %v1477, %v1485
  %v1494 = vmul.f32 %v1478, %v1485
  %v1495 = vadd.f32 %v1455, %v1487
  %v1496 = vadd.f32 %v1456, %v1488
  %v1497 = vadd.f32 %v1457, %v1489
  %v1498 = vadd.f32 %v1458, %v1490
  %v1499 = vadd.f32 %v1459, %v1491
  %v1500 = vadd.f32 %v1460, %v1492
  %v1501 = vadd.f32 %v1461, %v1493
  %v1502 = vadd.f32 %v1462, %v1494
  %vm1503 = vcmp.lt.s32.totalorder %v61, 2
  %vm1504 = vcmp.lt.s32.totalorder %v62, 2
  %vm1505 = vcmp.lt.s32.totalorder %v63, 2
  %vm1506 = vcmp.lt.s32.totalorder %v64, 2
  %vm1507 = vcmp.lt.s32.totalorder %v65, 2
  %vm1508 = vcmp.lt.s32.totalorder %v66, 2
  %vm1509 = vcmp.lt.s32.totalorder %v67, 2
  %vm1510 = vcmp.lt.s32.totalorder %v68, 2
  %v1511 = vsel %vm1503, %v528, 0.0
  %v1512 = vsel %vm1504, %v526, 0.0
  %v1513 = vsel %vm1505, %v532, 0.0
  %v1514 = vsel %vm1506, %v530, 0.0
  %v1515 = vsel %vm1507, %v529, 0.0
  %v1516 = vsel %vm1508, %v527, 0.0
  %v1517 = vsel %vm1509, %v533, 0.0
  %v1518 = vsel %vm1510, %v531, 0.0
  %1519 = vset.pattern.permute.xlu0 29
  %1520 = vperm.xlu0 %1519, %v178
  %v1521 = vpop.permute.xlu0 %1520
  %1523 = vset.pattern.permute.xlu0 29
  %1524 = vperm.xlu0 %1523, %v179
  %v1525 = vpop.permute.xlu0 %1524
  %v1527 = vmul.f32 %v1511, %v1521
  %v1528 = vmul.f32 %v1512, %v1521
  %v1529 = vmul.f32 %v1513, %v1521
  %v1530 = vmul.f32 %v1514, %v1521
  %v1531 = vmul.f32 %v1515, %v1525
  %v1532 = vmul.f32 %v1516, %v1525
  %v1533 = vmul.f32 %v1517, %v1525
  %v1534 = vmul.f32 %v1518, %v1525
  %v1535 = vadd.f32 %v1495, %v1527
  %v1536 = vadd.f32 %v1496, %v1528
  %v1537 = vadd.f32 %v1497, %v1529
  %v1538 = vadd.f32 %v1498, %v1530
  %v1539 = vadd.f32 %v1499, %v1531
  %v1540 = vadd.f32 %v1500, %v1532
  %v1541 = vadd.f32 %v1501, %v1533
  %v1542 = vadd.f32 %v1502, %v1534
  %vm1543 = vcmp.lt.s32.totalorder %v61, 1
  %vm1544 = vcmp.lt.s32.totalorder %v62, 1
  %vm1545 = vcmp.lt.s32.totalorder %v63, 1
  %vm1546 = vcmp.lt.s32.totalorder %v64, 1
  %vm1547 = vcmp.lt.s32.totalorder %v65, 1
  %vm1548 = vcmp.lt.s32.totalorder %v66, 1
  %vm1549 = vcmp.lt.s32.totalorder %v67, 1
  %vm1550 = vcmp.lt.s32.totalorder %v68, 1
  %v1551 = vsel %vm1543, %v593, 0.0
  %v1552 = vsel %vm1544, %v591, 0.0
  %v1553 = vsel %vm1545, %v597, 0.0
  %v1554 = vsel %vm1546, %v595, 0.0
  %v1555 = vsel %vm1547, %v594, 0.0
  %v1556 = vsel %vm1548, %v592, 0.0
  %v1557 = vsel %vm1549, %v598, 0.0
  %v1558 = vsel %vm1550, %v596, 0.0
  %1559 = vset.pattern.permute.xlu0 30
  %1560 = vperm.xlu0 %1559, %v178
  %v1561 = vpop.permute.xlu0 %1560
  %1563 = vset.pattern.permute.xlu0 30
  %1564 = vperm.xlu0 %1563, %v179
  %v1565 = vpop.permute.xlu0 %1564
  %v1567 = vmul.f32 %v1551, %v1561
  %v1568 = vmul.f32 %v1552, %v1561
  %v1569 = vmul.f32 %v1553, %v1561
  %v1570 = vmul.f32 %v1554, %v1561
  %v1571 = vmul.f32 %v1555, %v1565
  %v1572 = vmul.f32 %v1556, %v1565
  %v1573 = vmul.f32 %v1557, %v1565
  %v1574 = vmul.f32 %v1558, %v1565
  %v1575 = vadd.f32 %v1535, %v1567
  %v1576 = vadd.f32 %v1536, %v1568
  %v1577 = vadd.f32 %v1537, %v1569
  %v1578 = vadd.f32 %v1538, %v1570
  %v1579 = vadd.f32 %v1539, %v1571
  %v1580 = vadd.f32 %v1540, %v1572
  %v1581 = vadd.f32 %v1541, %v1573
  %v1582 = vadd.f32 %v1542, %v1574
  %v1583 = vld [vmem:[%s7] sm:$0xff]
  %v1584 = vld [vmem:[%s7 + $0x8] sm:$0xff]
  %1586 = vset.pattern.permute.xlu0 0
  %1587 = vperm.xlu0 %1586, %v1583
  %v1588 = vpop.permute.xlu0 %1587
  %1591 = vset.pattern.permute.xlu0 0
  %1592 = vperm.xlu0 %1591, %v1584
  %v1593 = vpop.permute.xlu0 %1592
  %v1595 = vmul.f32 %v1575, %v1588
  %v1596 = vmul.f32 %v1576, %v1588
  %v1597 = vmul.f32 %v1577, %v1588
  %v1598 = vmul.f32 %v1578, %v1588
  %v1599 = vmul.f32 %v1579, %v1593
  %v1600 = vmul.f32 %v1580, %v1593
  %v1601 = vmul.f32 %v1581, %v1593
  %v1602 = vmul.f32 %v1582, %v1593
  %v1603 = vld [vmem:[%s8] sm:$0xff]
  %v1604 = vld [vmem:[%s8 + $0x8] sm:$0xff]
  %1606 = vset.pattern.permute.xlu0 0
  %1607 = vperm.xlu0 %1606, %v1603
  %v1608 = vpop.permute.xlu0 %1607
  %1611 = vset.pattern.permute.xlu0 0
  %1612 = vperm.xlu0 %1611, %v1604
  %v1613 = vpop.permute.xlu0 %1612
  %v1615 = vadd.f32 %v1595, %v1608
  %v1616 = vadd.f32 %v1596, %v1608
  %v1617 = vadd.f32 %v1597, %v1608
  %v1618 = vadd.f32 %v1598, %v1608
  %v1619 = vadd.f32 %v1599, %v1613
  %v1620 = vadd.f32 %v1600, %v1613
  %v1621 = vadd.f32 %v1601, %v1613
  %v1622 = vadd.f32 %v1602, %v1613
  %vm1623 = vcmp.ge.f32.partialorder %v1615, 0.0
  %vm1624 = vcmp.ge.f32.partialorder %v1616, 0.0
  %vm1625 = vcmp.ge.f32.partialorder %v1617, 0.0
  %vm1626 = vcmp.ge.f32.partialorder %v1618, 0.0
  %vm1627 = vcmp.ge.f32.partialorder %v1619, 0.0
  %vm1628 = vcmp.ge.f32.partialorder %v1620, 0.0
  %vm1629 = vcmp.ge.f32.partialorder %v1621, 0.0
  %vm1630 = vcmp.ge.f32.partialorder %v1622, 0.0
  %v1631 = vld [vmem:[%s9] sm:$0xff]
  %v1632 = vld [vmem:[%s9 + $0x8] sm:$0xff]
  %1634 = vset.pattern.permute.xlu0 0
  %1635 = vperm.xlu0 %1634, %v1631
  %v1636 = vpop.permute.xlu0 %1635
  %1639 = vset.pattern.permute.xlu0 0
  %1640 = vperm.xlu0 %1639, %v1632
  %v1641 = vpop.permute.xlu0 %1640
  %v1643 = vmul.f32 %v1636, %v1615
  %v1644 = vmul.f32 %v1636, %v1616
  %v1645 = vmul.f32 %v1636, %v1617
  %v1646 = vmul.f32 %v1636, %v1618
  %v1647 = vmul.f32 %v1641, %v1619
  %v1648 = vmul.f32 %v1641, %v1620
  %v1649 = vmul.f32 %v1641, %v1621
  %v1650 = vmul.f32 %v1641, %v1622
  %v1651 = vsel %vm1623, %v1615, %v1643
  %v1652 = vsel %vm1624, %v1616, %v1644
  %v1653 = vsel %vm1625, %v1617, %v1645
  %v1654 = vsel %vm1626, %v1618, %v1646
  %v1655 = vsel %vm1627, %v1619, %v1647
  %v1656 = vsel %vm1628, %v1620, %v1648
  %v1657 = vsel %vm1629, %v1621, %v1649
  %v1658 = vsel %vm1630, %v1622, %v1650
  %v1659 = vld [vmem:[%s5] sm:$0xff]
  %v1660 = vld [vmem:[%s5 + $0x8] sm:$0xff]
  %1661 = vrot.lane.b32.xlu0 %v1651, 15
  %v1662 = vpop.permute.xlu0 %1661
  %1663 = vrot.lane.b32.xlu0 %v1655, 15
  %v1664 = vpop.permute.xlu0 %1663
  %1665 = vrot.lane.b32.xlu0 %v1652, 15
  %v1666 = vpop.permute.xlu0 %1665
  %1667 = vrot.lane.b32.xlu0 %v1656, 15
  %v1668 = vpop.permute.xlu0 %1667
  %1669 = vrot.lane.b32.xlu0 %v1653, 15
  %v1670 = vpop.permute.xlu0 %1669
  %1671 = vrot.lane.b32.xlu0 %v1657, 15
  %v1672 = vpop.permute.xlu0 %1671
  %1673 = vrot.lane.b32.xlu0 %v1654, 15
  %v1674 = vpop.permute.xlu0 %1673
  %1675 = vrot.lane.b32.xlu0 %v1658, 15
  %v1676 = vpop.permute.xlu0 %1675
  %vm1677 = vcmp.lt.s32.totalorder %v197, 15
  %v1678 = vsel %vm1677, %v1670, %v1674
  %v1679 = vsel %vm1677, %v1672, %v1676
  %v1680 = vsel %vm1677, %v1666, %v1670
  %v1681 = vsel %vm1677, %v1668, %v1672
  %v1682 = vsel %vm1677, %v1662, %v1666
  %v1683 = vsel %vm1677, %v1664, %v1668
  %v1684 = vsel %vm1677, %v1674, %v1662
  %v1685 = vsel %vm1677, %v1676, %v1664
  %vm1686 = vcmp.ge.s32.totalorder %v69, 15
  %vm1687 = vcmp.ge.s32.totalorder %v70, 15
  %vm1688 = vcmp.ge.s32.totalorder %v71, 15
  %vm1689 = vcmp.ge.s32.totalorder %v72, 15
  %vm1690 = vcmp.ge.s32.totalorder %v73, 15
  %vm1691 = vcmp.ge.s32.totalorder %v74, 15
  %vm1692 = vcmp.ge.s32.totalorder %v75, 15
  %vm1693 = vcmp.ge.s32.totalorder %v76, 15
  %v1694 = vsel %vm1686, %v1684, 0.0
  %v1695 = vsel %vm1687, %v1682, 0.0
  %v1696 = vsel %vm1688, %v1680, 0.0
  %v1697 = vsel %vm1689, %v1678, 0.0
  %v1698 = vsel %vm1690, %v1685, 0.0
  %v1699 = vsel %vm1691, %v1683, 0.0
  %v1700 = vsel %vm1692, %v1681, 0.0
  %v1701 = vsel %vm1693, %v1679, 0.0
  %1703 = vset.pattern.permute.xlu0 0
  %1704 = vperm.xlu0 %1703, %v1659
  %v1705 = vpop.permute.xlu0 %1704
  %1708 = vset.pattern.permute.xlu0 0
  %1709 = vperm.xlu0 %1708, %v1660
  %v1710 = vpop.permute.xlu0 %1709
  %v1712 = vmul.f32 %v1694, %v1705
  %v1713 = vmul.f32 %v1695, %v1705
  %v1714 = vmul.f32 %v1696, %v1705
  %v1715 = vmul.f32 %v1697, %v1705
  %v1716 = vmul.f32 %v1698, %v1710
  %v1717 = vmul.f32 %v1699, %v1710
  %v1718 = vmul.f32 %v1700, %v1710
  %v1719 = vmul.f32 %v1701, %v1710
  %v1720 = vadd.f32 %v1712, 0.0
  %v1721 = vadd.f32 %v1713, 0.0
  %v1722 = vadd.f32 %v1714, 0.0
  %v1723 = vadd.f32 %v1715, 0.0
  %v1724 = vadd.f32 %v1716, 0.0
  %v1725 = vadd.f32 %v1717, 0.0
  %v1726 = vadd.f32 %v1718, 0.0
  %v1727 = vadd.f32 %v1719, 0.0
  %1728 = vrot.lane.b32.xlu0 %v1651, 14
  %v1729 = vpop.permute.xlu0 %1728
  %1730 = vrot.lane.b32.xlu0 %v1655, 14
  %v1731 = vpop.permute.xlu0 %1730
  %1732 = vrot.lane.b32.xlu0 %v1652, 14
  %v1733 = vpop.permute.xlu0 %1732
  %1734 = vrot.lane.b32.xlu0 %v1656, 14
  %v1735 = vpop.permute.xlu0 %1734
  %1736 = vrot.lane.b32.xlu0 %v1653, 14
  %v1737 = vpop.permute.xlu0 %1736
  %1738 = vrot.lane.b32.xlu0 %v1657, 14
  %v1739 = vpop.permute.xlu0 %1738
  %1740 = vrot.lane.b32.xlu0 %v1654, 14
  %v1741 = vpop.permute.xlu0 %1740
  %1742 = vrot.lane.b32.xlu0 %v1658, 14
  %v1743 = vpop.permute.xlu0 %1742
  %vm1744 = vcmp.lt.s32.totalorder %v197, 14
  %v1745 = vsel %vm1744, %v1737, %v1741
  %v1746 = vsel %vm1744, %v1739, %v1743
  %v1747 = vsel %vm1744, %v1733, %v1737
  %v1748 = vsel %vm1744, %v1735, %v1739
  %v1749 = vsel %vm1744, %v1729, %v1733
  %v1750 = vsel %vm1744, %v1731, %v1735
  %v1751 = vsel %vm1744, %v1741, %v1729
  %v1752 = vsel %vm1744, %v1743, %v1731
  %vm1753 = vcmp.ge.s32.totalorder %v69, 14
  %vm1754 = vcmp.ge.s32.totalorder %v70, 14
  %vm1755 = vcmp.ge.s32.totalorder %v71, 14
  %vm1756 = vcmp.ge.s32.totalorder %v72, 14
  %vm1757 = vcmp.ge.s32.totalorder %v73, 14
  %vm1758 = vcmp.ge.s32.totalorder %v74, 14
  %vm1759 = vcmp.ge.s32.totalorder %v75, 14
  %vm1760 = vcmp.ge.s32.totalorder %v76, 14
  %v1761 = vsel %vm1753, %v1751, 0.0
  %v1762 = vsel %vm1754, %v1749, 0.0
  %v1763 = vsel %vm1755, %v1747, 0.0
  %v1764 = vsel %vm1756, %v1745, 0.0
  %v1765 = vsel %vm1757, %v1752, 0.0
  %v1766 = vsel %vm1758, %v1750, 0.0
  %v1767 = vsel %vm1759, %v1748, 0.0
  %v1768 = vsel %vm1760, %v1746, 0.0
  %1769 = vset.pattern.permute.xlu0 1
  %1770 = vperm.xlu0 %1769, %v1659
  %v1771 = vpop.permute.xlu0 %1770
  %1773 = vset.pattern.permute.xlu0 1
  %1774 = vperm.xlu0 %1773, %v1660
  %v1775 = vpop.permute.xlu0 %1774
  %v1777 = vmul.f32 %v1761, %v1771
  %v1778 = vmul.f32 %v1762, %v1771
  %v1779 = vmul.f32 %v1763, %v1771
  %v1780 = vmul.f32 %v1764, %v1771
  %v1781 = vmul.f32 %v1765, %v1775
  %v1782 = vmul.f32 %v1766, %v1775
  %v1783 = vmul.f32 %v1767, %v1775
  %v1784 = vmul.f32 %v1768, %v1775
  %v1785 = vadd.f32 %v1720, %v1777
  %v1786 = vadd.f32 %v1721, %v1778
  %v1787 = vadd.f32 %v1722, %v1779
  %v1788 = vadd.f32 %v1723, %v1780
  %v1789 = vadd.f32 %v1724, %v1781
  %v1790 = vadd.f32 %v1725, %v1782
  %v1791 = vadd.f32 %v1726, %v1783
  %v1792 = vadd.f32 %v1727, %v1784
  %1793 = vrot.lane.b32.xlu0 %v1651, 13
  %v1794 = vpop.permute.xlu0 %1793
  %1795 = vrot.lane.b32.xlu0 %v1655, 13
  %v1796 = vpop.permute.xlu0 %1795
  %1797 = vrot.lane.b32.xlu0 %v1652, 13
  %v1798 = vpop.permute.xlu0 %1797
  %1799 = vrot.lane.b32.xlu0 %v1656, 13
  %v1800 = vpop.permute.xlu0 %1799
  %1801 = vrot.lane.b32.xlu0 %v1653, 13
  %v1802 = vpop.permute.xlu0 %1801
  %1803 = vrot.lane.b32.xlu0 %v1657, 13
  %v1804 = vpop.permute.xlu0 %1803
  %1805 = vrot.lane.b32.xlu0 %v1654, 13
  %v1806 = vpop.permute.xlu0 %1805
  %1807 = vrot.lane.b32.xlu0 %v1658, 13
  %v1808 = vpop.permute.xlu0 %1807
  %vm1809 = vcmp.lt.s32.totalorder %v197, 13
  %v1810 = vsel %vm1809, %v1802, %v1806
  %v1811 = vsel %vm1809, %v1804, %v1808
  %v1812 = vsel %vm1809, %v1798, %v1802
  %v1813 = vsel %vm1809, %v1800, %v1804
  %v1814 = vsel %vm1809, %v1794, %v1798
  %v1815 = vsel %vm1809, %v1796, %v1800
  %v1816 = vsel %vm1809, %v1806, %v1794
  %v1817 = vsel %vm1809, %v1808, %v1796
  %vm1818 = vcmp.ge.s32.totalorder %v69, 13
  %vm1819 = vcmp.ge.s32.totalorder %v70, 13
  %vm1820 = vcmp.ge.s32.totalorder %v71, 13
  %vm1821 = vcmp.ge.s32.totalorder %v72, 13
  %vm1822 = vcmp.ge.s32.totalorder %v73, 13
  %vm1823 = vcmp.ge.s32.totalorder %v74, 13
  %vm1824 = vcmp.ge.s32.totalorder %v75, 13
  %vm1825 = vcmp.ge.s32.totalorder %v76, 13
  %v1826 = vsel %vm1818, %v1816, 0.0
  %v1827 = vsel %vm1819, %v1814, 0.0
  %v1828 = vsel %vm1820, %v1812, 0.0
  %v1829 = vsel %vm1821, %v1810, 0.0
  %v1830 = vsel %vm1822, %v1817, 0.0
  %v1831 = vsel %vm1823, %v1815, 0.0
  %v1832 = vsel %vm1824, %v1813, 0.0
  %v1833 = vsel %vm1825, %v1811, 0.0
  %1834 = vset.pattern.permute.xlu0 2
  %1835 = vperm.xlu0 %1834, %v1659
  %v1836 = vpop.permute.xlu0 %1835
  %1838 = vset.pattern.permute.xlu0 2
  %1839 = vperm.xlu0 %1838, %v1660
  %v1840 = vpop.permute.xlu0 %1839
  %v1842 = vmul.f32 %v1826, %v1836
  %v1843 = vmul.f32 %v1827, %v1836
  %v1844 = vmul.f32 %v1828, %v1836
  %v1845 = vmul.f32 %v1829, %v1836
  %v1846 = vmul.f32 %v1830, %v1840
  %v1847 = vmul.f32 %v1831, %v1840
  %v1848 = vmul.f32 %v1832, %v1840
  %v1849 = vmul.f32 %v1833, %v1840
  %v1850 = vadd.f32 %v1785, %v1842
  %v1851 = vadd.f32 %v1786, %v1843
  %v1852 = vadd.f32 %v1787, %v1844
  %v1853 = vadd.f32 %v1788, %v1845
  %v1854 = vadd.f32 %v1789, %v1846
  %v1855 = vadd.f32 %v1790, %v1847
  %v1856 = vadd.f32 %v1791, %v1848
  %v1857 = vadd.f32 %v1792, %v1849
  %1858 = vrot.lane.b32.xlu0 %v1651, 12
  %v1859 = vpop.permute.xlu0 %1858
  %1860 = vrot.lane.b32.xlu0 %v1655, 12
  %v1861 = vpop.permute.xlu0 %1860
  %1862 = vrot.lane.b32.xlu0 %v1652, 12
  %v1863 = vpop.permute.xlu0 %1862
  %1864 = vrot.lane.b32.xlu0 %v1656, 12
  %v1865 = vpop.permute.xlu0 %1864
  %1866 = vrot.lane.b32.xlu0 %v1653, 12
  %v1867 = vpop.permute.xlu0 %1866
  %1868 = vrot.lane.b32.xlu0 %v1657, 12
  %v1869 = vpop.permute.xlu0 %1868
  %1870 = vrot.lane.b32.xlu0 %v1654, 12
  %v1871 = vpop.permute.xlu0 %1870
  %1872 = vrot.lane.b32.xlu0 %v1658, 12
  %v1873 = vpop.permute.xlu0 %1872
  %vm1874 = vcmp.lt.s32.totalorder %v197, 12
  %v1875 = vsel %vm1874, %v1867, %v1871
  %v1876 = vsel %vm1874, %v1869, %v1873
  %v1877 = vsel %vm1874, %v1863, %v1867
  %v1878 = vsel %vm1874, %v1865, %v1869
  %v1879 = vsel %vm1874, %v1859, %v1863
  %v1880 = vsel %vm1874, %v1861, %v1865
  %v1881 = vsel %vm1874, %v1871, %v1859
  %v1882 = vsel %vm1874, %v1873, %v1861
  %vm1883 = vcmp.ge.s32.totalorder %v69, 12
  %vm1884 = vcmp.ge.s32.totalorder %v70, 12
  %vm1885 = vcmp.ge.s32.totalorder %v71, 12
  %vm1886 = vcmp.ge.s32.totalorder %v72, 12
  %vm1887 = vcmp.ge.s32.totalorder %v73, 12
  %vm1888 = vcmp.ge.s32.totalorder %v74, 12
  %vm1889 = vcmp.ge.s32.totalorder %v75, 12
  %vm1890 = vcmp.ge.s32.totalorder %v76, 12
  %v1891 = vsel %vm1883, %v1881, 0.0
  %v1892 = vsel %vm1884, %v1879, 0.0
  %v1893 = vsel %vm1885, %v1877, 0.0
  %v1894 = vsel %vm1886, %v1875, 0.0
  %v1895 = vsel %vm1887, %v1882, 0.0
  %v1896 = vsel %vm1888, %v1880, 0.0
  %v1897 = vsel %vm1889, %v1878, 0.0
  %v1898 = vsel %vm1890, %v1876, 0.0
  %1899 = vset.pattern.permute.xlu0 3
  %1900 = vperm.xlu0 %1899, %v1659
  %v1901 = vpop.permute.xlu0 %1900
  %1903 = vset.pattern.permute.xlu0 3
  %1904 = vperm.xlu0 %1903, %v1660
  %v1905 = vpop.permute.xlu0 %1904
  %v1907 = vmul.f32 %v1891, %v1901
  %v1908 = vmul.f32 %v1892, %v1901
  %v1909 = vmul.f32 %v1893, %v1901
  %v1910 = vmul.f32 %v1894, %v1901
  %v1911 = vmul.f32 %v1895, %v1905
  %v1912 = vmul.f32 %v1896, %v1905
  %v1913 = vmul.f32 %v1897, %v1905
  %v1914 = vmul.f32 %v1898, %v1905
  %v1915 = vadd.f32 %v1850, %v1907
  %v1916 = vadd.f32 %v1851, %v1908
  %v1917 = vadd.f32 %v1852, %v1909
  %v1918 = vadd.f32 %v1853, %v1910
  %v1919 = vadd.f32 %v1854, %v1911
  %v1920 = vadd.f32 %v1855, %v1912
  %v1921 = vadd.f32 %v1856, %v1913
  %v1922 = vadd.f32 %v1857, %v1914
  %1923 = vrot.lane.b32.xlu0 %v1651, 11
  %v1924 = vpop.permute.xlu0 %1923
  %1925 = vrot.lane.b32.xlu0 %v1655, 11
  %v1926 = vpop.permute.xlu0 %1925
  %1927 = vrot.lane.b32.xlu0 %v1652, 11
  %v1928 = vpop.permute.xlu0 %1927
  %1929 = vrot.lane.b32.xlu0 %v1656, 11
  %v1930 = vpop.permute.xlu0 %1929
  %1931 = vrot.lane.b32.xlu0 %v1653, 11
  %v1932 = vpop.permute.xlu0 %1931
  %1933 = vrot.lane.b32.xlu0 %v1657, 11
  %v1934 = vpop.permute.xlu0 %1933
  %1935 = vrot.lane.b32.xlu0 %v1654, 11
  %v1936 = vpop.permute.xlu0 %1935
  %1937 = vrot.lane.b32.xlu0 %v1658, 11
  %v1938 = vpop.permute.xlu0 %1937
  %vm1939 = vcmp.lt.s32.totalorder %v197, 11
  %v1940 = vsel %vm1939, %v1932, %v1936
  %v1941 = vsel %vm1939, %v1934, %v1938
  %v1942 = vsel %vm1939, %v1928, %v1932
  %v1943 = vsel %vm1939, %v1930, %v1934
  %v1944 = vsel %vm1939, %v1924, %v1928
  %v1945 = vsel %vm1939, %v1926, %v1930
  %v1946 = vsel %vm1939, %v1936, %v1924
  %v1947 = vsel %vm1939, %v1938, %v1926
  %vm1948 = vcmp.ge.s32.totalorder %v69, 11
  %vm1949 = vcmp.ge.s32.totalorder %v70, 11
  %vm1950 = vcmp.ge.s32.totalorder %v71, 11
  %vm1951 = vcmp.ge.s32.totalorder %v72, 11
  %vm1952 = vcmp.ge.s32.totalorder %v73, 11
  %vm1953 = vcmp.ge.s32.totalorder %v74, 11
  %vm1954 = vcmp.ge.s32.totalorder %v75, 11
  %vm1955 = vcmp.ge.s32.totalorder %v76, 11
  %v1956 = vsel %vm1948, %v1946, 0.0
  %v1957 = vsel %vm1949, %v1944, 0.0
  %v1958 = vsel %vm1950, %v1942, 0.0
  %v1959 = vsel %vm1951, %v1940, 0.0
  %v1960 = vsel %vm1952, %v1947, 0.0
  %v1961 = vsel %vm1953, %v1945, 0.0
  %v1962 = vsel %vm1954, %v1943, 0.0
  %v1963 = vsel %vm1955, %v1941, 0.0
  %1964 = vset.pattern.permute.xlu0 4
  %1965 = vperm.xlu0 %1964, %v1659
  %v1966 = vpop.permute.xlu0 %1965
  %1968 = vset.pattern.permute.xlu0 4
  %1969 = vperm.xlu0 %1968, %v1660
  %v1970 = vpop.permute.xlu0 %1969
  %v1972 = vmul.f32 %v1956, %v1966
  %v1973 = vmul.f32 %v1957, %v1966
  %v1974 = vmul.f32 %v1958, %v1966
  %v1975 = vmul.f32 %v1959, %v1966
  %v1976 = vmul.f32 %v1960, %v1970
  %v1977 = vmul.f32 %v1961, %v1970
  %v1978 = vmul.f32 %v1962, %v1970
  %v1979 = vmul.f32 %v1963, %v1970
  %v1980 = vadd.f32 %v1915, %v1972
  %v1981 = vadd.f32 %v1916, %v1973
  %v1982 = vadd.f32 %v1917, %v1974
  %v1983 = vadd.f32 %v1918, %v1975
  %v1984 = vadd.f32 %v1919, %v1976
  %v1985 = vadd.f32 %v1920, %v1977
  %v1986 = vadd.f32 %v1921, %v1978
  %v1987 = vadd.f32 %v1922, %v1979
  %1988 = vrot.lane.b32.xlu0 %v1651, 10
  %v1989 = vpop.permute.xlu0 %1988
  %1990 = vrot.lane.b32.xlu0 %v1655, 10
  %v1991 = vpop.permute.xlu0 %1990
  %1992 = vrot.lane.b32.xlu0 %v1652, 10
  %v1993 = vpop.permute.xlu0 %1992
  %1994 = vrot.lane.b32.xlu0 %v1656, 10
  %v1995 = vpop.permute.xlu0 %1994
  %1996 = vrot.lane.b32.xlu0 %v1653, 10
  %v1997 = vpop.permute.xlu0 %1996
  %1998 = vrot.lane.b32.xlu0 %v1657, 10
  %v1999 = vpop.permute.xlu0 %1998
  %2000 = vrot.lane.b32.xlu0 %v1654, 10
  %v2001 = vpop.permute.xlu0 %2000
  %2002 = vrot.lane.b32.xlu0 %v1658, 10
  %v2003 = vpop.permute.xlu0 %2002
  %vm2004 = vcmp.lt.s32.totalorder %v197, 10
  %v2005 = vsel %vm2004, %v1997, %v2001
  %v2006 = vsel %vm2004, %v1999, %v2003
  %v2007 = vsel %vm2004, %v1993, %v1997
  %v2008 = vsel %vm2004, %v1995, %v1999
  %v2009 = vsel %vm2004, %v1989, %v1993
  %v2010 = vsel %vm2004, %v1991, %v1995
  %v2011 = vsel %vm2004, %v2001, %v1989
  %v2012 = vsel %vm2004, %v2003, %v1991
  %vm2013 = vcmp.ge.s32.totalorder %v69, 10
  %vm2014 = vcmp.ge.s32.totalorder %v70, 10
  %vm2015 = vcmp.ge.s32.totalorder %v71, 10
  %vm2016 = vcmp.ge.s32.totalorder %v72, 10
  %vm2017 = vcmp.ge.s32.totalorder %v73, 10
  %vm2018 = vcmp.ge.s32.totalorder %v74, 10
  %vm2019 = vcmp.ge.s32.totalorder %v75, 10
  %vm2020 = vcmp.ge.s32.totalorder %v76, 10
  %v2021 = vsel %vm2013, %v2011, 0.0
  %v2022 = vsel %vm2014, %v2009, 0.0
  %v2023 = vsel %vm2015, %v2007, 0.0
  %v2024 = vsel %vm2016, %v2005, 0.0
  %v2025 = vsel %vm2017, %v2012, 0.0
  %v2026 = vsel %vm2018, %v2010, 0.0
  %v2027 = vsel %vm2019, %v2008, 0.0
  %v2028 = vsel %vm2020, %v2006, 0.0
  %2029 = vset.pattern.permute.xlu0 5
  %2030 = vperm.xlu0 %2029, %v1659
  %v2031 = vpop.permute.xlu0 %2030
  %2033 = vset.pattern.permute.xlu0 5
  %2034 = vperm.xlu0 %2033, %v1660
  %v2035 = vpop.permute.xlu0 %2034
  %v2037 = vmul.f32 %v2021, %v2031
  %v2038 = vmul.f32 %v2022, %v2031
  %v2039 = vmul.f32 %v2023, %v2031
  %v2040 = vmul.f32 %v2024, %v2031
  %v2041 = vmul.f32 %v2025, %v2035
  %v2042 = vmul.f32 %v2026, %v2035
  %v2043 = vmul.f32 %v2027, %v2035
  %v2044 = vmul.f32 %v2028, %v2035
  %v2045 = vadd.f32 %v1980, %v2037
  %v2046 = vadd.f32 %v1981, %v2038
  %v2047 = vadd.f32 %v1982, %v2039
  %v2048 = vadd.f32 %v1983, %v2040
  %v2049 = vadd.f32 %v1984, %v2041
  %v2050 = vadd.f32 %v1985, %v2042
  %v2051 = vadd.f32 %v1986, %v2043
  %v2052 = vadd.f32 %v1987, %v2044
  %2053 = vrot.lane.b32.xlu0 %v1651, 9
  %v2054 = vpop.permute.xlu0 %2053
  %2055 = vrot.lane.b32.xlu0 %v1655, 9
  %v2056 = vpop.permute.xlu0 %2055
  %2057 = vrot.lane.b32.xlu0 %v1652, 9
  %v2058 = vpop.permute.xlu0 %2057
  %2059 = vrot.lane.b32.xlu0 %v1656, 9
  %v2060 = vpop.permute.xlu0 %2059
  %2061 = vrot.lane.b32.xlu0 %v1653, 9
  %v2062 = vpop.permute.xlu0 %2061
  %2063 = vrot.lane.b32.xlu0 %v1657, 9
  %v2064 = vpop.permute.xlu0 %2063
  %2065 = vrot.lane.b32.xlu0 %v1654, 9
  %v2066 = vpop.permute.xlu0 %2065
  %2067 = vrot.lane.b32.xlu0 %v1658, 9
  %v2068 = vpop.permute.xlu0 %2067
  %vm2069 = vcmp.lt.s32.totalorder %v197, 9
  %v2070 = vsel %vm2069, %v2062, %v2066
  %v2071 = vsel %vm2069, %v2064, %v2068
  %v2072 = vsel %vm2069, %v2058, %v2062
  %v2073 = vsel %vm2069, %v2060, %v2064
  %v2074 = vsel %vm2069, %v2054, %v2058
  %v2075 = vsel %vm2069, %v2056, %v2060
  %v2076 = vsel %vm2069, %v2066, %v2054
  %v2077 = vsel %vm2069, %v2068, %v2056
  %vm2078 = vcmp.ge.s32.totalorder %v69, 9
  %vm2079 = vcmp.ge.s32.totalorder %v70, 9
  %vm2080 = vcmp.ge.s32.totalorder %v71, 9
  %vm2081 = vcmp.ge.s32.totalorder %v72, 9
  %vm2082 = vcmp.ge.s32.totalorder %v73, 9
  %vm2083 = vcmp.ge.s32.totalorder %v74, 9
  %vm2084 = vcmp.ge.s32.totalorder %v75, 9
  %vm2085 = vcmp.ge.s32.totalorder %v76, 9
  %v2086 = vsel %vm2078, %v2076, 0.0
  %v2087 = vsel %vm2079, %v2074, 0.0
  %v2088 = vsel %vm2080, %v2072, 0.0
  %v2089 = vsel %vm2081, %v2070, 0.0
  %v2090 = vsel %vm2082, %v2077, 0.0
  %v2091 = vsel %vm2083, %v2075, 0.0
  %v2092 = vsel %vm2084, %v2073, 0.0
  %v2093 = vsel %vm2085, %v2071, 0.0
  %2094 = vset.pattern.permute.xlu0 6
  %2095 = vperm.xlu0 %2094, %v1659
  %v2096 = vpop.permute.xlu0 %2095
  %2098 = vset.pattern.permute.xlu0 6
  %2099 = vperm.xlu0 %2098, %v1660
  %v2100 = vpop.permute.xlu0 %2099
  %v2102 = vmul.f32 %v2086, %v2096
  %v2103 = vmul.f32 %v2087, %v2096
  %v2104 = vmul.f32 %v2088, %v2096
  %v2105 = vmul.f32 %v2089, %v2096
  %v2106 = vmul.f32 %v2090, %v2100
  %v2107 = vmul.f32 %v2091, %v2100
  %v2108 = vmul.f32 %v2092, %v2100
  %v2109 = vmul.f32 %v2093, %v2100
  %v2110 = vadd.f32 %v2045, %v2102
  %v2111 = vadd.f32 %v2046, %v2103
  %v2112 = vadd.f32 %v2047, %v2104
  %v2113 = vadd.f32 %v2048, %v2105
  %v2114 = vadd.f32 %v2049, %v2106
  %v2115 = vadd.f32 %v2050, %v2107
  %v2116 = vadd.f32 %v2051, %v2108
  %v2117 = vadd.f32 %v2052, %v2109
  %2118 = vrot.lane.b32.xlu0 %v1651, 8
  %v2119 = vpop.permute.xlu0 %2118
  %2120 = vrot.lane.b32.xlu0 %v1655, 8
  %v2121 = vpop.permute.xlu0 %2120
  %2122 = vrot.lane.b32.xlu0 %v1652, 8
  %v2123 = vpop.permute.xlu0 %2122
  %2124 = vrot.lane.b32.xlu0 %v1656, 8
  %v2125 = vpop.permute.xlu0 %2124
  %2126 = vrot.lane.b32.xlu0 %v1653, 8
  %v2127 = vpop.permute.xlu0 %2126
  %2128 = vrot.lane.b32.xlu0 %v1657, 8
  %v2129 = vpop.permute.xlu0 %2128
  %2130 = vrot.lane.b32.xlu0 %v1654, 8
  %v2131 = vpop.permute.xlu0 %2130
  %2132 = vrot.lane.b32.xlu0 %v1658, 8
  %v2133 = vpop.permute.xlu0 %2132
  %vm2134 = vcmp.lt.s32.totalorder %v197, 8
  %v2135 = vsel %vm2134, %v2127, %v2131
  %v2136 = vsel %vm2134, %v2129, %v2133
  %v2137 = vsel %vm2134, %v2123, %v2127
  %v2138 = vsel %vm2134, %v2125, %v2129
  %v2139 = vsel %vm2134, %v2119, %v2123
  %v2140 = vsel %vm2134, %v2121, %v2125
  %v2141 = vsel %vm2134, %v2131, %v2119
  %v2142 = vsel %vm2134, %v2133, %v2121
  %vm2143 = vcmp.ge.s32.totalorder %v69, 8
  %vm2144 = vcmp.ge.s32.totalorder %v70, 8
  %vm2145 = vcmp.ge.s32.totalorder %v71, 8
  %vm2146 = vcmp.ge.s32.totalorder %v72, 8
  %vm2147 = vcmp.ge.s32.totalorder %v73, 8
  %vm2148 = vcmp.ge.s32.totalorder %v74, 8
  %vm2149 = vcmp.ge.s32.totalorder %v75, 8
  %vm2150 = vcmp.ge.s32.totalorder %v76, 8
  %v2151 = vsel %vm2143, %v2141, 0.0
  %v2152 = vsel %vm2144, %v2139, 0.0
  %v2153 = vsel %vm2145, %v2137, 0.0
  %v2154 = vsel %vm2146, %v2135, 0.0
  %v2155 = vsel %vm2147, %v2142, 0.0
  %v2156 = vsel %vm2148, %v2140, 0.0
  %v2157 = vsel %vm2149, %v2138, 0.0
  %v2158 = vsel %vm2150, %v2136, 0.0
  %2159 = vset.pattern.permute.xlu0 7
  %2160 = vperm.xlu0 %2159, %v1659
  %v2161 = vpop.permute.xlu0 %2160
  %2163 = vset.pattern.permute.xlu0 7
  %2164 = vperm.xlu0 %2163, %v1660
  %v2165 = vpop.permute.xlu0 %2164
  %v2167 = vmul.f32 %v2151, %v2161
  %v2168 = vmul.f32 %v2152, %v2161
  %v2169 = vmul.f32 %v2153, %v2161
  %v2170 = vmul.f32 %v2154, %v2161
  %v2171 = vmul.f32 %v2155, %v2165
  %v2172 = vmul.f32 %v2156, %v2165
  %v2173 = vmul.f32 %v2157, %v2165
  %v2174 = vmul.f32 %v2158, %v2165
  %v2175 = vadd.f32 %v2110, %v2167
  %v2176 = vadd.f32 %v2111, %v2168
  %v2177 = vadd.f32 %v2112, %v2169
  %v2178 = vadd.f32 %v2113, %v2170
  %v2179 = vadd.f32 %v2114, %v2171
  %v2180 = vadd.f32 %v2115, %v2172
  %v2181 = vadd.f32 %v2116, %v2173
  %v2182 = vadd.f32 %v2117, %v2174
  %2183 = vrot.lane.b32.xlu0 %v1651, 7
  %v2184 = vpop.permute.xlu0 %2183
  %2185 = vrot.lane.b32.xlu0 %v1655, 7
  %v2186 = vpop.permute.xlu0 %2185
  %2187 = vrot.lane.b32.xlu0 %v1652, 7
  %v2188 = vpop.permute.xlu0 %2187
  %2189 = vrot.lane.b32.xlu0 %v1656, 7
  %v2190 = vpop.permute.xlu0 %2189
  %2191 = vrot.lane.b32.xlu0 %v1653, 7
  %v2192 = vpop.permute.xlu0 %2191
  %2193 = vrot.lane.b32.xlu0 %v1657, 7
  %v2194 = vpop.permute.xlu0 %2193
  %2195 = vrot.lane.b32.xlu0 %v1654, 7
  %v2196 = vpop.permute.xlu0 %2195
  %2197 = vrot.lane.b32.xlu0 %v1658, 7
  %v2198 = vpop.permute.xlu0 %2197
  %vm2199 = vcmp.lt.s32.totalorder %v197, 7
  %v2200 = vsel %vm2199, %v2192, %v2196
  %v2201 = vsel %vm2199, %v2194, %v2198
  %v2202 = vsel %vm2199, %v2188, %v2192
  %v2203 = vsel %vm2199, %v2190, %v2194
  %v2204 = vsel %vm2199, %v2184, %v2188
  %v2205 = vsel %vm2199, %v2186, %v2190
  %v2206 = vsel %vm2199, %v2196, %v2184
  %v2207 = vsel %vm2199, %v2198, %v2186
  %vm2208 = vcmp.ge.s32.totalorder %v69, 7
  %vm2209 = vcmp.ge.s32.totalorder %v70, 7
  %vm2210 = vcmp.ge.s32.totalorder %v71, 7
  %vm2211 = vcmp.ge.s32.totalorder %v72, 7
  %vm2212 = vcmp.ge.s32.totalorder %v73, 7
  %vm2213 = vcmp.ge.s32.totalorder %v74, 7
  %vm2214 = vcmp.ge.s32.totalorder %v75, 7
  %vm2215 = vcmp.ge.s32.totalorder %v76, 7
  %v2216 = vsel %vm2208, %v2206, 0.0
  %v2217 = vsel %vm2209, %v2204, 0.0
  %v2218 = vsel %vm2210, %v2202, 0.0
  %v2219 = vsel %vm2211, %v2200, 0.0
  %v2220 = vsel %vm2212, %v2207, 0.0
  %v2221 = vsel %vm2213, %v2205, 0.0
  %v2222 = vsel %vm2214, %v2203, 0.0
  %v2223 = vsel %vm2215, %v2201, 0.0
  %2224 = vset.pattern.permute.xlu0 8
  %2225 = vperm.xlu0 %2224, %v1659
  %v2226 = vpop.permute.xlu0 %2225
  %2228 = vset.pattern.permute.xlu0 8
  %2229 = vperm.xlu0 %2228, %v1660
  %v2230 = vpop.permute.xlu0 %2229
  %v2232 = vmul.f32 %v2216, %v2226
  %v2233 = vmul.f32 %v2217, %v2226
  %v2234 = vmul.f32 %v2218, %v2226
  %v2235 = vmul.f32 %v2219, %v2226
  %v2236 = vmul.f32 %v2220, %v2230
  %v2237 = vmul.f32 %v2221, %v2230
  %v2238 = vmul.f32 %v2222, %v2230
  %v2239 = vmul.f32 %v2223, %v2230
  %v2240 = vadd.f32 %v2175, %v2232
  %v2241 = vadd.f32 %v2176, %v2233
  %v2242 = vadd.f32 %v2177, %v2234
  %v2243 = vadd.f32 %v2178, %v2235
  %v2244 = vadd.f32 %v2179, %v2236
  %v2245 = vadd.f32 %v2180, %v2237
  %v2246 = vadd.f32 %v2181, %v2238
  %v2247 = vadd.f32 %v2182, %v2239
  %2248 = vrot.lane.b32.xlu0 %v1651, 6
  %v2249 = vpop.permute.xlu0 %2248
  %2250 = vrot.lane.b32.xlu0 %v1655, 6
  %v2251 = vpop.permute.xlu0 %2250
  %2252 = vrot.lane.b32.xlu0 %v1652, 6
  %v2253 = vpop.permute.xlu0 %2252
  %2254 = vrot.lane.b32.xlu0 %v1656, 6
  %v2255 = vpop.permute.xlu0 %2254
  %2256 = vrot.lane.b32.xlu0 %v1653, 6
  %v2257 = vpop.permute.xlu0 %2256
  %2258 = vrot.lane.b32.xlu0 %v1657, 6
  %v2259 = vpop.permute.xlu0 %2258
  %2260 = vrot.lane.b32.xlu0 %v1654, 6
  %v2261 = vpop.permute.xlu0 %2260
  %2262 = vrot.lane.b32.xlu0 %v1658, 6
  %v2263 = vpop.permute.xlu0 %2262
  %vm2264 = vcmp.lt.s32.totalorder %v197, 6
  %v2265 = vsel %vm2264, %v2257, %v2261
  %v2266 = vsel %vm2264, %v2259, %v2263
  %v2267 = vsel %vm2264, %v2253, %v2257
  %v2268 = vsel %vm2264, %v2255, %v2259
  %v2269 = vsel %vm2264, %v2249, %v2253
  %v2270 = vsel %vm2264, %v2251, %v2255
  %v2271 = vsel %vm2264, %v2261, %v2249
  %v2272 = vsel %vm2264, %v2263, %v2251
  %vm2273 = vcmp.ge.s32.totalorder %v69, 6
  %vm2274 = vcmp.ge.s32.totalorder %v70, 6
  %vm2275 = vcmp.ge.s32.totalorder %v71, 6
  %vm2276 = vcmp.ge.s32.totalorder %v72, 6
  %vm2277 = vcmp.ge.s32.totalorder %v73, 6
  %vm2278 = vcmp.ge.s32.totalorder %v74, 6
  %vm2279 = vcmp.ge.s32.totalorder %v75, 6
  %vm2280 = vcmp.ge.s32.totalorder %v76, 6
  %v2281 = vsel %vm2273, %v2271, 0.0
  %v2282 = vsel %vm2274, %v2269, 0.0
  %v2283 = vsel %vm2275, %v2267, 0.0
  %v2284 = vsel %vm2276, %v2265, 0.0
  %v2285 = vsel %vm2277, %v2272, 0.0
  %v2286 = vsel %vm2278, %v2270, 0.0
  %v2287 = vsel %vm2279, %v2268, 0.0
  %v2288 = vsel %vm2280, %v2266, 0.0
  %2289 = vset.pattern.permute.xlu0 9
  %2290 = vperm.xlu0 %2289, %v1659
  %v2291 = vpop.permute.xlu0 %2290
  %2293 = vset.pattern.permute.xlu0 9
  %2294 = vperm.xlu0 %2293, %v1660
  %v2295 = vpop.permute.xlu0 %2294
  %v2297 = vmul.f32 %v2281, %v2291
  %v2298 = vmul.f32 %v2282, %v2291
  %v2299 = vmul.f32 %v2283, %v2291
  %v2300 = vmul.f32 %v2284, %v2291
  %v2301 = vmul.f32 %v2285, %v2295
  %v2302 = vmul.f32 %v2286, %v2295
  %v2303 = vmul.f32 %v2287, %v2295
  %v2304 = vmul.f32 %v2288, %v2295
  %v2305 = vadd.f32 %v2240, %v2297
  %v2306 = vadd.f32 %v2241, %v2298
  %v2307 = vadd.f32 %v2242, %v2299
  %v2308 = vadd.f32 %v2243, %v2300
  %v2309 = vadd.f32 %v2244, %v2301
  %v2310 = vadd.f32 %v2245, %v2302
  %v2311 = vadd.f32 %v2246, %v2303
  %v2312 = vadd.f32 %v2247, %v2304
  %2313 = vrot.lane.b32.xlu0 %v1651, 5
  %v2314 = vpop.permute.xlu0 %2313
  %2315 = vrot.lane.b32.xlu0 %v1655, 5
  %v2316 = vpop.permute.xlu0 %2315
  %2317 = vrot.lane.b32.xlu0 %v1652, 5
  %v2318 = vpop.permute.xlu0 %2317
  %2319 = vrot.lane.b32.xlu0 %v1656, 5
  %v2320 = vpop.permute.xlu0 %2319
  %2321 = vrot.lane.b32.xlu0 %v1653, 5
  %v2322 = vpop.permute.xlu0 %2321
  %2323 = vrot.lane.b32.xlu0 %v1657, 5
  %v2324 = vpop.permute.xlu0 %2323
  %2325 = vrot.lane.b32.xlu0 %v1654, 5
  %v2326 = vpop.permute.xlu0 %2325
  %2327 = vrot.lane.b32.xlu0 %v1658, 5
  %v2328 = vpop.permute.xlu0 %2327
  %vm2329 = vcmp.lt.s32.totalorder %v197, 5
  %v2330 = vsel %vm2329, %v2322, %v2326
  %v2331 = vsel %vm2329, %v2324, %v2328
  %v2332 = vsel %vm2329, %v2318, %v2322
  %v2333 = vsel %vm2329, %v2320, %v2324
  %v2334 = vsel %vm2329, %v2314, %v2318
  %v2335 = vsel %vm2329, %v2316, %v2320
  %v2336 = vsel %vm2329, %v2326, %v2314
  %v2337 = vsel %vm2329, %v2328, %v2316
  %vm2338 = vcmp.ge.s32.totalorder %v69, 5
  %vm2339 = vcmp.ge.s32.totalorder %v70, 5
  %vm2340 = vcmp.ge.s32.totalorder %v71, 5
  %vm2341 = vcmp.ge.s32.totalorder %v72, 5
  %vm2342 = vcmp.ge.s32.totalorder %v73, 5
  %vm2343 = vcmp.ge.s32.totalorder %v74, 5
  %vm2344 = vcmp.ge.s32.totalorder %v75, 5
  %vm2345 = vcmp.ge.s32.totalorder %v76, 5
  %v2346 = vsel %vm2338, %v2336, 0.0
  %v2347 = vsel %vm2339, %v2334, 0.0
  %v2348 = vsel %vm2340, %v2332, 0.0
  %v2349 = vsel %vm2341, %v2330, 0.0
  %v2350 = vsel %vm2342, %v2337, 0.0
  %v2351 = vsel %vm2343, %v2335, 0.0
  %v2352 = vsel %vm2344, %v2333, 0.0
  %v2353 = vsel %vm2345, %v2331, 0.0
  %2354 = vset.pattern.permute.xlu0 10
  %2355 = vperm.xlu0 %2354, %v1659
  %v2356 = vpop.permute.xlu0 %2355
  %2358 = vset.pattern.permute.xlu0 10
  %2359 = vperm.xlu0 %2358, %v1660
  %v2360 = vpop.permute.xlu0 %2359
  %v2362 = vmul.f32 %v2346, %v2356
  %v2363 = vmul.f32 %v2347, %v2356
  %v2364 = vmul.f32 %v2348, %v2356
  %v2365 = vmul.f32 %v2349, %v2356
  %v2366 = vmul.f32 %v2350, %v2360
  %v2367 = vmul.f32 %v2351, %v2360
  %v2368 = vmul.f32 %v2352, %v2360
  %v2369 = vmul.f32 %v2353, %v2360
  %v2370 = vadd.f32 %v2305, %v2362
  %v2371 = vadd.f32 %v2306, %v2363
  %v2372 = vadd.f32 %v2307, %v2364
  %v2373 = vadd.f32 %v2308, %v2365
  %v2374 = vadd.f32 %v2309, %v2366
  %v2375 = vadd.f32 %v2310, %v2367
  %v2376 = vadd.f32 %v2311, %v2368
  %v2377 = vadd.f32 %v2312, %v2369
  %2378 = vrot.lane.b32.xlu0 %v1651, 4
  %v2379 = vpop.permute.xlu0 %2378
  %2380 = vrot.lane.b32.xlu0 %v1655, 4
  %v2381 = vpop.permute.xlu0 %2380
  %2382 = vrot.lane.b32.xlu0 %v1652, 4
  %v2383 = vpop.permute.xlu0 %2382
  %2384 = vrot.lane.b32.xlu0 %v1656, 4
  %v2385 = vpop.permute.xlu0 %2384
  %2386 = vrot.lane.b32.xlu0 %v1653, 4
  %v2387 = vpop.permute.xlu0 %2386
  %2388 = vrot.lane.b32.xlu0 %v1657, 4
  %v2389 = vpop.permute.xlu0 %2388
  %2390 = vrot.lane.b32.xlu0 %v1654, 4
  %v2391 = vpop.permute.xlu0 %2390
  %2392 = vrot.lane.b32.xlu0 %v1658, 4
  %v2393 = vpop.permute.xlu0 %2392
  %vm2394 = vcmp.lt.s32.totalorder %v197, 4
  %v2395 = vsel %vm2394, %v2387, %v2391
  %v2396 = vsel %vm2394, %v2389, %v2393
  %v2397 = vsel %vm2394, %v2383, %v2387
  %v2398 = vsel %vm2394, %v2385, %v2389
  %v2399 = vsel %vm2394, %v2379, %v2383
  %v2400 = vsel %vm2394, %v2381, %v2385
  %v2401 = vsel %vm2394, %v2391, %v2379
  %v2402 = vsel %vm2394, %v2393, %v2381
  %vm2403 = vcmp.ge.s32.totalorder %v69, 4
  %vm2404 = vcmp.ge.s32.totalorder %v70, 4
  %vm2405 = vcmp.ge.s32.totalorder %v71, 4
  %vm2406 = vcmp.ge.s32.totalorder %v72, 4
  %vm2407 = vcmp.ge.s32.totalorder %v73, 4
  %vm2408 = vcmp.ge.s32.totalorder %v74, 4
  %vm2409 = vcmp.ge.s32.totalorder %v75, 4
  %vm2410 = vcmp.ge.s32.totalorder %v76, 4
  %v2411 = vsel %vm2403, %v2401, 0.0
  %v2412 = vsel %vm2404, %v2399, 0.0
  %v2413 = vsel %vm2405, %v2397, 0.0
  %v2414 = vsel %vm2406, %v2395, 0.0
  %v2415 = vsel %vm2407, %v2402, 0.0
  %v2416 = vsel %vm2408, %v2400, 0.0
  %v2417 = vsel %vm2409, %v2398, 0.0
  %v2418 = vsel %vm2410, %v2396, 0.0
  %2419 = vset.pattern.permute.xlu0 11
  %2420 = vperm.xlu0 %2419, %v1659
  %v2421 = vpop.permute.xlu0 %2420
  %2423 = vset.pattern.permute.xlu0 11
  %2424 = vperm.xlu0 %2423, %v1660
  %v2425 = vpop.permute.xlu0 %2424
  %v2427 = vmul.f32 %v2411, %v2421
  %v2428 = vmul.f32 %v2412, %v2421
  %v2429 = vmul.f32 %v2413, %v2421
  %v2430 = vmul.f32 %v2414, %v2421
  %v2431 = vmul.f32 %v2415, %v2425
  %v2432 = vmul.f32 %v2416, %v2425
  %v2433 = vmul.f32 %v2417, %v2425
  %v2434 = vmul.f32 %v2418, %v2425
  %v2435 = vadd.f32 %v2370, %v2427
  %v2436 = vadd.f32 %v2371, %v2428
  %v2437 = vadd.f32 %v2372, %v2429
  %v2438 = vadd.f32 %v2373, %v2430
  %v2439 = vadd.f32 %v2374, %v2431
  %v2440 = vadd.f32 %v2375, %v2432
  %v2441 = vadd.f32 %v2376, %v2433
  %v2442 = vadd.f32 %v2377, %v2434
  %2443 = vrot.lane.b32.xlu0 %v1651, 3
  %v2444 = vpop.permute.xlu0 %2443
  %2445 = vrot.lane.b32.xlu0 %v1655, 3
  %v2446 = vpop.permute.xlu0 %2445
  %2447 = vrot.lane.b32.xlu0 %v1652, 3
  %v2448 = vpop.permute.xlu0 %2447
  %2449 = vrot.lane.b32.xlu0 %v1656, 3
  %v2450 = vpop.permute.xlu0 %2449
  %2451 = vrot.lane.b32.xlu0 %v1653, 3
  %v2452 = vpop.permute.xlu0 %2451
  %2453 = vrot.lane.b32.xlu0 %v1657, 3
  %v2454 = vpop.permute.xlu0 %2453
  %2455 = vrot.lane.b32.xlu0 %v1654, 3
  %v2456 = vpop.permute.xlu0 %2455
  %2457 = vrot.lane.b32.xlu0 %v1658, 3
  %v2458 = vpop.permute.xlu0 %2457
  %vm2459 = vcmp.lt.s32.totalorder %v197, 3
  %v2460 = vsel %vm2459, %v2452, %v2456
  %v2461 = vsel %vm2459, %v2454, %v2458
  %v2462 = vsel %vm2459, %v2448, %v2452
  %v2463 = vsel %vm2459, %v2450, %v2454
  %v2464 = vsel %vm2459, %v2444, %v2448
  %v2465 = vsel %vm2459, %v2446, %v2450
  %v2466 = vsel %vm2459, %v2456, %v2444
  %v2467 = vsel %vm2459, %v2458, %v2446
  %vm2468 = vcmp.ge.s32.totalorder %v69, 3
  %vm2469 = vcmp.ge.s32.totalorder %v70, 3
  %vm2470 = vcmp.ge.s32.totalorder %v71, 3
  %vm2471 = vcmp.ge.s32.totalorder %v72, 3
  %vm2472 = vcmp.ge.s32.totalorder %v73, 3
  %vm2473 = vcmp.ge.s32.totalorder %v74, 3
  %vm2474 = vcmp.ge.s32.totalorder %v75, 3
  %vm2475 = vcmp.ge.s32.totalorder %v76, 3
  %v2476 = vsel %vm2468, %v2466, 0.0
  %v2477 = vsel %vm2469, %v2464, 0.0
  %v2478 = vsel %vm2470, %v2462, 0.0
  %v2479 = vsel %vm2471, %v2460, 0.0
  %v2480 = vsel %vm2472, %v2467, 0.0
  %v2481 = vsel %vm2473, %v2465, 0.0
  %v2482 = vsel %vm2474, %v2463, 0.0
  %v2483 = vsel %vm2475, %v2461, 0.0
  %2484 = vset.pattern.permute.xlu0 12
  %2485 = vperm.xlu0 %2484, %v1659
  %v2486 = vpop.permute.xlu0 %2485
  %2488 = vset.pattern.permute.xlu0 12
  %2489 = vperm.xlu0 %2488, %v1660
  %v2490 = vpop.permute.xlu0 %2489
  %v2492 = vmul.f32 %v2476, %v2486
  %v2493 = vmul.f32 %v2477, %v2486
  %v2494 = vmul.f32 %v2478, %v2486
  %v2495 = vmul.f32 %v2479, %v2486
  %v2496 = vmul.f32 %v2480, %v2490
  %v2497 = vmul.f32 %v2481, %v2490
  %v2498 = vmul.f32 %v2482, %v2490
  %v2499 = vmul.f32 %v2483, %v2490
  %v2500 = vadd.f32 %v2435, %v2492
  %v2501 = vadd.f32 %v2436, %v2493
  %v2502 = vadd.f32 %v2437, %v2494
  %v2503 = vadd.f32 %v2438, %v2495
  %v2504 = vadd.f32 %v2439, %v2496
  %v2505 = vadd.f32 %v2440, %v2497
  %v2506 = vadd.f32 %v2441, %v2498
  %v2507 = vadd.f32 %v2442, %v2499
  %2508 = vrot.lane.b32.xlu0 %v1651, 2
  %v2509 = vpop.permute.xlu0 %2508
  %2510 = vrot.lane.b32.xlu0 %v1655, 2
  %v2511 = vpop.permute.xlu0 %2510
  %2512 = vrot.lane.b32.xlu0 %v1652, 2
  %v2513 = vpop.permute.xlu0 %2512
  %2514 = vrot.lane.b32.xlu0 %v1656, 2
  %v2515 = vpop.permute.xlu0 %2514
  %2516 = vrot.lane.b32.xlu0 %v1653, 2
  %v2517 = vpop.permute.xlu0 %2516
  %2518 = vrot.lane.b32.xlu0 %v1657, 2
  %v2519 = vpop.permute.xlu0 %2518
  %2520 = vrot.lane.b32.xlu0 %v1654, 2
  %v2521 = vpop.permute.xlu0 %2520
  %2522 = vrot.lane.b32.xlu0 %v1658, 2
  %v2523 = vpop.permute.xlu0 %2522
  %vm2524 = vcmp.lt.s32.totalorder %v197, 2
  %v2525 = vsel %vm2524, %v2517, %v2521
  %v2526 = vsel %vm2524, %v2519, %v2523
  %v2527 = vsel %vm2524, %v2513, %v2517
  %v2528 = vsel %vm2524, %v2515, %v2519
  %v2529 = vsel %vm2524, %v2509, %v2513
  %v2530 = vsel %vm2524, %v2511, %v2515
  %v2531 = vsel %vm2524, %v2521, %v2509
  %v2532 = vsel %vm2524, %v2523, %v2511
  %vm2533 = vcmp.ge.s32.totalorder %v69, 2
  %vm2534 = vcmp.ge.s32.totalorder %v70, 2
  %vm2535 = vcmp.ge.s32.totalorder %v71, 2
  %vm2536 = vcmp.ge.s32.totalorder %v72, 2
  %vm2537 = vcmp.ge.s32.totalorder %v73, 2
  %vm2538 = vcmp.ge.s32.totalorder %v74, 2
  %vm2539 = vcmp.ge.s32.totalorder %v75, 2
  %vm2540 = vcmp.ge.s32.totalorder %v76, 2
  %v2541 = vsel %vm2533, %v2531, 0.0
  %v2542 = vsel %vm2534, %v2529, 0.0
  %v2543 = vsel %vm2535, %v2527, 0.0
  %v2544 = vsel %vm2536, %v2525, 0.0
  %v2545 = vsel %vm2537, %v2532, 0.0
  %v2546 = vsel %vm2538, %v2530, 0.0
  %v2547 = vsel %vm2539, %v2528, 0.0
  %v2548 = vsel %vm2540, %v2526, 0.0
  %2549 = vset.pattern.permute.xlu0 13
  %2550 = vperm.xlu0 %2549, %v1659
  %v2551 = vpop.permute.xlu0 %2550
  %2553 = vset.pattern.permute.xlu0 13
  %2554 = vperm.xlu0 %2553, %v1660
  %v2555 = vpop.permute.xlu0 %2554
  %v2557 = vmul.f32 %v2541, %v2551
  %v2558 = vmul.f32 %v2542, %v2551
  %v2559 = vmul.f32 %v2543, %v2551
  %v2560 = vmul.f32 %v2544, %v2551
  %v2561 = vmul.f32 %v2545, %v2555
  %v2562 = vmul.f32 %v2546, %v2555
  %v2563 = vmul.f32 %v2547, %v2555
  %v2564 = vmul.f32 %v2548, %v2555
  %v2565 = vadd.f32 %v2500, %v2557
  %v2566 = vadd.f32 %v2501, %v2558
  %v2567 = vadd.f32 %v2502, %v2559
  %v2568 = vadd.f32 %v2503, %v2560
  %v2569 = vadd.f32 %v2504, %v2561
  %v2570 = vadd.f32 %v2505, %v2562
  %v2571 = vadd.f32 %v2506, %v2563
  %v2572 = vadd.f32 %v2507, %v2564
  %2573 = vrot.lane.b32.xlu0 %v1651, 1
  %v2574 = vpop.permute.xlu0 %2573
  %2575 = vrot.lane.b32.xlu0 %v1655, 1
  %v2576 = vpop.permute.xlu0 %2575
  %2577 = vrot.lane.b32.xlu0 %v1652, 1
  %v2578 = vpop.permute.xlu0 %2577
  %2579 = vrot.lane.b32.xlu0 %v1656, 1
  %v2580 = vpop.permute.xlu0 %2579
  %2581 = vrot.lane.b32.xlu0 %v1653, 1
  %v2582 = vpop.permute.xlu0 %2581
  %2583 = vrot.lane.b32.xlu0 %v1657, 1
  %v2584 = vpop.permute.xlu0 %2583
  %2585 = vrot.lane.b32.xlu0 %v1654, 1
  %v2586 = vpop.permute.xlu0 %2585
  %2587 = vrot.lane.b32.xlu0 %v1658, 1
  %v2588 = vpop.permute.xlu0 %2587
  %vm2589 = vcmp.lt.s32.totalorder %v197, 1
  %v2590 = vsel %vm2589, %v2582, %v2586
  %v2591 = vsel %vm2589, %v2584, %v2588
  %v2592 = vsel %vm2589, %v2578, %v2582
  %v2593 = vsel %vm2589, %v2580, %v2584
  %v2594 = vsel %vm2589, %v2574, %v2578
  %v2595 = vsel %vm2589, %v2576, %v2580
  %v2596 = vsel %vm2589, %v2586, %v2574
  %v2597 = vsel %vm2589, %v2588, %v2576
  %vm2598 = vcmp.ge.s32.totalorder %v69, 1
  %vm2599 = vcmp.ge.s32.totalorder %v70, 1
  %vm2600 = vcmp.ge.s32.totalorder %v71, 1
  %vm2601 = vcmp.ge.s32.totalorder %v72, 1
  %vm2602 = vcmp.ge.s32.totalorder %v73, 1
  %vm2603 = vcmp.ge.s32.totalorder %v74, 1
  %vm2604 = vcmp.ge.s32.totalorder %v75, 1
  %vm2605 = vcmp.ge.s32.totalorder %v76, 1
  %v2606 = vsel %vm2598, %v2596, 0.0
  %v2607 = vsel %vm2599, %v2594, 0.0
  %v2608 = vsel %vm2600, %v2592, 0.0
  %v2609 = vsel %vm2601, %v2590, 0.0
  %v2610 = vsel %vm2602, %v2597, 0.0
  %v2611 = vsel %vm2603, %v2595, 0.0
  %v2612 = vsel %vm2604, %v2593, 0.0
  %v2613 = vsel %vm2605, %v2591, 0.0
  %2614 = vset.pattern.permute.xlu0 14
  %2615 = vperm.xlu0 %2614, %v1659
  %v2616 = vpop.permute.xlu0 %2615
  %2618 = vset.pattern.permute.xlu0 14
  %2619 = vperm.xlu0 %2618, %v1660
  %v2620 = vpop.permute.xlu0 %2619
  %v2622 = vmul.f32 %v2606, %v2616
  %v2623 = vmul.f32 %v2607, %v2616
  %v2624 = vmul.f32 %v2608, %v2616
  %v2625 = vmul.f32 %v2609, %v2616
  %v2626 = vmul.f32 %v2610, %v2620
  %v2627 = vmul.f32 %v2611, %v2620
  %v2628 = vmul.f32 %v2612, %v2620
  %v2629 = vmul.f32 %v2613, %v2620
  %v2630 = vadd.f32 %v2565, %v2622
  %v2631 = vadd.f32 %v2566, %v2623
  %v2632 = vadd.f32 %v2567, %v2624
  %v2633 = vadd.f32 %v2568, %v2625
  %v2634 = vadd.f32 %v2569, %v2626
  %v2635 = vadd.f32 %v2570, %v2627
  %v2636 = vadd.f32 %v2571, %v2628
  %v2637 = vadd.f32 %v2572, %v2629
  %2638 = vset.pattern.permute.xlu0 15
  %2639 = vperm.xlu0 %2638, %v1659
  %v2640 = vpop.permute.xlu0 %2639
  %2642 = vset.pattern.permute.xlu0 15
  %2643 = vperm.xlu0 %2642, %v1660
  %v2644 = vpop.permute.xlu0 %2643
  %v2646 = vmul.f32 %v1651, %v2640
  %v2647 = vmul.f32 %v1652, %v2640
  %v2648 = vmul.f32 %v1653, %v2640
  %v2649 = vmul.f32 %v1654, %v2640
  %v2650 = vmul.f32 %v1655, %v2644
  %v2651 = vmul.f32 %v1656, %v2644
  %v2652 = vmul.f32 %v1657, %v2644
  %v2653 = vmul.f32 %v1658, %v2644
  %v2654 = vadd.f32 %v2630, %v2646
  %v2655 = vadd.f32 %v2631, %v2647
  %v2656 = vadd.f32 %v2632, %v2648
  %v2657 = vadd.f32 %v2633, %v2649
  %v2658 = vadd.f32 %v2634, %v2650
  %v2659 = vadd.f32 %v2635, %v2651
  %v2660 = vadd.f32 %v2636, %v2652
  %v2661 = vadd.f32 %v2637, %v2653
  %2662 = vrot.lane.b32.xlu0 %v1651, 127
  %v2663 = vpop.permute.xlu0 %2662
  %2664 = vrot.lane.b32.xlu0 %v1655, 127
  %v2665 = vpop.permute.xlu0 %2664
  %2666 = vrot.lane.b32.xlu0 %v1652, 127
  %v2667 = vpop.permute.xlu0 %2666
  %2668 = vrot.lane.b32.xlu0 %v1656, 127
  %v2669 = vpop.permute.xlu0 %2668
  %2670 = vrot.lane.b32.xlu0 %v1653, 127
  %v2671 = vpop.permute.xlu0 %2670
  %2672 = vrot.lane.b32.xlu0 %v1657, 127
  %v2673 = vpop.permute.xlu0 %2672
  %2674 = vrot.lane.b32.xlu0 %v1654, 127
  %v2675 = vpop.permute.xlu0 %2674
  %2676 = vrot.lane.b32.xlu0 %v1658, 127
  %v2677 = vpop.permute.xlu0 %2676
  %vm2678 = vcmp.lt.s32.totalorder %v197, 127
  %v2679 = vsel %vm2678, %v2671, %v2675
  %v2680 = vsel %vm2678, %v2673, %v2677
  %v2681 = vsel %vm2678, %v2667, %v2671
  %v2682 = vsel %vm2678, %v2669, %v2673
  %v2683 = vsel %vm2678, %v2663, %v2667
  %v2684 = vsel %vm2678, %v2665, %v2669
  %v2685 = vsel %vm2678, %v2675, %v2663
  %v2686 = vsel %vm2678, %v2677, %v2665
  %vm2687 = vcmp.lt.s32.totalorder %v69, 15
  %vm2688 = vcmp.lt.s32.totalorder %v70, 15
  %vm2689 = vcmp.lt.s32.totalorder %v71, 15
  %vm2690 = vcmp.lt.s32.totalorder %v72, 15
  %vm2691 = vcmp.lt.s32.totalorder %v73, 15
  %vm2692 = vcmp.lt.s32.totalorder %v74, 15
  %vm2693 = vcmp.lt.s32.totalorder %v75, 15
  %vm2694 = vcmp.lt.s32.totalorder %v76, 15
  %v2695 = vsel %vm2687, %v2683, 0.0
  %v2696 = vsel %vm2688, %v2681, 0.0
  %v2697 = vsel %vm2689, %v2679, 0.0
  %v2698 = vsel %vm2690, %v2685, 0.0
  %v2699 = vsel %vm2691, %v2684, 0.0
  %v2700 = vsel %vm2692, %v2682, 0.0
  %v2701 = vsel %vm2693, %v2680, 0.0
  %v2702 = vsel %vm2694, %v2686, 0.0
  %2703 = vset.pattern.permute.xlu0 16
  %2704 = vperm.xlu0 %2703, %v1659
  %v2705 = vpop.permute.xlu0 %2704
  %2707 = vset.pattern.permute.xlu0 16
  %2708 = vperm.xlu0 %2707, %v1660
  %v2709 = vpop.permute.xlu0 %2708
  %v2711 = vmul.f32 %v2695, %v2705
  %v2712 = vmul.f32 %v2696, %v2705
  %v2713 = vmul.f32 %v2697, %v2705
  %v2714 = vmul.f32 %v2698, %v2705
  %v2715 = vmul.f32 %v2699, %v2709
  %v2716 = vmul.f32 %v2700, %v2709
  %v2717 = vmul.f32 %v2701, %v2709
  %v2718 = vmul.f32 %v2702, %v2709
  %v2719 = vadd.f32 %v2654, %v2711
  %v2720 = vadd.f32 %v2655, %v2712
  %v2721 = vadd.f32 %v2656, %v2713
  %v2722 = vadd.f32 %v2657, %v2714
  %v2723 = vadd.f32 %v2658, %v2715
  %v2724 = vadd.f32 %v2659, %v2716
  %v2725 = vadd.f32 %v2660, %v2717
  %v2726 = vadd.f32 %v2661, %v2718
  %2727 = vrot.lane.b32.xlu0 %v1651, 126
  %v2728 = vpop.permute.xlu0 %2727
  %2729 = vrot.lane.b32.xlu0 %v1655, 126
  %v2730 = vpop.permute.xlu0 %2729
  %2731 = vrot.lane.b32.xlu0 %v1652, 126
  %v2732 = vpop.permute.xlu0 %2731
  %2733 = vrot.lane.b32.xlu0 %v1656, 126
  %v2734 = vpop.permute.xlu0 %2733
  %2735 = vrot.lane.b32.xlu0 %v1653, 126
  %v2736 = vpop.permute.xlu0 %2735
  %2737 = vrot.lane.b32.xlu0 %v1657, 126
  %v2738 = vpop.permute.xlu0 %2737
  %2739 = vrot.lane.b32.xlu0 %v1654, 126
  %v2740 = vpop.permute.xlu0 %2739
  %2741 = vrot.lane.b32.xlu0 %v1658, 126
  %v2742 = vpop.permute.xlu0 %2741
  %vm2743 = vcmp.lt.s32.totalorder %v197, 126
  %v2744 = vsel %vm2743, %v2736, %v2740
  %v2745 = vsel %vm2743, %v2738, %v2742
  %v2746 = vsel %vm2743, %v2732, %v2736
  %v2747 = vsel %vm2743, %v2734, %v2738
  %v2748 = vsel %vm2743, %v2728, %v2732
  %v2749 = vsel %vm2743, %v2730, %v2734
  %v2750 = vsel %vm2743, %v2740, %v2728
  %v2751 = vsel %vm2743, %v2742, %v2730
  %vm2752 = vcmp.lt.s32.totalorder %v69, 14
  %vm2753 = vcmp.lt.s32.totalorder %v70, 14
  %vm2754 = vcmp.lt.s32.totalorder %v71, 14
  %vm2755 = vcmp.lt.s32.totalorder %v72, 14
  %vm2756 = vcmp.lt.s32.totalorder %v73, 14
  %vm2757 = vcmp.lt.s32.totalorder %v74, 14
  %vm2758 = vcmp.lt.s32.totalorder %v75, 14
  %vm2759 = vcmp.lt.s32.totalorder %v76, 14
  %v2760 = vsel %vm2752, %v2748, 0.0
  %v2761 = vsel %vm2753, %v2746, 0.0
  %v2762 = vsel %vm2754, %v2744, 0.0
  %v2763 = vsel %vm2755, %v2750, 0.0
  %v2764 = vsel %vm2756, %v2749, 0.0
  %v2765 = vsel %vm2757, %v2747, 0.0
  %v2766 = vsel %vm2758, %v2745, 0.0
  %v2767 = vsel %vm2759, %v2751, 0.0
  %2768 = vset.pattern.permute.xlu0 17
  %2769 = vperm.xlu0 %2768, %v1659
  %v2770 = vpop.permute.xlu0 %2769
  %2772 = vset.pattern.permute.xlu0 17
  %2773 = vperm.xlu0 %2772, %v1660
  %v2774 = vpop.permute.xlu0 %2773
  %v2776 = vmul.f32 %v2760, %v2770
  %v2777 = vmul.f32 %v2761, %v2770
  %v2778 = vmul.f32 %v2762, %v2770
  %v2779 = vmul.f32 %v2763, %v2770
  %v2780 = vmul.f32 %v2764, %v2774
  %v2781 = vmul.f32 %v2765, %v2774
  %v2782 = vmul.f32 %v2766, %v2774
  %v2783 = vmul.f32 %v2767, %v2774
  %v2784 = vadd.f32 %v2719, %v2776
  %v2785 = vadd.f32 %v2720, %v2777
  %v2786 = vadd.f32 %v2721, %v2778
  %v2787 = vadd.f32 %v2722, %v2779
  %v2788 = vadd.f32 %v2723, %v2780
  %v2789 = vadd.f32 %v2724, %v2781
  %v2790 = vadd.f32 %v2725, %v2782
  %v2791 = vadd.f32 %v2726, %v2783
  %2792 = vrot.lane.b32.xlu0 %v1651, 125
  %v2793 = vpop.permute.xlu0 %2792
  %2794 = vrot.lane.b32.xlu0 %v1655, 125
  %v2795 = vpop.permute.xlu0 %2794
  %2796 = vrot.lane.b32.xlu0 %v1652, 125
  %v2797 = vpop.permute.xlu0 %2796
  %2798 = vrot.lane.b32.xlu0 %v1656, 125
  %v2799 = vpop.permute.xlu0 %2798
  %2800 = vrot.lane.b32.xlu0 %v1653, 125
  %v2801 = vpop.permute.xlu0 %2800
  %2802 = vrot.lane.b32.xlu0 %v1657, 125
  %v2803 = vpop.permute.xlu0 %2802
  %2804 = vrot.lane.b32.xlu0 %v1654, 125
  %v2805 = vpop.permute.xlu0 %2804
  %2806 = vrot.lane.b32.xlu0 %v1658, 125
  %v2807 = vpop.permute.xlu0 %2806
  %vm2808 = vcmp.lt.s32.totalorder %v197, 125
  %v2809 = vsel %vm2808, %v2801, %v2805
  %v2810 = vsel %vm2808, %v2803, %v2807
  %v2811 = vsel %vm2808, %v2797, %v2801
  %v2812 = vsel %vm2808, %v2799, %v2803
  %v2813 = vsel %vm2808, %v2793, %v2797
  %v2814 = vsel %vm2808, %v2795, %v2799
  %v2815 = vsel %vm2808, %v2805, %v2793
  %v2816 = vsel %vm2808, %v2807, %v2795
  %vm2817 = vcmp.lt.s32.totalorder %v69, 13
  %vm2818 = vcmp.lt.s32.totalorder %v70, 13
  %vm2819 = vcmp.lt.s32.totalorder %v71, 13
  %vm2820 = vcmp.lt.s32.totalorder %v72, 13
  %vm2821 = vcmp.lt.s32.totalorder %v73, 13
  %vm2822 = vcmp.lt.s32.totalorder %v74, 13
  %vm2823 = vcmp.lt.s32.totalorder %v75, 13
  %vm2824 = vcmp.lt.s32.totalorder %v76, 13
  %v2825 = vsel %vm2817, %v2813, 0.0
  %v2826 = vsel %vm2818, %v2811, 0.0
  %v2827 = vsel %vm2819, %v2809, 0.0
  %v2828 = vsel %vm2820, %v2815, 0.0
  %v2829 = vsel %vm2821, %v2814, 0.0
  %v2830 = vsel %vm2822, %v2812, 0.0
  %v2831 = vsel %vm2823, %v2810, 0.0
  %v2832 = vsel %vm2824, %v2816, 0.0
  %2833 = vset.pattern.permute.xlu0 18
  %2834 = vperm.xlu0 %2833, %v1659
  %v2835 = vpop.permute.xlu0 %2834
  %2837 = vset.pattern.permute.xlu0 18
  %2838 = vperm.xlu0 %2837, %v1660
  %v2839 = vpop.permute.xlu0 %2838
  %v2841 = vmul.f32 %v2825, %v2835
  %v2842 = vmul.f32 %v2826, %v2835
  %v2843 = vmul.f32 %v2827, %v2835
  %v2844 = vmul.f32 %v2828, %v2835
  %v2845 = vmul.f32 %v2829, %v2839
  %v2846 = vmul.f32 %v2830, %v2839
  %v2847 = vmul.f32 %v2831, %v2839
  %v2848 = vmul.f32 %v2832, %v2839
  %v2849 = vadd.f32 %v2784, %v2841
  %v2850 = vadd.f32 %v2785, %v2842
  %v2851 = vadd.f32 %v2786, %v2843
  %v2852 = vadd.f32 %v2787, %v2844
  %v2853 = vadd.f32 %v2788, %v2845
  %v2854 = vadd.f32 %v2789, %v2846
  %v2855 = vadd.f32 %v2790, %v2847
  %v2856 = vadd.f32 %v2791, %v2848
  %2857 = vrot.lane.b32.xlu0 %v1651, 124
  %v2858 = vpop.permute.xlu0 %2857
  %2859 = vrot.lane.b32.xlu0 %v1655, 124
  %v2860 = vpop.permute.xlu0 %2859
  %2861 = vrot.lane.b32.xlu0 %v1652, 124
  %v2862 = vpop.permute.xlu0 %2861
  %2863 = vrot.lane.b32.xlu0 %v1656, 124
  %v2864 = vpop.permute.xlu0 %2863
  %2865 = vrot.lane.b32.xlu0 %v1653, 124
  %v2866 = vpop.permute.xlu0 %2865
  %2867 = vrot.lane.b32.xlu0 %v1657, 124
  %v2868 = vpop.permute.xlu0 %2867
  %2869 = vrot.lane.b32.xlu0 %v1654, 124
  %v2870 = vpop.permute.xlu0 %2869
  %2871 = vrot.lane.b32.xlu0 %v1658, 124
  %v2872 = vpop.permute.xlu0 %2871
  %vm2873 = vcmp.lt.s32.totalorder %v197, 124
  %v2874 = vsel %vm2873, %v2866, %v2870
  %v2875 = vsel %vm2873, %v2868, %v2872
  %v2876 = vsel %vm2873, %v2862, %v2866
  %v2877 = vsel %vm2873, %v2864, %v2868
  %v2878 = vsel %vm2873, %v2858, %v2862
  %v2879 = vsel %vm2873, %v2860, %v2864
  %v2880 = vsel %vm2873, %v2870, %v2858
  %v2881 = vsel %vm2873, %v2872, %v2860
  %vm2882 = vcmp.lt.s32.totalorder %v69, 12
  %vm2883 = vcmp.lt.s32.totalorder %v70, 12
  %vm2884 = vcmp.lt.s32.totalorder %v71, 12
  %vm2885 = vcmp.lt.s32.totalorder %v72, 12
  %vm2886 = vcmp.lt.s32.totalorder %v73, 12
  %vm2887 = vcmp.lt.s32.totalorder %v74, 12
  %vm2888 = vcmp.lt.s32.totalorder %v75, 12
  %vm2889 = vcmp.lt.s32.totalorder %v76, 12
  %v2890 = vsel %vm2882, %v2878, 0.0
  %v2891 = vsel %vm2883, %v2876, 0.0
  %v2892 = vsel %vm2884, %v2874, 0.0
  %v2893 = vsel %vm2885, %v2880, 0.0
  %v2894 = vsel %vm2886, %v2879, 0.0
  %v2895 = vsel %vm2887, %v2877, 0.0
  %v2896 = vsel %vm2888, %v2875, 0.0
  %v2897 = vsel %vm2889, %v2881, 0.0
  %2898 = vset.pattern.permute.xlu0 19
  %2899 = vperm.xlu0 %2898, %v1659
  %v2900 = vpop.permute.xlu0 %2899
  %2902 = vset.pattern.permute.xlu0 19
  %2903 = vperm.xlu0 %2902, %v1660
  %v2904 = vpop.permute.xlu0 %2903
  %v2906 = vmul.f32 %v2890, %v2900
  %v2907 = vmul.f32 %v2891, %v2900
  %v2908 = vmul.f32 %v2892, %v2900
  %v2909 = vmul.f32 %v2893, %v2900
  %v2910 = vmul.f32 %v2894, %v2904
  %v2911 = vmul.f32 %v2895, %v2904
  %v2912 = vmul.f32 %v2896, %v2904
  %v2913 = vmul.f32 %v2897, %v2904
  %v2914 = vadd.f32 %v2849, %v2906
  %v2915 = vadd.f32 %v2850, %v2907
  %v2916 = vadd.f32 %v2851, %v2908
  %v2917 = vadd.f32 %v2852, %v2909
  %v2918 = vadd.f32 %v2853, %v2910
  %v2919 = vadd.f32 %v2854, %v2911
  %v2920 = vadd.f32 %v2855, %v2912
  %v2921 = vadd.f32 %v2856, %v2913
  %2922 = vrot.lane.b32.xlu0 %v1651, 123
  %v2923 = vpop.permute.xlu0 %2922
  %2924 = vrot.lane.b32.xlu0 %v1655, 123
  %v2925 = vpop.permute.xlu0 %2924
  %2926 = vrot.lane.b32.xlu0 %v1652, 123
  %v2927 = vpop.permute.xlu0 %2926
  %2928 = vrot.lane.b32.xlu0 %v1656, 123
  %v2929 = vpop.permute.xlu0 %2928
  %2930 = vrot.lane.b32.xlu0 %v1653, 123
  %v2931 = vpop.permute.xlu0 %2930
  %2932 = vrot.lane.b32.xlu0 %v1657, 123
  %v2933 = vpop.permute.xlu0 %2932
  %2934 = vrot.lane.b32.xlu0 %v1654, 123
  %v2935 = vpop.permute.xlu0 %2934
  %2936 = vrot.lane.b32.xlu0 %v1658, 123
  %v2937 = vpop.permute.xlu0 %2936
  %vm2938 = vcmp.lt.s32.totalorder %v197, 123
  %v2939 = vsel %vm2938, %v2931, %v2935
  %v2940 = vsel %vm2938, %v2933, %v2937
  %v2941 = vsel %vm2938, %v2927, %v2931
  %v2942 = vsel %vm2938, %v2929, %v2933
  %v2943 = vsel %vm2938, %v2923, %v2927
  %v2944 = vsel %vm2938, %v2925, %v2929
  %v2945 = vsel %vm2938, %v2935, %v2923
  %v2946 = vsel %vm2938, %v2937, %v2925
  %vm2947 = vcmp.lt.s32.totalorder %v69, 11
  %vm2948 = vcmp.lt.s32.totalorder %v70, 11
  %vm2949 = vcmp.lt.s32.totalorder %v71, 11
  %vm2950 = vcmp.lt.s32.totalorder %v72, 11
  %vm2951 = vcmp.lt.s32.totalorder %v73, 11
  %vm2952 = vcmp.lt.s32.totalorder %v74, 11
  %vm2953 = vcmp.lt.s32.totalorder %v75, 11
  %vm2954 = vcmp.lt.s32.totalorder %v76, 11
  %v2955 = vsel %vm2947, %v2943, 0.0
  %v2956 = vsel %vm2948, %v2941, 0.0
  %v2957 = vsel %vm2949, %v2939, 0.0
  %v2958 = vsel %vm2950, %v2945, 0.0
  %v2959 = vsel %vm2951, %v2944, 0.0
  %v2960 = vsel %vm2952, %v2942, 0.0
  %v2961 = vsel %vm2953, %v2940, 0.0
  %v2962 = vsel %vm2954, %v2946, 0.0
  %2963 = vset.pattern.permute.xlu0 20
  %2964 = vperm.xlu0 %2963, %v1659
  %v2965 = vpop.permute.xlu0 %2964
  %2967 = vset.pattern.permute.xlu0 20
  %2968 = vperm.xlu0 %2967, %v1660
  %v2969 = vpop.permute.xlu0 %2968
  %v2971 = vmul.f32 %v2955, %v2965
  %v2972 = vmul.f32 %v2956, %v2965
  %v2973 = vmul.f32 %v2957, %v2965
  %v2974 = vmul.f32 %v2958, %v2965
  %v2975 = vmul.f32 %v2959, %v2969
  %v2976 = vmul.f32 %v2960, %v2969
  %v2977 = vmul.f32 %v2961, %v2969
  %v2978 = vmul.f32 %v2962, %v2969
  %v2979 = vadd.f32 %v2914, %v2971
  %v2980 = vadd.f32 %v2915, %v2972
  %v2981 = vadd.f32 %v2916, %v2973
  %v2982 = vadd.f32 %v2917, %v2974
  %v2983 = vadd.f32 %v2918, %v2975
  %v2984 = vadd.f32 %v2919, %v2976
  %v2985 = vadd.f32 %v2920, %v2977
  %v2986 = vadd.f32 %v2921, %v2978
  %2987 = vrot.lane.b32.xlu0 %v1651, 122
  %v2988 = vpop.permute.xlu0 %2987
  %2989 = vrot.lane.b32.xlu0 %v1655, 122
  %v2990 = vpop.permute.xlu0 %2989
  %2991 = vrot.lane.b32.xlu0 %v1652, 122
  %v2992 = vpop.permute.xlu0 %2991
  %2993 = vrot.lane.b32.xlu0 %v1656, 122
  %v2994 = vpop.permute.xlu0 %2993
  %2995 = vrot.lane.b32.xlu0 %v1653, 122
  %v2996 = vpop.permute.xlu0 %2995
  %2997 = vrot.lane.b32.xlu0 %v1657, 122
  %v2998 = vpop.permute.xlu0 %2997
  %2999 = vrot.lane.b32.xlu0 %v1654, 122
  %v3000 = vpop.permute.xlu0 %2999
  %3001 = vrot.lane.b32.xlu0 %v1658, 122
  %v3002 = vpop.permute.xlu0 %3001
  %vm3003 = vcmp.lt.s32.totalorder %v197, 122
  %v3004 = vsel %vm3003, %v2996, %v3000
  %v3005 = vsel %vm3003, %v2998, %v3002
  %v3006 = vsel %vm3003, %v2992, %v2996
  %v3007 = vsel %vm3003, %v2994, %v2998
  %v3008 = vsel %vm3003, %v2988, %v2992
  %v3009 = vsel %vm3003, %v2990, %v2994
  %v3010 = vsel %vm3003, %v3000, %v2988
  %v3011 = vsel %vm3003, %v3002, %v2990
  %vm3012 = vcmp.lt.s32.totalorder %v69, 10
  %vm3013 = vcmp.lt.s32.totalorder %v70, 10
  %vm3014 = vcmp.lt.s32.totalorder %v71, 10
  %vm3015 = vcmp.lt.s32.totalorder %v72, 10
  %vm3016 = vcmp.lt.s32.totalorder %v73, 10
  %vm3017 = vcmp.lt.s32.totalorder %v74, 10
  %vm3018 = vcmp.lt.s32.totalorder %v75, 10
  %vm3019 = vcmp.lt.s32.totalorder %v76, 10
  %v3020 = vsel %vm3012, %v3008, 0.0
  %v3021 = vsel %vm3013, %v3006, 0.0
  %v3022 = vsel %vm3014, %v3004, 0.0
  %v3023 = vsel %vm3015, %v3010, 0.0
  %v3024 = vsel %vm3016, %v3009, 0.0
  %v3025 = vsel %vm3017, %v3007, 0.0
  %v3026 = vsel %vm3018, %v3005, 0.0
  %v3027 = vsel %vm3019, %v3011, 0.0
  %3028 = vset.pattern.permute.xlu0 21
  %3029 = vperm.xlu0 %3028, %v1659
  %v3030 = vpop.permute.xlu0 %3029
  %3032 = vset.pattern.permute.xlu0 21
  %3033 = vperm.xlu0 %3032, %v1660
  %v3034 = vpop.permute.xlu0 %3033
  %v3036 = vmul.f32 %v3020, %v3030
  %v3037 = vmul.f32 %v3021, %v3030
  %v3038 = vmul.f32 %v3022, %v3030
  %v3039 = vmul.f32 %v3023, %v3030
  %v3040 = vmul.f32 %v3024, %v3034
  %v3041 = vmul.f32 %v3025, %v3034
  %v3042 = vmul.f32 %v3026, %v3034
  %v3043 = vmul.f32 %v3027, %v3034
  %v3044 = vadd.f32 %v2979, %v3036
  %v3045 = vadd.f32 %v2980, %v3037
  %v3046 = vadd.f32 %v2981, %v3038
  %v3047 = vadd.f32 %v2982, %v3039
  %v3048 = vadd.f32 %v2983, %v3040
  %v3049 = vadd.f32 %v2984, %v3041
  %v3050 = vadd.f32 %v2985, %v3042
  %v3051 = vadd.f32 %v2986, %v3043
  %3052 = vrot.lane.b32.xlu0 %v1651, 121
  %v3053 = vpop.permute.xlu0 %3052
  %3054 = vrot.lane.b32.xlu0 %v1655, 121
  %v3055 = vpop.permute.xlu0 %3054
  %3056 = vrot.lane.b32.xlu0 %v1652, 121
  %v3057 = vpop.permute.xlu0 %3056
  %3058 = vrot.lane.b32.xlu0 %v1656, 121
  %v3059 = vpop.permute.xlu0 %3058
  %3060 = vrot.lane.b32.xlu0 %v1653, 121
  %v3061 = vpop.permute.xlu0 %3060
  %3062 = vrot.lane.b32.xlu0 %v1657, 121
  %v3063 = vpop.permute.xlu0 %3062
  %3064 = vrot.lane.b32.xlu0 %v1654, 121
  %v3065 = vpop.permute.xlu0 %3064
  %3066 = vrot.lane.b32.xlu0 %v1658, 121
  %v3067 = vpop.permute.xlu0 %3066
  %vm3068 = vcmp.lt.s32.totalorder %v197, 121
  %v3069 = vsel %vm3068, %v3061, %v3065
  %v3070 = vsel %vm3068, %v3063, %v3067
  %v3071 = vsel %vm3068, %v3057, %v3061
  %v3072 = vsel %vm3068, %v3059, %v3063
  %v3073 = vsel %vm3068, %v3053, %v3057
  %v3074 = vsel %vm3068, %v3055, %v3059
  %v3075 = vsel %vm3068, %v3065, %v3053
  %v3076 = vsel %vm3068, %v3067, %v3055
  %vm3077 = vcmp.lt.s32.totalorder %v69, 9
  %vm3078 = vcmp.lt.s32.totalorder %v70, 9
  %vm3079 = vcmp.lt.s32.totalorder %v71, 9
  %vm3080 = vcmp.lt.s32.totalorder %v72, 9
  %vm3081 = vcmp.lt.s32.totalorder %v73, 9
  %vm3082 = vcmp.lt.s32.totalorder %v74, 9
  %vm3083 = vcmp.lt.s32.totalorder %v75, 9
  %vm3084 = vcmp.lt.s32.totalorder %v76, 9
  %v3085 = vsel %vm3077, %v3073, 0.0
  %v3086 = vsel %vm3078, %v3071, 0.0
  %v3087 = vsel %vm3079, %v3069, 0.0
  %v3088 = vsel %vm3080, %v3075, 0.0
  %v3089 = vsel %vm3081, %v3074, 0.0
  %v3090 = vsel %vm3082, %v3072, 0.0
  %v3091 = vsel %vm3083, %v3070, 0.0
  %v3092 = vsel %vm3084, %v3076, 0.0
  %3093 = vset.pattern.permute.xlu0 22
  %3094 = vperm.xlu0 %3093, %v1659
  %v3095 = vpop.permute.xlu0 %3094
  %3097 = vset.pattern.permute.xlu0 22
  %3098 = vperm.xlu0 %3097, %v1660
  %v3099 = vpop.permute.xlu0 %3098
  %v3101 = vmul.f32 %v3085, %v3095
  %v3102 = vmul.f32 %v3086, %v3095
  %v3103 = vmul.f32 %v3087, %v3095
  %v3104 = vmul.f32 %v3088, %v3095
  %v3105 = vmul.f32 %v3089, %v3099
  %v3106 = vmul.f32 %v3090, %v3099
  %v3107 = vmul.f32 %v3091, %v3099
  %v3108 = vmul.f32 %v3092, %v3099
  %v3109 = vadd.f32 %v3044, %v3101
  %v3110 = vadd.f32 %v3045, %v3102
  %v3111 = vadd.f32 %v3046, %v3103
  %v3112 = vadd.f32 %v3047, %v3104
  %v3113 = vadd.f32 %v3048, %v3105
  %v3114 = vadd.f32 %v3049, %v3106
  %v3115 = vadd.f32 %v3050, %v3107
  %v3116 = vadd.f32 %v3051, %v3108
  %3117 = vrot.lane.b32.xlu0 %v1651, 120
  %v3118 = vpop.permute.xlu0 %3117
  %3119 = vrot.lane.b32.xlu0 %v1655, 120
  %v3120 = vpop.permute.xlu0 %3119
  %3121 = vrot.lane.b32.xlu0 %v1652, 120
  %v3122 = vpop.permute.xlu0 %3121
  %3123 = vrot.lane.b32.xlu0 %v1656, 120
  %v3124 = vpop.permute.xlu0 %3123
  %3125 = vrot.lane.b32.xlu0 %v1653, 120
  %v3126 = vpop.permute.xlu0 %3125
  %3127 = vrot.lane.b32.xlu0 %v1657, 120
  %v3128 = vpop.permute.xlu0 %3127
  %3129 = vrot.lane.b32.xlu0 %v1654, 120
  %v3130 = vpop.permute.xlu0 %3129
  %3131 = vrot.lane.b32.xlu0 %v1658, 120
  %v3132 = vpop.permute.xlu0 %3131
  %vm3133 = vcmp.lt.s32.totalorder %v197, 120
  %v3134 = vsel %vm3133, %v3126, %v3130
  %v3135 = vsel %vm3133, %v3128, %v3132
  %v3136 = vsel %vm3133, %v3122, %v3126
  %v3137 = vsel %vm3133, %v3124, %v3128
  %v3138 = vsel %vm3133, %v3118, %v3122
  %v3139 = vsel %vm3133, %v3120, %v3124
  %v3140 = vsel %vm3133, %v3130, %v3118
  %v3141 = vsel %vm3133, %v3132, %v3120
  %vm3142 = vcmp.lt.s32.totalorder %v69, 8
  %vm3143 = vcmp.lt.s32.totalorder %v70, 8
  %vm3144 = vcmp.lt.s32.totalorder %v71, 8
  %vm3145 = vcmp.lt.s32.totalorder %v72, 8
  %vm3146 = vcmp.lt.s32.totalorder %v73, 8
  %vm3147 = vcmp.lt.s32.totalorder %v74, 8
  %vm3148 = vcmp.lt.s32.totalorder %v75, 8
  %vm3149 = vcmp.lt.s32.totalorder %v76, 8
  %v3150 = vsel %vm3142, %v3138, 0.0
  %v3151 = vsel %vm3143, %v3136, 0.0
  %v3152 = vsel %vm3144, %v3134, 0.0
  %v3153 = vsel %vm3145, %v3140, 0.0
  %v3154 = vsel %vm3146, %v3139, 0.0
  %v3155 = vsel %vm3147, %v3137, 0.0
  %v3156 = vsel %vm3148, %v3135, 0.0
  %v3157 = vsel %vm3149, %v3141, 0.0
  %3158 = vset.pattern.permute.xlu0 23
  %3159 = vperm.xlu0 %3158, %v1659
  %v3160 = vpop.permute.xlu0 %3159
  %3162 = vset.pattern.permute.xlu0 23
  %3163 = vperm.xlu0 %3162, %v1660
  %v3164 = vpop.permute.xlu0 %3163
  %v3166 = vmul.f32 %v3150, %v3160
  %v3167 = vmul.f32 %v3151, %v3160
  %v3168 = vmul.f32 %v3152, %v3160
  %v3169 = vmul.f32 %v3153, %v3160
  %v3170 = vmul.f32 %v3154, %v3164
  %v3171 = vmul.f32 %v3155, %v3164
  %v3172 = vmul.f32 %v3156, %v3164
  %v3173 = vmul.f32 %v3157, %v3164
  %v3174 = vadd.f32 %v3109, %v3166
  %v3175 = vadd.f32 %v3110, %v3167
  %v3176 = vadd.f32 %v3111, %v3168
  %v3177 = vadd.f32 %v3112, %v3169
  %v3178 = vadd.f32 %v3113, %v3170
  %v3179 = vadd.f32 %v3114, %v3171
  %v3180 = vadd.f32 %v3115, %v3172
  %v3181 = vadd.f32 %v3116, %v3173
  %3182 = vrot.lane.b32.xlu0 %v1651, 119
  %v3183 = vpop.permute.xlu0 %3182
  %3184 = vrot.lane.b32.xlu0 %v1655, 119
  %v3185 = vpop.permute.xlu0 %3184
  %3186 = vrot.lane.b32.xlu0 %v1652, 119
  %v3187 = vpop.permute.xlu0 %3186
  %3188 = vrot.lane.b32.xlu0 %v1656, 119
  %v3189 = vpop.permute.xlu0 %3188
  %3190 = vrot.lane.b32.xlu0 %v1653, 119
  %v3191 = vpop.permute.xlu0 %3190
  %3192 = vrot.lane.b32.xlu0 %v1657, 119
  %v3193 = vpop.permute.xlu0 %3192
  %3194 = vrot.lane.b32.xlu0 %v1654, 119
  %v3195 = vpop.permute.xlu0 %3194
  %3196 = vrot.lane.b32.xlu0 %v1658, 119
  %v3197 = vpop.permute.xlu0 %3196
  %vm3198 = vcmp.lt.s32.totalorder %v197, 119
  %v3199 = vsel %vm3198, %v3191, %v3195
  %v3200 = vsel %vm3198, %v3193, %v3197
  %v3201 = vsel %vm3198, %v3187, %v3191
  %v3202 = vsel %vm3198, %v3189, %v3193
  %v3203 = vsel %vm3198, %v3183, %v3187
  %v3204 = vsel %vm3198, %v3185, %v3189
  %v3205 = vsel %vm3198, %v3195, %v3183
  %v3206 = vsel %vm3198, %v3197, %v3185
  %vm3207 = vcmp.lt.s32.totalorder %v69, 7
  %vm3208 = vcmp.lt.s32.totalorder %v70, 7
  %vm3209 = vcmp.lt.s32.totalorder %v71, 7
  %vm3210 = vcmp.lt.s32.totalorder %v72, 7
  %vm3211 = vcmp.lt.s32.totalorder %v73, 7
  %vm3212 = vcmp.lt.s32.totalorder %v74, 7
  %vm3213 = vcmp.lt.s32.totalorder %v75, 7
  %vm3214 = vcmp.lt.s32.totalorder %v76, 7
  %v3215 = vsel %vm3207, %v3203, 0.0
  %v3216 = vsel %vm3208, %v3201, 0.0
  %v3217 = vsel %vm3209, %v3199, 0.0
  %v3218 = vsel %vm3210, %v3205, 0.0
  %v3219 = vsel %vm3211, %v3204, 0.0
  %v3220 = vsel %vm3212, %v3202, 0.0
  %v3221 = vsel %vm3213, %v3200, 0.0
  %v3222 = vsel %vm3214, %v3206, 0.0
  %3223 = vset.pattern.permute.xlu0 24
  %3224 = vperm.xlu0 %3223, %v1659
  %v3225 = vpop.permute.xlu0 %3224
  %3227 = vset.pattern.permute.xlu0 24
  %3228 = vperm.xlu0 %3227, %v1660
  %v3229 = vpop.permute.xlu0 %3228
  %v3231 = vmul.f32 %v3215, %v3225
  %v3232 = vmul.f32 %v3216, %v3225
  %v3233 = vmul.f32 %v3217, %v3225
  %v3234 = vmul.f32 %v3218, %v3225
  %v3235 = vmul.f32 %v3219, %v3229
  %v3236 = vmul.f32 %v3220, %v3229
  %v3237 = vmul.f32 %v3221, %v3229
  %v3238 = vmul.f32 %v3222, %v3229
  %v3239 = vadd.f32 %v3174, %v3231
  %v3240 = vadd.f32 %v3175, %v3232
  %v3241 = vadd.f32 %v3176, %v3233
  %v3242 = vadd.f32 %v3177, %v3234
  %v3243 = vadd.f32 %v3178, %v3235
  %v3244 = vadd.f32 %v3179, %v3236
  %v3245 = vadd.f32 %v3180, %v3237
  %v3246 = vadd.f32 %v3181, %v3238
  %3247 = vrot.lane.b32.xlu0 %v1651, 118
  %v3248 = vpop.permute.xlu0 %3247
  %3249 = vrot.lane.b32.xlu0 %v1655, 118
  %v3250 = vpop.permute.xlu0 %3249
  %3251 = vrot.lane.b32.xlu0 %v1652, 118
  %v3252 = vpop.permute.xlu0 %3251
  %3253 = vrot.lane.b32.xlu0 %v1656, 118
  %v3254 = vpop.permute.xlu0 %3253
  %3255 = vrot.lane.b32.xlu0 %v1653, 118
  %v3256 = vpop.permute.xlu0 %3255
  %3257 = vrot.lane.b32.xlu0 %v1657, 118
  %v3258 = vpop.permute.xlu0 %3257
  %3259 = vrot.lane.b32.xlu0 %v1654, 118
  %v3260 = vpop.permute.xlu0 %3259
  %3261 = vrot.lane.b32.xlu0 %v1658, 118
  %v3262 = vpop.permute.xlu0 %3261
  %vm3263 = vcmp.lt.s32.totalorder %v197, 118
  %v3264 = vsel %vm3263, %v3256, %v3260
  %v3265 = vsel %vm3263, %v3258, %v3262
  %v3266 = vsel %vm3263, %v3252, %v3256
  %v3267 = vsel %vm3263, %v3254, %v3258
  %v3268 = vsel %vm3263, %v3248, %v3252
  %v3269 = vsel %vm3263, %v3250, %v3254
  %v3270 = vsel %vm3263, %v3260, %v3248
  %v3271 = vsel %vm3263, %v3262, %v3250
  %vm3272 = vcmp.lt.s32.totalorder %v69, 6
  %vm3273 = vcmp.lt.s32.totalorder %v70, 6
  %vm3274 = vcmp.lt.s32.totalorder %v71, 6
  %vm3275 = vcmp.lt.s32.totalorder %v72, 6
  %vm3276 = vcmp.lt.s32.totalorder %v73, 6
  %vm3277 = vcmp.lt.s32.totalorder %v74, 6
  %vm3278 = vcmp.lt.s32.totalorder %v75, 6
  %vm3279 = vcmp.lt.s32.totalorder %v76, 6
  %v3280 = vsel %vm3272, %v3268, 0.0
  %v3281 = vsel %vm3273, %v3266, 0.0
  %v3282 = vsel %vm3274, %v3264, 0.0
  %v3283 = vsel %vm3275, %v3270, 0.0
  %v3284 = vsel %vm3276, %v3269, 0.0
  %v3285 = vsel %vm3277, %v3267, 0.0
  %v3286 = vsel %vm3278, %v3265, 0.0
  %v3287 = vsel %vm3279, %v3271, 0.0
  %3288 = vset.pattern.permute.xlu0 25
  %3289 = vperm.xlu0 %3288, %v1659
  %v3290 = vpop.permute.xlu0 %3289
  %3292 = vset.pattern.permute.xlu0 25
  %3293 = vperm.xlu0 %3292, %v1660
  %v3294 = vpop.permute.xlu0 %3293
  %v3296 = vmul.f32 %v3280, %v3290
  %v3297 = vmul.f32 %v3281, %v3290
  %v3298 = vmul.f32 %v3282, %v3290
  %v3299 = vmul.f32 %v3283, %v3290
  %v3300 = vmul.f32 %v3284, %v3294
  %v3301 = vmul.f32 %v3285, %v3294
  %v3302 = vmul.f32 %v3286, %v3294
  %v3303 = vmul.f32 %v3287, %v3294
  %v3304 = vadd.f32 %v3239, %v3296
  %v3305 = vadd.f32 %v3240, %v3297
  %v3306 = vadd.f32 %v3241, %v3298
  %v3307 = vadd.f32 %v3242, %v3299
  %v3308 = vadd.f32 %v3243, %v3300
  %v3309 = vadd.f32 %v3244, %v3301
  %v3310 = vadd.f32 %v3245, %v3302
  %v3311 = vadd.f32 %v3246, %v3303
  %3312 = vrot.lane.b32.xlu0 %v1651, 117
  %v3313 = vpop.permute.xlu0 %3312
  %3314 = vrot.lane.b32.xlu0 %v1655, 117
  %v3315 = vpop.permute.xlu0 %3314
  %3316 = vrot.lane.b32.xlu0 %v1652, 117
  %v3317 = vpop.permute.xlu0 %3316
  %3318 = vrot.lane.b32.xlu0 %v1656, 117
  %v3319 = vpop.permute.xlu0 %3318
  %3320 = vrot.lane.b32.xlu0 %v1653, 117
  %v3321 = vpop.permute.xlu0 %3320
  %3322 = vrot.lane.b32.xlu0 %v1657, 117
  %v3323 = vpop.permute.xlu0 %3322
  %3324 = vrot.lane.b32.xlu0 %v1654, 117
  %v3325 = vpop.permute.xlu0 %3324
  %3326 = vrot.lane.b32.xlu0 %v1658, 117
  %v3327 = vpop.permute.xlu0 %3326
  %vm3328 = vcmp.lt.s32.totalorder %v197, 117
  %v3329 = vsel %vm3328, %v3321, %v3325
  %v3330 = vsel %vm3328, %v3323, %v3327
  %v3331 = vsel %vm3328, %v3317, %v3321
  %v3332 = vsel %vm3328, %v3319, %v3323
  %v3333 = vsel %vm3328, %v3313, %v3317
  %v3334 = vsel %vm3328, %v3315, %v3319
  %v3335 = vsel %vm3328, %v3325, %v3313
  %v3336 = vsel %vm3328, %v3327, %v3315
  %vm3337 = vcmp.lt.s32.totalorder %v69, 5
  %vm3338 = vcmp.lt.s32.totalorder %v70, 5
  %vm3339 = vcmp.lt.s32.totalorder %v71, 5
  %vm3340 = vcmp.lt.s32.totalorder %v72, 5
  %vm3341 = vcmp.lt.s32.totalorder %v73, 5
  %vm3342 = vcmp.lt.s32.totalorder %v74, 5
  %vm3343 = vcmp.lt.s32.totalorder %v75, 5
  %vm3344 = vcmp.lt.s32.totalorder %v76, 5
  %v3345 = vsel %vm3337, %v3333, 0.0
  %v3346 = vsel %vm3338, %v3331, 0.0
  %v3347 = vsel %vm3339, %v3329, 0.0
  %v3348 = vsel %vm3340, %v3335, 0.0
  %v3349 = vsel %vm3341, %v3334, 0.0
  %v3350 = vsel %vm3342, %v3332, 0.0
  %v3351 = vsel %vm3343, %v3330, 0.0
  %v3352 = vsel %vm3344, %v3336, 0.0
  %3353 = vset.pattern.permute.xlu0 26
  %3354 = vperm.xlu0 %3353, %v1659
  %v3355 = vpop.permute.xlu0 %3354
  %3357 = vset.pattern.permute.xlu0 26
  %3358 = vperm.xlu0 %3357, %v1660
  %v3359 = vpop.permute.xlu0 %3358
  %v3361 = vmul.f32 %v3345, %v3355
  %v3362 = vmul.f32 %v3346, %v3355
  %v3363 = vmul.f32 %v3347, %v3355
  %v3364 = vmul.f32 %v3348, %v3355
  %v3365 = vmul.f32 %v3349, %v3359
  %v3366 = vmul.f32 %v3350, %v3359
  %v3367 = vmul.f32 %v3351, %v3359
  %v3368 = vmul.f32 %v3352, %v3359
  %v3369 = vadd.f32 %v3304, %v3361
  %v3370 = vadd.f32 %v3305, %v3362
  %v3371 = vadd.f32 %v3306, %v3363
  %v3372 = vadd.f32 %v3307, %v3364
  %v3373 = vadd.f32 %v3308, %v3365
  %v3374 = vadd.f32 %v3309, %v3366
  %v3375 = vadd.f32 %v3310, %v3367
  %v3376 = vadd.f32 %v3311, %v3368
  %3377 = vrot.lane.b32.xlu0 %v1651, 116
  %v3378 = vpop.permute.xlu0 %3377
  %3379 = vrot.lane.b32.xlu0 %v1655, 116
  %v3380 = vpop.permute.xlu0 %3379
  %3381 = vrot.lane.b32.xlu0 %v1652, 116
  %v3382 = vpop.permute.xlu0 %3381
  %3383 = vrot.lane.b32.xlu0 %v1656, 116
  %v3384 = vpop.permute.xlu0 %3383
  %3385 = vrot.lane.b32.xlu0 %v1653, 116
  %v3386 = vpop.permute.xlu0 %3385
  %3387 = vrot.lane.b32.xlu0 %v1657, 116
  %v3388 = vpop.permute.xlu0 %3387
  %3389 = vrot.lane.b32.xlu0 %v1654, 116
  %v3390 = vpop.permute.xlu0 %3389
  %3391 = vrot.lane.b32.xlu0 %v1658, 116
  %v3392 = vpop.permute.xlu0 %3391
  %vm3393 = vcmp.lt.s32.totalorder %v197, 116
  %v3394 = vsel %vm3393, %v3386, %v3390
  %v3395 = vsel %vm3393, %v3388, %v3392
  %v3396 = vsel %vm3393, %v3382, %v3386
  %v3397 = vsel %vm3393, %v3384, %v3388
  %v3398 = vsel %vm3393, %v3378, %v3382
  %v3399 = vsel %vm3393, %v3380, %v3384
  %v3400 = vsel %vm3393, %v3390, %v3378
  %v3401 = vsel %vm3393, %v3392, %v3380
  %vm3402 = vcmp.lt.s32.totalorder %v69, 4
  %vm3403 = vcmp.lt.s32.totalorder %v70, 4
  %vm3404 = vcmp.lt.s32.totalorder %v71, 4
  %vm3405 = vcmp.lt.s32.totalorder %v72, 4
  %vm3406 = vcmp.lt.s32.totalorder %v73, 4
  %vm3407 = vcmp.lt.s32.totalorder %v74, 4
  %vm3408 = vcmp.lt.s32.totalorder %v75, 4
  %vm3409 = vcmp.lt.s32.totalorder %v76, 4
  %v3410 = vsel %vm3402, %v3398, 0.0
  %v3411 = vsel %vm3403, %v3396, 0.0
  %v3412 = vsel %vm3404, %v3394, 0.0
  %v3413 = vsel %vm3405, %v3400, 0.0
  %v3414 = vsel %vm3406, %v3399, 0.0
  %v3415 = vsel %vm3407, %v3397, 0.0
  %v3416 = vsel %vm3408, %v3395, 0.0
  %v3417 = vsel %vm3409, %v3401, 0.0
  %3418 = vset.pattern.permute.xlu0 27
  %3419 = vperm.xlu0 %3418, %v1659
  %v3420 = vpop.permute.xlu0 %3419
  %3422 = vset.pattern.permute.xlu0 27
  %3423 = vperm.xlu0 %3422, %v1660
  %v3424 = vpop.permute.xlu0 %3423
  %v3426 = vmul.f32 %v3410, %v3420
  %v3427 = vmul.f32 %v3411, %v3420
  %v3428 = vmul.f32 %v3412, %v3420
  %v3429 = vmul.f32 %v3413, %v3420
  %v3430 = vmul.f32 %v3414, %v3424
  %v3431 = vmul.f32 %v3415, %v3424
  %v3432 = vmul.f32 %v3416, %v3424
  %v3433 = vmul.f32 %v3417, %v3424
  %v3434 = vadd.f32 %v3369, %v3426
  %v3435 = vadd.f32 %v3370, %v3427
  %v3436 = vadd.f32 %v3371, %v3428
  %v3437 = vadd.f32 %v3372, %v3429
  %v3438 = vadd.f32 %v3373, %v3430
  %v3439 = vadd.f32 %v3374, %v3431
  %v3440 = vadd.f32 %v3375, %v3432
  %v3441 = vadd.f32 %v3376, %v3433
  %3442 = vrot.lane.b32.xlu0 %v1651, 115
  %v3443 = vpop.permute.xlu0 %3442
  %3444 = vrot.lane.b32.xlu0 %v1655, 115
  %v3445 = vpop.permute.xlu0 %3444
  %3446 = vrot.lane.b32.xlu0 %v1652, 115
  %v3447 = vpop.permute.xlu0 %3446
  %3448 = vrot.lane.b32.xlu0 %v1656, 115
  %v3449 = vpop.permute.xlu0 %3448
  %3450 = vrot.lane.b32.xlu0 %v1653, 115
  %v3451 = vpop.permute.xlu0 %3450
  %3452 = vrot.lane.b32.xlu0 %v1657, 115
  %v3453 = vpop.permute.xlu0 %3452
  %3454 = vrot.lane.b32.xlu0 %v1654, 115
  %v3455 = vpop.permute.xlu0 %3454
  %3456 = vrot.lane.b32.xlu0 %v1658, 115
  %v3457 = vpop.permute.xlu0 %3456
  %vm3458 = vcmp.lt.s32.totalorder %v197, 115
  %v3459 = vsel %vm3458, %v3451, %v3455
  %v3460 = vsel %vm3458, %v3453, %v3457
  %v3461 = vsel %vm3458, %v3447, %v3451
  %v3462 = vsel %vm3458, %v3449, %v3453
  %v3463 = vsel %vm3458, %v3443, %v3447
  %v3464 = vsel %vm3458, %v3445, %v3449
  %v3465 = vsel %vm3458, %v3455, %v3443
  %v3466 = vsel %vm3458, %v3457, %v3445
  %vm3467 = vcmp.lt.s32.totalorder %v69, 3
  %vm3468 = vcmp.lt.s32.totalorder %v70, 3
  %vm3469 = vcmp.lt.s32.totalorder %v71, 3
  %vm3470 = vcmp.lt.s32.totalorder %v72, 3
  %vm3471 = vcmp.lt.s32.totalorder %v73, 3
  %vm3472 = vcmp.lt.s32.totalorder %v74, 3
  %vm3473 = vcmp.lt.s32.totalorder %v75, 3
  %vm3474 = vcmp.lt.s32.totalorder %v76, 3
  %v3475 = vsel %vm3467, %v3463, 0.0
  %v3476 = vsel %vm3468, %v3461, 0.0
  %v3477 = vsel %vm3469, %v3459, 0.0
  %v3478 = vsel %vm3470, %v3465, 0.0
  %v3479 = vsel %vm3471, %v3464, 0.0
  %v3480 = vsel %vm3472, %v3462, 0.0
  %v3481 = vsel %vm3473, %v3460, 0.0
  %v3482 = vsel %vm3474, %v3466, 0.0
  %3483 = vset.pattern.permute.xlu0 28
  %3484 = vperm.xlu0 %3483, %v1659
  %v3485 = vpop.permute.xlu0 %3484
  %3487 = vset.pattern.permute.xlu0 28
  %3488 = vperm.xlu0 %3487, %v1660
  %v3489 = vpop.permute.xlu0 %3488
  %v3491 = vmul.f32 %v3475, %v3485
  %v3492 = vmul.f32 %v3476, %v3485
  %v3493 = vmul.f32 %v3477, %v3485
  %v3494 = vmul.f32 %v3478, %v3485
  %v3495 = vmul.f32 %v3479, %v3489
  %v3496 = vmul.f32 %v3480, %v3489
  %v3497 = vmul.f32 %v3481, %v3489
  %v3498 = vmul.f32 %v3482, %v3489
  %v3499 = vadd.f32 %v3434, %v3491
  %v3500 = vadd.f32 %v3435, %v3492
  %v3501 = vadd.f32 %v3436, %v3493
  %v3502 = vadd.f32 %v3437, %v3494
  %v3503 = vadd.f32 %v3438, %v3495
  %v3504 = vadd.f32 %v3439, %v3496
  %v3505 = vadd.f32 %v3440, %v3497
  %v3506 = vadd.f32 %v3441, %v3498
  %3507 = vrot.lane.b32.xlu0 %v1651, 114
  %v3508 = vpop.permute.xlu0 %3507
  %3509 = vrot.lane.b32.xlu0 %v1655, 114
  %v3510 = vpop.permute.xlu0 %3509
  %3511 = vrot.lane.b32.xlu0 %v1652, 114
  %v3512 = vpop.permute.xlu0 %3511
  %3513 = vrot.lane.b32.xlu0 %v1656, 114
  %v3514 = vpop.permute.xlu0 %3513
  %3515 = vrot.lane.b32.xlu0 %v1653, 114
  %v3516 = vpop.permute.xlu0 %3515
  %3517 = vrot.lane.b32.xlu0 %v1657, 114
  %v3518 = vpop.permute.xlu0 %3517
  %3519 = vrot.lane.b32.xlu0 %v1654, 114
  %v3520 = vpop.permute.xlu0 %3519
  %3521 = vrot.lane.b32.xlu0 %v1658, 114
  %v3522 = vpop.permute.xlu0 %3521
  %vm3523 = vcmp.lt.s32.totalorder %v197, 114
  %v3524 = vsel %vm3523, %v3516, %v3520
  %v3525 = vsel %vm3523, %v3518, %v3522
  %v3526 = vsel %vm3523, %v3512, %v3516
  %v3527 = vsel %vm3523, %v3514, %v3518
  %v3528 = vsel %vm3523, %v3508, %v3512
  %v3529 = vsel %vm3523, %v3510, %v3514
  %v3530 = vsel %vm3523, %v3520, %v3508
  %v3531 = vsel %vm3523, %v3522, %v3510
  %vm3532 = vcmp.lt.s32.totalorder %v69, 2
  %vm3533 = vcmp.lt.s32.totalorder %v70, 2
  %vm3534 = vcmp.lt.s32.totalorder %v71, 2
  %vm3535 = vcmp.lt.s32.totalorder %v72, 2
  %vm3536 = vcmp.lt.s32.totalorder %v73, 2
  %vm3537 = vcmp.lt.s32.totalorder %v74, 2
  %vm3538 = vcmp.lt.s32.totalorder %v75, 2
  %vm3539 = vcmp.lt.s32.totalorder %v76, 2
  %v3540 = vsel %vm3532, %v3528, 0.0
  %v3541 = vsel %vm3533, %v3526, 0.0
  %v3542 = vsel %vm3534, %v3524, 0.0
  %v3543 = vsel %vm3535, %v3530, 0.0
  %v3544 = vsel %vm3536, %v3529, 0.0
  %v3545 = vsel %vm3537, %v3527, 0.0
  %v3546 = vsel %vm3538, %v3525, 0.0
  %v3547 = vsel %vm3539, %v3531, 0.0
  %3548 = vset.pattern.permute.xlu0 29
  %3549 = vperm.xlu0 %3548, %v1659
  %v3550 = vpop.permute.xlu0 %3549
  %3552 = vset.pattern.permute.xlu0 29
  %3553 = vperm.xlu0 %3552, %v1660
  %v3554 = vpop.permute.xlu0 %3553
  %v3556 = vmul.f32 %v3540, %v3550
  %v3557 = vmul.f32 %v3541, %v3550
  %v3558 = vmul.f32 %v3542, %v3550
  %v3559 = vmul.f32 %v3543, %v3550
  %v3560 = vmul.f32 %v3544, %v3554
  %v3561 = vmul.f32 %v3545, %v3554
  %v3562 = vmul.f32 %v3546, %v3554
  %v3563 = vmul.f32 %v3547, %v3554
  %v3564 = vadd.f32 %v3499, %v3556
  %v3565 = vadd.f32 %v3500, %v3557
  %v3566 = vadd.f32 %v3501, %v3558
  %v3567 = vadd.f32 %v3502, %v3559
  %v3568 = vadd.f32 %v3503, %v3560
  %v3569 = vadd.f32 %v3504, %v3561
  %v3570 = vadd.f32 %v3505, %v3562
  %v3571 = vadd.f32 %v3506, %v3563
  %3572 = vrot.lane.b32.xlu0 %v1651, 113
  %v3573 = vpop.permute.xlu0 %3572
  %3574 = vrot.lane.b32.xlu0 %v1655, 113
  %v3575 = vpop.permute.xlu0 %3574
  %3576 = vrot.lane.b32.xlu0 %v1652, 113
  %v3577 = vpop.permute.xlu0 %3576
  %3578 = vrot.lane.b32.xlu0 %v1656, 113
  %v3579 = vpop.permute.xlu0 %3578
  %3580 = vrot.lane.b32.xlu0 %v1653, 113
  %v3581 = vpop.permute.xlu0 %3580
  %3582 = vrot.lane.b32.xlu0 %v1657, 113
  %v3583 = vpop.permute.xlu0 %3582
  %3584 = vrot.lane.b32.xlu0 %v1654, 113
  %v3585 = vpop.permute.xlu0 %3584
  %3586 = vrot.lane.b32.xlu0 %v1658, 113
  %v3587 = vpop.permute.xlu0 %3586
  %vm3588 = vcmp.lt.s32.totalorder %v197, 113
  %v3589 = vsel %vm3588, %v3581, %v3585
  %v3590 = vsel %vm3588, %v3583, %v3587
  %v3591 = vsel %vm3588, %v3577, %v3581
  %v3592 = vsel %vm3588, %v3579, %v3583
  %v3593 = vsel %vm3588, %v3573, %v3577
  %v3594 = vsel %vm3588, %v3575, %v3579
  %v3595 = vsel %vm3588, %v3585, %v3573
  %v3596 = vsel %vm3588, %v3587, %v3575
  %vm3597 = vcmp.lt.s32.totalorder %v69, 1
  %vm3598 = vcmp.lt.s32.totalorder %v70, 1
  %vm3599 = vcmp.lt.s32.totalorder %v71, 1
  %vm3600 = vcmp.lt.s32.totalorder %v72, 1
  %vm3601 = vcmp.lt.s32.totalorder %v73, 1
  %vm3602 = vcmp.lt.s32.totalorder %v74, 1
  %vm3603 = vcmp.lt.s32.totalorder %v75, 1
  %vm3604 = vcmp.lt.s32.totalorder %v76, 1
  %v3605 = vsel %vm3597, %v3593, 0.0
  %v3606 = vsel %vm3598, %v3591, 0.0
  %v3607 = vsel %vm3599, %v3589, 0.0
  %v3608 = vsel %vm3600, %v3595, 0.0
  %v3609 = vsel %vm3601, %v3594, 0.0
  %v3610 = vsel %vm3602, %v3592, 0.0
  %v3611 = vsel %vm3603, %v3590, 0.0
  %v3612 = vsel %vm3604, %v3596, 0.0
  %3613 = vset.pattern.permute.xlu0 30
  %3614 = vperm.xlu0 %3613, %v1659
  %v3615 = vpop.permute.xlu0 %3614
  %3617 = vset.pattern.permute.xlu0 30
  %3618 = vperm.xlu0 %3617, %v1660
  %v3619 = vpop.permute.xlu0 %3618
  %v3621 = vmul.f32 %v3605, %v3615
  %v3622 = vmul.f32 %v3606, %v3615
  %v3623 = vmul.f32 %v3607, %v3615
  %v3624 = vmul.f32 %v3608, %v3615
  %v3625 = vmul.f32 %v3609, %v3619
  %v3626 = vmul.f32 %v3610, %v3619
  %v3627 = vmul.f32 %v3611, %v3619
  %v3628 = vmul.f32 %v3612, %v3619
  %v3629 = vadd.f32 %v3564, %v3621
  %v3630 = vadd.f32 %v3565, %v3622
  %v3631 = vadd.f32 %v3566, %v3623
  %v3632 = vadd.f32 %v3567, %v3624
  %v3633 = vadd.f32 %v3568, %v3625
  %v3634 = vadd.f32 %v3569, %v3626
  %v3635 = vadd.f32 %v3570, %v3627
  %v3636 = vadd.f32 %v3571, %v3628
  %v3637 = vld [vmem:[%s10] sm:$0xff]
  %v3638 = vld [vmem:[%s10 + $0x8] sm:$0xff]
  %3640 = vset.pattern.permute.xlu0 0
  %3641 = vperm.xlu0 %3640, %v3637
  %v3642 = vpop.permute.xlu0 %3641
  %3645 = vset.pattern.permute.xlu0 0
  %3646 = vperm.xlu0 %3645, %v3638
  %v3647 = vpop.permute.xlu0 %3646
  %v3649 = vmul.f32 %v3629, %v3642
  %v3650 = vmul.f32 %v3630, %v3642
  %v3651 = vmul.f32 %v3631, %v3642
  %v3652 = vmul.f32 %v3632, %v3642
  %v3653 = vmul.f32 %v3633, %v3647
  %v3654 = vmul.f32 %v3634, %v3647
  %v3655 = vmul.f32 %v3635, %v3647
  %v3656 = vmul.f32 %v3636, %v3647
  %v3657 = vld [vmem:[%s11] sm:$0xff]
  %v3658 = vld [vmem:[%s11 + $0x8] sm:$0xff]
  %3660 = vset.pattern.permute.xlu0 0
  %3661 = vperm.xlu0 %3660, %v3657
  %v3662 = vpop.permute.xlu0 %3661
  %3665 = vset.pattern.permute.xlu0 0
  %3666 = vperm.xlu0 %3665, %v3658
  %v3667 = vpop.permute.xlu0 %3666
  %v3669 = vadd.f32 %v3649, %v3662
  %v3670 = vadd.f32 %v3650, %v3662
  %v3671 = vadd.f32 %v3651, %v3662
  %v3672 = vadd.f32 %v3652, %v3662
  %v3673 = vadd.f32 %v3653, %v3667
  %v3674 = vadd.f32 %v3654, %v3667
  %v3675 = vadd.f32 %v3655, %v3667
  %v3676 = vadd.f32 %v3656, %v3667
  %v3677 = vld [vmem:[%s6] sm:$0xff]
  %v3678 = vld [vmem:[%s6 + $0x8] sm:$0xff]
  %3679 = vrot.lane.b32.xlu0 %v3669, 34
  %v3680 = vpop.permute.xlu0 %3679
  %3681 = vrot.lane.b32.xlu0 %v3673, 34
  %v3682 = vpop.permute.xlu0 %3681
  %3683 = vrot.lane.b32.xlu0 %v3670, 34
  %v3684 = vpop.permute.xlu0 %3683
  %3685 = vrot.lane.b32.xlu0 %v3674, 34
  %v3686 = vpop.permute.xlu0 %3685
  %3687 = vrot.lane.b32.xlu0 %v3671, 34
  %v3688 = vpop.permute.xlu0 %3687
  %3689 = vrot.lane.b32.xlu0 %v3675, 34
  %v3690 = vpop.permute.xlu0 %3689
  %3691 = vrot.lane.b32.xlu0 %v3672, 34
  %v3692 = vpop.permute.xlu0 %3691
  %3693 = vrot.lane.b32.xlu0 %v3676, 34
  %v3694 = vpop.permute.xlu0 %3693
  %vm3695 = vcmp.lt.s32.totalorder %v197, 34
  %v3696 = vsel %vm3695, %v3688, %v3692
  %v3697 = vsel %vm3695, %v3690, %v3694
  %v3698 = vsel %vm3695, %v3684, %v3688
  %v3699 = vsel %vm3695, %v3686, %v3690
  %v3700 = vsel %vm3695, %v3680, %v3684
  %v3701 = vsel %vm3695, %v3682, %v3686
  %v3702 = vsel %vm3695, %v3692, %v3680
  %v3703 = vsel %vm3695, %v3694, %v3682
  %vm3704 = vmand %vm879, %vm2533
  %vm3705 = vmand %vm880, %vm2534
  %vm3706 = vmand %vm881, %vm2535
  %vm3707 = vmand %vm882, %vm2536
  %vm3708 = vmand %vm883, %vm2537
  %vm3709 = vmand %vm884, %vm2538
  %vm3710 = vmand %vm885, %vm2539
  %vm3711 = vmand %vm886, %vm2540
  %v3712 = vsel %vm3704, %v3702, 0.0
  %v3713 = vsel %vm3705, %v3700, 0.0
  %v3714 = vsel %vm3706, %v3698, 0.0
  %v3715 = vsel %vm3707, %v3696, 0.0
  %v3716 = vsel %vm3708, %v3703, 0.0
  %v3717 = vsel %vm3709, %v3701, 0.0
  %v3718 = vsel %vm3710, %v3699, 0.0
  %v3719 = vsel %vm3711, %v3697, 0.0
  %3721 = vset.pattern.permute.xlu0 0
  %3722 = vperm.xlu0 %3721, %v3677
  %v3723 = vpop.permute.xlu0 %3722
  %3726 = vset.pattern.permute.xlu0 0
  %3727 = vperm.xlu0 %3726, %v3678
  %v3728 = vpop.permute.xlu0 %3727
  %v3730 = vmul.f32 %v3712, %v3723
  %v3731 = vmul.f32 %v3713, %v3723
  %v3732 = vmul.f32 %v3714, %v3723
  %v3733 = vmul.f32 %v3715, %v3723
  %v3734 = vmul.f32 %v3716, %v3728
  %v3735 = vmul.f32 %v3717, %v3728
  %v3736 = vmul.f32 %v3718, %v3728
  %v3737 = vmul.f32 %v3719, %v3728
  %v3738 = vadd.f32 %v3730, 0.0
  %v3739 = vadd.f32 %v3731, 0.0
  %v3740 = vadd.f32 %v3732, 0.0
  %v3741 = vadd.f32 %v3733, 0.0
  %v3742 = vadd.f32 %v3734, 0.0
  %v3743 = vadd.f32 %v3735, 0.0
  %v3744 = vadd.f32 %v3736, 0.0
  %v3745 = vadd.f32 %v3737, 0.0
  %3746 = vrot.lane.b32.xlu0 %v3669, 32
  %v3747 = vpop.permute.xlu0 %3746
  %3748 = vrot.lane.b32.xlu0 %v3673, 32
  %v3749 = vpop.permute.xlu0 %3748
  %3750 = vrot.lane.b32.xlu0 %v3670, 32
  %v3751 = vpop.permute.xlu0 %3750
  %3752 = vrot.lane.b32.xlu0 %v3674, 32
  %v3753 = vpop.permute.xlu0 %3752
  %3754 = vrot.lane.b32.xlu0 %v3671, 32
  %v3755 = vpop.permute.xlu0 %3754
  %3756 = vrot.lane.b32.xlu0 %v3675, 32
  %v3757 = vpop.permute.xlu0 %3756
  %3758 = vrot.lane.b32.xlu0 %v3672, 32
  %v3759 = vpop.permute.xlu0 %3758
  %3760 = vrot.lane.b32.xlu0 %v3676, 32
  %v3761 = vpop.permute.xlu0 %3760
  %v3762 = vsel %vm525, %v3755, %v3759
  %v3763 = vsel %vm525, %v3757, %v3761
  %v3764 = vsel %vm525, %v3751, %v3755
  %v3765 = vsel %vm525, %v3753, %v3757
  %v3766 = vsel %vm525, %v3747, %v3751
  %v3767 = vsel %vm525, %v3749, %v3753
  %v3768 = vsel %vm525, %v3759, %v3747
  %v3769 = vsel %vm525, %v3761, %v3749
  %v3770 = vsel %vm879, %v3768, 0.0
  %v3771 = vsel %vm880, %v3766, 0.0
  %v3772 = vsel %vm881, %v3764, 0.0
  %v3773 = vsel %vm882, %v3762, 0.0
  %v3774 = vsel %vm883, %v3769, 0.0
  %v3775 = vsel %vm884, %v3767, 0.0
  %v3776 = vsel %vm885, %v3765, 0.0
  %v3777 = vsel %vm886, %v3763, 0.0
  %3778 = vset.pattern.permute.xlu0 1
  %3779 = vperm.xlu0 %3778, %v3677
  %v3780 = vpop.permute.xlu0 %3779
  %3782 = vset.pattern.permute.xlu0 1
  %3783 = vperm.xlu0 %3782, %v3678
  %v3784 = vpop.permute.xlu0 %3783
  %v3786 = vmul.f32 %v3770, %v3780
  %v3787 = vmul.f32 %v3771, %v3780
  %v3788 = vmul.f32 %v3772, %v3780
  %v3789 = vmul.f32 %v3773, %v3780
  %v3790 = vmul.f32 %v3774, %v3784
  %v3791 = vmul.f32 %v3775, %v3784
  %v3792 = vmul.f32 %v3776, %v3784
  %v3793 = vmul.f32 %v3777, %v3784
  %v3794 = vadd.f32 %v3738, %v3786
  %v3795 = vadd.f32 %v3739, %v3787
  %v3796 = vadd.f32 %v3740, %v3788
  %v3797 = vadd.f32 %v3741, %v3789
  %v3798 = vadd.f32 %v3742, %v3790
  %v3799 = vadd.f32 %v3743, %v3791
  %v3800 = vadd.f32 %v3744, %v3792
  %v3801 = vadd.f32 %v3745, %v3793
  %3802 = vrot.lane.b32.xlu0 %v3669, 30
  %v3803 = vpop.permute.xlu0 %3802
  %3804 = vrot.lane.b32.xlu0 %v3673, 30
  %v3805 = vpop.permute.xlu0 %3804
  %3806 = vrot.lane.b32.xlu0 %v3670, 30
  %v3807 = vpop.permute.xlu0 %3806
  %3808 = vrot.lane.b32.xlu0 %v3674, 30
  %v3809 = vpop.permute.xlu0 %3808
  %3810 = vrot.lane.b32.xlu0 %v3671, 30
  %v3811 = vpop.permute.xlu0 %3810
  %3812 = vrot.lane.b32.xlu0 %v3675, 30
  %v3813 = vpop.permute.xlu0 %3812
  %3814 = vrot.lane.b32.xlu0 %v3672, 30
  %v3815 = vpop.permute.xlu0 %3814
  %3816 = vrot.lane.b32.xlu0 %v3676, 30
  %v3817 = vpop.permute.xlu0 %3816
  %vm3818 = vcmp.lt.s32.totalorder %v197, 30
  %v3819 = vsel %vm3818, %v3811, %v3815
  %v3820 = vsel %vm3818, %v3813, %v3817
  %v3821 = vsel %vm3818, %v3807, %v3811
  %v3822 = vsel %vm3818, %v3809, %v3813
  %v3823 = vsel %vm3818, %v3803, %v3807
  %v3824 = vsel %vm3818, %v3805, %v3809
  %v3825 = vsel %vm3818, %v3815, %v3803
  %v3826 = vsel %vm3818, %v3817, %v3805
  %vm3827 = vmand %vm879, %vm2752
  %vm3828 = vmand %vm880, %vm2753
  %vm3829 = vmand %vm881, %vm2754
  %vm3830 = vmand %vm882, %vm2755
  %vm3831 = vmand %vm883, %vm2756
  %vm3832 = vmand %vm884, %vm2757
  %vm3833 = vmand %vm885, %vm2758
  %vm3834 = vmand %vm886, %vm2759
  %v3835 = vsel %vm3827, %v3825, 0.0
  %v3836 = vsel %vm3828, %v3823, 0.0
  %v3837 = vsel %vm3829, %v3821, 0.0
  %v3838 = vsel %vm3830, %v3819, 0.0
  %v3839 = vsel %vm3831, %v3826, 0.0
  %v3840 = vsel %vm3832, %v3824, 0.0
  %v3841 = vsel %vm3833, %v3822, 0.0
  %v3842 = vsel %vm3834, %v3820, 0.0
  %3843 = vset.pattern.permute.xlu0 2
  %3844 = vperm.xlu0 %3843, %v3677
  %v3845 = vpop.permute.xlu0 %3844
  %3847 = vset.pattern.permute.xlu0 2
  %3848 = vperm.xlu0 %3847, %v3678
  %v3849 = vpop.permute.xlu0 %3848
  %v3851 = vmul.f32 %v3835, %v3845
  %v3852 = vmul.f32 %v3836, %v3845
  %v3853 = vmul.f32 %v3837, %v3845
  %v3854 = vmul.f32 %v3838, %v3845
  %v3855 = vmul.f32 %v3839, %v3849
  %v3856 = vmul.f32 %v3840, %v3849
  %v3857 = vmul.f32 %v3841, %v3849
  %v3858 = vmul.f32 %v3842, %v3849
  %v3859 = vadd.f32 %v3794, %v3851
  %v3860 = vadd.f32 %v3795, %v3852
  %v3861 = vadd.f32 %v3796, %v3853
  %v3862 = vadd.f32 %v3797, %v3854
  %v3863 = vadd.f32 %v3798, %v3855
  %v3864 = vadd.f32 %v3799, %v3856
  %v3865 = vadd.f32 %v3800, %v3857
  %v3866 = vadd.f32 %v3801, %v3858
  %3867 = vrot.lane.b32.xlu0 %v3669, 2
  %v3868 = vpop.permute.xlu0 %3867
  %3869 = vrot.lane.b32.xlu0 %v3673, 2
  %v3870 = vpop.permute.xlu0 %3869
  %3871 = vrot.lane.b32.xlu0 %v3670, 2
  %v3872 = vpop.permute.xlu0 %3871
  %3873 = vrot.lane.b32.xlu0 %v3674, 2
  %v3874 = vpop.permute.xlu0 %3873
  %3875 = vrot.lane.b32.xlu0 %v3671, 2
  %v3876 = vpop.permute.xlu0 %3875
  %3877 = vrot.lane.b32.xlu0 %v3675, 2
  %v3878 = vpop.permute.xlu0 %3877
  %3879 = vrot.lane.b32.xlu0 %v3672, 2
  %v3880 = vpop.permute.xlu0 %3879
  %3881 = vrot.lane.b32.xlu0 %v3676, 2
  %v3882 = vpop.permute.xlu0 %3881
  %v3883 = vsel %vm2524, %v3876, %v3880
  %v3884 = vsel %vm2524, %v3878, %v3882
  %v3885 = vsel %vm2524, %v3872, %v3876
  %v3886 = vsel %vm2524, %v3874, %v3878
  %v3887 = vsel %vm2524, %v3868, %v3872
  %v3888 = vsel %vm2524, %v3870, %v3874
  %v3889 = vsel %vm2524, %v3880, %v3868
  %v3890 = vsel %vm2524, %v3882, %v3870
  %v3891 = vsel %vm2533, %v3889, 0.0
  %v3892 = vsel %vm2534, %v3887, 0.0
  %v3893 = vsel %vm2535, %v3885, 0.0
  %v3894 = vsel %vm2536, %v3883, 0.0
  %v3895 = vsel %vm2537, %v3890, 0.0
  %v3896 = vsel %vm2538, %v3888, 0.0
  %v3897 = vsel %vm2539, %v3886, 0.0
  %v3898 = vsel %vm2540, %v3884, 0.0
  %3899 = vset.pattern.permute.xlu0 3
  %3900 = vperm.xlu0 %3899, %v3677
  %v3901 = vpop.permute.xlu0 %3900
  %3903 = vset.pattern.permute.xlu0 3
  %3904 = vperm.xlu0 %3903, %v3678
  %v3905 = vpop.permute.xlu0 %3904
  %v3907 = vmul.f32 %v3891, %v3901
  %v3908 = vmul.f32 %v3892, %v3901
  %v3909 = vmul.f32 %v3893, %v3901
  %v3910 = vmul.f32 %v3894, %v3901
  %v3911 = vmul.f32 %v3895, %v3905
  %v3912 = vmul.f32 %v3896, %v3905
  %v3913 = vmul.f32 %v3897, %v3905
  %v3914 = vmul.f32 %v3898, %v3905
  %v3915 = vadd.f32 %v3859, %v3907
  %v3916 = vadd.f32 %v3860, %v3908
  %v3917 = vadd.f32 %v3861, %v3909
  %v3918 = vadd.f32 %v3862, %v3910
  %v3919 = vadd.f32 %v3863, %v3911
  %v3920 = vadd.f32 %v3864, %v3912
  %v3921 = vadd.f32 %v3865, %v3913
  %v3922 = vadd.f32 %v3866, %v3914
  %3923 = vset.pattern.permute.xlu0 4
  %3924 = vperm.xlu0 %3923, %v3677
  %v3925 = vpop.permute.xlu0 %3924
  %3927 = vset.pattern.permute.xlu0 4
  %3928 = vperm.xlu0 %3927, %v3678
  %v3929 = vpop.permute.xlu0 %3928
  %v3931 = vmul.f32 %v3669, %v3925
  %v3932 = vmul.f32 %v3670, %v3925
  %v3933 = vmul.f32 %v3671, %v3925
  %v3934 = vmul.f32 %v3672, %v3925
  %v3935 = vmul.f32 %v3673, %v3929
  %v3936 = vmul.f32 %v3674, %v3929
  %v3937 = vmul.f32 %v3675, %v3929
  %v3938 = vmul.f32 %v3676, %v3929
  %v3939 = vadd.f32 %v3915, %v3931
  %v3940 = vadd.f32 %v3916, %v3932
  %v3941 = vadd.f32 %v3917, %v3933
  %v3942 = vadd.f32 %v3918, %v3934
  %v3943 = vadd.f32 %v3919, %v3935
  %v3944 = vadd.f32 %v3920, %v3936
  %v3945 = vadd.f32 %v3921, %v3937
  %v3946 = vadd.f32 %v3922, %v3938
  %3947 = vrot.lane.b32.xlu0 %v3669, 126
  %v3948 = vpop.permute.xlu0 %3947
  %3949 = vrot.lane.b32.xlu0 %v3673, 126
  %v3950 = vpop.permute.xlu0 %3949
  %3951 = vrot.lane.b32.xlu0 %v3670, 126
  %v3952 = vpop.permute.xlu0 %3951
  %3953 = vrot.lane.b32.xlu0 %v3674, 126
  %v3954 = vpop.permute.xlu0 %3953
  %3955 = vrot.lane.b32.xlu0 %v3671, 126
  %v3956 = vpop.permute.xlu0 %3955
  %3957 = vrot.lane.b32.xlu0 %v3675, 126
  %v3958 = vpop.permute.xlu0 %3957
  %3959 = vrot.lane.b32.xlu0 %v3672, 126
  %v3960 = vpop.permute.xlu0 %3959
  %3961 = vrot.lane.b32.xlu0 %v3676, 126
  %v3962 = vpop.permute.xlu0 %3961
  %v3963 = vsel %vm2743, %v3956, %v3960
  %v3964 = vsel %vm2743, %v3958, %v3962
  %v3965 = vsel %vm2743, %v3952, %v3956
  %v3966 = vsel %vm2743, %v3954, %v3958
  %v3967 = vsel %vm2743, %v3948, %v3952
  %v3968 = vsel %vm2743, %v3950, %v3954
  %v3969 = vsel %vm2743, %v3960, %v3948
  %v3970 = vsel %vm2743, %v3962, %v3950
  %v3971 = vsel %vm2752, %v3967, 0.0
  %v3972 = vsel %vm2753, %v3965, 0.0
  %v3973 = vsel %vm2754, %v3963, 0.0
  %v3974 = vsel %vm2755, %v3969, 0.0
  %v3975 = vsel %vm2756, %v3968, 0.0
  %v3976 = vsel %vm2757, %v3966, 0.0
  %v3977 = vsel %vm2758, %v3964, 0.0
  %v3978 = vsel %vm2759, %v3970, 0.0
  %3979 = vset.pattern.permute.xlu0 5
  %3980 = vperm.xlu0 %3979, %v3677
  %v3981 = vpop.permute.xlu0 %3980
  %3983 = vset.pattern.permute.xlu0 5
  %3984 = vperm.xlu0 %3983, %v3678
  %v3985 = vpop.permute.xlu0 %3984
  %v3987 = vmul.f32 %v3971, %v3981
  %v3988 = vmul.f32 %v3972, %v3981
  %v3989 = vmul.f32 %v3973, %v3981
  %v3990 = vmul.f32 %v3974, %v3981
  %v3991 = vmul.f32 %v3975, %v3985
  %v3992 = vmul.f32 %v3976, %v3985
  %v3993 = vmul.f32 %v3977, %v3985
  %v3994 = vmul.f32 %v3978, %v3985
  %v3995 = vadd.f32 %v3939, %v3987
  %v3996 = vadd.f32 %v3940, %v3988
  %v3997 = vadd.f32 %v3941, %v3989
  %v3998 = vadd.f32 %v3942, %v3990
  %v3999 = vadd.f32 %v3943, %v3991
  %v4000 = vadd.f32 %v3944, %v3992
  %v4001 = vadd.f32 %v3945, %v3993
  %v4002 = vadd.f32 %v3946, %v3994
  %4003 = vrot.lane.b32.xlu0 %v3669, 98
  %v4004 = vpop.permute.xlu0 %4003
  %4005 = vrot.lane.b32.xlu0 %v3673, 98
  %v4006 = vpop.permute.xlu0 %4005
  %4007 = vrot.lane.b32.xlu0 %v3670, 98
  %v4008 = vpop.permute.xlu0 %4007
  %4009 = vrot.lane.b32.xlu0 %v3674, 98
  %v4010 = vpop.permute.xlu0 %4009
  %4011 = vrot.lane.b32.xlu0 %v3671, 98
  %v4012 = vpop.permute.xlu0 %4011
  %4013 = vrot.lane.b32.xlu0 %v3675, 98
  %v4014 = vpop.permute.xlu0 %4013
  %4015 = vrot.lane.b32.xlu0 %v3672, 98
  %v4016 = vpop.permute.xlu0 %4015
  %4017 = vrot.lane.b32.xlu0 %v3676, 98
  %v4018 = vpop.permute.xlu0 %4017
  %vm4019 = vcmp.lt.s32.totalorder %v197, 98
  %v4020 = vsel %vm4019, %v4012, %v4016
  %v4021 = vsel %vm4019, %v4014, %v4018
  %v4022 = vsel %vm4019, %v4008, %v4012
  %v4023 = vsel %vm4019, %v4010, %v4014
  %v4024 = vsel %vm4019, %v4004, %v4008
  %v4025 = vsel %vm4019, %v4006, %v4010
  %v4026 = vsel %vm4019, %v4016, %v4004
  %v4027 = vsel %vm4019, %v4018, %v4006
  %vm4028 = vmand %vm1023, %vm2533
  %vm4029 = vmand %vm1024, %vm2534
  %vm4030 = vmand %vm1025, %vm2535
  %vm4031 = vmand %vm1026, %vm2536
  %vm4032 = vmand %vm1027, %vm2537
  %vm4033 = vmand %vm1028, %vm2538
  %vm4034 = vmand %vm1029, %vm2539
  %vm4035 = vmand %vm1030, %vm2540
  %v4036 = vsel %vm4028, %v4024, 0.0
  %v4037 = vsel %vm4029, %v4022, 0.0
  %v4038 = vsel %vm4030, %v4020, 0.0
  %v4039 = vsel %vm4031, %v4026, 0.0
  %v4040 = vsel %vm4032, %v4025, 0.0
  %v4041 = vsel %vm4033, %v4023, 0.0
  %v4042 = vsel %vm4034, %v4021, 0.0
  %v4043 = vsel %vm4035, %v4027, 0.0
  %4044 = vset.pattern.permute.xlu0 6
  %4045 = vperm.xlu0 %4044, %v3677
  %v4046 = vpop.permute.xlu0 %4045
  %4048 = vset.pattern.permute.xlu0 6
  %4049 = vperm.xlu0 %4048, %v3678
  %v4050 = vpop.permute.xlu0 %4049
  %v4052 = vmul.f32 %v4036, %v4046
  %v4053 = vmul.f32 %v4037, %v4046
  %v4054 = vmul.f32 %v4038, %v4046
  %v4055 = vmul.f32 %v4039, %v4046
  %v4056 = vmul.f32 %v4040, %v4050
  %v4057 = vmul.f32 %v4041, %v4050
  %v4058 = vmul.f32 %v4042, %v4050
  %v4059 = vmul.f32 %v4043, %v4050
  %v4060 = vadd.f32 %v3995, %v4052
  %v4061 = vadd.f32 %v3996, %v4053
  %v4062 = vadd.f32 %v3997, %v4054
  %v4063 = vadd.f32 %v3998, %v4055
  %v4064 = vadd.f32 %v3999, %v4056
  %v4065 = vadd.f32 %v4000, %v4057
  %v4066 = vadd.f32 %v4001, %v4058
  %v4067 = vadd.f32 %v4002, %v4059
  %4068 = vrot.lane.b32.xlu0 %v3669, 96
  %v4069 = vpop.permute.xlu0 %4068
  %4070 = vrot.lane.b32.xlu0 %v3673, 96
  %v4071 = vpop.permute.xlu0 %4070
  %4072 = vrot.lane.b32.xlu0 %v3670, 96
  %v4073 = vpop.permute.xlu0 %4072
  %4074 = vrot.lane.b32.xlu0 %v3674, 96
  %v4075 = vpop.permute.xlu0 %4074
  %4076 = vrot.lane.b32.xlu0 %v3671, 96
  %v4077 = vpop.permute.xlu0 %4076
  %4078 = vrot.lane.b32.xlu0 %v3675, 96
  %v4079 = vpop.permute.xlu0 %4078
  %4080 = vrot.lane.b32.xlu0 %v3672, 96
  %v4081 = vpop.permute.xlu0 %4080
  %4082 = vrot.lane.b32.xlu0 %v3676, 96
  %v4083 = vpop.permute.xlu0 %4082
  %v4084 = vsel %vm265, %v4077, %v4081
  %v4085 = vsel %vm265, %v4079, %v4083
  %v4086 = vsel %vm265, %v4073, %v4077
  %v4087 = vsel %vm265, %v4075, %v4079
  %v4088 = vsel %vm265, %v4069, %v4073
  %v4089 = vsel %vm265, %v4071, %v4075
  %v4090 = vsel %vm265, %v4081, %v4069
  %v4091 = vsel %vm265, %v4083, %v4071
  %v4092 = vsel %vm1023, %v4088, 0.0
  %v4093 = vsel %vm1024, %v4086, 0.0
  %v4094 = vsel %vm1025, %v4084, 0.0
  %v4095 = vsel %vm1026, %v4090, 0.0
  %v4096 = vsel %vm1027, %v4089, 0.0
  %v4097 = vsel %vm1028, %v4087, 0.0
  %v4098 = vsel %vm1029, %v4085, 0.0
  %v4099 = vsel %vm1030, %v4091, 0.0
  %4100 = vset.pattern.permute.xlu0 7
  %4101 = vperm.xlu0 %4100, %v3677
  %v4102 = vpop.permute.xlu0 %4101
  %4104 = vset.pattern.permute.xlu0 7
  %4105 = vperm.xlu0 %4104, %v3678
  %v4106 = vpop.permute.xlu0 %4105
  %v4108 = vmul.f32 %v4092, %v4102
  %v4109 = vmul.f32 %v4093, %v4102
  %v4110 = vmul.f32 %v4094, %v4102
  %v4111 = vmul.f32 %v4095, %v4102
  %v4112 = vmul.f32 %v4096, %v4106
  %v4113 = vmul.f32 %v4097, %v4106
  %v4114 = vmul.f32 %v4098, %v4106
  %v4115 = vmul.f32 %v4099, %v4106
  %v4116 = vadd.f32 %v4060, %v4108
  %v4117 = vadd.f32 %v4061, %v4109
  %v4118 = vadd.f32 %v4062, %v4110
  %v4119 = vadd.f32 %v4063, %v4111
  %v4120 = vadd.f32 %v4064, %v4112
  %v4121 = vadd.f32 %v4065, %v4113
  %v4122 = vadd.f32 %v4066, %v4114
  %v4123 = vadd.f32 %v4067, %v4115
  %4124 = vrot.lane.b32.xlu0 %v3669, 94
  %v4125 = vpop.permute.xlu0 %4124
  %4126 = vrot.lane.b32.xlu0 %v3673, 94
  %v4127 = vpop.permute.xlu0 %4126
  %4128 = vrot.lane.b32.xlu0 %v3670, 94
  %v4129 = vpop.permute.xlu0 %4128
  %4130 = vrot.lane.b32.xlu0 %v3674, 94
  %v4131 = vpop.permute.xlu0 %4130
  %4132 = vrot.lane.b32.xlu0 %v3671, 94
  %v4133 = vpop.permute.xlu0 %4132
  %4134 = vrot.lane.b32.xlu0 %v3675, 94
  %v4135 = vpop.permute.xlu0 %4134
  %4136 = vrot.lane.b32.xlu0 %v3672, 94
  %v4137 = vpop.permute.xlu0 %4136
  %4138 = vrot.lane.b32.xlu0 %v3676, 94
  %v4139 = vpop.permute.xlu0 %4138
  %vm4140 = vcmp.lt.s32.totalorder %v197, 94
  %v4141 = vsel %vm4140, %v4133, %v4137
  %v4142 = vsel %vm4140, %v4135, %v4139
  %v4143 = vsel %vm4140, %v4129, %v4133
  %v4144 = vsel %vm4140, %v4131, %v4135
  %v4145 = vsel %vm4140, %v4125, %v4129
  %v4146 = vsel %vm4140, %v4127, %v4131
  %v4147 = vsel %vm4140, %v4137, %v4125
  %v4148 = vsel %vm4140, %v4139, %v4127
  %vm4149 = vmand %vm1023, %vm2752
  %vm4150 = vmand %vm1024, %vm2753
  %vm4151 = vmand %vm1025, %vm2754
  %vm4152 = vmand %vm1026, %vm2755
  %vm4153 = vmand %vm1027, %vm2756
  %vm4154 = vmand %vm1028, %vm2757
  %vm4155 = vmand %vm1029, %vm2758
  %vm4156 = vmand %vm1030, %vm2759
  %v4157 = vsel %vm4149, %v4145, 0.0
  %v4158 = vsel %vm4150, %v4143, 0.0
  %v4159 = vsel %vm4151, %v4141, 0.0
  %v4160 = vsel %vm4152, %v4147, 0.0
  %v4161 = vsel %vm4153, %v4146, 0.0
  %v4162 = vsel %vm4154, %v4144, 0.0
  %v4163 = vsel %vm4155, %v4142, 0.0
  %v4164 = vsel %vm4156, %v4148, 0.0
  %4165 = vset.pattern.permute.xlu0 8
  %4166 = vperm.xlu0 %4165, %v3677
  %v4167 = vpop.permute.xlu0 %4166
  %4169 = vset.pattern.permute.xlu0 8
  %4170 = vperm.xlu0 %4169, %v3678
  %v4171 = vpop.permute.xlu0 %4170
  %v4173 = vmul.f32 %v4157, %v4167
  %v4174 = vmul.f32 %v4158, %v4167
  %v4175 = vmul.f32 %v4159, %v4167
  %v4176 = vmul.f32 %v4160, %v4167
  %v4177 = vmul.f32 %v4161, %v4171
  %v4178 = vmul.f32 %v4162, %v4171
  %v4179 = vmul.f32 %v4163, %v4171
  %v4180 = vmul.f32 %v4164, %v4171
  %v4181 = vadd.f32 %v4116, %v4173
  %v4182 = vadd.f32 %v4117, %v4174
  %v4183 = vadd.f32 %v4118, %v4175
  %v4184 = vadd.f32 %v4119, %v4176
  %v4185 = vadd.f32 %v4120, %v4177
  %v4186 = vadd.f32 %v4121, %v4178
  %v4187 = vadd.f32 %v4122, %v4179
  %v4188 = vadd.f32 %v4123, %v4180
  %4189 = vrot.lane.b32.xlu0 %v3669, 68
  %v4190 = vpop.permute.xlu0 %4189
  %4191 = vrot.lane.b32.xlu0 %v3673, 68
  %v4192 = vpop.permute.xlu0 %4191
  %4193 = vrot.lane.b32.xlu0 %v3670, 68
  %v4194 = vpop.permute.xlu0 %4193
  %4195 = vrot.lane.b32.xlu0 %v3674, 68
  %v4196 = vpop.permute.xlu0 %4195
  %4197 = vrot.lane.b32.xlu0 %v3671, 68
  %v4198 = vpop.permute.xlu0 %4197
  %4199 = vrot.lane.b32.xlu0 %v3675, 68
  %v4200 = vpop.permute.xlu0 %4199
  %4201 = vrot.lane.b32.xlu0 %v3672, 68
  %v4202 = vpop.permute.xlu0 %4201
  %4203 = vrot.lane.b32.xlu0 %v3676, 68
  %v4204 = vpop.permute.xlu0 %4203
  %vm4205 = vcmp.lt.s32.totalorder %v197, 68
  %v4206 = vsel %vm4205, %v4198, %v4202
  %v4207 = vsel %vm4205, %v4200, %v4204
  %v4208 = vsel %vm4205, %v4194, %v4198
  %v4209 = vsel %vm4205, %v4196, %v4200
  %v4210 = vsel %vm4205, %v4190, %v4194
  %v4211 = vsel %vm4205, %v4192, %v4196
  %v4212 = vsel %vm4205, %v4202, %v4190
  %v4213 = vsel %vm4205, %v4204, %v4192
  %vm4214 = vmand %vm799, %vm2403
  %vm4215 = vmand %vm800, %vm2404
  %vm4216 = vmand %vm801, %vm2405
  %vm4217 = vmand %vm802, %vm2406
  %vm4218 = vmand %vm803, %vm2407
  %vm4219 = vmand %vm804, %vm2408
  %vm4220 = vmand %vm805, %vm2409
  %vm4221 = vmand %vm806, %vm2410
  %v4222 = vsel %vm4214, %v4212, 0.0
  %v4223 = vsel %vm4215, %v4210, 0.0
  %v4224 = vsel %vm4216, %v4208, 0.0
  %v4225 = vsel %vm4217, %v4206, 0.0
  %v4226 = vsel %vm4218, %v4213, 0.0
  %v4227 = vsel %vm4219, %v4211, 0.0
  %v4228 = vsel %vm4220, %v4209, 0.0
  %v4229 = vsel %vm4221, %v4207, 0.0
  %4230 = vset.pattern.permute.xlu0 9
  %4231 = vperm.xlu0 %4230, %v3677
  %v4232 = vpop.permute.xlu0 %4231
  %4234 = vset.pattern.permute.xlu0 9
  %4235 = vperm.xlu0 %4234, %v3678
  %v4236 = vpop.permute.xlu0 %4235
  %v4238 = vmul.f32 %v4222, %v4232
  %v4239 = vmul.f32 %v4223, %v4232
  %v4240 = vmul.f32 %v4224, %v4232
  %v4241 = vmul.f32 %v4225, %v4232
  %v4242 = vmul.f32 %v4226, %v4236
  %v4243 = vmul.f32 %v4227, %v4236
  %v4244 = vmul.f32 %v4228, %v4236
  %v4245 = vmul.f32 %v4229, %v4236
  %v4246 = vadd.f32 %v4181, %v4238
  %v4247 = vadd.f32 %v4182, %v4239
  %v4248 = vadd.f32 %v4183, %v4240
  %v4249 = vadd.f32 %v4184, %v4241
  %v4250 = vadd.f32 %v4185, %v4242
  %v4251 = vadd.f32 %v4186, %v4243
  %v4252 = vadd.f32 %v4187, %v4244
  %v4253 = vadd.f32 %v4188, %v4245
  %4254 = vrot.lane.b32.xlu0 %v3669, 64
  %v4255 = vpop.permute.xlu0 %4254
  %4256 = vrot.lane.b32.xlu0 %v3673, 64
  %v4257 = vpop.permute.xlu0 %4256
  %4258 = vrot.lane.b32.xlu0 %v3670, 64
  %v4259 = vpop.permute.xlu0 %4258
  %4260 = vrot.lane.b32.xlu0 %v3674, 64
  %v4261 = vpop.permute.xlu0 %4260
  %4262 = vrot.lane.b32.xlu0 %v3671, 64
  %v4263 = vpop.permute.xlu0 %4262
  %4264 = vrot.lane.b32.xlu0 %v3675, 64
  %v4265 = vpop.permute.xlu0 %4264
  %4266 = vrot.lane.b32.xlu0 %v3672, 64
  %v4267 = vpop.permute.xlu0 %4266
  %4268 = vrot.lane.b32.xlu0 %v3676, 64
  %v4269 = vpop.permute.xlu0 %4268
  %v4270 = vsel %vm395, %v4263, %v4267
  %v4271 = vsel %vm395, %v4265, %v4269
  %v4272 = vsel %vm395, %v4259, %v4263
  %v4273 = vsel %vm395, %v4261, %v4265
  %v4274 = vsel %vm395, %v4255, %v4259
  %v4275 = vsel %vm395, %v4257, %v4261
  %v4276 = vsel %vm395, %v4267, %v4255
  %v4277 = vsel %vm395, %v4269, %v4257
  %v4278 = vsel %vm799, %v4276, 0.0
  %v4279 = vsel %vm800, %v4274, 0.0
  %v4280 = vsel %vm801, %v4272, 0.0
  %v4281 = vsel %vm802, %v4270, 0.0
  %v4282 = vsel %vm803, %v4277, 0.0
  %v4283 = vsel %vm804, %v4275, 0.0
  %v4284 = vsel %vm805, %v4273, 0.0
  %v4285 = vsel %vm806, %v4271, 0.0
  %4286 = vset.pattern.permute.xlu0 10
  %4287 = vperm.xlu0 %4286, %v3677
  %v4288 = vpop.permute.xlu0 %4287
  %4290 = vset.pattern.permute.xlu0 10
  %4291 = vperm.xlu0 %4290, %v3678
  %v4292 = vpop.permute.xlu0 %4291
  %v4294 = vmul.f32 %v4278, %v4288
  %v4295 = vmul.f32 %v4279, %v4288
  %v4296 = vmul.f32 %v4280, %v4288
  %v4297 = vmul.f32 %v4281, %v4288
  %v4298 = vmul.f32 %v4282, %v4292
  %v4299 = vmul.f32 %v4283, %v4292
  %v4300 = vmul.f32 %v4284, %v4292
  %v4301 = vmul.f32 %v4285, %v4292
  %v4302 = vadd.f32 %v4246, %v4294
  %v4303 = vadd.f32 %v4247, %v4295
  %v4304 = vadd.f32 %v4248, %v4296
  %v4305 = vadd.f32 %v4249, %v4297
  %v4306 = vadd.f32 %v4250, %v4298
  %v4307 = vadd.f32 %v4251, %v4299
  %v4308 = vadd.f32 %v4252, %v4300
  %v4309 = vadd.f32 %v4253, %v4301
  %4310 = vrot.lane.b32.xlu0 %v3669, 60
  %v4311 = vpop.permute.xlu0 %4310
  %4312 = vrot.lane.b32.xlu0 %v3673, 60
  %v4313 = vpop.permute.xlu0 %4312
  %4314 = vrot.lane.b32.xlu0 %v3670, 60
  %v4315 = vpop.permute.xlu0 %4314
  %4316 = vrot.lane.b32.xlu0 %v3674, 60
  %v4317 = vpop.permute.xlu0 %4316
  %4318 = vrot.lane.b32.xlu0 %v3671, 60
  %v4319 = vpop.permute.xlu0 %4318
  %4320 = vrot.lane.b32.xlu0 %v3675, 60
  %v4321 = vpop.permute.xlu0 %4320
  %4322 = vrot.lane.b32.xlu0 %v3672, 60
  %v4323 = vpop.permute.xlu0 %4322
  %4324 = vrot.lane.b32.xlu0 %v3676, 60
  %v4325 = vpop.permute.xlu0 %4324
  %vm4326 = vcmp.lt.s32.totalorder %v197, 60
  %v4327 = vsel %vm4326, %v4319, %v4323
  %v4328 = vsel %vm4326, %v4321, %v4325
  %v4329 = vsel %vm4326, %v4315, %v4319
  %v4330 = vsel %vm4326, %v4317, %v4321
  %v4331 = vsel %vm4326, %v4311, %v4315
  %v4332 = vsel %vm4326, %v4313, %v4317
  %v4333 = vsel %vm4326, %v4323, %v4311
  %v4334 = vsel %vm4326, %v4325, %v4313
  %vm4335 = vmand %vm799, %vm2882
  %vm4336 = vmand %vm800, %vm2883
  %vm4337 = vmand %vm801, %vm2884
  %vm4338 = vmand %vm802, %vm2885
  %vm4339 = vmand %vm803, %vm2886
  %vm4340 = vmand %vm804, %vm2887
  %vm4341 = vmand %vm805, %vm2888
  %vm4342 = vmand %vm806, %vm2889
  %v4343 = vsel %vm4335, %v4333, 0.0
  %v4344 = vsel %vm4336, %v4331, 0.0
  %v4345 = vsel %vm4337, %v4329, 0.0
  %v4346 = vsel %vm4338, %v4327, 0.0
  %v4347 = vsel %vm4339, %v4334, 0.0
  %v4348 = vsel %vm4340, %v4332, 0.0
  %v4349 = vsel %vm4341, %v4330, 0.0
  %v4350 = vsel %vm4342, %v4328, 0.0
  %4351 = vset.pattern.permute.xlu0 11
  %4352 = vperm.xlu0 %4351, %v3677
  %v4353 = vpop.permute.xlu0 %4352
  %4355 = vset.pattern.permute.xlu0 11
  %4356 = vperm.xlu0 %4355, %v3678
  %v4357 = vpop.permute.xlu0 %4356
  %v4359 = vmul.f32 %v4343, %v4353
  %v4360 = vmul.f32 %v4344, %v4353
  %v4361 = vmul.f32 %v4345, %v4353
  %v4362 = vmul.f32 %v4346, %v4353
  %v4363 = vmul.f32 %v4347, %v4357
  %v4364 = vmul.f32 %v4348, %v4357
  %v4365 = vmul.f32 %v4349, %v4357
  %v4366 = vmul.f32 %v4350, %v4357
  %v4367 = vadd.f32 %v4302, %v4359
  %v4368 = vadd.f32 %v4303, %v4360
  %v4369 = vadd.f32 %v4304, %v4361
  %v4370 = vadd.f32 %v4305, %v4362
  %v4371 = vadd.f32 %v4306, %v4363
  %v4372 = vadd.f32 %v4307, %v4364
  %v4373 = vadd.f32 %v4308, %v4365
  %v4374 = vadd.f32 %v4309, %v4366
  %4375 = vrot.lane.b32.xlu0 %v3669, 4
  %v4376 = vpop.permute.xlu0 %4375
  %4377 = vrot.lane.b32.xlu0 %v3673, 4
  %v4378 = vpop.permute.xlu0 %4377
  %4379 = vrot.lane.b32.xlu0 %v3670, 4
  %v4380 = vpop.permute.xlu0 %4379
  %4381 = vrot.lane.b32.xlu0 %v3674, 4
  %v4382 = vpop.permute.xlu0 %4381
  %4383 = vrot.lane.b32.xlu0 %v3671, 4
  %v4384 = vpop.permute.xlu0 %4383
  %4385 = vrot.lane.b32.xlu0 %v3675, 4
  %v4386 = vpop.permute.xlu0 %4385
  %4387 = vrot.lane.b32.xlu0 %v3672, 4
  %v4388 = vpop.permute.xlu0 %4387
  %4389 = vrot.lane.b32.xlu0 %v3676, 4
  %v4390 = vpop.permute.xlu0 %4389
  %v4391 = vsel %vm2394, %v4384, %v4388
  %v4392 = vsel %vm2394, %v4386, %v4390
  %v4393 = vsel %vm2394, %v4380, %v4384
  %v4394 = vsel %vm2394, %v4382, %v4386
  %v4395 = vsel %vm2394, %v4376, %v4380
  %v4396 = vsel %vm2394, %v4378, %v4382
  %v4397 = vsel %vm2394, %v4388, %v4376
  %v4398 = vsel %vm2394, %v4390, %v4378
  %v4399 = vsel %vm2403, %v4397, 0.0
  %v4400 = vsel %vm2404, %v4395, 0.0
  %v4401 = vsel %vm2405, %v4393, 0.0
  %v4402 = vsel %vm2406, %v4391, 0.0
  %v4403 = vsel %vm2407, %v4398, 0.0
  %v4404 = vsel %vm2408, %v4396, 0.0
  %v4405 = vsel %vm2409, %v4394, 0.0
  %v4406 = vsel %vm2410, %v4392, 0.0
  %4407 = vset.pattern.permute.xlu0 12
  %4408 = vperm.xlu0 %4407, %v3677
  %v4409 = vpop.permute.xlu0 %4408
  %4411 = vset.pattern.permute.xlu0 12
  %4412 = vperm.xlu0 %4411, %v3678
  %v4413 = vpop.permute.xlu0 %4412
  %v4415 = vmul.f32 %v4399, %v4409
  %v4416 = vmul.f32 %v4400, %v4409
  %v4417 = vmul.f32 %v4401, %v4409
  %v4418 = vmul.f32 %v4402, %v4409
  %v4419 = vmul.f32 %v4403, %v4413
  %v4420 = vmul.f32 %v4404, %v4413
  %v4421 = vmul.f32 %v4405, %v4413
  %v4422 = vmul.f32 %v4406, %v4413
  %v4423 = vadd.f32 %v4367, %v4415
  %v4424 = vadd.f32 %v4368, %v4416
  %v4425 = vadd.f32 %v4369, %v4417
  %v4426 = vadd.f32 %v4370, %v4418
  %v4427 = vadd.f32 %v4371, %v4419
  %v4428 = vadd.f32 %v4372, %v4420
  %v4429 = vadd.f32 %v4373, %v4421
  %v4430 = vadd.f32 %v4374, %v4422
  %4431 = vrot.lane.b32.xlu0 %v3669, 124
  %v4432 = vpop.permute.xlu0 %4431
  %4433 = vrot.lane.b32.xlu0 %v3673, 124
  %v4434 = vpop.permute.xlu0 %4433
  %4435 = vrot.lane.b32.xlu0 %v3670, 124
  %v4436 = vpop.permute.xlu0 %4435
  %4437 = vrot.lane.b32.xlu0 %v3674, 124
  %v4438 = vpop.permute.xlu0 %4437
  %4439 = vrot.lane.b32.xlu0 %v3671, 124
  %v4440 = vpop.permute.xlu0 %4439
  %4441 = vrot.lane.b32.xlu0 %v3675, 124
  %v4442 = vpop.permute.xlu0 %4441
  %4443 = vrot.lane.b32.xlu0 %v3672, 124
  %v4444 = vpop.permute.xlu0 %4443
  %4445 = vrot.lane.b32.xlu0 %v3676, 124
  %v4446 = vpop.permute.xlu0 %4445
  %v4447 = vsel %vm2873, %v4440, %v4444
  %v4448 = vsel %vm2873, %v4442, %v4446
  %v4449 = vsel %vm2873, %v4436, %v4440
  %v4450 = vsel %vm2873, %v4438, %v4442
  %v4451 = vsel %vm2873, %v4432, %v4436
  %v4452 = vsel %vm2873, %v4434, %v4438
  %v4453 = vsel %vm2873, %v4444, %v4432
  %v4454 = vsel %vm2873, %v4446, %v4434
  %v4455 = vsel %vm2882, %v4451, 0.0
  %v4456 = vsel %vm2883, %v4449, 0.0
  %v4457 = vsel %vm2884, %v4447, 0.0
  %v4458 = vsel %vm2885, %v4453, 0.0
  %v4459 = vsel %vm2886, %v4452, 0.0
  %v4460 = vsel %vm2887, %v4450, 0.0
  %v4461 = vsel %vm2888, %v4448, 0.0
  %v4462 = vsel %vm2889, %v4454, 0.0
  %4463 = vset.pattern.permute.xlu0 13
  %4464 = vperm.xlu0 %4463, %v3677
  %v4465 = vpop.permute.xlu0 %4464
  %4467 = vset.pattern.permute.xlu0 13
  %4468 = vperm.xlu0 %4467, %v3678
  %v4469 = vpop.permute.xlu0 %4468
  %v4471 = vmul.f32 %v4455, %v4465
  %v4472 = vmul.f32 %v4456, %v4465
  %v4473 = vmul.f32 %v4457, %v4465
  %v4474 = vmul.f32 %v4458, %v4465
  %v4475 = vmul.f32 %v4459, %v4469
  %v4476 = vmul.f32 %v4460, %v4469
  %v4477 = vmul.f32 %v4461, %v4469
  %v4478 = vmul.f32 %v4462, %v4469
  %v4479 = vadd.f32 %v4423, %v4471
  %v4480 = vadd.f32 %v4424, %v4472
  %v4481 = vadd.f32 %v4425, %v4473
  %v4482 = vadd.f32 %v4426, %v4474
  %v4483 = vadd.f32 %v4427, %v4475
  %v4484 = vadd.f32 %v4428, %v4476
  %v4485 = vadd.f32 %v4429, %v4477
  %v4486 = vadd.f32 %v4430, %v4478
  %vm4487 = vmand %vm1103, %vm2403
  %vm4488 = vmand %vm1104, %vm2404
  %vm4489 = vmand %vm1105, %vm2405
  %vm4490 = vmand %vm1106, %vm2406
  %vm4491 = vmand %vm1107, %vm2407
  %vm4492 = vmand %vm1108, %vm2408
  %vm4493 = vmand %vm1109, %vm2409
  %vm4494 = vmand %vm1110, %vm2410
  %v4495 = vsel %vm4487, %v4210, 0.0
  %v4496 = vsel %vm4488, %v4208, 0.0
  %v4497 = vsel %vm4489, %v4206, 0.0
  %v4498 = vsel %vm4490, %v4212, 0.0
  %v4499 = vsel %vm4491, %v4211, 0.0
  %v4500 = vsel %vm4492, %v4209, 0.0
  %v4501 = vsel %vm4493, %v4207, 0.0
  %v4502 = vsel %vm4494, %v4213, 0.0
  %4503 = vset.pattern.permute.xlu0 14
  %4504 = vperm.xlu0 %4503, %v3677
  %v4505 = vpop.permute.xlu0 %4504
  %4507 = vset.pattern.permute.xlu0 14
  %4508 = vperm.xlu0 %4507, %v3678
  %v4509 = vpop.permute.xlu0 %4508
  %v4511 = vmul.f32 %v4495, %v4505
  %v4512 = vmul.f32 %v4496, %v4505
  %v4513 = vmul.f32 %v4497, %v4505
  %v4514 = vmul.f32 %v4498, %v4505
  %v4515 = vmul.f32 %v4499, %v4509
  %v4516 = vmul.f32 %v4500, %v4509
  %v4517 = vmul.f32 %v4501, %v4509
  %v4518 = vmul.f32 %v4502, %v4509
  %v4519 = vadd.f32 %v4479, %v4511
  %v4520 = vadd.f32 %v4480, %v4512
  %v4521 = vadd.f32 %v4481, %v4513
  %v4522 = vadd.f32 %v4482, %v4514
  %v4523 = vadd.f32 %v4483, %v4515
  %v4524 = vadd.f32 %v4484, %v4516
  %v4525 = vadd.f32 %v4485, %v4517
  %v4526 = vadd.f32 %v4486, %v4518
  %v4527 = vsel %vm1103, %v4274, 0.0
  %v4528 = vsel %vm1104, %v4272, 0.0
  %v4529 = vsel %vm1105, %v4270, 0.0
  %v4530 = vsel %vm1106, %v4276, 0.0
  %v4531 = vsel %vm1107, %v4275, 0.0
  %v4532 = vsel %vm1108, %v4273, 0.0
  %v4533 = vsel %vm1109, %v4271, 0.0
  %v4534 = vsel %vm1110, %v4277, 0.0
  %4535 = vset.pattern.permute.xlu0 15
  %4536 = vperm.xlu0 %4535, %v3677
  %v4537 = vpop.permute.xlu0 %4536
  %4539 = vset.pattern.permute.xlu0 15
  %4540 = vperm.xlu0 %4539, %v3678
  %v4541 = vpop.permute.xlu0 %4540
  %v4543 = vmul.f32 %v4527, %v4537
  %v4544 = vmul.f32 %v4528, %v4537
  %v4545 = vmul.f32 %v4529, %v4537
  %v4546 = vmul.f32 %v4530, %v4537
  %v4547 = vmul.f32 %v4531, %v4541
  %v4548 = vmul.f32 %v4532, %v4541
  %v4549 = vmul.f32 %v4533, %v4541
  %v4550 = vmul.f32 %v4534, %v4541
  %v4551 = vadd.f32 %v4519, %v4543
  %v4552 = vadd.f32 %v4520, %v4544
  %v4553 = vadd.f32 %v4521, %v4545
  %v4554 = vadd.f32 %v4522, %v4546
  %v4555 = vadd.f32 %v4523, %v4547
  %v4556 = vadd.f32 %v4524, %v4548
  %v4557 = vadd.f32 %v4525, %v4549
  %v4558 = vadd.f32 %v4526, %v4550
  %vm4559 = vmand %vm1103, %vm2882
  %vm4560 = vmand %vm1104, %vm2883
  %vm4561 = vmand %vm1105, %vm2884
  %vm4562 = vmand %vm1106, %vm2885
  %vm4563 = vmand %vm1107, %vm2886
  %vm4564 = vmand %vm1108, %vm2887
  %vm4565 = vmand %vm1109, %vm2888
  %vm4566 = vmand %vm1110, %vm2889
  %v4567 = vsel %vm4559, %v4331, 0.0
  %v4568 = vsel %vm4560, %v4329, 0.0
  %v4569 = vsel %vm4561, %v4327, 0.0
  %v4570 = vsel %vm4562, %v4333, 0.0
  %v4571 = vsel %vm4563, %v4332, 0.0
  %v4572 = vsel %vm4564, %v4330, 0.0
  %v4573 = vsel %vm4565, %v4328, 0.0
  %v4574 = vsel %vm4566, %v4334, 0.0
  %4575 = vset.pattern.permute.xlu0 16
  %4576 = vperm.xlu0 %4575, %v3677
  %v4577 = vpop.permute.xlu0 %4576
  %4579 = vset.pattern.permute.xlu0 16
  %4580 = vperm.xlu0 %4579, %v3678
  %v4581 = vpop.permute.xlu0 %4580
  %v4583 = vmul.f32 %v4567, %v4577
  %v4584 = vmul.f32 %v4568, %v4577
  %v4585 = vmul.f32 %v4569, %v4577
  %v4586 = vmul.f32 %v4570, %v4577
  %v4587 = vmul.f32 %v4571, %v4581
  %v4588 = vmul.f32 %v4572, %v4581
  %v4589 = vmul.f32 %v4573, %v4581
  %v4590 = vmul.f32 %v4574, %v4581
  %v4591 = vadd.f32 %v4551, %v4583
  %v4592 = vadd.f32 %v4552, %v4584
  %v4593 = vadd.f32 %v4553, %v4585
  %v4594 = vadd.f32 %v4554, %v4586
  %v4595 = vadd.f32 %v4555, %v4587
  %v4596 = vadd.f32 %v4556, %v4588
  %v4597 = vadd.f32 %v4557, %v4589
  %v4598 = vadd.f32 %v4558, %v4590
  %4599 = vrot.lane.b32.xlu0 %v3669, 8
  %v4600 = vpop.permute.xlu0 %4599
  %4601 = vrot.lane.b32.xlu0 %v3673, 8
  %v4602 = vpop.permute.xlu0 %4601
  %4603 = vrot.lane.b32.xlu0 %v3670, 8
  %v4604 = vpop.permute.xlu0 %4603
  %4605 = vrot.lane.b32.xlu0 %v3674, 8
  %v4606 = vpop.permute.xlu0 %4605
  %4607 = vrot.lane.b32.xlu0 %v3671, 8
  %v4608 = vpop.permute.xlu0 %4607
  %4609 = vrot.lane.b32.xlu0 %v3675, 8
  %v4610 = vpop.permute.xlu0 %4609
  %4611 = vrot.lane.b32.xlu0 %v3672, 8
  %v4612 = vpop.permute.xlu0 %4611
  %4613 = vrot.lane.b32.xlu0 %v3676, 8
  %v4614 = vpop.permute.xlu0 %4613
  %v4615 = vsel %vm2134, %v4608, %v4612
  %v4616 = vsel %vm2134, %v4610, %v4614
  %v4617 = vsel %vm2134, %v4604, %v4608
  %v4618 = vsel %vm2134, %v4606, %v4610
  %v4619 = vsel %vm2134, %v4600, %v4604
  %v4620 = vsel %vm2134, %v4602, %v4606
  %v4621 = vsel %vm2134, %v4612, %v4600
  %v4622 = vsel %vm2134, %v4614, %v4602
  %vm4623 = vmand %vm639, %vm2143
  %vm4624 = vmand %vm640, %vm2144
  %vm4625 = vmand %vm641, %vm2145
  %vm4626 = vmand %vm642, %vm2146
  %vm4627 = vmand %vm643, %vm2147
  %vm4628 = vmand %vm644, %vm2148
  %vm4629 = vmand %vm645, %vm2149
  %vm4630 = vmand %vm646, %vm2150
  %v4631 = vsel %vm4623, %v4615, 0.0
  %v4632 = vsel %vm4624, %v4621, 0.0
  %v4633 = vsel %vm4625, %v4619, 0.0
  %v4634 = vsel %vm4626, %v4617, 0.0
  %v4635 = vsel %vm4627, %v4616, 0.0
  %v4636 = vsel %vm4628, %v4622, 0.0
  %v4637 = vsel %vm4629, %v4620, 0.0
  %v4638 = vsel %vm4630, %v4618, 0.0
  %4639 = vset.pattern.permute.xlu0 17
  %4640 = vperm.xlu0 %4639, %v3677
  %v4641 = vpop.permute.xlu0 %4640
  %4643 = vset.pattern.permute.xlu0 17
  %4644 = vperm.xlu0 %4643, %v3678
  %v4645 = vpop.permute.xlu0 %4644
  %v4647 = vmul.f32 %v4631, %v4641
  %v4648 = vmul.f32 %v4632, %v4641
  %v4649 = vmul.f32 %v4633, %v4641
  %v4650 = vmul.f32 %v4634, %v4641
  %v4651 = vmul.f32 %v4635, %v4645
  %v4652 = vmul.f32 %v4636, %v4645
  %v4653 = vmul.f32 %v4637, %v4645
  %v4654 = vmul.f32 %v4638, %v4645
  %v4655 = vadd.f32 %v4591, %v4647
  %v4656 = vadd.f32 %v4592, %v4648
  %v4657 = vadd.f32 %v4593, %v4649
  %v4658 = vadd.f32 %v4594, %v4650
  %v4659 = vadd.f32 %v4595, %v4651
  %v4660 = vadd.f32 %v4596, %v4652
  %v4661 = vadd.f32 %v4597, %v4653
  %v4662 = vadd.f32 %v4598, %v4654
  %v4663 = vsel %vm639, %v3672, 0.0
  %v4664 = vsel %vm640, %v3669, 0.0
  %v4665 = vsel %vm641, %v3670, 0.0
  %v4666 = vsel %vm642, %v3671, 0.0
  %v4667 = vsel %vm643, %v3676, 0.0
  %v4668 = vsel %vm644, %v3673, 0.0
  %v4669 = vsel %vm645, %v3674, 0.0
  %v4670 = vsel %vm646, %v3675, 0.0
  %4671 = vset.pattern.permute.xlu0 18
  %4672 = vperm.xlu0 %4671, %v3677
  %v4673 = vpop.permute.xlu0 %4672
  %4675 = vset.pattern.permute.xlu0 18
  %4676 = vperm.xlu0 %4675, %v3678
  %v4677 = vpop.permute.xlu0 %4676
  %v4679 = vmul.f32 %v4663, %v4673
  %v4680 = vmul.f32 %v4664, %v4673
  %v4681 = vmul.f32 %v4665, %v4673
  %v4682 = vmul.f32 %v4666, %v4673
  %v4683 = vmul.f32 %v4667, %v4677
  %v4684 = vmul.f32 %v4668, %v4677
  %v4685 = vmul.f32 %v4669, %v4677
  %v4686 = vmul.f32 %v4670, %v4677
  %v4687 = vadd.f32 %v4655, %v4679
  %v4688 = vadd.f32 %v4656, %v4680
  %v4689 = vadd.f32 %v4657, %v4681
  %v4690 = vadd.f32 %v4658, %v4682
  %v4691 = vadd.f32 %v4659, %v4683
  %v4692 = vadd.f32 %v4660, %v4684
  %v4693 = vadd.f32 %v4661, %v4685
  %v4694 = vadd.f32 %v4662, %v4686
  %4695 = vrot.lane.b32.xlu0 %v3669, 120
  %v4696 = vpop.permute.xlu0 %4695
  %4697 = vrot.lane.b32.xlu0 %v3673, 120
  %v4698 = vpop.permute.xlu0 %4697
  %4699 = vrot.lane.b32.xlu0 %v3670, 120
  %v4700 = vpop.permute.xlu0 %4699
  %4701 = vrot.lane.b32.xlu0 %v3674, 120
  %v4702 = vpop.permute.xlu0 %4701
  %4703 = vrot.lane.b32.xlu0 %v3671, 120
  %v4704 = vpop.permute.xlu0 %4703
  %4705 = vrot.lane.b32.xlu0 %v3675, 120
  %v4706 = vpop.permute.xlu0 %4705
  %4707 = vrot.lane.b32.xlu0 %v3672, 120
  %v4708 = vpop.permute.xlu0 %4707
  %4709 = vrot.lane.b32.xlu0 %v3676, 120
  %v4710 = vpop.permute.xlu0 %4709
  %v4711 = vsel %vm3133, %v4704, %v4708
  %v4712 = vsel %vm3133, %v4706, %v4710
  %v4713 = vsel %vm3133, %v4700, %v4704
  %v4714 = vsel %vm3133, %v4702, %v4706
  %v4715 = vsel %vm3133, %v4696, %v4700
  %v4716 = vsel %vm3133, %v4698, %v4702
  %v4717 = vsel %vm3133, %v4708, %v4696
  %v4718 = vsel %vm3133, %v4710, %v4698
  %vm4719 = vmand %vm639, %vm3142
  %vm4720 = vmand %vm640, %vm3143
  %vm4721 = vmand %vm641, %vm3144
  %vm4722 = vmand %vm642, %vm3145
  %vm4723 = vmand %vm643, %vm3146
  %vm4724 = vmand %vm644, %vm3147
  %vm4725 = vmand %vm645, %vm3148
  %vm4726 = vmand %vm646, %vm3149
  %v4727 = vsel %vm4719, %v4717, 0.0
  %v4728 = vsel %vm4720, %v4715, 0.0
  %v4729 = vsel %vm4721, %v4713, 0.0
  %v4730 = vsel %vm4722, %v4711, 0.0
  %v4731 = vsel %vm4723, %v4718, 0.0
  %v4732 = vsel %vm4724, %v4716, 0.0
  %v4733 = vsel %vm4725, %v4714, 0.0
  %v4734 = vsel %vm4726, %v4712, 0.0
  %4735 = vset.pattern.permute.xlu0 19
  %4736 = vperm.xlu0 %4735, %v3677
  %v4737 = vpop.permute.xlu0 %4736
  %4739 = vset.pattern.permute.xlu0 19
  %4740 = vperm.xlu0 %4739, %v3678
  %v4741 = vpop.permute.xlu0 %4740
  %v4743 = vmul.f32 %v4727, %v4737
  %v4744 = vmul.f32 %v4728, %v4737
  %v4745 = vmul.f32 %v4729, %v4737
  %v4746 = vmul.f32 %v4730, %v4737
  %v4747 = vmul.f32 %v4731, %v4741
  %v4748 = vmul.f32 %v4732, %v4741
  %v4749 = vmul.f32 %v4733, %v4741
  %v4750 = vmul.f32 %v4734, %v4741
  %v4751 = vadd.f32 %v4687, %v4743
  %v4752 = vadd.f32 %v4688, %v4744
  %v4753 = vadd.f32 %v4689, %v4745
  %v4754 = vadd.f32 %v4690, %v4746
  %v4755 = vadd.f32 %v4691, %v4747
  %v4756 = vadd.f32 %v4692, %v4748
  %v4757 = vadd.f32 %v4693, %v4749
  %v4758 = vadd.f32 %v4694, %v4750
  %v4759 = vsel %vm2143, %v4621, 0.0
  %v4760 = vsel %vm2144, %v4619, 0.0
  %v4761 = vsel %vm2145, %v4617, 0.0
  %v4762 = vsel %vm2146, %v4615, 0.0
  %v4763 = vsel %vm2147, %v4622, 0.0
  %v4764 = vsel %vm2148, %v4620, 0.0
  %v4765 = vsel %vm2149, %v4618, 0.0
  %v4766 = vsel %vm2150, %v4616, 0.0
  %4767 = vset.pattern.permute.xlu0 20
  %4768 = vperm.xlu0 %4767, %v3677
  %v4769 = vpop.permute.xlu0 %4768
  %4771 = vset.pattern.permute.xlu0 20
  %4772 = vperm.xlu0 %4771, %v3678
  %v4773 = vpop.permute.xlu0 %4772
  %v4775 = vmul.f32 %v4759, %v4769
  %v4776 = vmul.f32 %v4760, %v4769
  %v4777 = vmul.f32 %v4761, %v4769
  %v4778 = vmul.f32 %v4762, %v4769
  %v4779 = vmul.f32 %v4763, %v4773
  %v4780 = vmul.f32 %v4764, %v4773
  %v4781 = vmul.f32 %v4765, %v4773
  %v4782 = vmul.f32 %v4766, %v4773
  %v4783 = vadd.f32 %v4751, %v4775
  %v4784 = vadd.f32 %v4752, %v4776
  %v4785 = vadd.f32 %v4753, %v4777
  %v4786 = vadd.f32 %v4754, %v4778
  %v4787 = vadd.f32 %v4755, %v4779
  %v4788 = vadd.f32 %v4756, %v4780
  %v4789 = vadd.f32 %v4757, %v4781
  %v4790 = vadd.f32 %v4758, %v4782
  %v4791 = vsel %vm3142, %v4715, 0.0
  %v4792 = vsel %vm3143, %v4713, 0.0
  %v4793 = vsel %vm3144, %v4711, 0.0
  %v4794 = vsel %vm3145, %v4717, 0.0
  %v4795 = vsel %vm3146, %v4716, 0.0
  %v4796 = vsel %vm3147, %v4714, 0.0
  %v4797 = vsel %vm3148, %v4712, 0.0
  %v4798 = vsel %vm3149, %v4718, 0.0
  %4799 = vset.pattern.permute.xlu0 21
  %4800 = vperm.xlu0 %4799, %v3677
  %v4801 = vpop.permute.xlu0 %4800
  %4803 = vset.pattern.permute.xlu0 21
  %4804 = vperm.xlu0 %4803, %v3678
  %v4805 = vpop.permute.xlu0 %4804
  %v4807 = vmul.f32 %v4791, %v4801
  %v4808 = vmul.f32 %v4792, %v4801
  %v4809 = vmul.f32 %v4793, %v4801
  %v4810 = vmul.f32 %v4794, %v4801
  %v4811 = vmul.f32 %v4795, %v4805
  %v4812 = vmul.f32 %v4796, %v4805
  %v4813 = vmul.f32 %v4797, %v4805
  %v4814 = vmul.f32 %v4798, %v4805
  %v4815 = vadd.f32 %v4783, %v4807
  %v4816 = vadd.f32 %v4784, %v4808
  %v4817 = vadd.f32 %v4785, %v4809
  %v4818 = vadd.f32 %v4786, %v4810
  %v4819 = vadd.f32 %v4787, %v4811
  %v4820 = vadd.f32 %v4788, %v4812
  %v4821 = vadd.f32 %v4789, %v4813
  %v4822 = vadd.f32 %v4790, %v4814
  %vm4823 = vmand %vm1263, %vm2143
  %vm4824 = vmand %vm1264, %vm2144
  %vm4825 = vmand %vm1265, %vm2145
  %vm4826 = vmand %vm1266, %vm2146
  %vm4827 = vmand %vm1267, %vm2147
  %vm4828 = vmand %vm1268, %vm2148
  %vm4829 = vmand %vm1269, %vm2149
  %vm4830 = vmand %vm1270, %vm2150
  %v4831 = vsel %vm4823, %v4619, 0.0
  %v4832 = vsel %vm4824, %v4617, 0.0
  %v4833 = vsel %vm4825, %v4615, 0.0
  %v4834 = vsel %vm4826, %v4621, 0.0
  %v4835 = vsel %vm4827, %v4620, 0.0
  %v4836 = vsel %vm4828, %v4618, 0.0
  %v4837 = vsel %vm4829, %v4616, 0.0
  %v4838 = vsel %vm4830, %v4622, 0.0
  %4839 = vset.pattern.permute.xlu0 22
  %4840 = vperm.xlu0 %4839, %v3677
  %v4841 = vpop.permute.xlu0 %4840
  %4843 = vset.pattern.permute.xlu0 22
  %4844 = vperm.xlu0 %4843, %v3678
  %v4845 = vpop.permute.xlu0 %4844
  %v4847 = vmul.f32 %v4831, %v4841
  %v4848 = vmul.f32 %v4832, %v4841
  %v4849 = vmul.f32 %v4833, %v4841
  %v4850 = vmul.f32 %v4834, %v4841
  %v4851 = vmul.f32 %v4835, %v4845
  %v4852 = vmul.f32 %v4836, %v4845
  %v4853 = vmul.f32 %v4837, %v4845
  %v4854 = vmul.f32 %v4838, %v4845
  %v4855 = vadd.f32 %v4815, %v4847
  %v4856 = vadd.f32 %v4816, %v4848
  %v4857 = vadd.f32 %v4817, %v4849
  %v4858 = vadd.f32 %v4818, %v4850
  %v4859 = vadd.f32 %v4819, %v4851
  %v4860 = vadd.f32 %v4820, %v4852
  %v4861 = vadd.f32 %v4821, %v4853
  %v4862 = vadd.f32 %v4822, %v4854
  %v4863 = vsel %vm1263, %v3670, 0.0
  %v4864 = vsel %vm1264, %v3671, 0.0
  %v4865 = vsel %vm1265, %v3672, 0.0
  %v4866 = vsel %vm1266, %v3669, 0.0
  %v4867 = vsel %vm1267, %v3674, 0.0
  %v4868 = vsel %vm1268, %v3675, 0.0
  %v4869 = vsel %vm1269, %v3676, 0.0
  %v4870 = vsel %vm1270, %v3673, 0.0
  %4871 = vset.pattern.permute.xlu0 23
  %4872 = vperm.xlu0 %4871, %v3677
  %v4873 = vpop.permute.xlu0 %4872
  %4875 = vset.pattern.permute.xlu0 23
  %4876 = vperm.xlu0 %4875, %v3678
  %v4877 = vpop.permute.xlu0 %4876
  %v4879 = vmul.f32 %v4863, %v4873
  %v4880 = vmul.f32 %v4864, %v4873
  %v4881 = vmul.f32 %v4865, %v4873
  %v4882 = vmul.f32 %v4866, %v4873
  %v4883 = vmul.f32 %v4867, %v4877
  %v4884 = vmul.f32 %v4868, %v4877
  %v4885 = vmul.f32 %v4869, %v4877
  %v4886 = vmul.f32 %v4870, %v4877
  %v4887 = vadd.f32 %v4855, %v4879
  %v4888 = vadd.f32 %v4856, %v4880
  %v4889 = vadd.f32 %v4857, %v4881
  %v4890 = vadd.f32 %v4858, %v4882
  %v4891 = vadd.f32 %v4859, %v4883
  %v4892 = vadd.f32 %v4860, %v4884
  %v4893 = vadd.f32 %v4861, %v4885
  %v4894 = vadd.f32 %v4862, %v4886
  %vm4895 = vmand %vm1263, %vm3142
  %vm4896 = vmand %vm1264, %vm3143
  %vm4897 = vmand %vm1265, %vm3144
  %vm4898 = vmand %vm1266, %vm3145
  %vm4899 = vmand %vm1267, %vm3146
  %vm4900 = vmand %vm1268, %vm3147
  %vm4901 = vmand %vm1269, %vm3148
  %vm4902 = vmand %vm1270, %vm3149
  %v4903 = vsel %vm4895, %v4713, 0.0
  %v4904 = vsel %vm4896, %v4711, 0.0
  %v4905 = vsel %vm4897, %v4717, 0.0
  %v4906 = vsel %vm4898, %v4715, 0.0
  %v4907 = vsel %vm4899, %v4714, 0.0
  %v4908 = vsel %vm4900, %v4712, 0.0
  %v4909 = vsel %vm4901, %v4718, 0.0
  %v4910 = vsel %vm4902, %v4716, 0.0
  %4911 = vset.pattern.permute.xlu0 24
  %4912 = vperm.xlu0 %4911, %v3677
  %v4913 = vpop.permute.xlu0 %4912
  %4915 = vset.pattern.permute.xlu0 24
  %4916 = vperm.xlu0 %4915, %v3678
  %v4917 = vpop.permute.xlu0 %4916
  %v4919 = vmul.f32 %v4903, %v4913
  %v4920 = vmul.f32 %v4904, %v4913
  %v4921 = vmul.f32 %v4905, %v4913
  %v4922 = vmul.f32 %v4906, %v4913
  %v4923 = vmul.f32 %v4907, %v4917
  %v4924 = vmul.f32 %v4908, %v4917
  %v4925 = vmul.f32 %v4909, %v4917
  %v4926 = vmul.f32 %v4910, %v4917
  %v4927 = vadd.f32 %v4887, %v4919
  %v4928 = vadd.f32 %v4888, %v4920
  %v4929 = vadd.f32 %v4889, %v4921
  %v4930 = vadd.f32 %v4890, %v4922
  %v4931 = vadd.f32 %v4891, %v4923
  %v4932 = vadd.f32 %v4892, %v4924
  %v4933 = vadd.f32 %v4893, %v4925
  %v4934 = vadd.f32 %v4894, %v4926
  %v4935 = vld [vmem:[%s12] sm:$0xff]
  %v4936 = vld [vmem:[%s12 + $0x8] sm:$0xff]
  %v4938 = vsel %vm79, %v4935, 0
  %v4941 = vsel %vm79, %v4936, 0
  %4943 = vmatpush.msra.mxu0 0.0
  %4944 = vmatpush.msra.mxu0 0.0
  %4945 = vmatpush.msra.mxu0 0.0
  %4946 = vmatpush.msra.mxu0 0.0
  %4947 = vmatpush.msra.mxu0 0.0
  %4948 = vmatpush.msra.mxu0 0.0
  %4949 = vmatpush.msra.mxu0 0.0
  %4950 = vmatpush.msra.mxu0 0.0
  %4951 = vmatpush.msra.mxu0 0.0
  %4952 = vmatpush.msra.mxu0 0.0
  %4953 = vmatpush.msra.mxu0 0.0
  %4954 = vmatpush.msra.mxu0 0.0
  %4955 = vmatpush.msra.mxu0 0.0
  %4956 = vmatpush.msra.mxu0 0.0
  %4957 = vmatpush.msra.mxu0 %v4931
  %4958 = vmatpush.msra.mxu0 %v4927
  %4959 = vmatmul.f32.gmra.mxu0 %v4938
  %v4960 = vpop.f32.mrf.mxu0
  %v4961 = vadd.f32 %v53, %v4960
  %4962 = vmatmul.f32.gmra.mxu0 %v4941
  %v4963 = vpop.f32.mrf.mxu0
  %v4964 = vadd.f32 %v57, %v4963
  %4965 = vdwg.mxu0
  %4966 = vmatpush.msra.mxu0 0.0
  %4967 = vmatpush.msra.mxu0 0.0
  %4968 = vmatpush.msra.mxu0 0.0
  %4969 = vmatpush.msra.mxu0 0.0
  %4970 = vmatpush.msra.mxu0 0.0
  %4971 = vmatpush.msra.mxu0 0.0
  %4972 = vmatpush.msra.mxu0 0.0
  %4973 = vmatpush.msra.mxu0 0.0
  %4974 = vmatpush.msra.mxu0 0.0
  %4975 = vmatpush.msra.mxu0 0.0
  %4976 = vmatpush.msra.mxu0 0.0
  %4977 = vmatpush.msra.mxu0 0.0
  %4978 = vmatpush.msra.mxu0 0.0
  %4979 = vmatpush.msra.mxu0 0.0
  %4980 = vmatpush.msra.mxu0 %v4932
  %4981 = vmatpush.msra.mxu0 %v4928
  %4982 = vmatmul.f32.gmra.mxu0 %v4938
  %v4983 = vpop.f32.mrf.mxu0
  %v4984 = vadd.f32 %v54, %v4983
  %4985 = vmatmul.f32.gmra.mxu0 %v4941
  %v4986 = vpop.f32.mrf.mxu0
  %v4987 = vadd.f32 %v58, %v4986
  %4988 = vdwg.mxu0
  %4989 = vmatpush.msra.mxu0 0.0
  %4990 = vmatpush.msra.mxu0 0.0
  %4991 = vmatpush.msra.mxu0 0.0
  %4992 = vmatpush.msra.mxu0 0.0
  %4993 = vmatpush.msra.mxu0 0.0
  %4994 = vmatpush.msra.mxu0 0.0
  %4995 = vmatpush.msra.mxu0 0.0
  %4996 = vmatpush.msra.mxu0 0.0
  %4997 = vmatpush.msra.mxu0 0.0
  %4998 = vmatpush.msra.mxu0 0.0
  %4999 = vmatpush.msra.mxu0 0.0
  %5000 = vmatpush.msra.mxu0 0.0
  %5001 = vmatpush.msra.mxu0 0.0
  %5002 = vmatpush.msra.mxu0 0.0
  %5003 = vmatpush.msra.mxu0 %v4933
  %5004 = vmatpush.msra.mxu0 %v4929
  %5005 = vmatmul.f32.gmra.mxu0 %v4938
  %v5006 = vpop.f32.mrf.mxu0
  %v5007 = vadd.f32 %v55, %v5006
  %5008 = vmatmul.f32.gmra.mxu0 %v4941
  %v5009 = vpop.f32.mrf.mxu0
  %v5010 = vadd.f32 %v59, %v5009
  %5011 = vdwg.mxu0
  %5012 = vmatpush.msra.mxu0 0.0
  %5013 = vmatpush.msra.mxu0 0.0
  %5014 = vmatpush.msra.mxu0 0.0
  %5015 = vmatpush.msra.mxu0 0.0
  %5016 = vmatpush.msra.mxu0 0.0
  %5017 = vmatpush.msra.mxu0 0.0
  %5018 = vmatpush.msra.mxu0 0.0
  %5019 = vmatpush.msra.mxu0 0.0
  %5020 = vmatpush.msra.mxu0 0.0
  %5021 = vmatpush.msra.mxu0 0.0
  %5022 = vmatpush.msra.mxu0 0.0
  %5023 = vmatpush.msra.mxu0 0.0
  %5024 = vmatpush.msra.mxu0 0.0
  %5025 = vmatpush.msra.mxu0 0.0
  %5026 = vmatpush.msra.mxu0 %v4934
  %5027 = vmatpush.msra.mxu0 %v4930
  %5028 = vmatmul.f32.gmra.mxu0 %v4938
  %v5029 = vpop.f32.mrf.mxu0
  %v5030 = vadd.f32 %v56, %v5029
  %5031 = vmatmul.f32.gmra.mxu0 %v4941
  %v5032 = vpop.f32.mrf.mxu0
  %v5033 = vadd.f32 %v60, %v5032
  %5034 = vdwg.mxu0
  %v5035 = vld [vmem:[%s13] sm:$0xff]
  %v5036 = vld [vmem:[%s13 + $0x8] sm:$0xff]
  %5038 = vset.pattern.permute.xlu0 0
  %5039 = vperm.xlu0 %5038, %v5035
  %v5040 = vpop.permute.xlu0 %5039
  %5043 = vset.pattern.permute.xlu0 0
  %5044 = vperm.xlu0 %5043, %v5036
  %v5045 = vpop.permute.xlu0 %5044
  %v5047 = vmul.f32 %v4961, %v5040
  %v5048 = vmul.f32 %v4984, %v5040
  %v5049 = vmul.f32 %v5007, %v5040
  %v5050 = vmul.f32 %v5030, %v5040
  %v5051 = vmul.f32 %v4964, %v5045
  %v5052 = vmul.f32 %v4987, %v5045
  %v5053 = vmul.f32 %v5010, %v5045
  %v5054 = vmul.f32 %v5033, %v5045
  %v5055 = vld [vmem:[%s14] sm:$0xff]
  %v5056 = vld [vmem:[%s14 + $0x8] sm:$0xff]
  %5058 = vset.pattern.permute.xlu0 0
  %5059 = vperm.xlu0 %5058, %v5055
  %v5060 = vpop.permute.xlu0 %5059
  %5063 = vset.pattern.permute.xlu0 0
  %5064 = vperm.xlu0 %5063, %v5056
  %v5065 = vpop.permute.xlu0 %5064
  %v5067 = vadd.f32 %v5047, %v5060
  %v5068 = vadd.f32 %v5048, %v5060
  %v5069 = vadd.f32 %v5049, %v5060
  %v5070 = vadd.f32 %v5050, %v5060
  %v5071 = vadd.f32 %v5051, %v5065
  %v5072 = vadd.f32 %v5052, %v5065
  %v5073 = vadd.f32 %v5053, %v5065
  %v5074 = vadd.f32 %v5054, %v5065
  %vm5075 = vcmp.ge.f32.partialorder %v5067, 0.0
  %vm5076 = vcmp.ge.f32.partialorder %v5068, 0.0
  %vm5077 = vcmp.ge.f32.partialorder %v5069, 0.0
  %vm5078 = vcmp.ge.f32.partialorder %v5070, 0.0
  %vm5079 = vcmp.ge.f32.partialorder %v5071, 0.0
  %vm5080 = vcmp.ge.f32.partialorder %v5072, 0.0
  %vm5081 = vcmp.ge.f32.partialorder %v5073, 0.0
  %vm5082 = vcmp.ge.f32.partialorder %v5074, 0.0
  %v5083 = vld [vmem:[%s15] sm:$0xff]
  %v5084 = vld [vmem:[%s15 + $0x8] sm:$0xff]
  %5086 = vset.pattern.permute.xlu0 0
  %5087 = vperm.xlu0 %5086, %v5083
  %v5088 = vpop.permute.xlu0 %5087
  %5091 = vset.pattern.permute.xlu0 0
  %5092 = vperm.xlu0 %5091, %v5084
  %v5093 = vpop.permute.xlu0 %5092
  %v5095 = vmul.f32 %v5088, %v5067
  %v5096 = vmul.f32 %v5088, %v5068
  %v5097 = vmul.f32 %v5088, %v5069
  %v5098 = vmul.f32 %v5088, %v5070
  %v5099 = vmul.f32 %v5093, %v5071
  %v5100 = vmul.f32 %v5093, %v5072
  %v5101 = vmul.f32 %v5093, %v5073
  %v5102 = vmul.f32 %v5093, %v5074
  %v5103 = vsel %vm5075, %v5067, %v5095
  %v5104 = vsel %vm5076, %v5068, %v5096
  %v5105 = vsel %vm5077, %v5069, %v5097
  %v5106 = vsel %vm5078, %v5070, %v5098
  %v5107 = vsel %vm5079, %v5071, %v5099
  %v5108 = vsel %vm5080, %v5072, %v5100
  %v5109 = vsel %vm5081, %v5073, %v5101
  %v5110 = vsel %vm5082, %v5074, %v5102
  %5111 = vst [vmem:[%s16] sm:$0xff] %v5103
  %5112 = vst [vmem:[%s16 + $0x8] sm:$0xff] %v5104
  %5113 = vst [vmem:[%s16 + $0x10] sm:$0xff] %v5105
  %5114 = vst [vmem:[%s16 + $0x18] sm:$0xff] %v5106
  %5115 = vst [vmem:[%s16 + $0x20] sm:$0xff] %v5107
  %5116 = vst [vmem:[%s16 + $0x28] sm:$0xff] %v5108
  %5117 = vst [vmem:[%s16 + $0x30] sm:$0xff] %v5109
  %5118 = vst [vmem:[%s16 + $0x38] sm:$0xff] %v5110
  // Predicated region
  $region66: #{c3modul_forward.1} parent=0 // pred_check
    _
  $region67: #{c3modul_forward.1} parent=0 // pred_check_branch
    %5120 = sbr.rel (0) target = $region69
  $region68: #{c3modul_forward.1} parent=0 // pred_region
    _
  $region69: #{c3modul_forward.1} parent=0 // pred_fallthru
    _
  // Predicated region
  $region70: #{c3modul_forward.1} parent=0 // pred_check
    _
  $region71: #{c3modul_forward.1} parent=0 // pred_check_branch
    %5122 = sbr.rel (0) target = $region73
  $region72: #{c3modul_forward.1} parent=0 // pred_region
    _
  $region73: #{c3modul_forward.1} parent=0 // pred_fallthru
    _

</llo_original>
